<compile_context>
chip_gen: v7x
topology: tpu7x:2x2x1
jax: 0.10.0
libtpu: 0.0.40
codegen_flags: <defaults>
</compile_context>

<pallas_src>
import functools
import math

import jax
import jax.numpy as jnp
from jax import lax
from jax.experimental import pallas as pl
from jax.experimental.pallas import tpu as pltpu


# ------------------------------ tiling helpers ------------------------------ #

_ROW_TILES = (256, 128, 64, 32, 16, 8)     # sublane-axis tile candidates
_LANE_TILES = (512, 256, 128)              # lane-axis tile candidates (mult. of 128)


def _tile(dim, candidates):
    """Largest candidate dividing `dim`, else the full (unblocked) dimension."""
    for c in candidates:
        if dim % c == 0:
            return c
    return dim


_GELU_C = math.sqrt(2.0 / math.pi)


def _gelu_new(y):
    # GPT-2 "gelu_new" (tanh approximation), computed in f32.
    return 0.5 * y * (1.0 + jnp.tanh(_GELU_C * (y + 0.044715 * (y ** 3))))


# ------------------------------ Pallas kernels ------------------------------ #

def _ln_linear_kernel(x_ref, g_ref, b_ref, w_ref, bias_ref, o_ref, *,
                      eps, activation, transpose_rhs):
    """y = act( LayerNorm(x) @ W (+ trans) + bias ). LN stats in f32, matmul in bf16."""
    x = x_ref[...].astype(jnp.float32)                         # (tm, K)
    mean = jnp.mean(x, axis=-1, keepdims=True)
    var = jnp.mean(jnp.square(x - mean), axis=-1, keepdims=True)
    xn = (x - mean) * lax.rsqrt(var + eps)
    xn = xn * g_ref[...] + b_ref[...]
    xn = xn.astype(jnp.bfloat16)
    if transpose_rhs:
        y = lax.dot_general(xn, w_ref[...], (((1,), (1,)), ((), ())),
                            preferred_element_type=jnp.float32)
    else:
        y = jnp.dot(xn, w_ref[...], preferred_element_type=jnp.float32)
    y = y + bias_ref[...]
    if activation == "gelu":
        y = _gelu_new(y)
    elif activation == "tanh":
        y = jnp.tanh(y)
    o_ref[...] = y.astype(o_ref.dtype)


def ln_linear(x, gamma, beta, w, b, *, activation="none", transpose_rhs=False,
              out_dtype=jnp.bfloat16, eps=1e-5):
    """Fused LayerNorm + Linear.  x:(M,K) f32, w:(K,N) or (N,K) bf16, b:(N,)|None."""
    M, K = x.shape
    if transpose_rhs:
        N, K2 = w.shape
    else:
        K2, N = w.shape
    assert K == K2
    tm = _tile(M, _ROW_TILES)
    tn = _tile(N, _LANE_TILES)
    if b is None:
        b = jnp.zeros((N,), jnp.float32)
    b2 = b.reshape(1, N).astype(jnp.float32)
    g2 = gamma.reshape(1, K).astype(jnp.float32)
    be2 = beta.reshape(1, K).astype(jnp.float32)
    if transpose_rhs:
        w_spec = pl.BlockSpec((tn, K), lambda i, j: (j, 0))
    else:
        w_spec = pl.BlockSpec((K, tn), lambda i, j: (0, j))
    return pl.pallas_call(
        functools.partial(_ln_linear_kernel, eps=eps, activation=activation,
                          transpose_rhs=transpose_rhs),
        out_shape=jax.ShapeDtypeStruct((M, N), out_dtype),
        grid_spec=pltpu.PrefetchScalarGridSpec(
            num_scalar_prefetch=0,
            grid=(M // tm, N // tn),
            in_specs=[pl.BlockSpec((tm, K), lambda i, j: (i, 0)),
                      pl.BlockSpec((1, K), lambda i, j: (0, 0)),
                      pl.BlockSpec((1, K), lambda i, j: (0, 0)),
                      w_spec,
                      pl.BlockSpec((1, tn), lambda i, j: (0, j))],
            out_specs=pl.BlockSpec((tm, tn), lambda i, j: (i, j))),
        compiler_params=pltpu.CompilerParams(
            dimension_semantics=("parallel", "parallel")),
    )(x.astype(jnp.float32), g2, be2, w.astype(jnp.bfloat16), b2)


def _linear_residual_kernel(x_ref, w_ref, bias_ref, r_ref, o_ref):
    """o = x @ W + bias + residual  (bf16 matmul, f32 accumulate/add)."""
    y = jnp.dot(x_ref[...], w_ref[...], preferred_element_type=jnp.float32)
    o_ref[...] = y + bias_ref[...] + r_ref[...]


def linear_residual(x, w, b, res):
    """x:(M,K) bf16, w:(K,N) bf16, b:(N,), res:(M,N) f32 -> (M,N) f32."""
    M, K = x.shape
    K2, N = w.shape
    assert K == K2 and res.shape == (M, N)
    tm = _tile(M, _ROW_TILES)
    tn = _tile(N, _LANE_TILES)
    b2 = b.reshape(1, N).astype(jnp.float32)
    return pl.pallas_call(
        _linear_residual_kernel,
        out_shape=jax.ShapeDtypeStruct((M, N), jnp.float32),
        grid_spec=pltpu.PrefetchScalarGridSpec(
            num_scalar_prefetch=0,
            grid=(M // tm, N // tn),
            in_specs=[pl.BlockSpec((tm, K), lambda i, j: (i, 0)),
                      pl.BlockSpec((K, tn), lambda i, j: (0, j)),
                      pl.BlockSpec((1, tn), lambda i, j: (0, j)),
                      pl.BlockSpec((tm, tn), lambda i, j: (i, j))],
            out_specs=pl.BlockSpec((tm, tn), lambda i, j: (i, j))),
        compiler_params=pltpu.CompilerParams(
            dimension_semantics=("parallel", "parallel")),
    )(x.astype(jnp.bfloat16), w.astype(jnp.bfloat16), b2, res.astype(jnp.float32))


def _matmul_kernel(x_ref, w_ref, bias_ref, o_ref, acc_ref, *, activation):
    """3-D grid tiled matmul with f32 VMEM accumulator (K is the last, 'arbitrary' axis)."""
    k = pl.program_id(2)

    @pl.when(k == 0)
    def _():
        acc_ref[...] = jnp.zeros_like(acc_ref)

    acc_ref[...] += jnp.dot(x_ref[...], w_ref[...],
                            preferred_element_type=jnp.float32)

    @pl.when(k == pl.num_programs(2) - 1)
    def _():
        y = acc_ref[...] + bias_ref[...]
        if activation == "tanh":
            y = jnp.tanh(y)
        elif activation == "gelu":
            y = _gelu_new(y)
        o_ref[...] = y.astype(o_ref.dtype)


def tiled_linear(x, w, b=None, *, activation="none", out_dtype=jnp.float32):
    """General tiled matmul: x:(M,K) @ w:(K,N) + b, bf16 operands, f32 accumulate."""
    M, K = x.shape
    K2, N = w.shape
    assert K == K2
    tm = _tile(M, _ROW_TILES)
    tn = _tile(N, _LANE_TILES)
    tk = _tile(K, _LANE_TILES)
    if b is None:
        b = jnp.zeros((N,), jnp.float32)
    b2 = b.reshape(1, N).astype(jnp.float32)
    return pl.pallas_call(
        functools.partial(_matmul_kernel, activation=activation),
        out_shape=jax.ShapeDtypeStruct((M, N), out_dtype),
        grid_spec=pltpu.PrefetchScalarGridSpec(
            num_scalar_prefetch=0,
            grid=(M // tm, N // tn, K // tk),
            in_specs=[pl.BlockSpec((tm, tk), lambda i, j, k: (i, k)),
                      pl.BlockSpec((tk, tn), lambda i, j, k: (k, j)),
                      pl.BlockSpec((1, tn), lambda i, j, k: (0, j))],
            out_specs=pl.BlockSpec((tm, tn), lambda i, j, k: (i, j)),
            scratch_shapes=[pltpu.VMEM((tm, tn), jnp.float32)]),
        compiler_params=pltpu.CompilerParams(
            dimension_semantics=("parallel", "parallel", "arbitrary")),
    )(x.astype(jnp.bfloat16), w.astype(jnp.bfloat16), b2)


def _flash_attn_kernel(q_ref, k_ref, v_ref, o_ref, m_ref, l_ref, acc_ref, *,
                       n_head, scale):
    """Flash-style causal attention over the fused (1, tile, E) QKV slabs.

    grid = (B, q-tiles, kv-tiles); heads are split inside the kernel with static
    lane slices so E stays the lane axis end to end (no HBM transposes).
    """
    qi = pl.program_id(1)
    ki = pl.program_id(2)
    n_kv = pl.num_programs(2)
    tq = q_ref.shape[1]
    tk = k_ref.shape[1]
    E = q_ref.shape[2]
    Dh = E // n_head

    @pl.when(ki == 0)
    def _():
        m_ref[...] = jnp.full_like(m_ref, -jnp.inf)
        l_ref[...] = jnp.zeros_like(l_ref)
        acc_ref[...] = jnp.zeros_like(acc_ref)

    # Skip kv tiles that lie entirely above the causal diagonal.
    @pl.when(ki * tk <= qi * tq + (tq - 1))
    def _():
        # Causal mask computed once per (q,k) tile pair, shared across all heads.
        q_pos = qi * tq + lax.broadcasted_iota(jnp.int32, (tq, tk), 0)
        k_pos = ki * tk + lax.broadcasted_iota(jnp.int32, (tq, tk), 1)
        causal = k_pos <= q_pos
        for h in range(n_head):
            sl = slice(h * Dh, (h + 1) * Dh)
            # Fold 1/sqrt(Dh) into the small q tile rather than the (tq,tk) scores.
            q = (q_ref[0, :, sl].astype(jnp.float32) * scale).astype(jnp.bfloat16)
            k = k_ref[0, :, sl]
            v = v_ref[0, :, sl]
            s = lax.dot_general(q, k, (((1,), (1,)), ((), ())),
                                preferred_element_type=jnp.float32)
            s = jnp.where(causal, s, -1e30)
            m_prev = m_ref[h]                                          # (tq, 1)
            m_new = jnp.maximum(m_prev, jnp.max(s, axis=-1, keepdims=True))
            alpha = jnp.exp(m_prev - m_new)
            p = jnp.exp(s - m_new)
            l_ref[h] = alpha * l_ref[h] + jnp.sum(p, axis=-1, keepdims=True)
            acc_ref[h] = alpha * acc_ref[h] + jnp.dot(
                p.astype(jnp.bfloat16), v, preferred_element_type=jnp.float32)
            m_ref[h] = m_new

    @pl.when(ki == n_kv - 1)
    def _():
        outs = []
        for h in range(n_head):
            inv_l = pl.reciprocal(l_ref[h], approx=True)               # EUP slot
            outs.append(acc_ref[h] * inv_l)
        o_ref[0] = jnp.concatenate(outs, axis=-1).astype(o_ref.dtype)  # lane-dense E


def flash_attention(qkv, *, n_head):
    """qkv: (B, T, 3E) bf16 -> (B, T, E) bf16, causal multi-head attention."""
    B, T, threeE = qkv.shape
    E = threeE // 3
    Dh = E // n_head
    tq = _tile(T, _ROW_TILES)
    tk = tq
    return pl.pallas_call(
        functools.partial(_flash_attn_kernel, n_head=n_head,
                          scale=1.0 / math.sqrt(Dh)),
        out_shape=jax.ShapeDtypeStruct((B, T, E), jnp.bfloat16),
        grid_spec=pltpu.PrefetchScalarGridSpec(
            num_scalar_prefetch=0,
            grid=(B, T // tq, T // tk),
            in_specs=[pl.BlockSpec((1, tq, E), lambda b, qi, ki: (b, qi, 0)),
                      pl.BlockSpec((1, tk, E), lambda b, qi, ki: (b, ki, 1)),
                      pl.BlockSpec((1, tk, E), lambda b, qi, ki: (b, ki, 2))],
            out_specs=pl.BlockSpec((1, tq, E), lambda b, qi, ki: (b, qi, 0)),
            scratch_shapes=[pltpu.VMEM((n_head, tq, 1), jnp.float32),   # m
                            pltpu.VMEM((n_head, tq, 1), jnp.float32),   # l
                            pltpu.VMEM((n_head, tq, Dh), jnp.float32)]  # acc
        ),
        compiler_params=pltpu.CompilerParams(
            dimension_semantics=("parallel", "parallel", "arbitrary")),
    )(qkv, qkv, qkv)   # same array, three views (q | k | v columns)


# -------------------------- parameter initialization ------------------------ #

def init_params(key, *, vocab, max_pos, n_layer, n_head, n_embd,
                prefix_size, prefix_length):
    ks = iter(jax.random.split(key, 128))
    nrm = lambda shape, std=0.02: jax.random.normal(next(ks), shape,
                                                    dtype=jnp.float32) * std
    bf = lambda a: a.astype(jnp.bfloat16)
    p = {}
    # GPT-2 embeddings (wte tied with lm_head; bf16 copy pre-cast once for the head)
    p["wte"] = nrm((vocab, n_embd))
    p["wte_bf16"] = bf(p["wte"])
    p["wpe"] = nrm((max_pos, n_embd))
    p["layers"] = []
    for _ in range(n_layer):
        layer = {
            "ln1_g": jnp.ones((n_embd,), jnp.float32),
            "ln1_b": jnp.zeros((n_embd,), jnp.float32),
            "attn_w": bf(nrm((n_embd, 3 * n_embd))),
            "attn_b": jnp.zeros((3 * n_embd,), jnp.float32),
            "proj_w": bf(nrm((n_embd, n_embd))),
            "proj_b": jnp.zeros((n_embd,), jnp.float32),
            "ln2_g": jnp.ones((n_embd,), jnp.float32),
            "ln2_b": jnp.zeros((n_embd,), jnp.float32),
            "fc_w": bf(nrm((n_embd, 4 * n_embd))),
            "fc_b": jnp.zeros((4 * n_embd,), jnp.float32),
            "mlp_proj_w": bf(nrm((4 * n_embd, n_embd))),
            "mlp_proj_b": jnp.zeros((n_embd,), jnp.float32),
        }
        p["layers"].append(layer)
    p["lnf_g"] = jnp.ones((n_embd,), jnp.float32)
    p["lnf_b"] = jnp.zeros((n_embd,), jnp.float32)

    # clip_project: prefix_length <= 10 -> MLP((prefix_size, E*L//2, E*L)) with Tanh
    hid = n_embd * prefix_length // 2
    out = n_embd * prefix_length
    p["clip_w1"] = bf(nrm((prefix_size, hid)))
    p["clip_b1"] = jnp.zeros((hid,), jnp.float32)
    p["clip_w2"] = bf(nrm((hid, out)))
    p["clip_b2"] = jnp.zeros((out,), jnp.float32)
    return p


# -------------------------------- forward pass ------------------------------ #

def clip_caption_forward(tokens, prefix, params, *, prefix_length, n_head, n_embd):
    B, S = tokens.shape
    E = n_embd

    # 1) text embedding lookup (gather — XLA glue)
    embedding_text = jnp.take(params["wte"], tokens, axis=0)          # (B, S, E) f32

    # 2) clip_project MLP: Linear -> Tanh -> Linear   (tiled Pallas matmuls)
    h = tiled_linear(prefix, params["clip_w1"], params["clip_b1"],
                     activation="tanh", out_dtype=jnp.bfloat16)
    h = tiled_linear(h, params["clip_w2"], params["clip_b2"],
                     out_dtype=jnp.float32)
    prefix_projections = h.reshape(B, prefix_length, E)

    # 3) concatenate prefix projections with text embeddings along seq dim
    x = jnp.concatenate([prefix_projections, embedding_text], axis=1)  # (B, T, E)
    T = prefix_length + S

    # 4) GPT-2 forward with inputs_embeds (residual stream kept in f32)
    hcur = (x + params["wpe"][:T][None, :, :]).reshape(B * T, E)       # (B*T, E) f32

    for layer in params["layers"]:
        # --- attention block: LN1 fused into the QKV matmul ---
        qkv = ln_linear(hcur, layer["ln1_g"], layer["ln1_b"],
                        layer["attn_w"], layer["attn_b"],
                        out_dtype=jnp.bfloat16)                        # (B*T, 3E)
        attn = flash_attention(qkv.reshape(B, T, 3 * E), n_head=n_head)  # (B, T, E)
        # residual add fused into the output projection
        hcur = linear_residual(attn.reshape(B * T, E),
                               layer["proj_w"], layer["proj_b"], hcur)

        # --- MLP block: LN2 fused into the FC matmul, GELU fused, residual fused ---
        m = ln_linear(hcur, layer["ln2_g"], layer["ln2_b"],
                      layer["fc_w"], layer["fc_b"],
                      activation="gelu", out_dtype=jnp.bfloat16)       # (B*T, 4E)
        hcur = linear_residual(m, layer["mlp_proj_w"], layer["mlp_proj_b"], hcur)

    # final LayerNorm fused into the tied LM head; trans_b contraction avoids
    # materializing wte.T (largest weight in the model)
    logits = ln_linear(hcur, params["lnf_g"], params["lnf_b"],
                       params["wte_bf16"], None,
                       transpose_rhs=True, out_dtype=jnp.float32)      # (B*T, vocab)
    vocab = params["wte"].shape[0]
    return logits.reshape(B, T, vocab)


# ------------------------------------ main ----------------------------------- #

if __name__ == "__main__":
    # small synthetic configuration consistent with the module's forward;
    # shapes chosen so every Pallas block is (8,128)-aligned or full-extent.
    B = 2                 # batch
    S = 8                 # caption token length
    prefix_length = 8     # <= 10  -> MLP clip_project branch
    prefix_size = 128     # CLIP feature size (stand-in for 512)
    n_embd = 128          # gpt_embedding_size (stand-in for 768)
    n_head = 4            # head_dim = 32 (stand-in for 64)
    n_layer = 2
    vocab = 256
    max_pos = 64

    key = jax.random.PRNGKey(0)
    kp, kt, kx = jax.random.split(key, 3)

    params = init_params(kp, vocab=vocab, max_pos=max_pos, n_layer=n_layer,
                         n_head=n_head, n_embd=n_embd,
                         prefix_size=prefix_size, prefix_length=prefix_length)

    tokens = jax.random.randint(kt, (B, S), 0, vocab, dtype=jnp.int32)
    prefix = jax.random.normal(kx, (B, prefix_size), dtype=jnp.float32)

    fwd = jax.jit(functools.partial(clip_caption_forward,
                                    prefix_length=prefix_length,
                                    n_head=n_head, n_embd=n_embd))
    logits = fwd(tokens, prefix, params)
    jax.block_until_ready(logits)

    assert logits.shape == (B, prefix_length + S, vocab)
    assert bool(jnp.all(jnp.isfinite(logits)))
    print("KERNEL_OK")
</pallas_src>

<mosaic_0001>
module attributes {stable_mosaic.version = 11 : i64} {
  func.func @_matmul_kernel(%arg0: i32, %arg1: i32, %arg2: i32, %arg3: memref<2x512xbf16, #tpu.memory_space<vmem>>, %arg4: memref<512x512xbf16, #tpu.memory_space<vmem>>, %arg5: memref<1x512xf32, #tpu.memory_space<vmem>>, %arg6: memref<2x512xf32, #tpu.memory_space<vmem>>, %arg7: memref<2x512xf32, #tpu.memory_space<vmem>>) attributes {dimension_semantics = [#tpu.dimension_semantics<parallel>, #tpu.dimension_semantics<parallel>, #tpu.dimension_semantics<arbitrary>], iteration_bounds = array<i64: 1, 2, 1>, scalar_prefetch = 0 : i64, scratch_operands = 1 : i64, tpu.core_type = #tpu.core_type<tc>, window_params = [{transform_indices = @transform_0, window_bounds = array<i64: 2, 512>}, {transform_indices = @transform_1, window_bounds = array<i64: 512, 512>}, {transform_indices = @transform_2, window_bounds = array<i64: 1, 512>}, {transform_indices = @transform_3, window_bounds = array<i64: 2, 512>}]} {
    %c0_i32 = arith.constant 0 : i32
    %0 = arith.cmpi eq, %arg2, %c0_i32 : i32
    %1 = arith.extui %0 : i1 to i32
    %c0_i32_0 = arith.constant 0 : i32
    %2 = arith.cmpi ne, %1, %c0_i32_0 : i32
    scf.if %2 {
      %cst_10 = arith.constant 0.000000e+00 : f32
      %12 = vector.broadcast %cst_10 : f32 to vector<2x512xf32>
      %c0_11 = arith.constant 0 : index
      %c0_12 = arith.constant 0 : index
      %13 = vector.load %arg7[%c0_11, %c0_12] : memref<2x512xf32, #tpu.memory_space<vmem>>, vector<2x512xf32>
      tpu.vector_store %arg7[%c0_11, %c0_12], %12 {strides = array<i32>} : memref<2x512xf32, #tpu.memory_space<vmem>>, vector<2x512xf32>,
    } else {
    }
    %c0 = arith.constant 0 : index
    %c0_1 = arith.constant 0 : index
    %3 = vector.load %arg7[%c0, %c0_1] : memref<2x512xf32, #tpu.memory_space<vmem>>, vector<2x512xf32>
    %c0_2 = arith.constant 0 : index
    %c0_3 = arith.constant 0 : index
    %4 = vector.load %arg3[%c0_2, %c0_3] : memref<2x512xbf16, #tpu.memory_space<vmem>>, vector<2x512xbf16>
    %c0_4 = arith.constant 0 : index
    %c0_5 = arith.constant 0 : index
    %5 = vector.load %arg4[%c0_4, %c0_5] : memref<512x512xbf16, #tpu.memory_space<vmem>>, vector<512x512xbf16>
    %cst = arith.constant dense<0.000000e+00> : vector<2x512xf32>
    %6 = tpu.matmul %4, %5, %cst {dimension_numbers = #tpu.dot_dimension_numbers<[1], [0], [0], [1], [0, 0, 1, 1], [], []>} : vector<2x512xbf16>, vector<512x512xbf16>, vector<2x512xf32> -> vector<2x512xf32>
    %7 = arith.addf %3, %6 : vector<2x512xf32>
    %c0_6 = arith.constant 0 : index
    %c0_7 = arith.constant 0 : index
    %8 = vector.load %arg7[%c0_6, %c0_7] : memref<2x512xf32, #tpu.memory_space<vmem>>, vector<2x512xf32>
    tpu.vector_store %arg7[%c0_6, %c0_7], %7 {strides = array<i32>} : memref<2x512xf32, #tpu.memory_space<vmem>>, vector<2x512xf32>,
    %c0_i32_8 = arith.constant 0 : i32
    %9 = arith.cmpi eq, %arg2, %c0_i32_8 : i32
    %10 = arith.extui %9 : i1 to i32
    %c0_i32_9 = arith.constant 0 : i32
    %11 = arith.cmpi ne, %10, %c0_i32_9 : i32
    scf.if %11 {
      %c0_10 = arith.constant 0 : index
      %c0_11 = arith.constant 0 : index
      %12 = vector.load %arg7[%c0_10, %c0_11] : memref<2x512xf32, #tpu.memory_space<vmem>>, vector<2x512xf32>
      %c0_12 = arith.constant 0 : index
      %c0_13 = arith.constant 0 : index
      %13 = vector.load %arg5[%c0_12, %c0_13] : memref<1x512xf32, #tpu.memory_space<vmem>>, vector<1x512xf32>
      %14 = vector.broadcast %13 : vector<1x512xf32> to vector<2x512xf32>
      %15 = arith.addf %12, %14 : vector<2x512xf32>
      %c0_14 = arith.constant 0 : index
      %c0_15 = arith.constant 0 : index
      %16 = vector.load %arg6[%c0_14, %c0_15] : memref<2x512xf32, #tpu.memory_space<vmem>>, vector<2x512xf32>
      tpu.vector_store %arg6[%c0_14, %c0_15], %15 {strides = array<i32>} : memref<2x512xf32, #tpu.memory_space<vmem>>, vector<2x512xf32>,
    } else {
    }
    return
  }
  func.func @transform_0(%arg0: i32, %arg1: i32, %arg2: i32) -> (i32, i32) {
    %c0_i32 = arith.constant 0 : i32
    return %arg0, %arg2 : i32, i32
  }
  func.func @transform_1(%arg0: i32, %arg1: i32, %arg2: i32) -> (i32, i32) {
    %c0_i32 = arith.constant 0 : i32
    return %arg2, %arg1 : i32, i32
  }
  func.func @transform_2(%arg0: i32, %arg1: i32, %arg2: i32) -> (i32, i32) {
    %c0_i32 = arith.constant 0 : i32
    %c0_i32_0 = arith.constant 0 : i32
    return %c0_i32, %arg1 : i32, i32
  }
  func.func @transform_3(%arg0: i32, %arg1: i32, %arg2: i32) -> (i32, i32) {
    %c0_i32 = arith.constant 0 : i32
    return %arg0, %arg1 : i32, i32
  }
}

module attributes {stable_mosaic.version = 11 : i64} {
  func.func @_matmul_kernel(%arg0: i32, %arg1: i32, %arg2: i32, %arg3: memref<2x128xbf16, #tpu.memory_space<vmem>>, %arg4: memref<128x512xbf16, #tpu.memory_space<vmem>>, %arg5: memref<1x512xf32, #tpu.memory_space<vmem>>, %arg6: memref<2x512xbf16, #tpu.memory_space<vmem>>, %arg7: memref<2x512xf32, #tpu.memory_space<vmem>>) attributes {dimension_semantics = [#tpu.dimension_semantics<parallel>, #tpu.dimension_semantics<parallel>, #tpu.dimension_semantics<arbitrary>], iteration_bounds = array<i64: 1, 1, 1>, scalar_prefetch = 0 : i64, scratch_operands = 1 : i64, tpu.core_type = #tpu.core_type<tc>, window_params = [{transform_indices = @transform_0, window_bounds = array<i64: 2, 128>}, {transform_indices = @transform_1, window_bounds = array<i64: 128, 512>}, {transform_indices = @transform_2, window_bounds = array<i64: 1, 512>}, {transform_indices = @transform_3, window_bounds = array<i64: 2, 512>}]} {
    %c0_i32 = arith.constant 0 : i32
    %0 = arith.cmpi eq, %arg2, %c0_i32 : i32
    %1 = arith.extui %0 : i1 to i32
    %c0_i32_0 = arith.constant 0 : i32
    %2 = arith.cmpi ne, %1, %c0_i32_0 : i32
    scf.if %2 {
      %cst_10 = arith.constant 0.000000e+00 : f32
      %12 = vector.broadcast %cst_10 : f32 to vector<2x512xf32>
      %c0_11 = arith.constant 0 : index
      %c0_12 = arith.constant 0 : index
      %13 = vector.load %arg7[%c0_11, %c0_12] : memref<2x512xf32, #tpu.memory_space<vmem>>, vector<2x512xf32>
      tpu.vector_store %arg7[%c0_11, %c0_12], %12 {strides = array<i32>} : memref<2x512xf32, #tpu.memory_space<vmem>>, vector<2x512xf32>,
    } else {
    }
    %c0 = arith.constant 0 : index
    %c0_1 = arith.constant 0 : index
    %3 = vector.load %arg7[%c0, %c0_1] : memref<2x512xf32, #tpu.memory_space<vmem>>, vector<2x512xf32>
    %c0_2 = arith.constant 0 : index
    %c0_3 = arith.constant 0 : index
    %4 = vector.load %arg3[%c0_2, %c0_3] : memref<2x128xbf16, #tpu.memory_space<vmem>>, vector<2x128xbf16>
    %c0_4 = arith.constant 0 : index
    %c0_5 = arith.constant 0 : index
    %5 = vector.load %arg4[%c0_4, %c0_5] : memref<128x512xbf16, #tpu.memory_space<vmem>>, vector<128x512xbf16>
    %cst = arith.constant dense<0.000000e+00> : vector<2x512xf32>
    %6 = tpu.matmul %4, %5, %cst {dimension_numbers = #tpu.dot_dimension_numbers<[1], [0], [0], [1], [0, 0, 1, 1], [], []>} : vector<2x128xbf16>, vector<128x512xbf16>, vector<2x512xf32> -> vector<2x512xf32>
    %7 = arith.addf %3, %6 : vector<2x512xf32>
    %c0_6 = arith.constant 0 : index
    %c0_7 = arith.constant 0 : index
    %8 = vector.load %arg7[%c0_6, %c0_7] : memref<2x512xf32, #tpu.memory_space<vmem>>, vector<2x512xf32>
    tpu.vector_store %arg7[%c0_6, %c0_7], %7 {strides = array<i32>} : memref<2x512xf32, #tpu.memory_space<vmem>>, vector<2x512xf32>,
    %c0_i32_8 = arith.constant 0 : i32
    %9 = arith.cmpi eq, %arg2, %c0_i32_8 : i32
    %10 = arith.extui %9 : i1 to i32
    %c0_i32_9 = arith.constant 0 : i32
    %11 = arith.cmpi ne, %10, %c0_i32_9 : i32
    scf.if %11 {
      %c0_10 = arith.constant 0 : index
      %c0_11 = arith.constant 0 : index
      %12 = vector.load %arg7[%c0_10, %c0_11] : memref<2x512xf32, #tpu.memory_space<vmem>>, vector<2x512xf32>
      %c0_12 = arith.constant 0 : index
      %c0_13 = arith.constant 0 : index
      %13 = vector.load %arg5[%c0_12, %c0_13] : memref<1x512xf32, #tpu.memory_space<vmem>>, vector<1x512xf32>
      %14 = vector.broadcast %13 : vector<1x512xf32> to vector<2x512xf32>
      %15 = arith.addf %12, %14 : vector<2x512xf32>
      %16 = math.tanh %15 : vector<2x512xf32>
      %17 = arith.truncf %16 : vector<2x512xf32> to vector<2x512xbf16>
      %c0_14 = arith.constant 0 : index
      %c0_15 = arith.constant 0 : index
      %18 = vector.load %arg6[%c0_14, %c0_15] : memref<2x512xbf16, #tpu.memory_space<vmem>>, vector<2x512xbf16>
      tpu.vector_store %arg6[%c0_14, %c0_15], %17 {strides = array<i32>} : memref<2x512xbf16, #tpu.memory_space<vmem>>, vector<2x512xbf16>,
    } else {
    }
    return
  }
  func.func @transform_0(%arg0: i32, %arg1: i32, %arg2: i32) -> (i32, i32) {
    %c0_i32 = arith.constant 0 : i32
    return %arg0, %arg2 : i32, i32
  }
  func.func @transform_1(%arg0: i32, %arg1: i32, %arg2: i32) -> (i32, i32) {
    %c0_i32 = arith.constant 0 : i32
    return %arg2, %arg1 : i32, i32
  }
  func.func @transform_2(%arg0: i32, %arg1: i32, %arg2: i32) -> (i32, i32) {
    %c0_i32 = arith.constant 0 : i32
    %c0_i32_0 = arith.constant 0 : i32
    return %c0_i32, %arg1 : i32, i32
  }
  func.func @transform_3(%arg0: i32, %arg1: i32, %arg2: i32) -> (i32, i32) {
    %c0_i32 = arith.constant 0 : i32
    return %arg0, %arg1 : i32, i32
  }
}

module attributes {stable_mosaic.version = 11 : i64} {
  func.func @_ln_linear_kernel(%arg0: i32, %arg1: i32, %arg2: memref<32x128xf32, #tpu.memory_space<vmem>>, %arg3: memref<1x128xf32, #tpu.memory_space<vmem>>, %arg4: memref<1x128xf32, #tpu.memory_space<vmem>>, %arg5: memref<128x128xbf16, #tpu.memory_space<vmem>>, %arg6: memref<1x128xf32, #tpu.memory_space<vmem>>, %arg7: memref<32x128xbf16, #tpu.memory_space<vmem>>) attributes {dimension_semantics = [#tpu.dimension_semantics<parallel>, #tpu.dimension_semantics<parallel>], iteration_bounds = array<i64: 1, 3>, scalar_prefetch = 0 : i64, scratch_operands = 0 : i64, tpu.core_type = #tpu.core_type<tc>, window_params = [{transform_indices = @transform_0, window_bounds = array<i64: 32, 128>}, {pipeline_mode = #tpu.pipeline_mode<synchronous>, transform_indices = @transform_1, window_bounds = array<i64: 1, 128>}, {pipeline_mode = #tpu.pipeline_mode<synchronous>, transform_indices = @transform_2, window_bounds = array<i64: 1, 128>}, {transform_indices = @transform_3, window_bounds = array<i64: 128, 128>}, {transform_indices = @transform_4, window_bounds = array<i64: 1, 128>}, {transform_indices = @transform_5, window_bounds = array<i64: 32, 128>}]} {
    %c0 = arith.constant 0 : index
    %c0_0 = arith.constant 0 : index
    %0 = vector.load %arg2[%c0, %c0_0] : memref<32x128xf32, #tpu.memory_space<vmem>>, vector<32x128xf32>
    %cst = arith.constant dense<0.000000e+00> : vector<32xf32>
    %1 = vector.multi_reduction <add>, %0, %cst [1] : vector<32x128xf32> to vector<32xf32>
    %2 = vector.shape_cast %1 : vector<32xf32> to vector<32x1xf32>
    %cst_1 = arith.constant 1.280000e+02 : f32
    %3 = vector.broadcast %cst_1 : f32 to vector<32x1xf32>
    %4 = arith.divf %2, %3 : vector<32x1xf32>
    %5 = vector.broadcast %4 : vector<32x1xf32> to vector<32x128xf32>
    %6 = arith.subf %0, %5 : vector<32x128xf32>
    %7 = arith.mulf %6, %6 : vector<32x128xf32>
    %cst_2 = arith.constant dense<0.000000e+00> : vector<32xf32>
    %8 = vector.multi_reduction <add>, %7, %cst_2 [1] : vector<32x128xf32> to vector<32xf32>
    %9 = vector.shape_cast %8 : vector<32xf32> to vector<32x1xf32>
    %cst_3 = arith.constant 1.280000e+02 : f32
    %10 = vector.broadcast %cst_3 : f32 to vector<32x1xf32>
    %11 = arith.divf %9, %10 : vector<32x1xf32>
    %12 = vector.broadcast %4 : vector<32x1xf32> to vector<32x128xf32>
    %13 = arith.subf %0, %12 : vector<32x128xf32>
    %cst_4 = arith.constant 9.99999974E-6 : f32
    %14 = vector.broadcast %cst_4 : f32 to vector<32x1xf32>
    %15 = arith.addf %11, %14 : vector<32x1xf32>
    %16 = math.rsqrt %15 : vector<32x1xf32>
    %17 = vector.broadcast %16 : vector<32x1xf32> to vector<32x128xf32>
    %18 = arith.mulf %13, %17 : vector<32x128xf32>
    %c0_5 = arith.constant 0 : index
    %c0_6 = arith.constant 0 : index
    %19 = vector.load %arg3[%c0_5, %c0_6] : memref<1x128xf32, #tpu.memory_space<vmem>>, vector<1x128xf32>
    %20 = vector.broadcast %19 : vector<1x128xf32> to vector<32x128xf32>
    %21 = arith.mulf %18, %20 : vector<32x128xf32>
    %c0_7 = arith.constant 0 : index
    %c0_8 = arith.constant 0 : index
    %22 = vector.load %arg4[%c0_7, %c0_8] : memref<1x128xf32, #tpu.memory_space<vmem>>, vector<1x128xf32>
    %23 = vector.broadcast %22 : vector<1x128xf32> to vector<32x128xf32>
    %24 = arith.addf %21, %23 : vector<32x128xf32>
    %25 = arith.truncf %24 : vector<32x128xf32> to vector<32x128xbf16>
    %c0_9 = arith.constant 0 : index
    %c0_10 = arith.constant 0 : index
    %26 = vector.load %arg5[%c0_9, %c0_10] : memref<128x128xbf16, #tpu.memory_space<vmem>>, vector<128x128xbf16>
    %cst_11 = arith.constant dense<0.000000e+00> : vector<32x128xf32>
    %27 = tpu.matmul %25, %26, %cst_11 {dimension_numbers = #tpu.dot_dimension_numbers<[1], [0], [0], [1], [0, 0, 1, 1], [], []>} : vector<32x128xbf16>, vector<128x128xbf16>, vector<32x128xf32> -> vector<32x128xf32>
    %c0_12 = arith.constant 0 : index
    %c0_13 = arith.constant 0 : index
    %28 = vector.load %arg6[%c0_12, %c0_13] : memref<1x128xf32, #tpu.memory_space<vmem>>, vector<1x128xf32>
    %29 = vector.broadcast %28 : vector<1x128xf32> to vector<32x128xf32>
    %30 = arith.addf %27, %29 : vector<32x128xf32>
    %31 = arith.truncf %30 : vector<32x128xf32> to vector<32x128xbf16>
    %c0_14 = arith.constant 0 : index
    %c0_15 = arith.constant 0 : index
    %32 = vector.load %arg7[%c0_14, %c0_15] : memref<32x128xbf16, #tpu.memory_space<vmem>>, vector<32x128xbf16>
    tpu.vector_store %arg7[%c0_14, %c0_15], %31 {strides = array<i32>} : memref<32x128xbf16, #tpu.memory_space<vmem>>, vector<32x128xbf16>,
    return
  }
  func.func @transform_0(%arg0: i32, %arg1: i32) -> (i32, i32) {
    %c0_i32 = arith.constant 0 : i32
    %c0_i32_0 = arith.constant 0 : i32
    return %arg0, %c0_i32 : i32, i32
  }
  func.func @transform_1(%arg0: i32, %arg1: i32) -> (i32, i32) {
    %c0_i32 = arith.constant 0 : i32
    %c0_i32_0 = arith.constant 0 : i32
    %c0_i32_1 = arith.constant 0 : i32
    return %c0_i32, %c0_i32_0 : i32, i32
  }
  func.func @transform_2(%arg0: i32, %arg1: i32) -> (i32, i32) {
    %c0_i32 = arith.constant 0 : i32
    %c0_i32_0 = arith.constant 0 : i32
    %c0_i32_1 = arith.constant 0 : i32
    return %c0_i32, %c0_i32_0 : i32, i32
  }
  func.func @transform_3(%arg0: i32, %arg1: i32) -> (i32, i32) {
    %c0_i32 = arith.constant 0 : i32
    %c0_i32_0 = arith.constant 0 : i32
    return %c0_i32, %arg1 : i32, i32
  }
  func.func @transform_4(%arg0: i32, %arg1: i32) -> (i32, i32) {
    %c0_i32 = arith.constant 0 : i32
    %c0_i32_0 = arith.constant 0 : i32
    return %c0_i32, %arg1 : i32, i32
  }
  func.func @transform_5(%arg0: i32, %arg1: i32) -> (i32, i32) {
    %c0_i32 = arith.constant 0 : i32
    return %arg0, %arg1 : i32, i32
  }
}

module attributes {stable_mosaic.version = 11 : i64} {
  func.func @_flash_attn_kernel(%arg0: i32, %arg1: i32, %arg2: i32, %arg3: memref<1x16x128xbf16, #tpu.memory_space<vmem>>, %arg4: memref<1x16x128xbf16, #tpu.memory_space<vmem>>, %arg5: memref<1x16x128xbf16, #tpu.memory_space<vmem>>, %arg6: memref<1x16x128xbf16, #tpu.memory_space<vmem>>, %arg7: memref<4x16x1xf32, #tpu.memory_space<vmem>>, %arg8: memref<4x16x1xf32, #tpu.memory_space<vmem>>, %arg9: memref<4x16x32xf32, #tpu.memory_space<vmem>>) attributes {dimension_semantics = [#tpu.dimension_semantics<parallel>, #tpu.dimension_semantics<parallel>, #tpu.dimension_semantics<arbitrary>], iteration_bounds = array<i64: 2, 1, 1>, scalar_prefetch = 0 : i64, scratch_operands = 3 : i64, tpu.core_type = #tpu.core_type<tc>, window_params = [{transform_indices = @transform_0, window_bounds = array<i64: 1, 16, 128>}, {transform_indices = @transform_1, window_bounds = array<i64: 1, 16, 128>}, {transform_indices = @transform_2, window_bounds = array<i64: 1, 16, 128>}, {transform_indices = @transform_3, window_bounds = array<i64: 1, 16, 128>}]} {
    %c0_i32 = arith.constant 0 : i32
    %0 = arith.cmpi eq, %arg2, %c0_i32 : i32
    %1 = arith.extui %0 : i1 to i32
    %c0_i32_0 = arith.constant 0 : i32
    %2 = arith.cmpi ne, %1, %c0_i32_0 : i32
    scf.if %2 {
      %cst = arith.constant 0xFF800000 : f32
      %12 = vector.broadcast %cst : f32 to vector<4x16x1xf32>
      %c0 = arith.constant 0 : index
      %c0_5 = arith.constant 0 : index
      %c0_6 = arith.constant 0 : index
      %13 = vector.load %arg7[%c0, %c0_5, %c0_6] : memref<4x16x1xf32, #tpu.memory_space<vmem>>, vector<4x16x1xf32>
      tpu.vector_store %arg7[%c0, %c0_5, %c0_6], %12 {strides = array<i32>} : memref<4x16x1xf32, #tpu.memory_space<vmem>>, vector<4x16x1xf32>,
      %cst_7 = arith.constant 0.000000e+00 : f32
      %14 = vector.broadcast %cst_7 : f32 to vector<4x16x1xf32>
      %c0_8 = arith.constant 0 : index
      %c0_9 = arith.constant 0 : index
      %c0_10 = arith.constant 0 : index
      %15 = vector.load %arg8[%c0_8, %c0_9, %c0_10] : memref<4x16x1xf32, #tpu.memory_space<vmem>>, vector<4x16x1xf32>
      tpu.vector_store %arg8[%c0_8, %c0_9, %c0_10], %14 {strides = array<i32>} : memref<4x16x1xf32, #tpu.memory_space<vmem>>, vector<4x16x1xf32>,
      %cst_11 = arith.constant 0.000000e+00 : f32
      %16 = vector.broadcast %cst_11 : f32 to vector<4x16x32xf32>
      %c0_12 = arith.constant 0 : index
      %c0_13 = arith.constant 0 : index
      %c0_14 = arith.constant 0 : index
      %17 = vector.load %arg9[%c0_12, %c0_13, %c0_14] : memref<4x16x32xf32, #tpu.memory_space<vmem>>, vector<4x16x32xf32>
      tpu.vector_store %arg9[%c0_12, %c0_13, %c0_14], %16 {strides = array<i32>} : memref<4x16x32xf32, #tpu.memory_space<vmem>>, vector<4x16x32xf32>,
    } else {
    }
    %c16_i32 = arith.constant 16 : i32
    %3 = arith.muli %arg2, %c16_i32 : i32
    %c16_i32_1 = arith.constant 16 : i32
    %4 = arith.muli %arg1, %c16_i32_1 : i32
    %c15_i32 = arith.constant 15 : i32
    %5 = arith.addi %4, %c15_i32 : i32
    %6 = arith.cmpi sle, %3, %5 : i32
    %7 = arith.extui %6 : i1 to i32
    %c0_i32_2 = arith.constant 0 : i32
    %8 = arith.cmpi ne, %7, %c0_i32_2 : i32
    scf.if %8 {
      %c16_i32_5 = arith.constant 16 : i32
      %12 = arith.muli %arg1, %c16_i32_5 : i32
      %13 = tpu.iota {dimensions = array<i32: 0>} : vector<16x16xi32>
      %14 = vector.broadcast %12 : i32 to vector<16x16xi32>
      %15 = arith.addi %14, %13 : vector<16x16xi32>
      %c16_i32_6 = arith.constant 16 : i32
      %16 = arith.muli %arg2, %c16_i32_6 : i32
      %17 = tpu.iota {dimensions = array<i32: 1>} : vector<16x16xi32>
      %18 = vector.broadcast %16 : i32 to vector<16x16xi32>
      %19 = arith.addi %18, %17 : vector<16x16xi32>
      %20 = arith.cmpi sle, %19, %15 : vector<16x16xi32>
      %c0 = arith.constant 0 : index
      %c0_7 = arith.constant 0 : index
      %c0_8 = arith.constant 0 : index
      %21 = vector.load %arg3[%c0, %c0_7, %c0_8] : memref<1x16x128xbf16, #tpu.memory_space<vmem>>, vector<1x16x32xbf16>
      %22 = vector.shape_cast %21 : vector<1x16x32xbf16> to vector<16x32xbf16>
      %23 = arith.extf %22 : vector<16x32xbf16> to vector<16x32xf32>
      %cst = arith.constant 0.176776692 : f32
      %24 = vector.broadcast %cst : f32 to vector<16x32xf32>
      %25 = arith.mulf %23, %24 : vector<16x32xf32>
      %26 = arith.truncf %25 : vector<16x32xf32> to vector<16x32xbf16>
      %c0_9 = arith.constant 0 : index
      %c0_10 = arith.constant 0 : index
      %c0_11 = arith.constant 0 : index
      %27 = vector.load %arg4[%c0_9, %c0_10, %c0_11] : memref<1x16x128xbf16, #tpu.memory_space<vmem>>, vector<1x16x32xbf16>
      %28 = vector.shape_cast %27 : vector<1x16x32xbf16> to vector<16x32xbf16>
      %c0_12 = arith.constant 0 : index
      %c0_13 = arith.constant 0 : index
      %c0_14 = arith.constant 0 : index
      %29 = vector.load %arg5[%c0_12, %c0_13, %c0_14] : memref<1x16x128xbf16, #tpu.memory_space<vmem>>, vector<1x16x32xbf16>
      %30 = vector.shape_cast %29 : vector<1x16x32xbf16> to vector<16x32xbf16>
      %cst_15 = arith.constant dense<0.000000e+00> : vector<16x16xf32>
      %31 = tpu.matmul %26, %28, %cst_15 {dimension_numbers = #tpu.dot_dimension_numbers<[1], [1], [0], [0], [0, 0, 1, 0], [], []>} : vector<16x32xbf16>, vector<16x32xbf16>, vector<16x16xf32> -> vector<16x16xf32>
      %cst_16 = arith.constant -1.000000e+30 : f32
      %32 = vector.broadcast %cst_16 : f32 to vector<16x16xf32>
      %33 = arith.select %20, %31, %32 : vector<16x16xi1>, vector<16x16xf32>
      %c0_17 = arith.constant 0 : index
      %c0_18 = arith.constant 0 : index
      %c0_19 = arith.constant 0 : index
      %34 = vector.load %arg7[%c0_17, %c0_18, %c0_19] : memref<4x16x1xf32, #tpu.memory_space<vmem>>, vector<1x16x1xf32>
      %35 = vector.shape_cast %34 : vector<1x16x1xf32> to vector<16x1xf32>
      %cst_20 = arith.constant dense<0xFF800000> : vector<16xf32>
      %36 = vector.multi_reduction <maximumf>, %33, %cst_20 [1] : vector<16x16xf32> to vector<16xf32>
      %37 = vector.shape_cast %36 : vector<16xf32> to vector<16x1xf32>
      %38 = arith.maximumf %35, %37 : vector<16x1xf32>
      %39 = arith.subf %35, %38 : vector<16x1xf32>
      %40 = math.exp %39 : vector<16x1xf32>
      %41 = vector.broadcast %38 : vector<16x1xf32> to vector<16x16xf32>
      %42 = arith.subf %33, %41 : vector<16x16xf32>
      %43 = math.exp %42 : vector<16x16xf32>
      %c0_21 = arith.constant 0 : index
      %c0_22 = arith.constant 0 : index
      %c0_23 = arith.constant 0 : index
      %44 = vector.load %arg8[%c0_21, %c0_22, %c0_23] : memref<4x16x1xf32, #tpu.memory_space<vmem>>, vector<1x16x1xf32>
      %45 = vector.shape_cast %44 : vector<1x16x1xf32> to vector<16x1xf32>
      %46 = arith.mulf %40, %45 : vector<16x1xf32>
      %cst_24 = arith.constant dense<0.000000e+00> : vector<16xf32>
      %47 = vector.multi_reduction <add>, %43, %cst_24 [1] : vector<16x16xf32> to vector<16xf32>
      %48 = vector.shape_cast %47 : vector<16xf32> to vector<16x1xf32>
      %49 = arith.addf %46, %48 : vector<16x1xf32>
      %c0_25 = arith.constant 0 : index
      %c0_26 = arith.constant 0 : index
      %c0_27 = arith.constant 0 : index
      %50 = vector.load %arg8[%c0_25, %c0_26, %c0_27] : memref<4x16x1xf32, #tpu.memory_space<vmem>>, vector<1x16x1xf32>
      %51 = vector.shape_cast %50 : vector<1x16x1xf32> to vector<16x1xf32>
      %52 = vector.shape_cast %49 : vector<16x1xf32> to vector<1x16x1xf32>
      tpu.vector_store %arg8[%c0_25, %c0_26, %c0_27], %52 {strides = array<i32>} : memref<4x16x1xf32, #tpu.memory_space<vmem>>, vector<1x16x1xf32>,
      %c0_28 = arith.constant 0 : index
      %c0_29 = arith.constant 0 : index
      %c0_30 = arith.constant 0 : index
      %53 = vector.load %arg9[%c0_28, %c0_29, %c0_30] : memref<4x16x32xf32, #tpu.memory_space<vmem>>, vector<1x16x32xf32>
      %54 = vector.shape_cast %53 : vector<1x16x32xf32> to vector<16x32xf32>
      %55 = vector.broadcast %40 : vector<16x1xf32> to vector<16x32xf32>
      %56 = arith.mulf %55, %54 : vector<16x32xf32>
      %57 = arith.truncf %43 : vector<16x16xf32> to vector<16x16xbf16>
      %cst_31 = arith.constant dense<0.000000e+00> : vector<16x32xf32>
      %58 = tpu.matmul %57, %30, %cst_31 {dimension_numbers = #tpu.dot_dimension_numbers<[1], [0], [0], [1], [0, 0, 1, 1], [], []>} : vector<16x16xbf16>, vector<16x32xbf16>, vector<16x32xf32> -> vector<16x32xf32>
      %59 = arith.addf %56, %58 : vector<16x32xf32>
      %c0_32 = arith.constant 0 : index
      %c0_33 = arith.constant 0 : index
      %c0_34 = arith.constant 0 : index
      %60 = vector.load %arg9[%c0_32, %c0_33, %c0_34] : memref<4x16x32xf32, #tpu.memory_space<vmem>>, vector<1x16x32xf32>
      %61 = vector.shape_cast %60 : vector<1x16x32xf32> to vector<16x32xf32>
      %62 = vector.shape_cast %59 : vector<16x32xf32> to vector<1x16x32xf32>
      tpu.vector_store %arg9[%c0_32, %c0_33, %c0_34], %62 {strides = array<i32>} : memref<4x16x32xf32, #tpu.memory_space<vmem>>, vector<1x16x32xf32>,
      %c0_35 = arith.constant 0 : index
      %c0_36 = arith.constant 0 : index
      %c0_37 = arith.constant 0 : index
      %63 = vector.load %arg7[%c0_35, %c0_36, %c0_37] : memref<4x16x1xf32, #tpu.memory_space<vmem>>, vector<1x16x1xf32>
      %64 = vector.shape_cast %63 : vector<1x16x1xf32> to vector<16x1xf32>
      %65 = vector.shape_cast %38 : vector<16x1xf32> to vector<1x16x1xf32>
      tpu.vector_store %arg7[%c0_35, %c0_36, %c0_37], %65 {strides = array<i32>} : memref<4x16x1xf32, #tpu.memory_space<vmem>>, vector<1x16x1xf32>,
      %c0_38 = arith.constant 0 : index
      %c0_39 = arith.constant 0 : index
      %c32 = arith.constant 32 : index
      %66 = vector.load %arg3[%c0_38, %c0_39, %c32] : memref<1x16x128xbf16, #tpu.memory_space<vmem>>, vector<1x16x32xbf16>
      %67 = vector.shape_cast %66 : vector<1x16x32xbf16> to vector<16x32xbf16>
      %68 = arith.extf %67 : vector<16x32xbf16> to vector<16x32xf32>
      %cst_40 = arith.constant 0.176776692 : f32
      %69 = vector.broadcast %cst_40 : f32 to vector<16x32xf32>
      %70 = arith.mulf %68, %69 : vector<16x32xf32>
      %71 = arith.truncf %70 : vector<16x32xf32> to vector<16x32xbf16>
      %c0_41 = arith.constant 0 : index
      %c0_42 = arith.constant 0 : index
      %c32_43 = arith.constant 32 : index
      %72 = vector.load %arg4[%c0_41, %c0_42, %c32_43] : memref<1x16x128xbf16, #tpu.memory_space<vmem>>, vector<1x16x32xbf16>
      %73 = vector.shape_cast %72 : vector<1x16x32xbf16> to vector<16x32xbf16>
      %c0_44 = arith.constant 0 : index
      %c0_45 = arith.constant 0 : index
      %c32_46 = arith.constant 32 : index
      %74 = vector.load %arg5[%c0_44, %c0_45, %c32_46] : memref<1x16x128xbf16, #tpu.memory_space<vmem>>, vector<1x16x32xbf16>
      %75 = vector.shape_cast %74 : vector<1x16x32xbf16> to vector<16x32xbf16>
      %cst_47 = arith.constant dense<0.000000e+00> : vector<16x16xf32>
      %76 = tpu.matmul %71, %73, %cst_47 {dimension_numbers = #tpu.dot_dimension_numbers<[1], [1], [0], [0], [0, 0, 1, 0], [], []>} : vector<16x32xbf16>, vector<16x32xbf16>, vector<16x16xf32> -> vector<16x16xf32>
      %cst_48 = arith.constant -1.000000e+30 : f32
      %77 = vector.broadcast %cst_48 : f32 to vector<16x16xf32>
      %78 = arith.select %20, %76, %77 : vector<16x16xi1>, vector<16x16xf32>
      %c1 = arith.constant 1 : index
      %c0_49 = arith.constant 0 : index
      %c0_50 = arith.constant 0 : index
      %79 = vector.load %arg7[%c1, %c0_49, %c0_50] : memref<4x16x1xf32, #tpu.memory_space<vmem>>, vector<1x16x1xf32>
      %80 = vector.shape_cast %79 : vector<1x16x1xf32> to vector<16x1xf32>
      %cst_51 = arith.constant dense<0xFF800000> : vector<16xf32>
      %81 = vector.multi_reduction <maximumf>, %78, %cst_51 [1] : vector<16x16xf32> to vector<16xf32>
      %82 = vector.shape_cast %81 : vector<16xf32> to vector<16x1xf32>
      %83 = arith.maximumf %80, %82 : vector<16x1xf32>
      %84 = arith.subf %80, %83 : vector<16x1xf32>
      %85 = math.exp %84 : vector<16x1xf32>
      %86 = vector.broadcast %83 : vector<16x1xf32> to vector<16x16xf32>
      %87 = arith.subf %78, %86 : vector<16x16xf32>
      %88 = math.exp %87 : vector<16x16xf32>
      %c1_52 = arith.constant 1 : index
      %c0_53 = arith.constant 0 : index
      %c0_54 = arith.constant 0 : index
      %89 = vector.load %arg8[%c1_52, %c0_53, %c0_54] : memref<4x16x1xf32, #tpu.memory_space<vmem>>, vector<1x16x1xf32>
      %90 = vector.shape_cast %89 : vector<1x16x1xf32> to vector<16x1xf32>
      %91 = arith.mulf %85, %90 : vector<16x1xf32>
      %cst_55 = arith.constant dense<0.000000e+00> : vector<16xf32>
      %92 = vector.multi_reduction <add>, %88, %cst_55 [1] : vector<16x16xf32> to vector<16xf32>
      %93 = vector.shape_cast %92 : vector<16xf32> to vector<16x1xf32>
      %94 = arith.addf %91, %93 : vector<16x1xf32>
      %c1_56 = arith.constant 1 : index
      %c0_57 = arith.constant 0 : index
      %c0_58 = arith.constant 0 : index
      %95 = vector.load %arg8[%c1_56, %c0_57, %c0_58] : memref<4x16x1xf32, #tpu.memory_space<vmem>>, vector<1x16x1xf32>
      %96 = vector.shape_cast %95 : vector<1x16x1xf32> to vector<16x1xf32>
      %97 = vector.shape_cast %94 : vector<16x1xf32> to vector<1x16x1xf32>
      tpu.vector_store %arg8[%c1_56, %c0_57, %c0_58], %97 {strides = array<i32>} : memref<4x16x1xf32, #tpu.memory_space<vmem>>, vector<1x16x1xf32>,
      %c1_59 = arith.constant 1 : index
      %c0_60 = arith.constant 0 : index
      %c0_61 = arith.constant 0 : index
      %98 = vector.load %arg9[%c1_59, %c0_60, %c0_61] : memref<4x16x32xf32, #tpu.memory_space<vmem>>, vector<1x16x32xf32>
      %99 = vector.shape_cast %98 : vector<1x16x32xf32> to vector<16x32xf32>
      %100 = vector.broadcast %85 : vector<16x1xf32> to vector<16x32xf32>
      %101 = arith.mulf %100, %99 : vector<16x32xf32>
      %102 = arith.truncf %88 : vector<16x16xf32> to vector<16x16xbf16>
      %cst_62 = arith.constant dense<0.000000e+00> : vector<16x32xf32>
      %103 = tpu.matmul %102, %75, %cst_62 {dimension_numbers = #tpu.dot_dimension_numbers<[1], [0], [0], [1], [0, 0, 1, 1], [], []>} : vector<16x16xbf16>, vector<16x32xbf16>, vector<16x32xf32> -> vector<16x32xf32>
      %104 = arith.addf %101, %103 : vector<16x32xf32>
      %c1_63 = arith.constant 1 : index
      %c0_64 = arith.constant 0 : index
      %c0_65 = arith.constant 0 : index
      %105 = vector.load %arg9[%c1_63, %c0_64, %c0_65] : memref<4x16x32xf32, #tpu.memory_space<vmem>>, vector<1x16x32xf32>
      %106 = vector.shape_cast %105 : vector<1x16x32xf32> to vector<16x32xf32>
      %107 = vector.shape_cast %104 : vector<16x32xf32> to vector<1x16x32xf32>
      tpu.vector_store %arg9[%c1_63, %c0_64, %c0_65], %107 {strides = array<i32>} : memref<4x16x32xf32, #tpu.memory_space<vmem>>, vector<1x16x32xf32>,
      %c1_66 = arith.constant 1 : index
      %c0_67 = arith.constant 0 : index
      %c0_68 = arith.constant 0 : index
      %108 = vector.load %arg7[%c1_66, %c0_67, %c0_68] : memref<4x16x1xf32, #tpu.memory_space<vmem>>, vector<1x16x1xf32>
      %109 = vector.shape_cast %108 : vector<1x16x1xf32> to vector<16x1xf32>
      %110 = vector.shape_cast %83 : vector<16x1xf32> to vector<1x16x1xf32>
      tpu.vector_store %arg7[%c1_66, %c0_67, %c0_68], %110 {strides = array<i32>} : memref<4x16x1xf32, #tpu.memory_space<vmem>>, vector<1x16x1xf32>,
      %c0_69 = arith.constant 0 : index
      %c0_70 = arith.constant 0 : index
      %c64 = arith.constant 64 : index
      %111 = vector.load %arg3[%c0_69, %c0_70, %c64] : memref<1x16x128xbf16, #tpu.memory_space<vmem>>, vector<1x16x32xbf16>
      %112 = vector.shape_cast %111 : vector<1x16x32xbf16> to vector<16x32xbf16>
      %113 = arith.extf %112 : vector<16x32xbf16> to vector<16x32xf32>
      %cst_71 = arith.constant 0.176776692 : f32
      %114 = vector.broadcast %cst_71 : f32 to vector<16x32xf32>
      %115 = arith.mulf %113, %114 : vector<16x32xf32>
      %116 = arith.truncf %115 : vector<16x32xf32> to vector<16x32xbf16>
      %c0_72 = arith.constant 0 : index
      %c0_73 = arith.constant 0 : index
      %c64_74 = arith.constant 64 : index
      %117 = vector.load %arg4[%c0_72, %c0_73, %c64_74] : memref<1x16x128xbf16, #tpu.memory_space<vmem>>, vector<1x16x32xbf16>
      %118 = vector.shape_cast %117 : vector<1x16x32xbf16> to vector<16x32xbf16>
      %c0_75 = arith.constant 0 : index
      %c0_76 = arith.constant 0 : index
      %c64_77 = arith.constant 64 : index
      %119 = vector.load %arg5[%c0_75, %c0_76, %c64_77] : memref<1x16x128xbf16, #tpu.memory_space<vmem>>, vector<1x16x32xbf16>
      %120 = vector.shape_cast %119 : vector<1x16x32xbf16> to vector<16x32xbf16>
      %cst_78 = arith.constant dense<0.000000e+00> : vector<16x16xf32>
      %121 = tpu.matmul %116, %118, %cst_78 {dimension_numbers = #tpu.dot_dimension_numbers<[1], [1], [0], [0], [0, 0, 1, 0], [], []>} : vector<16x32xbf16>, vector<16x32xbf16>, vector<16x16xf32> -> vector<16x16xf32>
      %cst_79 = arith.constant -1.000000e+30 : f32
      %122 = vector.broadcast %cst_79 : f32 to vector<16x16xf32>
      %123 = arith.select %20, %121, %122 : vector<16x16xi1>, vector<16x16xf32>
      %c2 = arith.constant 2 : index
      %c0_80 = arith.constant 0 : index
      %c0_81 = arith.constant 0 : index
      %124 = vector.load %arg7[%c2, %c0_80, %c0_81] : memref<4x16x1xf32, #tpu.memory_space<vmem>>, vector<1x16x1xf32>
      %125 = vector.shape_cast %124 : vector<1x16x1xf32> to vector<16x1xf32>
      %cst_82 = arith.constant dense<0xFF800000> : vector<16xf32>
      %126 = vector.multi_reduction <maximumf>, %123, %cst_82 [1] : vector<16x16xf32> to vector<16xf32>
      %127 = vector.shape_cast %126 : vector<16xf32> to vector<16x1xf32>
      %128 = arith.maximumf %125, %127 : vector<16x1xf32>
      %129 = arith.subf %125, %128 : vector<16x1xf32>
      %130 = math.exp %129 : vector<16x1xf32>
      %131 = vector.broadcast %128 : vector<16x1xf32> to vector<16x16xf32>
      %132 = arith.subf %123, %131 : vector<16x16xf32>
      %133 = math.exp %132 : vector<16x16xf32>
      %c2_83 = arith.constant 2 : index
      %c0_84 = arith.constant 0 : index
      %c0_85 = arith.constant 0 : index
      %134 = vector.load %arg8[%c2_83, %c0_84, %c0_85] : memref<4x16x1xf32, #tpu.memory_space<vmem>>, vector<1x16x1xf32>
      %135 = vector.shape_cast %134 : vector<1x16x1xf32> to vector<16x1xf32>
      %136 = arith.mulf %130, %135 : vector<16x1xf32>
      %cst_86 = arith.constant dense<0.000000e+00> : vector<16xf32>
      %137 = vector.multi_reduction <add>, %133, %cst_86 [1] : vector<16x16xf32> to vector<16xf32>
      %138 = vector.shape_cast %137 : vector<16xf32> to vector<16x1xf32>
      %139 = arith.addf %136, %138 : vector<16x1xf32>
      %c2_87 = arith.constant 2 : index
      %c0_88 = arith.constant 0 : index
      %c0_89 = arith.constant 0 : index
      %140 = vector.load %arg8[%c2_87, %c0_88, %c0_89] : memref<4x16x1xf32, #tpu.memory_space<vmem>>, vector<1x16x1xf32>
      %141 = vector.shape_cast %140 : vector<1x16x1xf32> to vector<16x1xf32>
      %142 = vector.shape_cast %139 : vector<16x1xf32> to vector<1x16x1xf32>
      tpu.vector_store %arg8[%c2_87, %c0_88, %c0_89], %142 {strides = array<i32>} : memref<4x16x1xf32, #tpu.memory_space<vmem>>, vector<1x16x1xf32>,
      %c2_90 = arith.constant 2 : index
      %c0_91 = arith.constant 0 : index
      %c0_92 = arith.constant 0 : index
      %143 = vector.load %arg9[%c2_90, %c0_91, %c0_92] : memref<4x16x32xf32, #tpu.memory_space<vmem>>, vector<1x16x32xf32>
      %144 = vector.shape_cast %143 : vector<1x16x32xf32> to vector<16x32xf32>
      %145 = vector.broadcast %130 : vector<16x1xf32> to vector<16x32xf32>
      %146 = arith.mulf %145, %144 : vector<16x32xf32>
      %147 = arith.truncf %133 : vector<16x16xf32> to vector<16x16xbf16>
      %cst_93 = arith.constant dense<0.000000e+00> : vector<16x32xf32>
      %148 = tpu.matmul %147, %120, %cst_93 {dimension_numbers = #tpu.dot_dimension_numbers<[1], [0], [0], [1], [0, 0, 1, 1], [], []>} : vector<16x16xbf16>, vector<16x32xbf16>, vector<16x32xf32> -> vector<16x32xf32>
      %149 = arith.addf %146, %148 : vector<16x32xf32>
      %c2_94 = arith.constant 2 : index
      %c0_95 = arith.constant 0 : index
      %c0_96 = arith.constant 0 : index
      %150 = vector.load %arg9[%c2_94, %c0_95, %c0_96] : memref<4x16x32xf32, #tpu.memory_space<vmem>>, vector<1x16x32xf32>
      %151 = vector.shape_cast %150 : vector<1x16x32xf32> to vector<16x32xf32>
      %152 = vector.shape_cast %149 : vector<16x32xf32> to vector<1x16x32xf32>
      tpu.vector_store %arg9[%c2_94, %c0_95, %c0_96], %152 {strides = array<i32>} : memref<4x16x32xf32, #tpu.memory_space<vmem>>, vector<1x16x32xf32>,
      %c2_97 = arith.constant 2 : index
      %c0_98 = arith.constant 0 : index
      %c0_99 = arith.constant 0 : index
      %153 = vector.load %arg7[%c2_97, %c0_98, %c0_99] : memref<4x16x1xf32, #tpu.memory_space<vmem>>, vector<1x16x1xf32>
      %154 = vector.shape_cast %153 : vector<1x16x1xf32> to vector<16x1xf32>
      %155 = vector.shape_cast %128 : vector<16x1xf32> to vector<1x16x1xf32>
      tpu.vector_store %arg7[%c2_97, %c0_98, %c0_99], %155 {strides = array<i32>} : memref<4x16x1xf32, #tpu.memory_space<vmem>>, vector<1x16x1xf32>,
      %c0_100 = arith.constant 0 : index
      %c0_101 = arith.constant 0 : index
      %c96 = arith.constant 96 : index
      %156 = vector.load %arg3[%c0_100, %c0_101, %c96] : memref<1x16x128xbf16, #tpu.memory_space<vmem>>, vector<1x16x32xbf16>
      %157 = vector.shape_cast %156 : vector<1x16x32xbf16> to vector<16x32xbf16>
      %158 = arith.extf %157 : vector<16x32xbf16> to vector<16x32xf32>
      %cst_102 = arith.constant 0.176776692 : f32
      %159 = vector.broadcast %cst_102 : f32 to vector<16x32xf32>
      %160 = arith.mulf %158, %159 : vector<16x32xf32>
      %161 = arith.truncf %160 : vector<16x32xf32> to vector<16x32xbf16>
      %c0_103 = arith.constant 0 : index
      %c0_104 = arith.constant 0 : index
      %c96_105 = arith.constant 96 : index
      %162 = vector.load %arg4[%c0_103, %c0_104, %c96_105] : memref<1x16x128xbf16, #tpu.memory_space<vmem>>, vector<1x16x32xbf16>
      %163 = vector.shape_cast %162 : vector<1x16x32xbf16> to vector<16x32xbf16>
      %c0_106 = arith.constant 0 : index
      %c0_107 = arith.constant 0 : index
      %c96_108 = arith.constant 96 : index
      %164 = vector.load %arg5[%c0_106, %c0_107, %c96_108] : memref<1x16x128xbf16, #tpu.memory_space<vmem>>, vector<1x16x32xbf16>
      %165 = vector.shape_cast %164 : vector<1x16x32xbf16> to vector<16x32xbf16>
      %cst_109 = arith.constant dense<0.000000e+00> : vector<16x16xf32>
      %166 = tpu.matmul %161, %163, %cst_109 {dimension_numbers = #tpu.dot_dimension_numbers<[1], [1], [0], [0], [0, 0, 1, 0], [], []>} : vector<16x32xbf16>, vector<16x32xbf16>, vector<16x16xf32> -> vector<16x16xf32>
      %cst_110 = arith.constant -1.000000e+30 : f32
      %167 = vector.broadcast %cst_110 : f32 to vector<16x16xf32>
      %168 = arith.select %20, %166, %167 : vector<16x16xi1>, vector<16x16xf32>
      %c3 = arith.constant 3 : index
      %c0_111 = arith.constant 0 : index
      %c0_112 = arith.constant 0 : index
      %169 = vector.load %arg7[%c3, %c0_111, %c0_112] : memref<4x16x1xf32, #tpu.memory_space<vmem>>, vector<1x16x1xf32>
      %170 = vector.shape_cast %169 : vector<1x16x1xf32> to vector<16x1xf32>
      %cst_113 = arith.constant dense<0xFF800000> : vector<16xf32>
      %171 = vector.multi_reduction <maximumf>, %168, %cst_113 [1] : vector<16x16xf32> to vector<16xf32>
      %172 = vector.shape_cast %171 : vector<16xf32> to vector<16x1xf32>
      %173 = arith.maximumf %170, %172 : vector<16x1xf32>
      %174 = arith.subf %170, %173 : vector<16x1xf32>
      %175 = math.exp %174 : vector<16x1xf32>
      %176 = vector.broadcast %173 : vector<16x1xf32> to vector<16x16xf32>
      %177 = arith.subf %168, %176 : vector<16x16xf32>
      %178 = math.exp %177 : vector<16x16xf32>
      %c3_114 = arith.constant 3 : index
      %c0_115 = arith.constant 0 : index
      %c0_116 = arith.constant 0 : index
      %179 = vector.load %arg8[%c3_114, %c0_115, %c0_116] : memref<4x16x1xf32, #tpu.memory_space<vmem>>, vector<1x16x1xf32>
      %180 = vector.shape_cast %179 : vector<1x16x1xf32> to vector<16x1xf32>
      %181 = arith.mulf %175, %180 : vector<16x1xf32>
      %cst_117 = arith.constant dense<0.000000e+00> : vector<16xf32>
      %182 = vector.multi_reduction <add>, %178, %cst_117 [1] : vector<16x16xf32> to vector<16xf32>
      %183 = vector.shape_cast %182 : vector<16xf32> to vector<16x1xf32>
      %184 = arith.addf %181, %183 : vector<16x1xf32>
      %c3_118 = arith.constant 3 : index
      %c0_119 = arith.constant 0 : index
      %c0_120 = arith.constant 0 : index
      %185 = vector.load %arg8[%c3_118, %c0_119, %c0_120] : memref<4x16x1xf32, #tpu.memory_space<vmem>>, vector<1x16x1xf32>
      %186 = vector.shape_cast %185 : vector<1x16x1xf32> to vector<16x1xf32>
      %187 = vector.shape_cast %184 : vector<16x1xf32> to vector<1x16x1xf32>
      tpu.vector_store %arg8[%c3_118, %c0_119, %c0_120], %187 {strides = array<i32>} : memref<4x16x1xf32, #tpu.memory_space<vmem>>, vector<1x16x1xf32>,
      %c3_121 = arith.constant 3 : index
      %c0_122 = arith.constant 0 : index
      %c0_123 = arith.constant 0 : index
      %188 = vector.load %arg9[%c3_121, %c0_122, %c0_123] : memref<4x16x32xf32, #tpu.memory_space<vmem>>, vector<1x16x32xf32>
      %189 = vector.shape_cast %188 : vector<1x16x32xf32> to vector<16x32xf32>
      %190 = vector.broadcast %175 : vector<16x1xf32> to vector<16x32xf32>
      %191 = arith.mulf %190, %189 : vector<16x32xf32>
      %192 = arith.truncf %178 : vector<16x16xf32> to vector<16x16xbf16>
      %cst_124 = arith.constant dense<0.000000e+00> : vector<16x32xf32>
      %193 = tpu.matmul %192, %165, %cst_124 {dimension_numbers = #tpu.dot_dimension_numbers<[1], [0], [0], [1], [0, 0, 1, 1], [], []>} : vector<16x16xbf16>, vector<16x32xbf16>, vector<16x32xf32> -> vector<16x32xf32>
      %194 = arith.addf %191, %193 : vector<16x32xf32>
      %c3_125 = arith.constant 3 : index
      %c0_126 = arith.constant 0 : index
      %c0_127 = arith.constant 0 : index
      %195 = vector.load %arg9[%c3_125, %c0_126, %c0_127] : memref<4x16x32xf32, #tpu.memory_space<vmem>>, vector<1x16x32xf32>
      %196 = vector.shape_cast %195 : vector<1x16x32xf32> to vector<16x32xf32>
      %197 = vector.shape_cast %194 : vector<16x32xf32> to vector<1x16x32xf32>
      tpu.vector_store %arg9[%c3_125, %c0_126, %c0_127], %197 {strides = array<i32>} : memref<4x16x32xf32, #tpu.memory_space<vmem>>, vector<1x16x32xf32>,
      %c3_128 = arith.constant 3 : index
      %c0_129 = arith.constant 0 : index
      %c0_130 = arith.constant 0 : index
      %198 = vector.load %arg7[%c3_128, %c0_129, %c0_130] : memref<4x16x1xf32, #tpu.memory_space<vmem>>, vector<1x16x1xf32>
      %199 = vector.shape_cast %198 : vector<1x16x1xf32> to vector<16x1xf32>
      %200 = vector.shape_cast %173 : vector<16x1xf32> to vector<1x16x1xf32>
      tpu.vector_store %arg7[%c3_128, %c0_129, %c0_130], %200 {strides = array<i32>} : memref<4x16x1xf32, #tpu.memory_space<vmem>>, vector<1x16x1xf32>,
    } else {
    }
    %c0_i32_3 = arith.constant 0 : i32
    %9 = arith.cmpi eq, %arg2, %c0_i32_3 : i32
    %10 = arith.extui %9 : i1 to i32
    %c0_i32_4 = arith.constant 0 : i32
    %11 = arith.cmpi ne, %10, %c0_i32_4 : i32
    scf.if %11 {
      %c0 = arith.constant 0 : index
      %c0_5 = arith.constant 0 : index
      %c0_6 = arith.constant 0 : index
      %12 = vector.load %arg8[%c0, %c0_5, %c0_6] : memref<4x16x1xf32, #tpu.memory_space<vmem>>, vector<1x16x1xf32>
      %13 = vector.shape_cast %12 : vector<1x16x1xf32> to vector<16x1xf32>
      %14 = tpu.reciprocal %13 {approx = true} : vector<16x1xf32> -> vector<16x1xf32>
      %c0_7 = arith.constant 0 : index
      %c0_8 = arith.constant 0 : index
      %c0_9 = arith.constant 0 : index
      %15 = vector.load %arg9[%c0_7, %c0_8, %c0_9] : memref<4x16x32xf32, #tpu.memory_space<vmem>>, vector<1x16x32xf32>
      %16 = vector.shape_cast %15 : vector<1x16x32xf32> to vector<16x32xf32>
      %17 = vector.broadcast %14 : vector<16x1xf32> to vector<16x32xf32>
      %18 = arith.mulf %16, %17 : vector<16x32xf32>
      %c1 = arith.constant 1 : index
      %c0_10 = arith.constant 0 : index
      %c0_11 = arith.constant 0 : index
      %19 = vector.load %arg8[%c1, %c0_10, %c0_11] : memref<4x16x1xf32, #tpu.memory_space<vmem>>, vector<1x16x1xf32>
      %20 = vector.shape_cast %19 : vector<1x16x1xf32> to vector<16x1xf32>
      %21 = tpu.reciprocal %20 {approx = true} : vector<16x1xf32> -> vector<16x1xf32>
      %c1_12 = arith.constant 1 : index
      %c0_13 = arith.constant 0 : index
      %c0_14 = arith.constant 0 : index
      %22 = vector.load %arg9[%c1_12, %c0_13, %c0_14] : memref<4x16x32xf32, #tpu.memory_space<vmem>>, vector<1x16x32xf32>
      %23 = vector.shape_cast %22 : vector<1x16x32xf32> to vector<16x32xf32>
      %24 = vector.broadcast %21 : vector<16x1xf32> to vector<16x32xf32>
      %25 = arith.mulf %23, %24 : vector<16x32xf32>
      %c2 = arith.constant 2 : index
      %c0_15 = arith.constant 0 : index
      %c0_16 = arith.constant 0 : index
      %26 = vector.load %arg8[%c2, %c0_15, %c0_16] : memref<4x16x1xf32, #tpu.memory_space<vmem>>, vector<1x16x1xf32>
      %27 = vector.shape_cast %26 : vector<1x16x1xf32> to vector<16x1xf32>
      %28 = tpu.reciprocal %27 {approx = true} : vector<16x1xf32> -> vector<16x1xf32>
      %c2_17 = arith.constant 2 : index
      %c0_18 = arith.constant 0 : index
      %c0_19 = arith.constant 0 : index
      %29 = vector.load %arg9[%c2_17, %c0_18, %c0_19] : memref<4x16x32xf32, #tpu.memory_space<vmem>>, vector<1x16x32xf32>
      %30 = vector.shape_cast %29 : vector<1x16x32xf32> to vector<16x32xf32>
      %31 = vector.broadcast %28 : vector<16x1xf32> to vector<16x32xf32>
      %32 = arith.mulf %30, %31 : vector<16x32xf32>
      %c3 = arith.constant 3 : index
      %c0_20 = arith.constant 0 : index
      %c0_21 = arith.constant 0 : index
      %33 = vector.load %arg8[%c3, %c0_20, %c0_21] : memref<4x16x1xf32, #tpu.memory_space<vmem>>, vector<1x16x1xf32>
      %34 = vector.shape_cast %33 : vector<1x16x1xf32> to vector<16x1xf32>
      %35 = tpu.reciprocal %34 {approx = true} : vector<16x1xf32> -> vector<16x1xf32>
      %c3_22 = arith.constant 3 : index
      %c0_23 = arith.constant 0 : index
      %c0_24 = arith.constant 0 : index
      %36 = vector.load %arg9[%c3_22, %c0_23, %c0_24] : memref<4x16x32xf32, #tpu.memory_space<vmem>>, vector<1x16x32xf32>
      %37 = vector.shape_cast %36 : vector<1x16x32xf32> to vector<16x32xf32>
      %38 = vector.broadcast %35 : vector<16x1xf32> to vector<16x32xf32>
      %39 = arith.mulf %37, %38 : vector<16x32xf32>
      %40 = tpu.concatenate %18, %25, %32, %39 in 1 : vector<16x32xf32>, vector<16x32xf32>, vector<16x32xf32>, vector<16x32xf32> -> vector<16x128xf32>
      %41 = arith.truncf %40 : vector<16x128xf32> to vector<16x128xbf16>
      %c0_25 = arith.constant 0 : index
      %c0_26 = arith.constant 0 : index
      %c0_27 = arith.constant 0 : index
      %42 = vector.load %arg6[%c0_25, %c0_26, %c0_27] : memref<1x16x128xbf16, #tpu.memory_space<vmem>>, vector<1x16x128xbf16>
      %43 = vector.shape_cast %42 : vector<1x16x128xbf16> to vector<16x128xbf16>
      %44 = vector.shape_cast %41 : vector<16x128xbf16> to vector<1x16x128xbf16>
      tpu.vector_store %arg6[%c0_25, %c0_26, %c0_27], %44 {strides = array<i32>} : memref<1x16x128xbf16, #tpu.memory_space<vmem>>, vector<1x16x128xbf16>,
    } else {
    }
    return
  }
  func.func @transform_0(%arg0: i32, %arg1: i32, %arg2: i32) -> (i32, i32, i32) {
    %c0_i32 = arith.constant 0 : i32
    %c0_i32_0 = arith.constant 0 : i32
    return %arg0, %arg1, %c0_i32 : i32, i32, i32
  }
  func.func @transform_1(%arg0: i32, %arg1: i32, %arg2: i32) -> (i32, i32, i32) {
    %c1_i32 = arith.constant 1 : i32
    %c0_i32 = arith.constant 0 : i32
    return %arg0, %arg2, %c1_i32 : i32, i32, i32
  }
  func.func @transform_2(%arg0: i32, %arg1: i32, %arg2: i32) -> (i32, i32, i32) {
    %c2_i32 = arith.constant 2 : i32
    %c0_i32 = arith.constant 0 : i32
    return %arg0, %arg2, %c2_i32 : i32, i32, i32
  }
  func.func @transform_3(%arg0: i32, %arg1: i32, %arg2: i32) -> (i32, i32, i32) {
    %c0_i32 = arith.constant 0 : i32
    %c0_i32_0 = arith.constant 0 : i32
    return %arg0, %arg1, %c0_i32 : i32, i32, i32
  }
}

module attributes {stable_mosaic.version = 11 : i64} {
  func.func @_ln_linear_kernel(%arg0: i32, %arg1: i32, %arg2: memref<32x128xf32, #tpu.memory_space<vmem>>, %arg3: memref<1x128xf32, #tpu.memory_space<vmem>>, %arg4: memref<1x128xf32, #tpu.memory_space<vmem>>, %arg5: memref<128x512xbf16, #tpu.memory_space<vmem>>, %arg6: memref<1x512xf32, #tpu.memory_space<vmem>>, %arg7: memref<32x512xbf16, #tpu.memory_space<vmem>>) attributes {dimension_semantics = [#tpu.dimension_semantics<parallel>, #tpu.dimension_semantics<parallel>], iteration_bounds = array<i64: 1, 1>, scalar_prefetch = 0 : i64, scratch_operands = 0 : i64, tpu.core_type = #tpu.core_type<tc>, window_params = [{transform_indices = @transform_0, window_bounds = array<i64: 32, 128>}, {pipeline_mode = #tpu.pipeline_mode<synchronous>, transform_indices = @transform_1, window_bounds = array<i64: 1, 128>}, {pipeline_mode = #tpu.pipeline_mode<synchronous>, transform_indices = @transform_2, window_bounds = array<i64: 1, 128>}, {transform_indices = @transform_3, window_bounds = array<i64: 128, 512>}, {transform_indices = @transform_4, window_bounds = array<i64: 1, 512>}, {transform_indices = @transform_5, window_bounds = array<i64: 32, 512>}]} {
    %c0 = arith.constant 0 : index
    %c0_0 = arith.constant 0 : index
    %0 = vector.load %arg2[%c0, %c0_0] : memref<32x128xf32, #tpu.memory_space<vmem>>, vector<32x128xf32>
    %cst = arith.constant dense<0.000000e+00> : vector<32xf32>
    %1 = vector.multi_reduction <add>, %0, %cst [1] : vector<32x128xf32> to vector<32xf32>
    %2 = vector.shape_cast %1 : vector<32xf32> to vector<32x1xf32>
    %cst_1 = arith.constant 1.280000e+02 : f32
    %3 = vector.broadcast %cst_1 : f32 to vector<32x1xf32>
    %4 = arith.divf %2, %3 : vector<32x1xf32>
    %5 = vector.broadcast %4 : vector<32x1xf32> to vector<32x128xf32>
    %6 = arith.subf %0, %5 : vector<32x128xf32>
    %7 = arith.mulf %6, %6 : vector<32x128xf32>
    %cst_2 = arith.constant dense<0.000000e+00> : vector<32xf32>
    %8 = vector.multi_reduction <add>, %7, %cst_2 [1] : vector<32x128xf32> to vector<32xf32>
    %9 = vector.shape_cast %8 : vector<32xf32> to vector<32x1xf32>
    %cst_3 = arith.constant 1.280000e+02 : f32
    %10 = vector.broadcast %cst_3 : f32 to vector<32x1xf32>
    %11 = arith.divf %9, %10 : vector<32x1xf32>
    %12 = vector.broadcast %4 : vector<32x1xf32> to vector<32x128xf32>
    %13 = arith.subf %0, %12 : vector<32x128xf32>
    %cst_4 = arith.constant 9.99999974E-6 : f32
    %14 = vector.broadcast %cst_4 : f32 to vector<32x1xf32>
    %15 = arith.addf %11, %14 : vector<32x1xf32>
    %16 = math.rsqrt %15 : vector<32x1xf32>
    %17 = vector.broadcast %16 : vector<32x1xf32> to vector<32x128xf32>
    %18 = arith.mulf %13, %17 : vector<32x128xf32>
    %c0_5 = arith.constant 0 : index
    %c0_6 = arith.constant 0 : index
    %19 = vector.load %arg3[%c0_5, %c0_6] : memref<1x128xf32, #tpu.memory_space<vmem>>, vector<1x128xf32>
    %20 = vector.broadcast %19 : vector<1x128xf32> to vector<32x128xf32>
    %21 = arith.mulf %18, %20 : vector<32x128xf32>
    %c0_7 = arith.constant 0 : index
    %c0_8 = arith.constant 0 : index
    %22 = vector.load %arg4[%c0_7, %c0_8] : memref<1x128xf32, #tpu.memory_space<vmem>>, vector<1x128xf32>
    %23 = vector.broadcast %22 : vector<1x128xf32> to vector<32x128xf32>
    %24 = arith.addf %21, %23 : vector<32x128xf32>
    %25 = arith.truncf %24 : vector<32x128xf32> to vector<32x128xbf16>
    %c0_9 = arith.constant 0 : index
    %c0_10 = arith.constant 0 : index
    %26 = vector.load %arg5[%c0_9, %c0_10] : memref<128x512xbf16, #tpu.memory_space<vmem>>, vector<128x512xbf16>
    %cst_11 = arith.constant dense<0.000000e+00> : vector<32x512xf32>
    %27 = tpu.matmul %25, %26, %cst_11 {dimension_numbers = #tpu.dot_dimension_numbers<[1], [0], [0], [1], [0, 0, 1, 1], [], []>} : vector<32x128xbf16>, vector<128x512xbf16>, vector<32x512xf32> -> vector<32x512xf32>
    %c0_12 = arith.constant 0 : index
    %c0_13 = arith.constant 0 : index
    %28 = vector.load %arg6[%c0_12, %c0_13] : memref<1x512xf32, #tpu.memory_space<vmem>>, vector<1x512xf32>
    %29 = vector.broadcast %28 : vector<1x512xf32> to vector<32x512xf32>
    %30 = arith.addf %27, %29 : vector<32x512xf32>
    %cst_14 = arith.constant 5.000000e-01 : f32
    %31 = vector.broadcast %cst_14 : f32 to vector<32x512xf32>
    %32 = arith.mulf %31, %30 : vector<32x512xf32>
    %33 = arith.mulf %30, %30 : vector<32x512xf32>
    %34 = arith.mulf %30, %33 : vector<32x512xf32>
    %cst_15 = arith.constant 4.471500e-02 : f32
    %35 = vector.broadcast %cst_15 : f32 to vector<32x512xf32>
    %36 = arith.mulf %35, %34 : vector<32x512xf32>
    %37 = arith.addf %30, %36 : vector<32x512xf32>
    %cst_16 = arith.constant 0.797884583 : f32
    %38 = vector.broadcast %cst_16 : f32 to vector<32x512xf32>
    %39 = arith.mulf %38, %37 : vector<32x512xf32>
    %40 = math.tanh %39 : vector<32x512xf32>
    %cst_17 = arith.constant 1.000000e+00 : f32
    %41 = vector.broadcast %cst_17 : f32 to vector<32x512xf32>
    %42 = arith.addf %41, %40 : vector<32x512xf32>
    %43 = arith.mulf %32, %42 : vector<32x512xf32>
    %44 = arith.truncf %43 : vector<32x512xf32> to vector<32x512xbf16>
    %c0_18 = arith.constant 0 : index
    %c0_19 = arith.constant 0 : index
    %45 = vector.load %arg7[%c0_18, %c0_19] : memref<32x512xbf16, #tpu.memory_space<vmem>>, vector<32x512xbf16>
    tpu.vector_store %arg7[%c0_18, %c0_19], %44 {strides = array<i32>} : memref<32x512xbf16, #tpu.memory_space<vmem>>, vector<32x512xbf16>,
    return
  }
  func.func @transform_0(%arg0: i32, %arg1: i32) -> (i32, i32) {
    %c0_i32 = arith.constant 0 : i32
    %c0_i32_0 = arith.constant 0 : i32
    return %arg0, %c0_i32 : i32, i32
  }
  func.func @transform_1(%arg0: i32, %arg1: i32) -> (i32, i32) {
    %c0_i32 = arith.constant 0 : i32
    %c0_i32_0 = arith.constant 0 : i32
    %c0_i32_1 = arith.constant 0 : i32
    return %c0_i32, %c0_i32_0 : i32, i32
  }
  func.func @transform_2(%arg0: i32, %arg1: i32) -> (i32, i32) {
    %c0_i32 = arith.constant 0 : i32
    %c0_i32_0 = arith.constant 0 : i32
    %c0_i32_1 = arith.constant 0 : i32
    return %c0_i32, %c0_i32_0 : i32, i32
  }
  func.func @transform_3(%arg0: i32, %arg1: i32) -> (i32, i32) {
    %c0_i32 = arith.constant 0 : i32
    %c0_i32_0 = arith.constant 0 : i32
    return %c0_i32, %arg1 : i32, i32
  }
  func.func @transform_4(%arg0: i32, %arg1: i32) -> (i32, i32) {
    %c0_i32 = arith.constant 0 : i32
    %c0_i32_0 = arith.constant 0 : i32
    return %c0_i32, %arg1 : i32, i32
  }
  func.func @transform_5(%arg0: i32, %arg1: i32) -> (i32, i32) {
    %c0_i32 = arith.constant 0 : i32
    return %arg0, %arg1 : i32, i32
  }
}

module attributes {stable_mosaic.version = 11 : i64} {
  func.func @_linear_residual_kernel(%arg0: i32, %arg1: i32, %arg2: memref<32x128xbf16, #tpu.memory_space<vmem>>, %arg3: memref<128x128xbf16, #tpu.memory_space<vmem>>, %arg4: memref<1x128xf32, #tpu.memory_space<vmem>>, %arg5: memref<32x128xf32, #tpu.memory_space<vmem>>, %arg6: memref<32x128xf32, #tpu.memory_space<vmem>>) attributes {dimension_semantics = [#tpu.dimension_semantics<parallel>, #tpu.dimension_semantics<parallel>], iteration_bounds = array<i64: 1, 1>, scalar_prefetch = 0 : i64, scratch_operands = 0 : i64, tpu.core_type = #tpu.core_type<tc>, window_params = [{transform_indices = @transform_0, window_bounds = array<i64: 32, 128>}, {transform_indices = @transform_1, window_bounds = array<i64: 128, 128>}, {transform_indices = @transform_2, window_bounds = array<i64: 1, 128>}, {transform_indices = @transform_3, window_bounds = array<i64: 32, 128>}, {transform_indices = @transform_4, window_bounds = array<i64: 32, 128>}]} {
    %c0 = arith.constant 0 : index
    %c0_0 = arith.constant 0 : index
    %0 = vector.load %arg2[%c0, %c0_0] : memref<32x128xbf16, #tpu.memory_space<vmem>>, vector<32x128xbf16>
    %c0_1 = arith.constant 0 : index
    %c0_2 = arith.constant 0 : index
    %1 = vector.load %arg3[%c0_1, %c0_2] : memref<128x128xbf16, #tpu.memory_space<vmem>>, vector<128x128xbf16>
    %cst = arith.constant dense<0.000000e+00> : vector<32x128xf32>
    %2 = tpu.matmul %0, %1, %cst {dimension_numbers = #tpu.dot_dimension_numbers<[1], [0], [0], [1], [0, 0, 1, 1], [], []>} : vector<32x128xbf16>, vector<128x128xbf16>, vector<32x128xf32> -> vector<32x128xf32>
    %c0_3 = arith.constant 0 : index
    %c0_4 = arith.constant 0 : index
    %3 = vector.load %arg4[%c0_3, %c0_4] : memref<1x128xf32, #tpu.memory_space<vmem>>, vector<1x128xf32>
    %4 = vector.broadcast %3 : vector<1x128xf32> to vector<32x128xf32>
    %5 = arith.addf %2, %4 : vector<32x128xf32>
    %c0_5 = arith.constant 0 : index
    %c0_6 = arith.constant 0 : index
    %6 = vector.load %arg5[%c0_5, %c0_6] : memref<32x128xf32, #tpu.memory_space<vmem>>, vector<32x128xf32>
    %7 = arith.addf %5, %6 : vector<32x128xf32>
    %c0_7 = arith.constant 0 : index
    %c0_8 = arith.constant 0 : index
    %8 = vector.load %arg6[%c0_7, %c0_8] : memref<32x128xf32, #tpu.memory_space<vmem>>, vector<32x128xf32>
    tpu.vector_store %arg6[%c0_7, %c0_8], %7 {strides = array<i32>} : memref<32x128xf32, #tpu.memory_space<vmem>>, vector<32x128xf32>,
    return
  }
  func.func @transform_0(%arg0: i32, %arg1: i32) -> (i32, i32) {
    %c0_i32 = arith.constant 0 : i32
    %c0_i32_0 = arith.constant 0 : i32
    return %arg0, %c0_i32 : i32, i32
  }
  func.func @transform_1(%arg0: i32, %arg1: i32) -> (i32, i32) {
    %c0_i32 = arith.constant 0 : i32
    %c0_i32_0 = arith.constant 0 : i32
    return %c0_i32, %arg1 : i32, i32
  }
  func.func @transform_2(%arg0: i32, %arg1: i32) -> (i32, i32) {
    %c0_i32 = arith.constant 0 : i32
    %c0_i32_0 = arith.constant 0 : i32
    return %c0_i32, %arg1 : i32, i32
  }
  func.func @transform_3(%arg0: i32, %arg1: i32) -> (i32, i32) {
    %c0_i32 = arith.constant 0 : i32
    return %arg0, %arg1 : i32, i32
  }
  func.func @transform_4(%arg0: i32, %arg1: i32) -> (i32, i32) {
    %c0_i32 = arith.constant 0 : i32
    return %arg0, %arg1 : i32, i32
  }
}

module attributes {stable_mosaic.version = 11 : i64} {
  func.func @_linear_residual_kernel(%arg0: i32, %arg1: i32, %arg2: memref<32x512xbf16, #tpu.memory_space<vmem>>, %arg3: memref<512x128xbf16, #tpu.memory_space<vmem>>, %arg4: memref<1x128xf32, #tpu.memory_space<vmem>>, %arg5: memref<32x128xf32, #tpu.memory_space<vmem>>, %arg6: memref<32x128xf32, #tpu.memory_space<vmem>>) attributes {dimension_semantics = [#tpu.dimension_semantics<parallel>, #tpu.dimension_semantics<parallel>], iteration_bounds = array<i64: 1, 1>, scalar_prefetch = 0 : i64, scratch_operands = 0 : i64, tpu.core_type = #tpu.core_type<tc>, window_params = [{transform_indices = @transform_0, window_bounds = array<i64: 32, 512>}, {transform_indices = @transform_1, window_bounds = array<i64: 512, 128>}, {transform_indices = @transform_2, window_bounds = array<i64: 1, 128>}, {transform_indices = @transform_3, window_bounds = array<i64: 32, 128>}, {transform_indices = @transform_4, window_bounds = array<i64: 32, 128>}]} {
    %c0 = arith.constant 0 : index
    %c0_0 = arith.constant 0 : index
    %0 = vector.load %arg2[%c0, %c0_0] : memref<32x512xbf16, #tpu.memory_space<vmem>>, vector<32x512xbf16>
    %c0_1 = arith.constant 0 : index
    %c0_2 = arith.constant 0 : index
    %1 = vector.load %arg3[%c0_1, %c0_2] : memref<512x128xbf16, #tpu.memory_space<vmem>>, vector<512x128xbf16>
    %cst = arith.constant dense<0.000000e+00> : vector<32x128xf32>
    %2 = tpu.matmul %0, %1, %cst {dimension_numbers = #tpu.dot_dimension_numbers<[1], [0], [0], [1], [0, 0, 1, 1], [], []>} : vector<32x512xbf16>, vector<512x128xbf16>, vector<32x128xf32> -> vector<32x128xf32>
    %c0_3 = arith.constant 0 : index
    %c0_4 = arith.constant 0 : index
    %3 = vector.load %arg4[%c0_3, %c0_4] : memref<1x128xf32, #tpu.memory_space<vmem>>, vector<1x128xf32>
    %4 = vector.broadcast %3 : vector<1x128xf32> to vector<32x128xf32>
    %5 = arith.addf %2, %4 : vector<32x128xf32>
    %c0_5 = arith.constant 0 : index
    %c0_6 = arith.constant 0 : index
    %6 = vector.load %arg5[%c0_5, %c0_6] : memref<32x128xf32, #tpu.memory_space<vmem>>, vector<32x128xf32>
    %7 = arith.addf %5, %6 : vector<32x128xf32>
    %c0_7 = arith.constant 0 : index
    %c0_8 = arith.constant 0 : index
    %8 = vector.load %arg6[%c0_7, %c0_8] : memref<32x128xf32, #tpu.memory_space<vmem>>, vector<32x128xf32>
    tpu.vector_store %arg6[%c0_7, %c0_8], %7 {strides = array<i32>} : memref<32x128xf32, #tpu.memory_space<vmem>>, vector<32x128xf32>,
    return
  }
  func.func @transform_0(%arg0: i32, %arg1: i32) -> (i32, i32) {
    %c0_i32 = arith.constant 0 : i32
    %c0_i32_0 = arith.constant 0 : i32
    return %arg0, %c0_i32 : i32, i32
  }
  func.func @transform_1(%arg0: i32, %arg1: i32) -> (i32, i32) {
    %c0_i32 = arith.constant 0 : i32
    %c0_i32_0 = arith.constant 0 : i32
    return %c0_i32, %arg1 : i32, i32
  }
  func.func @transform_2(%arg0: i32, %arg1: i32) -> (i32, i32) {
    %c0_i32 = arith.constant 0 : i32
    %c0_i32_0 = arith.constant 0 : i32
    return %c0_i32, %arg1 : i32, i32
  }
  func.func @transform_3(%arg0: i32, %arg1: i32) -> (i32, i32) {
    %c0_i32 = arith.constant 0 : i32
    return %arg0, %arg1 : i32, i32
  }
  func.func @transform_4(%arg0: i32, %arg1: i32) -> (i32, i32) {
    %c0_i32 = arith.constant 0 : i32
    return %arg0, %arg1 : i32, i32
  }
}

module attributes {stable_mosaic.version = 11 : i64} {
  func.func @_ln_linear_kernel(%arg0: i32, %arg1: i32, %arg2: memref<32x128xf32, #tpu.memory_space<vmem>>, %arg3: memref<1x128xf32, #tpu.memory_space<vmem>>, %arg4: memref<1x128xf32, #tpu.memory_space<vmem>>, %arg5: memref<256x128xbf16, #tpu.memory_space<vmem>>, %arg6: memref<1x256xf32, #tpu.memory_space<vmem>>, %arg7: memref<32x256xf32, #tpu.memory_space<vmem>>) attributes {dimension_semantics = [#tpu.dimension_semantics<parallel>, #tpu.dimension_semantics<parallel>], iteration_bounds = array<i64: 1, 1>, scalar_prefetch = 0 : i64, scratch_operands = 0 : i64, tpu.core_type = #tpu.core_type<tc>, window_params = [{transform_indices = @transform_0, window_bounds = array<i64: 32, 128>}, {pipeline_mode = #tpu.pipeline_mode<synchronous>, transform_indices = @transform_1, window_bounds = array<i64: 1, 128>}, {pipeline_mode = #tpu.pipeline_mode<synchronous>, transform_indices = @transform_2, window_bounds = array<i64: 1, 128>}, {transform_indices = @transform_3, window_bounds = array<i64: 256, 128>}, {transform_indices = @transform_4, window_bounds = array<i64: 1, 256>}, {transform_indices = @transform_5, window_bounds = array<i64: 32, 256>}]} {
    %c0 = arith.constant 0 : index
    %c0_0 = arith.constant 0 : index
    %0 = vector.load %arg2[%c0, %c0_0] : memref<32x128xf32, #tpu.memory_space<vmem>>, vector<32x128xf32>
    %cst = arith.constant dense<0.000000e+00> : vector<32xf32>
    %1 = vector.multi_reduction <add>, %0, %cst [1] : vector<32x128xf32> to vector<32xf32>
    %2 = vector.shape_cast %1 : vector<32xf32> to vector<32x1xf32>
    %cst_1 = arith.constant 1.280000e+02 : f32
    %3 = vector.broadcast %cst_1 : f32 to vector<32x1xf32>
    %4 = arith.divf %2, %3 : vector<32x1xf32>
    %5 = vector.broadcast %4 : vector<32x1xf32> to vector<32x128xf32>
    %6 = arith.subf %0, %5 : vector<32x128xf32>
    %7 = arith.mulf %6, %6 : vector<32x128xf32>
    %cst_2 = arith.constant dense<0.000000e+00> : vector<32xf32>
    %8 = vector.multi_reduction <add>, %7, %cst_2 [1] : vector<32x128xf32> to vector<32xf32>
    %9 = vector.shape_cast %8 : vector<32xf32> to vector<32x1xf32>
    %cst_3 = arith.constant 1.280000e+02 : f32
    %10 = vector.broadcast %cst_3 : f32 to vector<32x1xf32>
    %11 = arith.divf %9, %10 : vector<32x1xf32>
    %12 = vector.broadcast %4 : vector<32x1xf32> to vector<32x128xf32>
    %13 = arith.subf %0, %12 : vector<32x128xf32>
    %cst_4 = arith.constant 9.99999974E-6 : f32
    %14 = vector.broadcast %cst_4 : f32 to vector<32x1xf32>
    %15 = arith.addf %11, %14 : vector<32x1xf32>
    %16 = math.rsqrt %15 : vector<32x1xf32>
    %17 = vector.broadcast %16 : vector<32x1xf32> to vector<32x128xf32>
    %18 = arith.mulf %13, %17 : vector<32x128xf32>
    %c0_5 = arith.constant 0 : index
    %c0_6 = arith.constant 0 : index
    %19 = vector.load %arg3[%c0_5, %c0_6] : memref<1x128xf32, #tpu.memory_space<vmem>>, vector<1x128xf32>
    %20 = vector.broadcast %19 : vector<1x128xf32> to vector<32x128xf32>
    %21 = arith.mulf %18, %20 : vector<32x128xf32>
    %c0_7 = arith.constant 0 : index
    %c0_8 = arith.constant 0 : index
    %22 = vector.load %arg4[%c0_7, %c0_8] : memref<1x128xf32, #tpu.memory_space<vmem>>, vector<1x128xf32>
    %23 = vector.broadcast %22 : vector<1x128xf32> to vector<32x128xf32>
    %24 = arith.addf %21, %23 : vector<32x128xf32>
    %25 = arith.truncf %24 : vector<32x128xf32> to vector<32x128xbf16>
    %c0_9 = arith.constant 0 : index
    %c0_10 = arith.constant 0 : index
    %26 = vector.load %arg5[%c0_9, %c0_10] : memref<256x128xbf16, #tpu.memory_space<vmem>>, vector<256x128xbf16>
    %cst_11 = arith.constant dense<0.000000e+00> : vector<32x256xf32>
    %27 = tpu.matmul %25, %26, %cst_11 {dimension_numbers = #tpu.dot_dimension_numbers<[1], [1], [0], [0], [0, 0, 1, 0], [], []>} : vector<32x128xbf16>, vector<256x128xbf16>, vector<32x256xf32> -> vector<32x256xf32>
    %c0_12 = arith.constant 0 : index
    %c0_13 = arith.constant 0 : index
    %28 = vector.load %arg6[%c0_12, %c0_13] : memref<1x256xf32, #tpu.memory_space<vmem>>, vector<1x256xf32>
    %29 = vector.broadcast %28 : vector<1x256xf32> to vector<32x256xf32>
    %30 = arith.addf %27, %29 : vector<32x256xf32>
    %c0_14 = arith.constant 0 : index
    %c0_15 = arith.constant 0 : index
    %31 = vector.load %arg7[%c0_14, %c0_15] : memref<32x256xf32, #tpu.memory_space<vmem>>, vector<32x256xf32>
    tpu.vector_store %arg7[%c0_14, %c0_15], %30 {strides = array<i32>} : memref<32x256xf32, #tpu.memory_space<vmem>>, vector<32x256xf32>,
    return
  }
  func.func @transform_0(%arg0: i32, %arg1: i32) -> (i32, i32) {
    %c0_i32 = arith.constant 0 : i32
    %c0_i32_0 = arith.constant 0 : i32
    return %arg0, %c0_i32 : i32, i32
  }
  func.func @transform_1(%arg0: i32, %arg1: i32) -> (i32, i32) {
    %c0_i32 = arith.constant 0 : i32
    %c0_i32_0 = arith.constant 0 : i32
    %c0_i32_1 = arith.constant 0 : i32
    return %c0_i32, %c0_i32_0 : i32, i32
  }
  func.func @transform_2(%arg0: i32, %arg1: i32) -> (i32, i32) {
    %c0_i32 = arith.constant 0 : i32
    %c0_i32_0 = arith.constant 0 : i32
    %c0_i32_1 = arith.constant 0 : i32
    return %c0_i32, %c0_i32_0 : i32, i32
  }
  func.func @transform_3(%arg0: i32, %arg1: i32) -> (i32, i32) {
    %c0_i32 = arith.constant 0 : i32
    %c0_i32_0 = arith.constant 0 : i32
    return %arg1, %c0_i32 : i32, i32
  }
  func.func @transform_4(%arg0: i32, %arg1: i32) -> (i32, i32) {
    %c0_i32 = arith.constant 0 : i32
    %c0_i32_0 = arith.constant 0 : i32
    return %c0_i32, %arg1 : i32, i32
  }
  func.func @transform_5(%arg0: i32, %arg1: i32) -> (i32, i32) {
    %c0_i32 = arith.constant 0 : i32
    return %arg0, %arg1 : i32, i32
  }
}

</mosaic_0001>

<llo_original>
// kernel: clip_caption_forward.13
$region0: #{clip_caption_forward.13}
  #allocation0 [shape = 'u32[]', space=smem, size = 0x4, offset = 0x4, fixed_abs, tag = 'smem constant byte address 0x4 - core index']
  #allocation1 [shape = 'u32[144,128]{1,0:T(1,128)}', space=vmem, size = 0x12000, scoped, tag = 'internal scratch']
  #allocation2 [shape = 'f32[2,512]{1,0:T(2,128)}', space=vmem, size = 0x1000, scoped, tag = 'scratch operand']
  %s0 = inlined_call_operand.vmem [shape: bf16[2,128], index: 0, kind: input, shape index: {}]
  %s1 = inlined_call_operand.vmem [shape: bf16[128,512], index: 1, kind: input, shape index: {}]
  %s2 = inlined_call_operand.vmem [shape: f32[1,512], index: 2, kind: input, shape index: {}]
  %s3 = inlined_call_operand.vmem [shape: bf16[2,512], index: 3, kind: output, shape index: {}]
  %s4 = sld [smem:[#allocation0]]
  $region30: #{clip_caption_forward.13} parent=0
    _
  %s6 = ssub.s32 1, %s4
  %s7 = scalar_select 0, %s6, %s4
  // Predicated region
  $region2: #{clip_caption_forward.13} parent=0 // pred_check
    _
  $region3: #{clip_caption_forward.13} parent=0 // pred_check_branch
    %9 = sbr.rel (0) target = $region5
  $region4: #{clip_caption_forward.13} parent=0 // pred_region
    _
  $region5: #{clip_caption_forward.13} parent=0 // pred_fallthru
    _
  // Predicated region
  $region6: #{clip_caption_forward.13} parent=0 // pred_check
    _
  $region7: #{clip_caption_forward.13} parent=0 // pred_check_branch
    %11 = sbr.rel (0) target = $region9
  $region8: #{clip_caption_forward.13} parent=0 // pred_region
    _
  $region9: #{clip_caption_forward.13} parent=0 // pred_fallthru
    _
  // Predicated region
  $region10: #{clip_caption_forward.13} parent=0 // pred_check
    _
  $region11: #{clip_caption_forward.13} parent=0 // pred_check_branch
    %13 = sbr.rel (0) target = $region13
  $region12: #{clip_caption_forward.13} parent=0 // pred_region
    _
  $region13: #{clip_caption_forward.13} parent=0 // pred_fallthru
    _
  %p15 = scmp.eq.s32.totalorder 0, 0
  // Predicated region
  $region14: #{clip_caption_forward.13} parent=0 // pred_check
    %p16 = pneg %p15
  $region15: #{clip_caption_forward.13} parent=0 // pred_check_branch
    %18 = sbr.rel (%p16) target = $region17
  $region16: #{clip_caption_forward.13} parent=0 // pred_region
    %19 = vst [vmem:[#allocation2] sm:$0xff] 0.0
  $region17: #{clip_caption_forward.13} parent=0 // pred_fallthru
    _
  %v20 = vld [vmem:[#allocation2] sm:$0xff]
  %v21 = vld [vmem:[%s0] sm:$0x1]
  %v22 = vld [vmem:[%s1] sm:$0xff]
  %v23 = vld [vmem:[%s1 + $0x8] sm:$0xff]
  %v24 = vld [vmem:[%s1 + $0x10] sm:$0xff]
  %v25 = vld [vmem:[%s1 + $0x18] sm:$0xff]
  %v26 = vld [vmem:[%s1 + $0x20] sm:$0xff]
  %v27 = vld [vmem:[%s1 + $0x28] sm:$0xff]
  %v28 = vld [vmem:[%s1 + $0x30] sm:$0xff]
  %v29 = vld [vmem:[%s1 + $0x38] sm:$0xff]
  %v30 = vld [vmem:[%s1 + $0x40] sm:$0xff]
  %v31 = vld [vmem:[%s1 + $0x48] sm:$0xff]
  %v32 = vld [vmem:[%s1 + $0x50] sm:$0xff]
  %v33 = vld [vmem:[%s1 + $0x58] sm:$0xff]
  %v34 = vld [vmem:[%s1 + $0x60] sm:$0xff]
  %v35 = vld [vmem:[%s1 + $0x68] sm:$0xff]
  %v36 = vld [vmem:[%s1 + $0x70] sm:$0xff]
  %v37 = vld [vmem:[%s1 + $0x78] sm:$0xff]
  %v38 = vld [vmem:[%s1 + $0x80] sm:$0xff]
  %v39 = vld [vmem:[%s1 + $0x88] sm:$0xff]
  %v40 = vld [vmem:[%s1 + $0x90] sm:$0xff]
  %v41 = vld [vmem:[%s1 + $0x98] sm:$0xff]
  %v42 = vld [vmem:[%s1 + $0xa0] sm:$0xff]
  %v43 = vld [vmem:[%s1 + $0xa8] sm:$0xff]
  %v44 = vld [vmem:[%s1 + $0xb0] sm:$0xff]
  %v45 = vld [vmem:[%s1 + $0xb8] sm:$0xff]
  %v46 = vld [vmem:[%s1 + $0xc0] sm:$0xff]
  %v47 = vld [vmem:[%s1 + $0xc8] sm:$0xff]
  %v48 = vld [vmem:[%s1 + $0xd0] sm:$0xff]
  %v49 = vld [vmem:[%s1 + $0xd8] sm:$0xff]
  %v50 = vld [vmem:[%s1 + $0xe0] sm:$0xff]
  %v51 = vld [vmem:[%s1 + $0xe8] sm:$0xff]
  %v52 = vld [vmem:[%s1 + $0xf0] sm:$0xff]
  %v53 = vld [vmem:[%s1 + $0xf8] sm:$0xff]
  %v86 = vunpack.c.l.b16 %v22
  %v87 = vunpack.c.h.b16 %v22
  %v88 = vunpack.c.l.b16 %v23
  %v89 = vunpack.c.h.b16 %v23
  %v90 = vunpack.c.l.b16 %v24
  %v91 = vunpack.c.h.b16 %v24
  %v92 = vunpack.c.l.b16 %v25
  %v93 = vunpack.c.h.b16 %v25
  %v94 = vunpack.c.l.b16 %v26
  %v95 = vunpack.c.h.b16 %v26
  %v96 = vunpack.c.l.b16 %v27
  %v97 = vunpack.c.h.b16 %v27
  %v98 = vunpack.c.l.b16 %v28
  %v99 = vunpack.c.h.b16 %v28
  %v100 = vunpack.c.l.b16 %v29
  %v101 = vunpack.c.h.b16 %v29
  %v102 = vunpack.c.l.b16 %v30
  %v103 = vunpack.c.h.b16 %v30
  %v104 = vunpack.c.l.b16 %v31
  %v105 = vunpack.c.h.b16 %v31
  %v106 = vunpack.c.l.b16 %v32
  %v107 = vunpack.c.h.b16 %v32
  %v108 = vunpack.c.l.b16 %v33
  %v109 = vunpack.c.h.b16 %v33
  %v110 = vunpack.c.l.b16 %v34
  %v111 = vunpack.c.h.b16 %v34
  %v112 = vunpack.c.l.b16 %v35
  %v113 = vunpack.c.h.b16 %v35
  %v114 = vunpack.c.l.b16 %v36
  %v115 = vunpack.c.h.b16 %v36
  %v116 = vunpack.c.l.b16 %v37
  %v117 = vunpack.c.h.b16 %v37
  %v118 = vunpack.c.l.b16 %v38
  %v119 = vunpack.c.h.b16 %v38
  %v120 = vunpack.c.l.b16 %v39
  %v121 = vunpack.c.h.b16 %v39
  %v122 = vunpack.c.l.b16 %v40
  %v123 = vunpack.c.h.b16 %v40
  %v124 = vunpack.c.l.b16 %v41
  %v125 = vunpack.c.h.b16 %v41
  %v126 = vunpack.c.l.b16 %v42
  %v127 = vunpack.c.h.b16 %v42
  %v128 = vunpack.c.l.b16 %v43
  %v129 = vunpack.c.h.b16 %v43
  %v130 = vunpack.c.l.b16 %v44
  %v131 = vunpack.c.h.b16 %v44
  %v132 = vunpack.c.l.b16 %v45
  %v133 = vunpack.c.h.b16 %v45
  %v134 = vunpack.c.l.b16 %v46
  %v135 = vunpack.c.h.b16 %v46
  %v136 = vunpack.c.l.b16 %v47
  %v137 = vunpack.c.h.b16 %v47
  %v138 = vunpack.c.l.b16 %v48
  %v139 = vunpack.c.h.b16 %v48
  %v140 = vunpack.c.l.b16 %v49
  %v141 = vunpack.c.h.b16 %v49
  %v142 = vunpack.c.l.b16 %v50
  %v143 = vunpack.c.h.b16 %v50
  %v144 = vunpack.c.l.b16 %v51
  %v145 = vunpack.c.h.b16 %v51
  %v146 = vunpack.c.l.b16 %v52
  %v147 = vunpack.c.h.b16 %v52
  %v148 = vunpack.c.l.b16 %v53
  %v149 = vunpack.c.h.b16 %v53
  %v150 = vpack.c.b16 %v90, %v86
  %v151 = vpack.c.b16 %v91, %v87
  %v152 = vpack.c.b16 %v92, %v88
  %v153 = vpack.c.b16 %v93, %v89
  %v154 = vpack.c.b16 %v98, %v94
  %v155 = vpack.c.b16 %v99, %v95
  %v156 = vpack.c.b16 %v100, %v96
  %v157 = vpack.c.b16 %v101, %v97
  %v158 = vpack.c.b16 %v106, %v102
  %v159 = vpack.c.b16 %v107, %v103
  %v160 = vpack.c.b16 %v108, %v104
  %v161 = vpack.c.b16 %v109, %v105
  %v162 = vpack.c.b16 %v114, %v110
  %v163 = vpack.c.b16 %v115, %v111
  %v164 = vpack.c.b16 %v116, %v112
  %v165 = vpack.c.b16 %v117, %v113
  %v166 = vpack.c.b16 %v122, %v118
  %v167 = vpack.c.b16 %v123, %v119
  %v168 = vpack.c.b16 %v124, %v120
  %v169 = vpack.c.b16 %v125, %v121
  %v170 = vpack.c.b16 %v130, %v126
  %v171 = vpack.c.b16 %v131, %v127
  %v172 = vpack.c.b16 %v132, %v128
  %v173 = vpack.c.b16 %v133, %v129
  %v174 = vpack.c.b16 %v138, %v134
  %v175 = vpack.c.b16 %v139, %v135
  %v176 = vpack.c.b16 %v140, %v136
  %v177 = vpack.c.b16 %v141, %v137
  %v178 = vpack.c.b16 %v146, %v142
  %v179 = vpack.c.b16 %v147, %v143
  %v180 = vpack.c.b16 %v148, %v144
  %v181 = vpack.c.b16 %v149, %v145
  %214 = vmatprep.subr.bf16.mxu0 %v151
  %215 = vmatpush1.bf16.msra.mxu0 %v150
  %216 = vmatprep.subr.bf16.mxu0 %v155
  %217 = vmatpush1.bf16.msra.mxu0 %v154
  %218 = vmatprep.subr.bf16.mxu0 %v159
  %219 = vmatpush1.bf16.msra.mxu0 %v158
  %220 = vmatprep.subr.bf16.mxu0 %v163
  %221 = vmatpush1.bf16.msra.mxu0 %v162
  %222 = vmatprep.subr.bf16.mxu0 %v167
  %223 = vmatpush1.bf16.msra.mxu0 %v166
  %224 = vmatprep.subr.bf16.mxu0 %v171
  %225 = vmatpush1.bf16.msra.mxu0 %v170
  %226 = vmatprep.subr.bf16.mxu0 %v175
  %227 = vmatpush1.bf16.msra.mxu0 %v174
  %228 = vmatprep.subr.bf16.mxu0 %v179
  %229 = vmatpush1.bf16.msra.mxu0 %v178
  %230 = vmatprep.subr.bf16.mxu0 0
  %231 = vmatpush1.bf16.msra.mxu0 0
  %232 = vmatprep.subr.bf16.mxu0 0
  %233 = vmatpush1.bf16.msra.mxu0 0
  %234 = vmatprep.subr.bf16.mxu0 0
  %235 = vmatpush1.bf16.msra.mxu0 0
  %236 = vmatprep.subr.bf16.mxu0 0
  %237 = vmatpush1.bf16.msra.mxu0 0
  %238 = vmatprep.subr.bf16.mxu0 0
  %239 = vmatpush1.bf16.msra.mxu0 0
  %240 = vmatprep.subr.bf16.mxu0 0
  %241 = vmatpush1.bf16.msra.mxu0 0
  %242 = vmatprep.subr.bf16.mxu0 0
  %243 = vmatpush1.bf16.msra.mxu0 0
  %244 = vmatprep.subr.bf16.mxu0 0
  %245 = vmatpush1.bf16.msra.mxu0 0
  %246 = vmatprep.mubr.bf16.mxu0 0
  %247 = vmatmul.mubr.bf16.gmra.mrb[0].mxu0 %v21
  %v248 = vpop.f32.mrb[0].mxu0
  %v249 = vadd.f32 0.0, %v248
  %v250 = vpop.f32.mrb[0].mxu0
  %v251 = vadd.f32 0.0, %v250
  %v252 = vpop.f32.mrb[0].mxu0
  %v253 = vpop.f32.mrb[0].mxu0
  %254 = vdwg.mxu0
  %255 = vmatprep.subr.bf16.mxu0 %v153
  %256 = vmatpush1.bf16.msra.mxu0 %v152
  %257 = vmatprep.subr.bf16.mxu0 %v157
  %258 = vmatpush1.bf16.msra.mxu0 %v156
  %259 = vmatprep.subr.bf16.mxu0 %v161
  %260 = vmatpush1.bf16.msra.mxu0 %v160
  %261 = vmatprep.subr.bf16.mxu0 %v165
  %262 = vmatpush1.bf16.msra.mxu0 %v164
  %263 = vmatprep.subr.bf16.mxu0 %v169
  %264 = vmatpush1.bf16.msra.mxu0 %v168
  %265 = vmatprep.subr.bf16.mxu0 %v173
  %266 = vmatpush1.bf16.msra.mxu0 %v172
  %267 = vmatprep.subr.bf16.mxu0 %v177
  %268 = vmatpush1.bf16.msra.mxu0 %v176
  %269 = vmatprep.subr.bf16.mxu0 %v181
  %270 = vmatpush1.bf16.msra.mxu0 %v180
  %271 = vmatprep.subr.bf16.mxu0 0
  %272 = vmatpush1.bf16.msra.mxu0 0
  %273 = vmatprep.subr.bf16.mxu0 0
  %274 = vmatpush1.bf16.msra.mxu0 0
  %275 = vmatprep.subr.bf16.mxu0 0
  %276 = vmatpush1.bf16.msra.mxu0 0
  %277 = vmatprep.subr.bf16.mxu0 0
  %278 = vmatpush1.bf16.msra.mxu0 0
  %279 = vmatprep.subr.bf16.mxu0 0
  %280 = vmatpush1.bf16.msra.mxu0 0
  %281 = vmatprep.subr.bf16.mxu0 0
  %282 = vmatpush1.bf16.msra.mxu0 0
  %283 = vmatprep.subr.bf16.mxu0 0
  %284 = vmatpush1.bf16.msra.mxu0 0
  %285 = vmatprep.subr.bf16.mxu0 0
  %286 = vmatpush1.bf16.msra.mxu0 0
  %287 = vmatprep.mubr.bf16.mxu0 0
  %288 = vmatmul.mubr.bf16.gmra.mrb[0].mxu0 %v21
  %v289 = vpop.f32.mrb[0].mxu0
  %v290 = vadd.f32 0.0, %v289
  %v291 = vpop.f32.mrb[0].mxu0
  %v292 = vadd.f32 0.0, %v291
  %v293 = vpop.f32.mrb[0].mxu0
  %v294 = vpop.f32.mrb[0].mxu0
  %295 = vdwg.mxu0
  %v300 = vcombine.low %v249, %v251
  %v301 = vcombine.low %v290, %v292
  %v303 = vunpack.c.l.s4 1983009808
  %v304 = vunpack.c.0.s8 %v303
  %v305 = vlaneseq
  %v306 = vshrl.u32 %v305, 7
  %v307 = vsub.s32 %v304, %v306
  %v308 = vrot.slane %v300, %v307
  %v310 = vunpack.c.l.s4 1983009808
  %v311 = vunpack.c.0.s8 %v310
  %v312 = vlaneseq
  %v313 = vshrl.u32 %v312, 7
  %v314 = vsub.s32 %v311, %v313
  %v315 = vrot.slane %v301, %v314
  %v316 = vcombine.low %v308, %v315
  %v318 = vadd.f32 %v20, %v316
  %319 = vst [vmem:[#allocation2] sm:$0xff] %v318
  // Predicated region
  $region18: #{clip_caption_forward.13} parent=0 // pred_check
    %p320 = pneg %p15
  $region19: #{clip_caption_forward.13} parent=0 // pred_check_branch
    %322 = sbr.rel (%p320) target = $region21
  $region20: #{clip_caption_forward.13} parent=0 // pred_region
    %v323 = vld [vmem:[#allocation2] sm:$0xff]
    %v324 = vld [vmem:[%s2] sm:$0xf]
    %v326 = vlaneseq
    %v327 = vshrl.u32 %v326, 7
    %v328 = vsub.s32 0, %v327
    %v329 = vrot.slane %v324, %v328
    %v330 = vlaneseq
    %v331 = vshrl.u32 %v330, 7
    %v332 = vsub.s32 1, %v331
    %v333 = vrot.slane %v324, %v332
    %v334 = vlaneseq
    %v335 = vshrl.u32 %v334, 7
    %v336 = vsub.s32 2, %v335
    %v337 = vrot.slane %v324, %v336
    %v338 = vlaneseq
    %v339 = vshrl.u32 %v338, 7
    %v340 = vsub.s32 3, %v339
    %v341 = vrot.slane %v324, %v340
    %v342 = vcombine.low %v329, %v333
    %v343 = vcombine.low %v337, %v341
    %v345 = vunpack.c.l.s4 1983009808
    %v346 = vunpack.c.0.s8 %v345
    %v347 = vlaneseq
    %v348 = vshrl.u32 %v347, 7
    %v349 = vsub.s32 %v346, %v348
    %v350 = vrot.slane %v342, %v349
    %v352 = vunpack.c.l.s4 1983009808
    %v353 = vunpack.c.0.s8 %v352
    %v354 = vlaneseq
    %v355 = vshrl.u32 %v354, 7
    %v356 = vsub.s32 %v353, %v355
    %v357 = vrot.slane %v343, %v356
    %v358 = vcombine.low %v350, %v357
    %v360 = vadd.f32 %v323, %v358
    %v361 = vtanh.pop %v360
    %v363 = vcombine.high %v361, %v361
    %v365 = vunpack.c.l.s4 1983009808
    %v366 = vunpack.c.0.s8 %v365
    %v367 = vlaneseq
    %v368 = vshrl.u32 %v367, 7
    %v369 = vsub.s32 %v366, %v368
    %v370 = vrot.slane %v361, %v369
    %v372 = vunpack.c.l.s4 1983009808
    %v373 = vunpack.c.0.s8 %v372
    %v374 = vlaneseq
    %v375 = vshrl.u32 %v374, 7
    %v376 = vsub.s32 %v373, %v375
    %v377 = vrot.slane %v363, %v376
    %v378 = vcombine.high %v370, %v370
    %v379 = vcombine.high %v377, %v377
    %v384 = vpack.c.bf16 %v370, %v370
    %v385 = vpack.c.bf16 %v378, %v378
    %v386 = vpack.c.bf16 %v377, %v377
    %v387 = vpack.c.bf16 %v379, %v379
    %v392 = vcombine.low %v384, %v385
    %v393 = vcombine.low %v386, %v387
    %v395 = vunpack.c.l.s4 1966171168
    %v396 = vunpack.c.0.s8 %v395
    %v397 = vlaneseq
    %v398 = vshrl.u32 %v397, 7
    %v399 = vsub.s32 %v396, %v398
    %v400 = vrot.slane %v392, %v399
    %v402 = vunpack.c.l.s4 1966171168
    %v403 = vunpack.c.0.s8 %v402
    %v404 = vlaneseq
    %v405 = vshrl.u32 %v404, 7
    %v406 = vsub.s32 %v403, %v405
    %v407 = vrot.slane %v393, %v406
    %v408 = vcombine.low %v400, %v407
    %v410 = vunpack.c.l.s4 1966171168
    %v411 = vunpack.c.0.s8 %v410
    %v412 = vlaneseq
    %v413 = vshrl.u32 %v412, 7
    %v414 = vsub.s32 %v411, %v413
    %v415 = vrot.slane %v408, %v414
    %417 = vst [vmem:[%s3] sm:$0xf] %v415
  $region21: #{clip_caption_forward.13} parent=0 // pred_fallthru
    _
  // Predicated region
  $region22: #{clip_caption_forward.13} parent=0 // pred_check
    _
  $region23: #{clip_caption_forward.13} parent=0 // pred_check_branch
    %419 = sbr.rel (0) target = $region25
  $region24: #{clip_caption_forward.13} parent=0 // pred_region
    _
  $region25: #{clip_caption_forward.13} parent=0 // pred_fallthru
    _
  // Predicated region
  $region26: #{clip_caption_forward.13} parent=0 // pred_check
    _
  $region27: #{clip_caption_forward.13} parent=0 // pred_check_branch
    %421 = sbr.rel (0) target = $region29
  $region28: #{clip_caption_forward.13} parent=0 // pred_region
    _
  $region29: #{clip_caption_forward.13} parent=0 // pred_fallthru
    _

// kernel: clip_caption_forward.15
$region0: #{clip_caption_forward.15}
  #allocation0 [shape = 'u32[]', space=smem, size = 0x4, offset = 0x4, fixed_abs, tag = 'smem constant byte address 0x4 - core index']
  #allocation1 [shape = 'u32[144,128]{1,0:T(1,128)}', space=vmem, size = 0x12000, scoped, tag = 'internal scratch']
  %s0 = inlined_call_operand.vmem [shape: f32[32,128], index: 0, kind: input, shape index: {}]
  %s1 = inlined_call_operand.vmem [shape: f32[1,128], index: 1, kind: input, shape index: {}]
  %s2 = inlined_call_operand.vmem [shape: f32[1,128], index: 2, kind: input, shape index: {}]
  %s3 = inlined_call_operand.vmem [shape: bf16[128,384], index: 3, kind: input, shape index: {}]
  %s4 = inlined_call_operand.vmem [shape: f32[1,384], index: 4, kind: input, shape index: {}]
  %s5 = inlined_call_operand.vmem [shape: bf16[32,384], index: 5, kind: output, shape index: {}]
  %s6 = sld [smem:[#allocation0]]
  $region131: #{clip_caption_forward.15} parent=0
    _
  %s8 = ssub.s32 1, %s6
  %s9 = scalar_select 0, %s8, %s6
  $region1: #{clip_caption_forward.15} parent=0
    #allocation2 [shape = 'u8[65536]{0}', space=vmem, size = 0x10000, scoped, tag = 'input window, operand 3']
    #allocation3 [shape = 'u8[16384]{0}', space=vmem, size = 0x4000, scoped, tag = 'output window, operand 0']
    loop: start=0, step=1, limit=5
    $region2: #{clip_caption_forward.15} parent=1 // loop_pre_header
      _
    $region3: #{clip_caption_forward.15} parent=1 // loop_header
      %s11 = sphi 0, %s15
      %p12 = scmp.ge.s32.totalorder %s11, 5
      %s18 = sphi 0, %s30
      %s19 = sphi 0, %s26
      %s20 = sphi 0, %s18
      %s21 = sphi 0, %s19
      %s22 = sphi 0, %s20
      %s23 = sphi 0, %s21
      %s33 = sphi 0, %s35
      %s36 = sphi 0, %s33
      %s37 = sphi 0, %s36
      %s53 = sphi 0, %s37
      %s57 = sphi 0, %s57
      %s59 = sphi 0, %s57
      %s60 = sphi 0, %s59
      %s74 = sphi 0, %s60
      %s78 = sphi 0, %s78
      %s80 = sphi 0, %s78
      %s81 = sphi 0, %s80
      %s95 = sphi 0, %s81
      %s101 = sphi 0, %s103
      %s104 = sphi 0, %s101
      %s105 = sphi 0, %s104
      %s121 = sphi 0, %s105
      %s127 = sphi 0, %s129
      %s130 = sphi 0, %s127
      %s131 = sphi 0, %s130
      %s147 = sphi 0, %s131
      %s155 = sphi 0, %s157
      %s158 = sphi 0, %s155
      %s159 = sphi 0, %s158
      %s175 = sphi 0, %s159
    $region4: #{clip_caption_forward.15} parent=1 // loop_header_branch
      %14 = sbr.rel (%p12) target = $region8
    $region5: #{clip_caption_forward.15} parent=1 // loop_body
      %s16 = ssub.s32 %s11, 1
      %s17 = ssub.s32 %s11, 2
      %s24 = sadd.s32 1, %s19
      %p25 = scmp.ge.s32.totalorder %s24, 3
      %s26 = scalar_select %p25, 0, %s24
      %s27 = sadd.s32 1, %s18
      %s28 = scalar_select %p25, %s27, %s18
      %p29 = scmp.ge.s32.totalorder %s28, 1
      %s30 = scalar_select %p29, 0, %s28
      %s31 = ssub.s32 %s18, %s30
      %p32 = scmp.eq.s32.totalorder %s31, 0
      %s34 = sadd.s32 %s33, 1
      %s35 = scalar_select %p32, %s33, %s34
      %p38 = pneg %p32
      %p39 = scmp.eq.s32.totalorder %s11, 2
      %p40 = por %p38, %p39
      %p41 = scmp.ne.s32.totalorder %s33, %s36
      %p42 = scmp.eq.s32.totalorder %s11, 0
      %p43 = por %p41, %p42
      %p44 = scmp.ne.s32.totalorder %s33, %s36
      %p45 = scmp.eq.s32.totalorder %s16, 2
      %p46 = por %p44, %p45
      %p47 = scmp.ne.s32.totalorder %s36, %s37
      %p48 = scmp.eq.s32.totalorder %s16, 0
      %p49 = por %p47, %p48
      %p50 = scmp.ne.s32.totalorder %s36, %s37
      %p51 = scmp.eq.s32.totalorder %s17, 2
      %p52 = por %p50, %p51
      %p54 = scmp.ne.s32.totalorder %s37, %s53
      %p55 = scmp.eq.s32.totalorder %s17, 0
      %p56 = por %p54, %p55
      %s58 = sadd.s32 %s57, 1
      %p61 = scmp.eq.s32.totalorder %s11, 2
      %p62 = scmp.ne.s32.totalorder %s57, %s59
      %p63 = scmp.eq.s32.totalorder %s11, 0
      %p64 = por %p62, %p63
      %p65 = scmp.ne.s32.totalorder %s57, %s59
      %p66 = scmp.eq.s32.totalorder %s16, 2
      %p67 = por %p65, %p66
      %p68 = scmp.ne.s32.totalorder %s59, %s60
      %p69 = scmp.eq.s32.totalorder %s16, 0
      %p70 = por %p68, %p69
      %p71 = scmp.ne.s32.totalorder %s59, %s60
      %p72 = scmp.eq.s32.totalorder %s17, 2
      %p73 = por %p71, %p72
      %p75 = scmp.ne.s32.totalorder %s60, %s74
      %p76 = scmp.eq.s32.totalorder %s17, 0
      %p77 = por %p75, %p76
      %s79 = sadd.s32 %s78, 1
      %p82 = scmp.eq.s32.totalorder %s11, 2
      %p83 = scmp.ne.s32.totalorder %s78, %s80
      %p84 = scmp.eq.s32.totalorder %s11, 0
      %p85 = por %p83, %p84
      %p86 = scmp.ne.s32.totalorder %s78, %s80
      %p87 = scmp.eq.s32.totalorder %s16, 2
      %p88 = por %p86, %p87
      %p89 = scmp.ne.s32.totalorder %s80, %s81
      %p90 = scmp.eq.s32.totalorder %s16, 0
      %p91 = por %p89, %p90
      %p92 = scmp.ne.s32.totalorder %s80, %s81
      %p93 = scmp.eq.s32.totalorder %s17, 2
      %p94 = por %p92, %p93
      %p96 = scmp.ne.s32.totalorder %s81, %s95
      %p97 = scmp.eq.s32.totalorder %s17, 0
      %p98 = por %p96, %p97
      %s99 = ssub.s32 %s19, %s26
      %p100 = scmp.eq.s32.totalorder %s99, 0
      %s102 = sadd.s32 %s101, 1
      %s103 = scalar_select %p100, %s101, %s102
      %p106 = pneg %p100
      %p107 = scmp.eq.s32.totalorder %s11, 2
      %p108 = por %p106, %p107
      %p109 = scmp.ne.s32.totalorder %s101, %s104
      %p110 = scmp.eq.s32.totalorder %s11, 0
      %p111 = por %p109, %p110
      %p112 = scmp.ne.s32.totalorder %s101, %s104
      %p113 = scmp.eq.s32.totalorder %s16, 2
      %p114 = por %p112, %p113
      %p115 = scmp.ne.s32.totalorder %s104, %s105
      %p116 = scmp.eq.s32.totalorder %s16, 0
      %p117 = por %p115, %p116
      %p118 = scmp.ne.s32.totalorder %s104, %s105
      %p119 = scmp.eq.s32.totalorder %s17, 2
      %p120 = por %p118, %p119
      %p122 = scmp.ne.s32.totalorder %s105, %s121
      %p123 = scmp.eq.s32.totalorder %s17, 0
      %p124 = por %p122, %p123
      %s125 = ssub.s32 %s19, %s26
      %p126 = scmp.eq.s32.totalorder %s125, 0
      %s128 = sadd.s32 %s127, 1
      %s129 = scalar_select %p126, %s127, %s128
      %p132 = pneg %p126
      %p133 = scmp.eq.s32.totalorder %s11, 2
      %p134 = por %p132, %p133
      %p135 = scmp.ne.s32.totalorder %s127, %s130
      %p136 = scmp.eq.s32.totalorder %s11, 0
      %p137 = por %p135, %p136
      %p138 = scmp.ne.s32.totalorder %s127, %s130
      %p139 = scmp.eq.s32.totalorder %s16, 2
      %p140 = por %p138, %p139
      %p141 = scmp.ne.s32.totalorder %s130, %s131
      %p142 = scmp.eq.s32.totalorder %s16, 0
      %p143 = por %p141, %p142
      %p144 = scmp.ne.s32.totalorder %s130, %s131
      %p145 = scmp.eq.s32.totalorder %s17, 2
      %p146 = por %p144, %p145
      %p148 = scmp.ne.s32.totalorder %s131, %s147
      %p149 = scmp.eq.s32.totalorder %s17, 0
      %p150 = por %p148, %p149
      %s151 = ssub.s32 %s18, %s30
      %s152 = ssub.s32 %s19, %s26
      %s153 = sor.u32 %s151, %s152
      %p154 = scmp.eq.s32.totalorder %s153, 0
      %s156 = sadd.s32 %s155, 1
      %s157 = scalar_select %p154, %s155, %s156
      %p160 = pneg %p154
      %p161 = scmp.eq.s32.totalorder %s11, 2
      %p162 = por %p160, %p161
      %p163 = scmp.ne.s32.totalorder %s155, %s158
      %p164 = scmp.eq.s32.totalorder %s11, 0
      %p165 = por %p163, %p164
      %p166 = scmp.ne.s32.totalorder %s155, %s158
      %p167 = scmp.eq.s32.totalorder %s16, 2
      %p168 = por %p166, %p167
      %p169 = scmp.ne.s32.totalorder %s158, %s159
      %p170 = scmp.eq.s32.totalorder %s16, 0
      %p171 = por %p169, %p170
      %p172 = scmp.ne.s32.totalorder %s158, %s159
      %p173 = scmp.eq.s32.totalorder %s17, 2
      %p174 = por %p172, %p173
      %p176 = scmp.ne.s32.totalorder %s159, %s175
      %p177 = scmp.eq.s32.totalorder %s17, 0
      %p178 = por %p176, %p177
      %p179 = scmp.le.s32.totalorder 1, %s11
      %p180 = scmp.lt.s32.totalorder %s11, 4
      %p181 = pnand %p179, %p180
      %p182 = pneg %p181
      // Predicated region
      $region9: #{clip_caption_forward.15} parent=5 // pred_check
        _
      $region10: #{clip_caption_forward.15} parent=5 // pred_check_branch
        %184 = sbr.rel (%p181) target = $region12
      $region11: #{clip_caption_forward.15} parent=5 // pred_region
        %s185 = ssub.s32 %s11, 1
        // Predicated region
        $region13: #{clip_caption_forward.15} parent=11 // pred_check
          %p186 = pneg %p49
        $region14: #{clip_caption_forward.15} parent=11 // pred_check_branch
          %188 = sbr.rel (%p186) target = $region16
        $region15: #{clip_caption_forward.15} parent=11 // pred_region
          %s189 = smul.u32 4, %s20
          %p190 = scmp.lt.s32.totalorder %s189, 3
          %s191 = scalar_select %p190, %s189, 3
          %s192 = smul.addr %s191, 8
          %s193 = scalar_lea.vmem %s0, %s192
          %s194 = smul.u32 4, %s20
        $region16: #{clip_caption_forward.15} parent=11 // pred_fallthru
          _
        // Predicated region
        $region17: #{clip_caption_forward.15} parent=11 // pred_check
          %p195 = pneg %p70
        $region18: #{clip_caption_forward.15} parent=11 // pred_check_branch
          %197 = sbr.rel (%p195) target = $region20
        $region19: #{clip_caption_forward.15} parent=11 // pred_region
          _
        $region20: #{clip_caption_forward.15} parent=11 // pred_fallthru
          _
        // Predicated region
        $region21: #{clip_caption_forward.15} parent=11 // pred_check
          %p198 = pneg %p91
        $region22: #{clip_caption_forward.15} parent=11 // pred_check_branch
          %200 = sbr.rel (%p198) target = $region24
        $region23: #{clip_caption_forward.15} parent=11 // pred_region
          _
        $region24: #{clip_caption_forward.15} parent=11 // pred_fallthru
          _
      $region12: #{clip_caption_forward.15} parent=5 // pred_fallthru
        _
      %p201 = scmp.lt.s32.totalorder %s11, 3
      // Predicated region
      $region25: #{clip_caption_forward.15} parent=5 // pred_check
        %p202 = pneg %p201
      $region26: #{clip_caption_forward.15} parent=5 // pred_check_branch
        %204 = sbr.rel (%p202) target = $region28
      $region27: #{clip_caption_forward.15} parent=5 // pred_region
        // Predicated region
        $region29: #{clip_caption_forward.15} parent=27 // pred_check
          %p205 = pneg %p111
        $region30: #{clip_caption_forward.15} parent=27 // pred_check_branch
          %207 = sbr.rel (%p205) target = $region32
        $region31: #{clip_caption_forward.15} parent=27 // pred_region
          %s208 = sand.u32 %s101, 1
          %s209 = sand.u32 %s101, 1
          %s210 = smul.addr %s209, 64
          %s211 = scalar_lea.vmem [#allocation2], %s210
          %s212 = smul.addr %s19, 4
          %s213 = scalar_lea.vmem %s3, %s212
          // Predicated region
          $region33: #{clip_caption_forward.15} parent=31 // pred_check
            _
          $region34: #{clip_caption_forward.15} parent=31 // pred_check_branch
            %215 = sbr.rel (0) target = $region36
          $region35: #{clip_caption_forward.15} parent=31 // pred_region
            // Predicated region
            $region37: #{clip_caption_forward.15} parent=35 // pred_check
              _
            $region38: #{clip_caption_forward.15} parent=35 // pred_check_branch
              %217 = sbr.rel target = $region40
            $region39: #{clip_caption_forward.15} parent=35 // pred_region
              // Predicated region
              $region52: #{clip_caption_forward.15} parent=39 // pred_check
                _
              $region53: #{clip_caption_forward.15} parent=39 // pred_check_branch
                %262 = sbr.rel (0) target = $region55
              $region54: #{clip_caption_forward.15} parent=39 // pred_region
                loop: start=0, step=1, limit=1
                $region56: #{clip_caption_forward.15} parent=54 // loop_pre_header
                  _
                $region57: #{clip_caption_forward.15} parent=54 // loop_header
                  %s264 = sphi 0, %s268
                  %p265 = scmp.ge.s32.totalorder %s264, 1
                  %s269 = sphi %s213, %s213
                  %s270 = sphi %s211, %s211
                $region58: #{clip_caption_forward.15} parent=54 // loop_header_branch
                  %267 = sbr.rel (%p265) target = $region62
                $region59: #{clip_caption_forward.15} parent=54 // loop_body
                  _
                $region60: #{clip_caption_forward.15} parent=54 // loop_footer
                  %s268 = sadd.s32 1, %s264
                $region61: #{clip_caption_forward.15} parent=54 // loop_footer_branch
                  %263 = sbr.rel target = $region57
                $region62: #{clip_caption_forward.15} parent=54 // loop_exit
                  _
                loop: start=0, step=1, limit=1
                $region63: #{clip_caption_forward.15} parent=54 // loop_pre_header
                  _
                $region64: #{clip_caption_forward.15} parent=54 // loop_header
                  %s273 = sphi 0, %s277
                  %p274 = scmp.ge.s32.totalorder %s273, 1
                  %s278 = sphi %s213, %s213
                  %s279 = sphi %s211, %s211
                $region65: #{clip_caption_forward.15} parent=54 // loop_header_branch
                  %276 = sbr.rel (%p274) target = $region69
                $region66: #{clip_caption_forward.15} parent=54 // loop_body
                  %v280 = vld [vmem:[%s278] sm:$0xf]
                  %281 = vst [vmem:[%s279] sm:$0xf] %v280
                  %v282 = vld [vmem:[%s278 + $0xc] sm:$0xf]
                  %283 = vst [vmem:[%s279 + $0x4] sm:$0xf] %v282
                  %v284 = vld [vmem:[%s278 + $0x18] sm:$0xf]
                  %285 = vst [vmem:[%s279 + $0x8] sm:$0xf] %v284
                  %v286 = vld [vmem:[%s278 + $0x24] sm:$0xf]
                  %287 = vst [vmem:[%s279 + $0xc] sm:$0xf] %v286
                  %v288 = vld [vmem:[%s278 + $0x30] sm:$0xf]
                  %289 = vst [vmem:[%s279 + $0x10] sm:$0xf] %v288
                  %v290 = vld [vmem:[%s278 + $0x3c] sm:$0xf]
                  %291 = vst [vmem:[%s279 + $0x14] sm:$0xf] %v290
                  %v292 = vld [vmem:[%s278 + $0x48] sm:$0xf]
                  %293 = vst [vmem:[%s279 + $0x18] sm:$0xf] %v292
                  %v294 = vld [vmem:[%s278 + $0x54] sm:$0xf]
                  %295 = vst [vmem:[%s279 + $0x1c] sm:$0xf] %v294
                  %v296 = vld [vmem:[%s278 + $0x60] sm:$0xf]
                  %297 = vst [vmem:[%s279 + $0x20] sm:$0xf] %v296
                  %v298 = vld [vmem:[%s278 + $0x6c] sm:$0xf]
                  %299 = vst [vmem:[%s279 + $0x24] sm:$0xf] %v298
                  %v300 = vld [vmem:[%s278 + $0x78] sm:$0xf]
                  %301 = vst [vmem:[%s279 + $0x28] sm:$0xf] %v300
                  %v302 = vld [vmem:[%s278 + $0x84] sm:$0xf]
                  %303 = vst [vmem:[%s279 + $0x2c] sm:$0xf] %v302
                  %v304 = vld [vmem:[%s278 + $0x90] sm:$0xf]
                  %305 = vst [vmem:[%s279 + $0x30] sm:$0xf] %v304
                  %v306 = vld [vmem:[%s278 + $0x9c] sm:$0xf]
                  %307 = vst [vmem:[%s279 + $0x34] sm:$0xf] %v306
                  %v308 = vld [vmem:[%s278 + $0xa8] sm:$0xf]
                  %309 = vst [vmem:[%s279 + $0x38] sm:$0xf] %v308
                  %v310 = vld [vmem:[%s278 + $0xb4] sm:$0xf]
                  %311 = vst [vmem:[%s279 + $0x3c] sm:$0xf] %v310
                $region67: #{clip_caption_forward.15} parent=54 // loop_footer
                  %s277 = sadd.s32 1, %s273
                $region68: #{clip_caption_forward.15} parent=54 // loop_footer_branch
                  %272 = sbr.rel target = $region64
                $region69: #{clip_caption_forward.15} parent=54 // loop_exit
                  _
              $region55: #{clip_caption_forward.15} parent=39 // pred_fallthru
                _
            $region40: #{clip_caption_forward.15} parent=35 // pred_fallthru
              _
            // Predicated region
            $region41: #{clip_caption_forward.15} parent=35 // pred_check
              _
            $region42: #{clip_caption_forward.15} parent=35 // pred_check_branch
              %219 = sbr.rel (0) target = $region44
            $region43: #{clip_caption_forward.15} parent=35 // pred_region
              loop: start=0, step=1, limit=1
              $region45: #{clip_caption_forward.15} parent=43 // loop_pre_header
                _
              $region46: #{clip_caption_forward.15} parent=43 // loop_header
                %s222 = sphi 0, %s226
                %p223 = scmp.ge.s32.totalorder %s222, 1
                %s227 = sphi %s213, %s213
                %s228 = sphi %s211, %s211
              $region47: #{clip_caption_forward.15} parent=43 // loop_header_branch
                %225 = sbr.rel (%p223) target = $region51
              $region48: #{clip_caption_forward.15} parent=43 // loop_body
                %v229 = vld [vmem:[%s227] sm:$0xf]
                %230 = vst [vmem:[%s228] sm:$0xf] %v229
                %v231 = vld [vmem:[%s227 + $0xc] sm:$0xf]
                %232 = vst [vmem:[%s228 + $0x4] sm:$0xf] %v231
                %v233 = vld [vmem:[%s227 + $0x18] sm:$0xf]
                %234 = vst [vmem:[%s228 + $0x8] sm:$0xf] %v233
                %v235 = vld [vmem:[%s227 + $0x24] sm:$0xf]
                %236 = vst [vmem:[%s228 + $0xc] sm:$0xf] %v235
                %v237 = vld [vmem:[%s227 + $0x30] sm:$0xf]
                %238 = vst [vmem:[%s228 + $0x10] sm:$0xf] %v237
                %v239 = vld [vmem:[%s227 + $0x3c] sm:$0xf]
                %240 = vst [vmem:[%s228 + $0x14] sm:$0xf] %v239
                %v241 = vld [vmem:[%s227 + $0x48] sm:$0xf]
                %242 = vst [vmem:[%s228 + $0x18] sm:$0xf] %v241
                %v243 = vld [vmem:[%s227 + $0x54] sm:$0xf]
                %244 = vst [vmem:[%s228 + $0x1c] sm:$0xf] %v243
                %v245 = vld [vmem:[%s227 + $0x60] sm:$0xf]
                %246 = vst [vmem:[%s228 + $0x20] sm:$0xf] %v245
                %v247 = vld [vmem:[%s227 + $0x6c] sm:$0xf]
                %248 = vst [vmem:[%s228 + $0x24] sm:$0xf] %v247
                %v249 = vld [vmem:[%s227 + $0x78] sm:$0xf]
                %250 = vst [vmem:[%s228 + $0x28] sm:$0xf] %v249
                %v251 = vld [vmem:[%s227 + $0x84] sm:$0xf]
                %252 = vst [vmem:[%s228 + $0x2c] sm:$0xf] %v251
                %v253 = vld [vmem:[%s227 + $0x90] sm:$0xf]
                %254 = vst [vmem:[%s228 + $0x30] sm:$0xf] %v253
                %v255 = vld [vmem:[%s227 + $0x9c] sm:$0xf]
                %256 = vst [vmem:[%s228 + $0x34] sm:$0xf] %v255
                %v257 = vld [vmem:[%s227 + $0xa8] sm:$0xf]
                %258 = vst [vmem:[%s228 + $0x38] sm:$0xf] %v257
                %v259 = vld [vmem:[%s227 + $0xb4] sm:$0xf]
                %260 = vst [vmem:[%s228 + $0x3c] sm:$0xf] %v259
              $region49: #{clip_caption_forward.15} parent=43 // loop_footer
                %s226 = sadd.s32 1, %s222
              $region50: #{clip_caption_forward.15} parent=43 // loop_footer_branch
                %221 = sbr.rel target = $region46
              $region51: #{clip_caption_forward.15} parent=43 // loop_exit
                _
            $region44: #{clip_caption_forward.15} parent=35 // pred_fallthru
              _
          $region36: #{clip_caption_forward.15} parent=31 // pred_fallthru
            _
          %312 = vnop
        $region32: #{clip_caption_forward.15} parent=27 // pred_fallthru
          _
        // Predicated region
        $region70: #{clip_caption_forward.15} parent=27 // pred_check
          %p313 = pneg %p137
        $region71: #{clip_caption_forward.15} parent=27 // pred_check_branch
          %315 = sbr.rel (%p313) target = $region73
        $region72: #{clip_caption_forward.15} parent=27 // pred_region
          %p316 = scmp.lt.s32.totalorder %s19, 2
          %s317 = scalar_select %p316, %s19, 2
          %s318 = scalar_lea.vmem %s4, %s317
        $region73: #{clip_caption_forward.15} parent=27 // pred_fallthru
          _
      $region28: #{clip_caption_forward.15} parent=5 // pred_fallthru
        _
      %p319 = scmp.le.s32.totalorder 1, %s11
      %p320 = scmp.lt.s32.totalorder %s11, 4
      %p321 = pnand %p319, %p320
      %p322 = pneg %p321
      // Predicated region
      $region74: #{clip_caption_forward.15} parent=5 // pred_check
        _
      $region75: #{clip_caption_forward.15} parent=5 // pred_check_branch
        %324 = sbr.rel (%p321) target = $region77
      $region76: #{clip_caption_forward.15} parent=5 // pred_region
        %s325 = ssub.s32 %s11, 1
        %s326 = sand.u32 %s104, 1
        %s327 = sand.u32 %s104, 1
        %s328 = smul.addr %s327, 64
        %s329 = scalar_lea.vmem [#allocation2], %s328
        // Predicated region
        $region78: #{clip_caption_forward.15} parent=76 // pred_check
          %p330 = pneg %p117
        $region79: #{clip_caption_forward.15} parent=76 // pred_check_branch
          %332 = sbr.rel (%p330) target = $region81
        $region80: #{clip_caption_forward.15} parent=76 // pred_region
          _
        $region81: #{clip_caption_forward.15} parent=76 // pred_fallthru
          _
        %s333 = smul.u32 4, %s20
        %p334 = scmp.lt.s32.totalorder %s333, 3
        %s335 = scalar_select %p334, %s333, 3
        %s336 = smul.addr %s335, 8
        %s337 = scalar_lea.vmem %s0, %s336
        %p338 = pneg %p49
        %p339 = pneg %p46
        %p340 = pneg %p70
        %p341 = pneg %p67
        %p342 = pneg %p91
        %p343 = pneg %p88
        %s344 = sand.u32 %s104, 1
        %s345 = sand.u32 %s104, 1
        %s346 = smul.addr %s345, 64
        %s347 = scalar_lea.vmem [#allocation2], %s346
        %p348 = pneg %p117
        %p349 = pneg %p114
        %p350 = scmp.lt.s32.totalorder %s21, 2
        %s351 = scalar_select %p350, %s21, 2
        %s352 = scalar_lea.vmem %s4, %s351
        %p353 = pneg %p143
        %p354 = pneg %p140
        %p355 = pneg %p171
        %p356 = pneg %p168
        %s357 = sand.u32 %s158, 1
        %s358 = sand.u32 %s158, 1
        %s359 = smul.addr %s358, 16
        %s360 = scalar_lea.vmem [#allocation3], %s359
        %s361 = smul.u32 4, %s20
        %p362 = scmp.lt.s32.totalorder %s361, 3
        %s363 = scalar_select %p362, %s361, 3
        %s364 = smul.addr %s363, 8
        %s365 = scalar_lea.vmem %s0, %s364
        %s366 = smul.u32 4, %s20
        %p367 = scmp.lt.s32.totalorder %s21, 2
        %s368 = scalar_select %p367, %s21, 2
        %s369 = scalar_lea.vmem %s4, %s368
        %s370 = smul.u32 4, %s20
        %v372 = vld [vmem:[%s365] sm:$0xff]
        %v373 = vld [vmem:[%s365 + $0x8] sm:$0xff]
        %v374 = vld [vmem:[%s365 + $0x10] sm:$0xff]
        %v375 = vld [vmem:[%s365 + $0x18] sm:$0xff]
        %376 = vadd.xlane.f32.xlu0 %v372
        %v377 = vpop.xlane.xlu0 %376
        %378 = vadd.xlane.f32.xlu0 %v373
        %v379 = vpop.xlane.xlu0 %378
        %380 = vadd.xlane.f32.xlu0 %v374
        %v381 = vpop.xlane.xlu0 %380
        %382 = vadd.xlane.f32.xlu0 %v375
        %v383 = vpop.xlane.xlu0 %382
        %v384 = vrcp.pop 128.0
        %v385 = vmul.f32 %v377, %v384
        %v386 = vmul.f32 %v379, %v384
        %v387 = vmul.f32 %v381, %v384
        %v388 = vmul.f32 %v383, %v384
        %v389 = vsub.f32 %v372, %v385
        %v390 = vsub.f32 %v373, %v386
        %v391 = vsub.f32 %v374, %v387
        %v392 = vsub.f32 %v375, %v388
        %v393 = vmul.f32 %v389, %v389
        %v394 = vmul.f32 %v390, %v390
        %v395 = vmul.f32 %v391, %v391
        %v396 = vmul.f32 %v392, %v392
        %397 = vadd.xlane.f32.xlu0 %v393
        %v398 = vpop.xlane.xlu0 %397
        %399 = vadd.xlane.f32.xlu0 %v394
        %v400 = vpop.xlane.xlu0 %399
        %401 = vadd.xlane.f32.xlu0 %v395
        %v402 = vpop.xlane.xlu0 %401
        %403 = vadd.xlane.f32.xlu0 %v396
        %v404 = vpop.xlane.xlu0 %403
        %v405 = vmul.f32 %v398, %v384
        %v406 = vmul.f32 %v400, %v384
        %v407 = vmul.f32 %v402, %v384
        %v408 = vmul.f32 %v404, %v384
        %v409 = vadd.f32 %v405, 1e-05
        %v410 = vadd.f32 %v406, 1e-05
        %v411 = vadd.f32 %v407, 1e-05
        %v412 = vadd.f32 %v408, 1e-05
        %v413 = vrsqrt.pop %v409
        %v414 = vrsqrt.pop %v410
        %v415 = vrsqrt.pop %v411
        %v416 = vrsqrt.pop %v412
        %v417 = vmul.f32 %v389, %v413
        %v418 = vmul.f32 %v390, %v414
        %v419 = vmul.f32 %v391, %v415
        %v420 = vmul.f32 %v392, %v416
        %v421 = vld [vmem:[%s1] sm:$0x1]
        %v423 = vlaneseq
        %v424 = vshrl.u32 %v423, 7
        %v425 = vsub.s32 0, %v424
        %v426 = vrot.slane %v421, %v425
        %v428 = vmul.f32 %v417, %v426
        %v429 = vmul.f32 %v418, %v426
        %v430 = vmul.f32 %v419, %v426
        %v431 = vmul.f32 %v420, %v426
        %v432 = vld [vmem:[%s2] sm:$0x1]
        %v434 = vlaneseq
        %v435 = vshrl.u32 %v434, 7
        %v436 = vsub.s32 0, %v435
        %v437 = vrot.slane %v432, %v436
        %v439 = vadd.f32 %v428, %v437
        %v440 = vadd.f32 %v429, %v437
        %v441 = vadd.f32 %v430, %v437
        %v442 = vadd.f32 %v431, %v437
        %v443 = vpack.c.bf16 %v440, %v439
        %v444 = vpack.c.bf16 %v442, %v441
        %v445 = vld [vmem:[%s329] sm:$0xf]
        %v446 = vld [vmem:[%s329 + $0x4] sm:$0xf]
        %v447 = vld [vmem:[%s329 + $0x8] sm:$0xf]
        %v448 = vld [vmem:[%s329 + $0xc] sm:$0xf]
        %v449 = vld [vmem:[%s329 + $0x10] sm:$0xf]
        %v450 = vld [vmem:[%s329 + $0x14] sm:$0xf]
        %v451 = vld [vmem:[%s329 + $0x18] sm:$0xf]
        %v452 = vld [vmem:[%s329 + $0x1c] sm:$0xf]
        %v453 = vld [vmem:[%s329 + $0x20] sm:$0xf]
        %v454 = vld [vmem:[%s329 + $0x24] sm:$0xf]
        %v455 = vld [vmem:[%s329 + $0x28] sm:$0xf]
        %v456 = vld [vmem:[%s329 + $0x2c] sm:$0xf]
        %v457 = vld [vmem:[%s329 + $0x30] sm:$0xf]
        %v458 = vld [vmem:[%s329 + $0x34] sm:$0xf]
        %v459 = vld [vmem:[%s329 + $0x38] sm:$0xf]
        %v460 = vld [vmem:[%s329 + $0x3c] sm:$0xf]
        %v461 = vld [vmem:[%s369] sm:$0x1]
        %v463 = vlaneseq
        %v464 = vshrl.u32 %v463, 7
        %v465 = vsub.s32 0, %v464
        %v466 = vrot.slane %v461, %v465
        %v484 = vunpack.c.l.b16 %v445
        %v485 = vunpack.c.l.b16 %v446
        %v486 = vunpack.c.l.b16 %v447
        %v487 = vunpack.c.l.b16 %v448
        %v488 = vunpack.c.l.b16 %v449
        %v489 = vunpack.c.l.b16 %v450
        %v490 = vunpack.c.l.b16 %v451
        %v491 = vunpack.c.l.b16 %v452
        %v492 = vunpack.c.l.b16 %v453
        %v493 = vunpack.c.l.b16 %v454
        %v494 = vunpack.c.l.b16 %v455
        %v495 = vunpack.c.l.b16 %v456
        %v496 = vunpack.c.l.b16 %v457
        %v497 = vunpack.c.l.b16 %v458
        %v498 = vunpack.c.l.b16 %v459
        %v499 = vunpack.c.l.b16 %v460
        %v500 = vpack.c.b16 %v485, %v484
        %v501 = vpack.c.b16 %v487, %v486
        %v502 = vpack.c.b16 %v489, %v488
        %v503 = vpack.c.b16 %v491, %v490
        %v504 = vpack.c.b16 %v493, %v492
        %v505 = vpack.c.b16 %v495, %v494
        %v506 = vpack.c.b16 %v497, %v496
        %v507 = vpack.c.b16 %v499, %v498
        %516 = vmatprep.subr.bf16.mxu0 0
        %517 = vmatpush1.bf16.msra.mxu0 %v500
        %518 = vmatprep.subr.bf16.mxu0 0
        %519 = vmatpush1.bf16.msra.mxu0 %v501
        %520 = vmatprep.subr.bf16.mxu0 0
        %521 = vmatpush1.bf16.msra.mxu0 %v502
        %522 = vmatprep.subr.bf16.mxu0 0
        %523 = vmatpush1.bf16.msra.mxu0 %v503
        %524 = vmatprep.subr.bf16.mxu0 0
        %525 = vmatpush1.bf16.msra.mxu0 %v504
        %526 = vmatprep.subr.bf16.mxu0 0
        %527 = vmatpush1.bf16.msra.mxu0 %v505
        %528 = vmatprep.subr.bf16.mxu0 0
        %529 = vmatpush1.bf16.msra.mxu0 %v506
        %530 = vmatprep.subr.bf16.mxu0 0
        %531 = vmatpush1.bf16.msra.mxu0 %v507
        %532 = vmatprep.subr.bf16.mxu0 0
        %533 = vmatpush1.bf16.msra.mxu0 0
        %534 = vmatprep.subr.bf16.mxu0 0
        %535 = vmatpush1.bf16.msra.mxu0 0
        %536 = vmatprep.subr.bf16.mxu0 0
        %537 = vmatpush1.bf16.msra.mxu0 0
        %538 = vmatprep.subr.bf16.mxu0 0
        %539 = vmatpush1.bf16.msra.mxu0 0
        %540 = vmatprep.subr.bf16.mxu0 0
        %541 = vmatpush1.bf16.msra.mxu0 0
        %542 = vmatprep.subr.bf16.mxu0 0
        %543 = vmatpush1.bf16.msra.mxu0 0
        %544 = vmatprep.subr.bf16.mxu0 0
        %545 = vmatpush1.bf16.msra.mxu0 0
        %546 = vmatprep.subr.bf16.mxu0 0
        %547 = vmatpush1.bf16.msra.mxu0 0
        %548 = vmatprep.mubr.bf16.mxu0 0
        %549 = vmatmul.mubr.bf16.gmra.mrb[0].mxu0 %v443
        %v550 = vpop.f32.mrb[0].mxu0
        %v551 = vadd.f32 %v466, %v550
        %v552 = vpop.f32.mrb[0].mxu0
        %v553 = vpop.f32.mrb[0].mxu0
        %v554 = vadd.f32 %v466, %v553
        %v555 = vpop.f32.mrb[0].mxu0
        %556 = vmatprep.mubr.bf16.mxu0 0
        %557 = vmatmul.mubr.bf16.gmra.mrb[0].mxu0 %v444
        %v558 = vpop.f32.mrb[0].mxu0
        %v559 = vadd.f32 %v466, %v558
        %v560 = vpop.f32.mrb[0].mxu0
        %v561 = vpop.f32.mrb[0].mxu0
        %v562 = vadd.f32 %v466, %v561
        %v563 = vpop.f32.mrb[0].mxu0
        %564 = vdwg.mxu0
        %v565 = vpack.c.bf16 %v554, %v551
        %v566 = vpack.c.bf16 %v562, %v559
        %v569 = vunpack.c.l.b16 %v565
        %v570 = vunpack.c.h.b16 %v565
        %v571 = vunpack.c.l.b16 %v566
        %v572 = vunpack.c.h.b16 %v566
        %v573 = vpack.c.b16 %v569, %v569
        %v574 = vpack.c.b16 %v570, %v570
        %v575 = vpack.c.b16 %v571, %v571
        %v576 = vpack.c.b16 %v572, %v572
        %581 = vst [vmem:[%s360] sm:$0xf] %v573
        %582 = vst [vmem:[%s360 + $0x4] sm:$0xf] %v574
        %583 = vst [vmem:[%s360 + $0x8] sm:$0xf] %v575
        %584 = vst [vmem:[%s360 + $0xc] sm:$0xf] %v576
        %s585 = sand.u32 %s158, 1
        %s586 = sand.u32 %s158, 1
        %s587 = smul.addr %s586, 16
        %s588 = scalar_lea.vmem [#allocation3], %s587
        // Predicated region
        $region82: #{clip_caption_forward.15} parent=76 // pred_check
          %p589 = pneg %p168
        $region83: #{clip_caption_forward.15} parent=76 // pred_check_branch
          %591 = sbr.rel (%p589) target = $region85
        $region84: #{clip_caption_forward.15} parent=76 // pred_region
          %s592 = smul.u32 4, %s20
          %s593 = smul.addr %s592, 3
          %s594 = sadd.s32 %s21, %s593
          %s595 = smul.addr %s594, 4
          %s596 = scalar_lea.vmem %s5, %s595
          // Predicated region
          $region86: #{clip_caption_forward.15} parent=84 // pred_check
            _
          $region87: #{clip_caption_forward.15} parent=84 // pred_check_branch
            %598 = sbr.rel (0) target = $region89
          $region88: #{clip_caption_forward.15} parent=84 // pred_region
            // Predicated region
            $region90: #{clip_caption_forward.15} parent=88 // pred_check
              _
            $region91: #{clip_caption_forward.15} parent=88 // pred_check_branch
              %600 = sbr.rel target = $region93
            $region92: #{clip_caption_forward.15} parent=88 // pred_region
              // Predicated region
              $region105: #{clip_caption_forward.15} parent=92 // pred_check
                _
              $region106: #{clip_caption_forward.15} parent=92 // pred_check_branch
                %621 = sbr.rel (0) target = $region108
              $region107: #{clip_caption_forward.15} parent=92 // pred_region
                loop: start=0, step=1, limit=1
                $region109: #{clip_caption_forward.15} parent=107 // loop_pre_header
                  _
                $region110: #{clip_caption_forward.15} parent=107 // loop_header
                  %s623 = sphi 0, %s627
                  %p624 = scmp.ge.s32.totalorder %s623, 1
                  %s628 = sphi %s588, %s588
                  %s629 = sphi %s596, %s596
                $region111: #{clip_caption_forward.15} parent=107 // loop_header_branch
                  %626 = sbr.rel (%p624) target = $region115
                $region112: #{clip_caption_forward.15} parent=107 // loop_body
                  _
                $region113: #{clip_caption_forward.15} parent=107 // loop_footer
                  %s627 = sadd.s32 1, %s623
                $region114: #{clip_caption_forward.15} parent=107 // loop_footer_branch
                  %622 = sbr.rel target = $region110
                $region115: #{clip_caption_forward.15} parent=107 // loop_exit
                  _
                loop: start=0, step=1, limit=1
                $region116: #{clip_caption_forward.15} parent=107 // loop_pre_header
                  _
                $region117: #{clip_caption_forward.15} parent=107 // loop_header
                  %s632 = sphi 0, %s636
                  %p633 = scmp.ge.s32.totalorder %s632, 1
                  %s637 = sphi %s588, %s588
                  %s638 = sphi %s596, %s596
                $region118: #{clip_caption_forward.15} parent=107 // loop_header_branch
                  %635 = sbr.rel (%p633) target = $region122
                $region119: #{clip_caption_forward.15} parent=107 // loop_body
                  %v639 = vld [vmem:[%s637] sm:$0xf]
                  %640 = vst [vmem:[%s638] sm:$0xf] %v639
                  %v641 = vld [vmem:[%s637 + $0x4] sm:$0xf]
                  %642 = vst [vmem:[%s638 + $0xc] sm:$0xf] %v641
                  %v643 = vld [vmem:[%s637 + $0x8] sm:$0xf]
                  %644 = vst [vmem:[%s638 + $0x18] sm:$0xf] %v643
                  %v645 = vld [vmem:[%s637 + $0xc] sm:$0xf]
                  %646 = vst [vmem:[%s638 + $0x24] sm:$0xf] %v645
                $region120: #{clip_caption_forward.15} parent=107 // loop_footer
                  %s636 = sadd.s32 1, %s632
                $region121: #{clip_caption_forward.15} parent=107 // loop_footer_branch
                  %631 = sbr.rel target = $region117
                $region122: #{clip_caption_forward.15} parent=107 // loop_exit
                  _
              $region108: #{clip_caption_forward.15} parent=92 // pred_fallthru
                _
            $region93: #{clip_caption_forward.15} parent=88 // pred_fallthru
              _
            // Predicated region
            $region94: #{clip_caption_forward.15} parent=88 // pred_check
              _
            $region95: #{clip_caption_forward.15} parent=88 // pred_check_branch
              %602 = sbr.rel (0) target = $region97
            $region96: #{clip_caption_forward.15} parent=88 // pred_region
              loop: start=0, step=1, limit=1
              $region98: #{clip_caption_forward.15} parent=96 // loop_pre_header
                _
              $region99: #{clip_caption_forward.15} parent=96 // loop_header
                %s605 = sphi 0, %s609
                %p606 = scmp.ge.s32.totalorder %s605, 1
                %s610 = sphi %s588, %s588
                %s611 = sphi %s596, %s596
              $region100: #{clip_caption_forward.15} parent=96 // loop_header_branch
                %608 = sbr.rel (%p606) target = $region104
              $region101: #{clip_caption_forward.15} parent=96 // loop_body
                %v612 = vld [vmem:[%s610] sm:$0xf]
                %613 = vst [vmem:[%s611] sm:$0xf] %v612
                %v614 = vld [vmem:[%s610 + $0x4] sm:$0xf]
                %615 = vst [vmem:[%s611 + $0xc] sm:$0xf] %v614
                %v616 = vld [vmem:[%s610 + $0x8] sm:$0xf]
                %617 = vst [vmem:[%s611 + $0x18] sm:$0xf] %v616
                %v618 = vld [vmem:[%s610 + $0xc] sm:$0xf]
                %619 = vst [vmem:[%s611 + $0x24] sm:$0xf] %v618
              $region102: #{clip_caption_forward.15} parent=96 // loop_footer
                %s609 = sadd.s32 1, %s605
              $region103: #{clip_caption_forward.15} parent=96 // loop_footer_branch
                %604 = sbr.rel target = $region99
              $region104: #{clip_caption_forward.15} parent=96 // loop_exit
                _
            $region97: #{clip_caption_forward.15} parent=88 // pred_fallthru
              _
          $region89: #{clip_caption_forward.15} parent=84 // pred_fallthru
            _
          %647 = vnop
        $region85: #{clip_caption_forward.15} parent=76 // pred_fallthru
          _
      $region77: #{clip_caption_forward.15} parent=5 // pred_fallthru
        _
      %p648 = scmp.le.s32.totalorder 2, %s11
      // Predicated region
      $region123: #{clip_caption_forward.15} parent=5 // pred_check
        %p649 = pneg %p648
      $region124: #{clip_caption_forward.15} parent=5 // pred_check_branch
        %651 = sbr.rel (%p649) target = $region126
      $region125: #{clip_caption_forward.15} parent=5 // pred_region
        %s652 = ssub.s32 %s11, 2
        // Predicated region
        $region127: #{clip_caption_forward.15} parent=125 // pred_check
          %p653 = pneg %p174
        $region128: #{clip_caption_forward.15} parent=125 // pred_check_branch
          %655 = sbr.rel (%p653) target = $region130
        $region129: #{clip_caption_forward.15} parent=125 // pred_region
          %s656 = sand.u32 %s159, 1
          %s657 = sand.u32 %s159, 1
          %s658 = smul.addr %s657, 16
          %s659 = scalar_lea.vmem [#allocation3], %s658
        $region130: #{clip_caption_forward.15} parent=125 // pred_fallthru
          _
      $region126: #{clip_caption_forward.15} parent=5 // pred_fallthru
        _
    $region6: #{clip_caption_forward.15} parent=1 // loop_footer
      %s15 = sadd.s32 1, %s11
    $region7: #{clip_caption_forward.15} parent=1 // loop_footer_branch
      %10 = sbr.rel target = $region3
    $region8: #{clip_caption_forward.15} parent=1 // loop_exit
      _

// kernel: clip_caption_forward.14
$region0: #{clip_caption_forward.14}
  #allocation0 [shape = 'u32[]', space=smem, size = 0x4, offset = 0x4, fixed_abs, tag = 'smem constant byte address 0x4 - core index']
  #allocation1 [shape = 'u32[144,128]{1,0:T(1,128)}', space=vmem, size = 0x12000, scoped, tag = 'internal scratch']
  #allocation2 [shape = 'f32[2,512]{1,0:T(2,128)}', space=vmem, size = 0x1000, scoped, tag = 'scratch operand']
  %s0 = inlined_call_operand.vmem [shape: bf16[2,512], index: 0, kind: input, shape index: {}]
  %s1 = inlined_call_operand.hbm [shape: bf16[512,1024], index: 1, kind: input, shape index: {}]
  %s2 = inlined_call_operand.vmem [shape: f32[1,1024], index: 2, kind: input, shape index: {}]
  %s3 = inlined_call_operand.vmem [shape: f32[2,1024], index: 3, kind: output, shape index: {}]
  %s4 = sld [smem:[#allocation0]]
  $region57: #{clip_caption_forward.14} parent=0
    _
  %s6 = ssub.s32 1, %s4
  %s7 = scalar_select 0, %s6, %s4
  $region1: #{clip_caption_forward.14} parent=0
    #allocation3 [shape = 'u8[1048576]{0}', space=vmem, size = 0x100000, scoped, tag = 'input window, operand 1']
    #allocation4 [shape = 's32[2]{0}', space=sflag, size = 0x8, scoped, tag = 'scoped memory for clip_caption_forward.14']
    %8 = vsyncpa [#allocation4], 0
    %s9 = scalar_lea.sflag [#allocation4], 1
    %10 = vsyncpa %s9, 0
    loop: start=0, step=1, limit=4
    $region2: #{clip_caption_forward.14} parent=1 // loop_pre_header
      _
    $region3: #{clip_caption_forward.14} parent=1 // loop_header
      %s12 = sphi 0, %s16
      %p13 = scmp.ge.s32.totalorder %s12, 4
      %s19 = sphi 0, %s38
      %s20 = sphi 0, %s34
      %s21 = sphi 0, %s30
      %s22 = sphi 0, %s19
      %s23 = sphi 0, %s20
      %s24 = sphi 0, %s21
      %s25 = sphi 0, %s22
      %s26 = sphi 0, %s23
      %s27 = sphi 0, %s24
      %s43 = sphi 0, %s45
      %s46 = sphi 0, %s43
      %s47 = sphi 0, %s46
      %s63 = sphi 0, %s47
      %s71 = sphi 0, %s73
      %s74 = sphi 0, %s71
      %s75 = sphi 0, %s74
      %s91 = sphi 0, %s75
      %s97 = sphi 0, %s99
      %s100 = sphi 0, %s97
      %s101 = sphi 0, %s100
      %s117 = sphi 0, %s101
      %s125 = sphi 0, %s127
      %s128 = sphi 0, %s125
      %s129 = sphi 0, %s128
      %s145 = sphi 0, %s129
    $region4: #{clip_caption_forward.14} parent=1 // loop_header_branch
      %15 = sbr.rel (%p13) target = $region8
    $region5: #{clip_caption_forward.14} parent=1 // loop_body
      %s17 = ssub.s32 %s12, 1
      %s18 = ssub.s32 %s12, 2
      %s28 = sadd.s32 1, %s21
      %p29 = scmp.ge.s32.totalorder %s28, 1
      %s30 = scalar_select %p29, 0, %s28
      %s31 = sadd.s32 1, %s20
      %s32 = scalar_select %p29, %s31, %s20
      %p33 = scmp.ge.s32.totalorder %s32, 2
      %s34 = scalar_select %p33, 0, %s32
      %s35 = sadd.s32 1, %s19
      %s36 = scalar_select %p33, %s35, %s19
      %p37 = scmp.ge.s32.totalorder %s36, 1
      %s38 = scalar_select %p37, 0, %s36
      %s39 = ssub.s32 %s19, %s38
      %s40 = ssub.s32 %s21, %s30
      %s41 = sor.u32 %s39, %s40
      %p42 = scmp.eq.s32.totalorder %s41, 0
      %s44 = sadd.s32 %s43, 1
      %s45 = scalar_select %p42, %s43, %s44
      %p48 = pneg %p42
      %p49 = scmp.eq.s32.totalorder %s12, 1
      %p50 = por %p48, %p49
      %p51 = scmp.ne.s32.totalorder %s43, %s46
      %p52 = scmp.eq.s32.totalorder %s12, 0
      %p53 = por %p51, %p52
      %p54 = scmp.ne.s32.totalorder %s43, %s46
      %p55 = scmp.eq.s32.totalorder %s17, 1
      %p56 = por %p54, %p55
      %p57 = scmp.ne.s32.totalorder %s46, %s47
      %p58 = scmp.eq.s32.totalorder %s17, 0
      %p59 = por %p57, %p58
      %p60 = scmp.ne.s32.totalorder %s46, %s47
      %p61 = scmp.eq.s32.totalorder %s18, 1
      %p62 = por %p60, %p61
      %p64 = scmp.ne.s32.totalorder %s47, %s63
      %p65 = scmp.eq.s32.totalorder %s18, 0
      %p66 = por %p64, %p65
      %s67 = ssub.s32 %s21, %s30
      %s68 = ssub.s32 %s20, %s34
      %s69 = sor.u32 %s67, %s68
      %p70 = scmp.eq.s32.totalorder %s69, 0
      %s72 = sadd.s32 %s71, 1
      %s73 = scalar_select %p70, %s71, %s72
      %p76 = pneg %p70
      %p77 = scmp.eq.s32.totalorder %s12, 1
      %p78 = por %p76, %p77
      %p79 = scmp.ne.s32.totalorder %s71, %s74
      %p80 = scmp.eq.s32.totalorder %s12, 0
      %p81 = por %p79, %p80
      %p82 = scmp.ne.s32.totalorder %s71, %s74
      %p83 = scmp.eq.s32.totalorder %s17, 1
      %p84 = por %p82, %p83
      %p85 = scmp.ne.s32.totalorder %s74, %s75
      %p86 = scmp.eq.s32.totalorder %s17, 0
      %p87 = por %p85, %p86
      %p88 = scmp.ne.s32.totalorder %s74, %s75
      %p89 = scmp.eq.s32.totalorder %s18, 1
      %p90 = por %p88, %p89
      %p92 = scmp.ne.s32.totalorder %s75, %s91
      %p93 = scmp.eq.s32.totalorder %s18, 0
      %p94 = por %p92, %p93
      %s95 = ssub.s32 %s20, %s34
      %p96 = scmp.eq.s32.totalorder %s95, 0
      %s98 = sadd.s32 %s97, 1
      %s99 = scalar_select %p96, %s97, %s98
      %p102 = pneg %p96
      %p103 = scmp.eq.s32.totalorder %s12, 1
      %p104 = por %p102, %p103
      %p105 = scmp.ne.s32.totalorder %s97, %s100
      %p106 = scmp.eq.s32.totalorder %s12, 0
      %p107 = por %p105, %p106
      %p108 = scmp.ne.s32.totalorder %s97, %s100
      %p109 = scmp.eq.s32.totalorder %s17, 1
      %p110 = por %p108, %p109
      %p111 = scmp.ne.s32.totalorder %s100, %s101
      %p112 = scmp.eq.s32.totalorder %s17, 0
      %p113 = por %p111, %p112
      %p114 = scmp.ne.s32.totalorder %s100, %s101
      %p115 = scmp.eq.s32.totalorder %s18, 1
      %p116 = por %p114, %p115
      %p118 = scmp.ne.s32.totalorder %s101, %s117
      %p119 = scmp.eq.s32.totalorder %s18, 0
      %p120 = por %p118, %p119
      %s121 = ssub.s32 %s19, %s38
      %s122 = ssub.s32 %s20, %s34
      %s123 = sor.u32 %s121, %s122
      %p124 = scmp.eq.s32.totalorder %s123, 0
      %s126 = sadd.s32 %s125, 1
      %s127 = scalar_select %p124, %s125, %s126
      %p130 = pneg %p124
      %p131 = scmp.eq.s32.totalorder %s12, 1
      %p132 = por %p130, %p131
      %p133 = scmp.ne.s32.totalorder %s125, %s128
      %p134 = scmp.eq.s32.totalorder %s12, 0
      %p135 = por %p133, %p134
      %p136 = scmp.ne.s32.totalorder %s125, %s128
      %p137 = scmp.eq.s32.totalorder %s17, 1
      %p138 = por %p136, %p137
      %p139 = scmp.ne.s32.totalorder %s128, %s129
      %p140 = scmp.eq.s32.totalorder %s17, 0
      %p141 = por %p139, %p140
      %p142 = scmp.ne.s32.totalorder %s128, %s129
      %p143 = scmp.eq.s32.totalorder %s18, 1
      %p144 = por %p142, %p143
      %p146 = scmp.ne.s32.totalorder %s129, %s145
      %p147 = scmp.eq.s32.totalorder %s18, 0
      %p148 = por %p146, %p147
      %p149 = scmp.le.s32.totalorder 1, %s12
      %p150 = scmp.lt.s32.totalorder %s12, 3
      %p151 = pnand %p149, %p150
      %p152 = pneg %p151
      // Predicated region
      $region9: #{clip_caption_forward.14} parent=5 // pred_check
        _
      $region10: #{clip_caption_forward.14} parent=5 // pred_check_branch
        %154 = sbr.rel (%p151) target = $region12
      $region11: #{clip_caption_forward.14} parent=5 // pred_region
        %s155 = ssub.s32 %s12, 1
        // Predicated region
        $region13: #{clip_caption_forward.14} parent=11 // pred_check
          %p156 = pneg %p59
        $region14: #{clip_caption_forward.14} parent=11 // pred_check_branch
          %158 = sbr.rel (%p156) target = $region16
        $region15: #{clip_caption_forward.14} parent=11 // pred_region
          %s159 = smul.u32 4, %s24
          %p160 = scmp.lt.s32.totalorder %s22, 0
          %s161 = scalar_select %p160, %s22, 0
          %p162 = scmp.lt.s32.totalorder %s159, 3
          %s163 = scalar_select %p162, %s159, 3
          %s164 = smul.addr %s161, 4
          %s165 = sadd.s32 %s163, %s164
          %s166 = scalar_lea.vmem %s0, %s165
          %s167 = smul.u32 4, %s24
        $region16: #{clip_caption_forward.14} parent=11 // pred_fallthru
          _
      $region12: #{clip_caption_forward.14} parent=5 // pred_fallthru
        _
      %p168 = scmp.lt.s32.totalorder %s12, 2
      // Predicated region
      $region17: #{clip_caption_forward.14} parent=5 // pred_check
        %p169 = pneg %p168
      $region18: #{clip_caption_forward.14} parent=5 // pred_check_branch
        %171 = sbr.rel (%p169) target = $region20
      $region19: #{clip_caption_forward.14} parent=5 // pred_region
        // Predicated region
        $region21: #{clip_caption_forward.14} parent=19 // pred_check
          %p172 = pneg %p81
        $region22: #{clip_caption_forward.14} parent=19 // pred_check_branch
          %174 = sbr.rel (%p172) target = $region24
        $region23: #{clip_caption_forward.14} parent=19 // pred_region
          %s175 = sand.u32 %s71, 1
          %s176 = scalar_lea.sflag [#allocation4], %s175
          %s177 = sand.u32 %s71, 1
          %s178 = smul.addr %s177, 1024
          %s179 = scalar_lea.vmem [#allocation3], %s178
          %s180 = smul.u32 64, %s21
          %s181 = smul.u32 4, %s20
          %s183 = ssub.s32 16384, 16384
          %184 = vsyncadd %s176, %s183
          %s185 = smul.addr %s180, 8
          %s186 = sadd.s32 %s181, %s185
          %s187 = smul.addr %s186, 64
          %s188 = scalar_lea.hbm %s1, %s187
          %s189 = sshll.u32 %s179, 4
          %s190 = int_to_ptr.vmem [resolvable:$true] %s189
          %195 = dma.hbm_to_vmem [thread:$0]  %s188, 16384, %s190, %s176, 512, 256, 16
        $region24: #{clip_caption_forward.14} parent=19 // pred_fallthru
          _
        // Predicated region
        $region25: #{clip_caption_forward.14} parent=19 // pred_check
          %p196 = pneg %p107
        $region26: #{clip_caption_forward.14} parent=19 // pred_check_branch
          %198 = sbr.rel (%p196) target = $region28
        $region27: #{clip_caption_forward.14} parent=19 // pred_region
          %s199 = smul.u32 4, %s20
          %p200 = scmp.lt.s32.totalorder %s199, 7
          %s201 = scalar_select %p200, %s199, 7
          %s202 = scalar_lea.vmem %s2, %s201
          %s203 = smul.u32 4, %s20
        $region28: #{clip_caption_forward.14} parent=19 // pred_fallthru
          _
      $region20: #{clip_caption_forward.14} parent=5 // pred_fallthru
        _
      %p204 = scmp.le.s32.totalorder 1, %s12
      %p205 = scmp.lt.s32.totalorder %s12, 3
      %p206 = pnand %p204, %p205
      %p207 = pneg %p206
      // Predicated region
      $region29: #{clip_caption_forward.14} parent=5 // pred_check
        _
      $region30: #{clip_caption_forward.14} parent=5 // pred_check_branch
        %209 = sbr.rel (%p206) target = $region32
      $region31: #{clip_caption_forward.14} parent=5 // pred_region
        %s210 = ssub.s32 %s12, 1
        %s211 = sand.u32 %s74, 1
        %s212 = scalar_lea.sflag [#allocation4], %s211
        %s213 = sand.u32 %s74, 1
        %s214 = smul.addr %s213, 1024
        %s215 = scalar_lea.vmem [#allocation3], %s214
        // Predicated region
        $region33: #{clip_caption_forward.14} parent=31 // pred_check
          %p216 = pneg %p87
        $region34: #{clip_caption_forward.14} parent=31 // pred_check_branch
          %218 = sbr.rel (%p216) target = $region36
        $region35: #{clip_caption_forward.14} parent=31 // pred_region
          %219 = dma.done %s212, 16384
        $region36: #{clip_caption_forward.14} parent=31 // pred_fallthru
          _
        %s220 = smul.u32 4, %s24
        %p221 = scmp.lt.s32.totalorder %s22, 0
        %s222 = scalar_select %p221, %s22, 0
        %p223 = scmp.lt.s32.totalorder %s220, 3
        %s224 = scalar_select %p223, %s220, 3
        %s225 = smul.addr %s222, 4
        %s226 = sadd.s32 %s224, %s225
        %s227 = scalar_lea.vmem %s0, %s226
        %p228 = pneg %p59
        %p229 = pneg %p56
        %s230 = sand.u32 %s74, 1
        %s231 = scalar_lea.sflag [#allocation4], %s230
        %s232 = sand.u32 %s74, 1
        %s233 = smul.addr %s232, 1024
        %s234 = scalar_lea.vmem [#allocation3], %s233
        %p235 = pneg %p87
        %p236 = pneg %p84
        %s237 = smul.u32 4, %s23
        %p238 = scmp.lt.s32.totalorder %s237, 7
        %s239 = scalar_select %p238, %s237, 7
        %s240 = scalar_lea.vmem %s2, %s239
        %p241 = pneg %p113
        %p242 = pneg %p110
        %p243 = pneg %p141
        %p244 = pneg %p138
        %s245 = smul.u32 4, %s23
        %p246 = scmp.lt.s32.totalorder %s22, 0
        %s247 = scalar_select %p246, %s22, 0
        %p248 = scmp.lt.s32.totalorder %s245, 7
        %s249 = scalar_select %p248, %s245, 7
        %s250 = smul.addr %s247, 8
        %s251 = sadd.s32 %s249, %s250
        %s252 = smul.addr %s251, 2
        %s253 = scalar_lea.vmem %s3, %s252
        %s254 = smul.u32 4, %s24
        %p255 = scmp.lt.s32.totalorder %s22, 0
        %s256 = scalar_select %p255, %s22, 0
        %p257 = scmp.lt.s32.totalorder %s254, 3
        %s258 = scalar_select %p257, %s254, 3
        %s259 = smul.addr %s256, 4
        %s260 = sadd.s32 %s258, %s259
        %s261 = scalar_lea.vmem %s0, %s260
        %s262 = smul.u32 4, %s24
        %s263 = smul.u32 64, %s24
        %s264 = smul.u32 4, %s23
        %s265 = smul.u32 4, %s23
        %p266 = scmp.lt.s32.totalorder %s265, 7
        %s267 = scalar_select %p266, %s265, 7
        %s268 = scalar_lea.vmem %s2, %s267
        %s269 = smul.u32 4, %s23
        %s270 = smul.u32 4, %s23
        %p271 = scmp.lt.s32.totalorder %s22, 0
        %s272 = scalar_select %p271, %s22, 0
        %p273 = scmp.lt.s32.totalorder %s270, 7
        %s274 = scalar_select %p273, %s270, 7
        %s275 = smul.addr %s272, 8
        %s276 = sadd.s32 %s274, %s275
        %s277 = smul.addr %s276, 2
        %s278 = scalar_lea.vmem %s3, %s277
        %s279 = smul.u32 4, %s23
        %p280 = scmp.eq.s32.totalorder %s24, 0
        // Predicated region
        $region37: #{clip_caption_forward.14} parent=31 // pred_check
          %p281 = pneg %p280
        $region38: #{clip_caption_forward.14} parent=31 // pred_check_branch
          %283 = sbr.rel (%p281) target = $region40
        $region39: #{clip_caption_forward.14} parent=31 // pred_region
          %284 = vst [vmem:[#allocation2] sm:$0xff] 0.0
        $region40: #{clip_caption_forward.14} parent=31 // pred_fallthru
          _
        %v285 = vld [vmem:[#allocation2] sm:$0xff]
        %v286 = vld [vmem:[%s261] sm:$0xf]
        %v287 = vld [vmem:[%s215] sm:$0xff]
        %v288 = vld [vmem:[%s215 + $0x8] sm:$0xff]
        %v289 = vld [vmem:[%s215 + $0x10] sm:$0xff]
        %v290 = vld [vmem:[%s215 + $0x18] sm:$0xff]
        %v291 = vld [vmem:[%s215 + $0x20] sm:$0xff]
        %v292 = vld [vmem:[%s215 + $0x28] sm:$0xff]
        %v293 = vld [vmem:[%s215 + $0x30] sm:$0xff]
        %v294 = vld [vmem:[%s215 + $0x38] sm:$0xff]
        %v295 = vld [vmem:[%s215 + $0x40] sm:$0xff]
        %v296 = vld [vmem:[%s215 + $0x48] sm:$0xff]
        %v297 = vld [vmem:[%s215 + $0x50] sm:$0xff]
        %v298 = vld [vmem:[%s215 + $0x58] sm:$0xff]
        %v299 = vld [vmem:[%s215 + $0x60] sm:$0xff]
        %v300 = vld [vmem:[%s215 + $0x68] sm:$0xff]
        %v301 = vld [vmem:[%s215 + $0x70] sm:$0xff]
        %v302 = vld [vmem:[%s215 + $0x78] sm:$0xff]
        %v303 = vld [vmem:[%s215 + $0x80] sm:$0xff]
        %v304 = vld [vmem:[%s215 + $0x88] sm:$0xff]
        %v305 = vld [vmem:[%s215 + $0x90] sm:$0xff]
        %v306 = vld [vmem:[%s215 + $0x98] sm:$0xff]
        %v307 = vld [vmem:[%s215 + $0xa0] sm:$0xff]
        %v308 = vld [vmem:[%s215 + $0xa8] sm:$0xff]
        %v309 = vld [vmem:[%s215 + $0xb0] sm:$0xff]
        %v310 = vld [vmem:[%s215 + $0xb8] sm:$0xff]
        %v311 = vld [vmem:[%s215 + $0xc0] sm:$0xff]
        %v312 = vld [vmem:[%s215 + $0xc8] sm:$0xff]
        %v313 = vld [vmem:[%s215 + $0xd0] sm:$0xff]
        %v314 = vld [vmem:[%s215 + $0xd8] sm:$0xff]
        %v315 = vld [vmem:[%s215 + $0xe0] sm:$0xff]
        %v316 = vld [vmem:[%s215 + $0xe8] sm:$0xff]
        %v317 = vld [vmem:[%s215 + $0xf0] sm:$0xff]
        %v318 = vld [vmem:[%s215 + $0xf8] sm:$0xff]
        %v319 = vld [vmem:[%s215 + $0x100] sm:$0xff]
        %v320 = vld [vmem:[%s215 + $0x108] sm:$0xff]
        %v321 = vld [vmem:[%s215 + $0x110] sm:$0xff]
        %v322 = vld [vmem:[%s215 + $0x118] sm:$0xff]
        %v323 = vld [vmem:[%s215 + $0x120] sm:$0xff]
        %v324 = vld [vmem:[%s215 + $0x128] sm:$0xff]
        %v325 = vld [vmem:[%s215 + $0x130] sm:$0xff]
        %v326 = vld [vmem:[%s215 + $0x138] sm:$0xff]
        %v327 = vld [vmem:[%s215 + $0x140] sm:$0xff]
        %v328 = vld [vmem:[%s215 + $0x148] sm:$0xff]
        %v329 = vld [vmem:[%s215 + $0x150] sm:$0xff]
        %v330 = vld [vmem:[%s215 + $0x158] sm:$0xff]
        %v331 = vld [vmem:[%s215 + $0x160] sm:$0xff]
        %v332 = vld [vmem:[%s215 + $0x168] sm:$0xff]
        %v333 = vld [vmem:[%s215 + $0x170] sm:$0xff]
        %v334 = vld [vmem:[%s215 + $0x178] sm:$0xff]
        %v335 = vld [vmem:[%s215 + $0x180] sm:$0xff]
        %v336 = vld [vmem:[%s215 + $0x188] sm:$0xff]
        %v337 = vld [vmem:[%s215 + $0x190] sm:$0xff]
        %v338 = vld [vmem:[%s215 + $0x198] sm:$0xff]
        %v339 = vld [vmem:[%s215 + $0x1a0] sm:$0xff]
        %v340 = vld [vmem:[%s215 + $0x1a8] sm:$0xff]
        %v341 = vld [vmem:[%s215 + $0x1b0] sm:$0xff]
        %v342 = vld [vmem:[%s215 + $0x1b8] sm:$0xff]
        %v343 = vld [vmem:[%s215 + $0x1c0] sm:$0xff]
        %v344 = vld [vmem:[%s215 + $0x1c8] sm:$0xff]
        %v345 = vld [vmem:[%s215 + $0x1d0] sm:$0xff]
        %v346 = vld [vmem:[%s215 + $0x1d8] sm:$0xff]
        %v347 = vld [vmem:[%s215 + $0x1e0] sm:$0xff]
        %v348 = vld [vmem:[%s215 + $0x1e8] sm:$0xff]
        %v349 = vld [vmem:[%s215 + $0x1f0] sm:$0xff]
        %v350 = vld [vmem:[%s215 + $0x1f8] sm:$0xff]
        %v351 = vld [vmem:[%s215 + $0x200] sm:$0xff]
        %v352 = vld [vmem:[%s215 + $0x208] sm:$0xff]
        %v353 = vld [vmem:[%s215 + $0x210] sm:$0xff]
        %v354 = vld [vmem:[%s215 + $0x218] sm:$0xff]
        %v355 = vld [vmem:[%s215 + $0x220] sm:$0xff]
        %v356 = vld [vmem:[%s215 + $0x228] sm:$0xff]
        %v357 = vld [vmem:[%s215 + $0x230] sm:$0xff]
        %v358 = vld [vmem:[%s215 + $0x238] sm:$0xff]
        %v359 = vld [vmem:[%s215 + $0x240] sm:$0xff]
        %v360 = vld [vmem:[%s215 + $0x248] sm:$0xff]
        %v361 = vld [vmem:[%s215 + $0x250] sm:$0xff]
        %v362 = vld [vmem:[%s215 + $0x258] sm:$0xff]
        %v363 = vld [vmem:[%s215 + $0x260] sm:$0xff]
        %v364 = vld [vmem:[%s215 + $0x268] sm:$0xff]
        %v365 = vld [vmem:[%s215 + $0x270] sm:$0xff]
        %v366 = vld [vmem:[%s215 + $0x278] sm:$0xff]
        %v367 = vld [vmem:[%s215 + $0x280] sm:$0xff]
        %v368 = vld [vmem:[%s215 + $0x288] sm:$0xff]
        %v369 = vld [vmem:[%s215 + $0x290] sm:$0xff]
        %v370 = vld [vmem:[%s215 + $0x298] sm:$0xff]
        %v371 = vld [vmem:[%s215 + $0x2a0] sm:$0xff]
        %v372 = vld [vmem:[%s215 + $0x2a8] sm:$0xff]
        %v373 = vld [vmem:[%s215 + $0x2b0] sm:$0xff]
        %v374 = vld [vmem:[%s215 + $0x2b8] sm:$0xff]
        %v375 = vld [vmem:[%s215 + $0x2c0] sm:$0xff]
        %v376 = vld [vmem:[%s215 + $0x2c8] sm:$0xff]
        %v377 = vld [vmem:[%s215 + $0x2d0] sm:$0xff]
        %v378 = vld [vmem:[%s215 + $0x2d8] sm:$0xff]
        %v379 = vld [vmem:[%s215 + $0x2e0] sm:$0xff]
        %v380 = vld [vmem:[%s215 + $0x2e8] sm:$0xff]
        %v381 = vld [vmem:[%s215 + $0x2f0] sm:$0xff]
        %v382 = vld [vmem:[%s215 + $0x2f8] sm:$0xff]
        %v383 = vld [vmem:[%s215 + $0x300] sm:$0xff]
        %v384 = vld [vmem:[%s215 + $0x308] sm:$0xff]
        %v385 = vld [vmem:[%s215 + $0x310] sm:$0xff]
        %v386 = vld [vmem:[%s215 + $0x318] sm:$0xff]
        %v387 = vld [vmem:[%s215 + $0x320] sm:$0xff]
        %v388 = vld [vmem:[%s215 + $0x328] sm:$0xff]
        %v389 = vld [vmem:[%s215 + $0x330] sm:$0xff]
        %v390 = vld [vmem:[%s215 + $0x338] sm:$0xff]
        %v391 = vld [vmem:[%s215 + $0x340] sm:$0xff]
        %v392 = vld [vmem:[%s215 + $0x348] sm:$0xff]
        %v393 = vld [vmem:[%s215 + $0x350] sm:$0xff]
        %v394 = vld [vmem:[%s215 + $0x358] sm:$0xff]
        %v395 = vld [vmem:[%s215 + $0x360] sm:$0xff]
        %v396 = vld [vmem:[%s215 + $0x368] sm:$0xff]
        %v397 = vld [vmem:[%s215 + $0x370] sm:$0xff]
        %v398 = vld [vmem:[%s215 + $0x378] sm:$0xff]
        %v399 = vld [vmem:[%s215 + $0x380] sm:$0xff]
        %v400 = vld [vmem:[%s215 + $0x388] sm:$0xff]
        %v401 = vld [vmem:[%s215 + $0x390] sm:$0xff]
        %v402 = vld [vmem:[%s215 + $0x398] sm:$0xff]
        %v403 = vld [vmem:[%s215 + $0x3a0] sm:$0xff]
        %v404 = vld [vmem:[%s215 + $0x3a8] sm:$0xff]
        %v405 = vld [vmem:[%s215 + $0x3b0] sm:$0xff]
        %v406 = vld [vmem:[%s215 + $0x3b8] sm:$0xff]
        %v407 = vld [vmem:[%s215 + $0x3c0] sm:$0xff]
        %v408 = vld [vmem:[%s215 + $0x3c8] sm:$0xff]
        %v409 = vld [vmem:[%s215 + $0x3d0] sm:$0xff]
        %v410 = vld [vmem:[%s215 + $0x3d8] sm:$0xff]
        %v411 = vld [vmem:[%s215 + $0x3e0] sm:$0xff]
        %v412 = vld [vmem:[%s215 + $0x3e8] sm:$0xff]
        %v413 = vld [vmem:[%s215 + $0x3f0] sm:$0xff]
        %v414 = vld [vmem:[%s215 + $0x3f8] sm:$0xff]
        %v417 = vunpack.c.l.s4 1966171168
        %v418 = vunpack.c.0.s8 %v417
        %v419 = vlaneseq
        %v420 = vshrl.u32 %v419, 7
        %v421 = vsub.s32 %v418, %v420
        %v422 = vrot.slane %v286, %v421
        %v423 = vcombine.high %v422, %v422
        %v425 = vunpack.c.l.s4 1966171168
        %v426 = vunpack.c.0.s8 %v425
        %v427 = vlaneseq
        %v428 = vshrl.u32 %v427, 7
        %v429 = vsub.s32 %v426, %v428
        %v430 = vrot.slane %v422, %v429
        %v432 = vunpack.c.l.s4 1966171168
        %v433 = vunpack.c.0.s8 %v432
        %v434 = vlaneseq
        %v435 = vshrl.u32 %v434, 7
        %v436 = vsub.s32 %v433, %v435
        %v437 = vrot.slane %v423, %v436
        %v438 = vcombine.high %v430, %v430
        %v439 = vcombine.high %v437, %v437
        %v572 = vunpack.c.l.b16 %v287
        %v573 = vunpack.c.h.b16 %v287
        %v574 = vunpack.c.l.b16 %v288
        %v575 = vunpack.c.h.b16 %v288
        %v576 = vunpack.c.l.b16 %v289
        %v577 = vunpack.c.h.b16 %v289
        %v578 = vunpack.c.l.b16 %v290
        %v579 = vunpack.c.h.b16 %v290
        %v580 = vunpack.c.l.b16 %v291
        %v581 = vunpack.c.h.b16 %v291
        %v582 = vunpack.c.l.b16 %v292
        %v583 = vunpack.c.h.b16 %v292
        %v584 = vunpack.c.l.b16 %v293
        %v585 = vunpack.c.h.b16 %v293
        %v586 = vunpack.c.l.b16 %v294
        %v587 = vunpack.c.h.b16 %v294
        %v588 = vunpack.c.l.b16 %v295
        %v589 = vunpack.c.h.b16 %v295
        %v590 = vunpack.c.l.b16 %v296
        %v591 = vunpack.c.h.b16 %v296
        %v592 = vunpack.c.l.b16 %v297
        %v593 = vunpack.c.h.b16 %v297
        %v594 = vunpack.c.l.b16 %v298
        %v595 = vunpack.c.h.b16 %v298
        %v596 = vunpack.c.l.b16 %v299
        %v597 = vunpack.c.h.b16 %v299
        %v598 = vunpack.c.l.b16 %v300
        %v599 = vunpack.c.h.b16 %v300
        %v600 = vunpack.c.l.b16 %v301
        %v601 = vunpack.c.h.b16 %v301
        %v602 = vunpack.c.l.b16 %v302
        %v603 = vunpack.c.h.b16 %v302
        %v604 = vunpack.c.l.b16 %v303
        %v605 = vunpack.c.h.b16 %v303
        %v606 = vunpack.c.l.b16 %v304
        %v607 = vunpack.c.h.b16 %v304
        %v608 = vunpack.c.l.b16 %v305
        %v609 = vunpack.c.h.b16 %v305
        %v610 = vunpack.c.l.b16 %v306
        %v611 = vunpack.c.h.b16 %v306
        %v612 = vunpack.c.l.b16 %v307
        %v613 = vunpack.c.h.b16 %v307
        %v614 = vunpack.c.l.b16 %v308
        %v615 = vunpack.c.h.b16 %v308
        %v616 = vunpack.c.l.b16 %v309
        %v617 = vunpack.c.h.b16 %v309
        %v618 = vunpack.c.l.b16 %v310
        %v619 = vunpack.c.h.b16 %v310
        %v620 = vunpack.c.l.b16 %v311
        %v621 = vunpack.c.h.b16 %v311
        %v622 = vunpack.c.l.b16 %v312
        %v623 = vunpack.c.h.b16 %v312
        %v624 = vunpack.c.l.b16 %v313
        %v625 = vunpack.c.h.b16 %v313
        %v626 = vunpack.c.l.b16 %v314
        %v627 = vunpack.c.h.b16 %v314
        %v628 = vunpack.c.l.b16 %v315
        %v629 = vunpack.c.h.b16 %v315
        %v630 = vunpack.c.l.b16 %v316
        %v631 = vunpack.c.h.b16 %v316
        %v632 = vunpack.c.l.b16 %v317
        %v633 = vunpack.c.h.b16 %v317
        %v634 = vunpack.c.l.b16 %v318
        %v635 = vunpack.c.h.b16 %v318
        %v636 = vunpack.c.l.b16 %v319
        %v637 = vunpack.c.h.b16 %v319
        %v638 = vunpack.c.l.b16 %v320
        %v639 = vunpack.c.h.b16 %v320
        %v640 = vunpack.c.l.b16 %v321
        %v641 = vunpack.c.h.b16 %v321
        %v642 = vunpack.c.l.b16 %v322
        %v643 = vunpack.c.h.b16 %v322
        %v644 = vunpack.c.l.b16 %v323
        %v645 = vunpack.c.h.b16 %v323
        %v646 = vunpack.c.l.b16 %v324
        %v647 = vunpack.c.h.b16 %v324
        %v648 = vunpack.c.l.b16 %v325
        %v649 = vunpack.c.h.b16 %v325
        %v650 = vunpack.c.l.b16 %v326
        %v651 = vunpack.c.h.b16 %v326
        %v652 = vunpack.c.l.b16 %v327
        %v653 = vunpack.c.h.b16 %v327
        %v654 = vunpack.c.l.b16 %v328
        %v655 = vunpack.c.h.b16 %v328
        %v656 = vunpack.c.l.b16 %v329
        %v657 = vunpack.c.h.b16 %v329
        %v658 = vunpack.c.l.b16 %v330
        %v659 = vunpack.c.h.b16 %v330
        %v660 = vunpack.c.l.b16 %v331
        %v661 = vunpack.c.h.b16 %v331
        %v662 = vunpack.c.l.b16 %v332
        %v663 = vunpack.c.h.b16 %v332
        %v664 = vunpack.c.l.b16 %v333
        %v665 = vunpack.c.h.b16 %v333
        %v666 = vunpack.c.l.b16 %v334
        %v667 = vunpack.c.h.b16 %v334
        %v668 = vunpack.c.l.b16 %v335
        %v669 = vunpack.c.h.b16 %v335
        %v670 = vunpack.c.l.b16 %v336
        %v671 = vunpack.c.h.b16 %v336
        %v672 = vunpack.c.l.b16 %v337
        %v673 = vunpack.c.h.b16 %v337
        %v674 = vunpack.c.l.b16 %v338
        %v675 = vunpack.c.h.b16 %v338
        %v676 = vunpack.c.l.b16 %v339
        %v677 = vunpack.c.h.b16 %v339
        %v678 = vunpack.c.l.b16 %v340
        %v679 = vunpack.c.h.b16 %v340
        %v680 = vunpack.c.l.b16 %v341
        %v681 = vunpack.c.h.b16 %v341
        %v682 = vunpack.c.l.b16 %v342
        %v683 = vunpack.c.h.b16 %v342
        %v684 = vunpack.c.l.b16 %v343
        %v685 = vunpack.c.h.b16 %v343
        %v686 = vunpack.c.l.b16 %v344
        %v687 = vunpack.c.h.b16 %v344
        %v688 = vunpack.c.l.b16 %v345
        %v689 = vunpack.c.h.b16 %v345
        %v690 = vunpack.c.l.b16 %v346
        %v691 = vunpack.c.h.b16 %v346
        %v692 = vunpack.c.l.b16 %v347
        %v693 = vunpack.c.h.b16 %v347
        %v694 = vunpack.c.l.b16 %v348
        %v695 = vunpack.c.h.b16 %v348
        %v696 = vunpack.c.l.b16 %v349
        %v697 = vunpack.c.h.b16 %v349
        %v698 = vunpack.c.l.b16 %v350
        %v699 = vunpack.c.h.b16 %v350
        %v700 = vunpack.c.l.b16 %v351
        %v701 = vunpack.c.h.b16 %v351
        %v702 = vunpack.c.l.b16 %v352
        %v703 = vunpack.c.h.b16 %v352
        %v704 = vunpack.c.l.b16 %v353
        %v705 = vunpack.c.h.b16 %v353
        %v706 = vunpack.c.l.b16 %v354
        %v707 = vunpack.c.h.b16 %v354
        %v708 = vunpack.c.l.b16 %v355
        %v709 = vunpack.c.h.b16 %v355
        %v710 = vunpack.c.l.b16 %v356
        %v711 = vunpack.c.h.b16 %v356
        %v712 = vunpack.c.l.b16 %v357
        %v713 = vunpack.c.h.b16 %v357
        %v714 = vunpack.c.l.b16 %v358
        %v715 = vunpack.c.h.b16 %v358
        %v716 = vunpack.c.l.b16 %v359
        %v717 = vunpack.c.h.b16 %v359
        %v718 = vunpack.c.l.b16 %v360
        %v719 = vunpack.c.h.b16 %v360
        %v720 = vunpack.c.l.b16 %v361
        %v721 = vunpack.c.h.b16 %v361
        %v722 = vunpack.c.l.b16 %v362
        %v723 = vunpack.c.h.b16 %v362
        %v724 = vunpack.c.l.b16 %v363
        %v725 = vunpack.c.h.b16 %v363
        %v726 = vunpack.c.l.b16 %v364
        %v727 = vunpack.c.h.b16 %v364
        %v728 = vunpack.c.l.b16 %v365
        %v729 = vunpack.c.h.b16 %v365
        %v730 = vunpack.c.l.b16 %v366
        %v731 = vunpack.c.h.b16 %v366
        %v732 = vunpack.c.l.b16 %v367
        %v733 = vunpack.c.h.b16 %v367
        %v734 = vunpack.c.l.b16 %v368
        %v735 = vunpack.c.h.b16 %v368
        %v736 = vunpack.c.l.b16 %v369
        %v737 = vunpack.c.h.b16 %v369
        %v738 = vunpack.c.l.b16 %v370
        %v739 = vunpack.c.h.b16 %v370
        %v740 = vunpack.c.l.b16 %v371
        %v741 = vunpack.c.h.b16 %v371
        %v742 = vunpack.c.l.b16 %v372
        %v743 = vunpack.c.h.b16 %v372
        %v744 = vunpack.c.l.b16 %v373
        %v745 = vunpack.c.h.b16 %v373
        %v746 = vunpack.c.l.b16 %v374
        %v747 = vunpack.c.h.b16 %v374
        %v748 = vunpack.c.l.b16 %v375
        %v749 = vunpack.c.h.b16 %v375
        %v750 = vunpack.c.l.b16 %v376
        %v751 = vunpack.c.h.b16 %v376
        %v752 = vunpack.c.l.b16 %v377
        %v753 = vunpack.c.h.b16 %v377
        %v754 = vunpack.c.l.b16 %v378
        %v755 = vunpack.c.h.b16 %v378
        %v756 = vunpack.c.l.b16 %v379
        %v757 = vunpack.c.h.b16 %v379
        %v758 = vunpack.c.l.b16 %v380
        %v759 = vunpack.c.h.b16 %v380
        %v760 = vunpack.c.l.b16 %v381
        %v761 = vunpack.c.h.b16 %v381
        %v762 = vunpack.c.l.b16 %v382
        %v763 = vunpack.c.h.b16 %v382
        %v764 = vunpack.c.l.b16 %v383
        %v765 = vunpack.c.h.b16 %v383
        %v766 = vunpack.c.l.b16 %v384
        %v767 = vunpack.c.h.b16 %v384
        %v768 = vunpack.c.l.b16 %v385
        %v769 = vunpack.c.h.b16 %v385
        %v770 = vunpack.c.l.b16 %v386
        %v771 = vunpack.c.h.b16 %v386
        %v772 = vunpack.c.l.b16 %v387
        %v773 = vunpack.c.h.b16 %v387
        %v774 = vunpack.c.l.b16 %v388
        %v775 = vunpack.c.h.b16 %v388
        %v776 = vunpack.c.l.b16 %v389
        %v777 = vunpack.c.h.b16 %v389
        %v778 = vunpack.c.l.b16 %v390
        %v779 = vunpack.c.h.b16 %v390
        %v780 = vunpack.c.l.b16 %v391
        %v781 = vunpack.c.h.b16 %v391
        %v782 = vunpack.c.l.b16 %v392
        %v783 = vunpack.c.h.b16 %v392
        %v784 = vunpack.c.l.b16 %v393
        %v785 = vunpack.c.h.b16 %v393
        %v786 = vunpack.c.l.b16 %v394
        %v787 = vunpack.c.h.b16 %v394
        %v788 = vunpack.c.l.b16 %v395
        %v789 = vunpack.c.h.b16 %v395
        %v790 = vunpack.c.l.b16 %v396
        %v791 = vunpack.c.h.b16 %v396
        %v792 = vunpack.c.l.b16 %v397
        %v793 = vunpack.c.h.b16 %v397
        %v794 = vunpack.c.l.b16 %v398
        %v795 = vunpack.c.h.b16 %v398
        %v796 = vunpack.c.l.b16 %v399
        %v797 = vunpack.c.h.b16 %v399
        %v798 = vunpack.c.l.b16 %v400
        %v799 = vunpack.c.h.b16 %v400
        %v800 = vunpack.c.l.b16 %v401
        %v801 = vunpack.c.h.b16 %v401
        %v802 = vunpack.c.l.b16 %v402
        %v803 = vunpack.c.h.b16 %v402
        %v804 = vunpack.c.l.b16 %v403
        %v805 = vunpack.c.h.b16 %v403
        %v806 = vunpack.c.l.b16 %v404
        %v807 = vunpack.c.h.b16 %v404
        %v808 = vunpack.c.l.b16 %v405
        %v809 = vunpack.c.h.b16 %v405
        %v810 = vunpack.c.l.b16 %v406
        %v811 = vunpack.c.h.b16 %v406
        %v812 = vunpack.c.l.b16 %v407
        %v813 = vunpack.c.h.b16 %v407
        %v814 = vunpack.c.l.b16 %v408
        %v815 = vunpack.c.h.b16 %v408
        %v816 = vunpack.c.l.b16 %v409
        %v817 = vunpack.c.h.b16 %v409
        %v818 = vunpack.c.l.b16 %v410
        %v819 = vunpack.c.h.b16 %v410
        %v820 = vunpack.c.l.b16 %v411
        %v821 = vunpack.c.h.b16 %v411
        %v822 = vunpack.c.l.b16 %v412
        %v823 = vunpack.c.h.b16 %v412
        %v824 = vunpack.c.l.b16 %v413
        %v825 = vunpack.c.h.b16 %v413
        %v826 = vunpack.c.l.b16 %v414
        %v827 = vunpack.c.h.b16 %v414
        %v828 = vpack.c.b16 %v576, %v572
        %v829 = vpack.c.b16 %v577, %v573
        %v830 = vpack.c.b16 %v578, %v574
        %v831 = vpack.c.b16 %v579, %v575
        %v832 = vpack.c.b16 %v584, %v580
        %v833 = vpack.c.b16 %v585, %v581
        %v834 = vpack.c.b16 %v586, %v582
        %v835 = vpack.c.b16 %v587, %v583
        %v836 = vpack.c.b16 %v592, %v588
        %v837 = vpack.c.b16 %v593, %v589
        %v838 = vpack.c.b16 %v594, %v590
        %v839 = vpack.c.b16 %v595, %v591
        %v840 = vpack.c.b16 %v600, %v596
        %v841 = vpack.c.b16 %v601, %v597
        %v842 = vpack.c.b16 %v602, %v598
        %v843 = vpack.c.b16 %v603, %v599
        %v844 = vpack.c.b16 %v608, %v604
        %v845 = vpack.c.b16 %v609, %v605
        %v846 = vpack.c.b16 %v610, %v606
        %v847 = vpack.c.b16 %v611, %v607
        %v848 = vpack.c.b16 %v616, %v612
        %v849 = vpack.c.b16 %v617, %v613
        %v850 = vpack.c.b16 %v618, %v614
        %v851 = vpack.c.b16 %v619, %v615
        %v852 = vpack.c.b16 %v624, %v620
        %v853 = vpack.c.b16 %v625, %v621
        %v854 = vpack.c.b16 %v626, %v622
        %v855 = vpack.c.b16 %v627, %v623
        %v856 = vpack.c.b16 %v632, %v628
        %v857 = vpack.c.b16 %v633, %v629
        %v858 = vpack.c.b16 %v634, %v630
        %v859 = vpack.c.b16 %v635, %v631
        %v860 = vpack.c.b16 %v640, %v636
        %v861 = vpack.c.b16 %v641, %v637
        %v862 = vpack.c.b16 %v642, %v638
        %v863 = vpack.c.b16 %v643, %v639
        %v864 = vpack.c.b16 %v648, %v644
        %v865 = vpack.c.b16 %v649, %v645
        %v866 = vpack.c.b16 %v650, %v646
        %v867 = vpack.c.b16 %v651, %v647
        %v868 = vpack.c.b16 %v656, %v652
        %v869 = vpack.c.b16 %v657, %v653
        %v870 = vpack.c.b16 %v658, %v654
        %v871 = vpack.c.b16 %v659, %v655
        %v872 = vpack.c.b16 %v664, %v660
        %v873 = vpack.c.b16 %v665, %v661
        %v874 = vpack.c.b16 %v666, %v662
        %v875 = vpack.c.b16 %v667, %v663
        %v876 = vpack.c.b16 %v672, %v668
        %v877 = vpack.c.b16 %v673, %v669
        %v878 = vpack.c.b16 %v674, %v670
        %v879 = vpack.c.b16 %v675, %v671
        %v880 = vpack.c.b16 %v680, %v676
        %v881 = vpack.c.b16 %v681, %v677
        %v882 = vpack.c.b16 %v682, %v678
        %v883 = vpack.c.b16 %v683, %v679
        %v884 = vpack.c.b16 %v688, %v684
        %v885 = vpack.c.b16 %v689, %v685
        %v886 = vpack.c.b16 %v690, %v686
        %v887 = vpack.c.b16 %v691, %v687
        %v888 = vpack.c.b16 %v696, %v692
        %v889 = vpack.c.b16 %v697, %v693
        %v890 = vpack.c.b16 %v698, %v694
        %v891 = vpack.c.b16 %v699, %v695
        %v892 = vpack.c.b16 %v704, %v700
        %v893 = vpack.c.b16 %v705, %v701
        %v894 = vpack.c.b16 %v706, %v702
        %v895 = vpack.c.b16 %v707, %v703
        %v896 = vpack.c.b16 %v712, %v708
        %v897 = vpack.c.b16 %v713, %v709
        %v898 = vpack.c.b16 %v714, %v710
        %v899 = vpack.c.b16 %v715, %v711
        %v900 = vpack.c.b16 %v720, %v716
        %v901 = vpack.c.b16 %v721, %v717
        %v902 = vpack.c.b16 %v722, %v718
        %v903 = vpack.c.b16 %v723, %v719
        %v904 = vpack.c.b16 %v728, %v724
        %v905 = vpack.c.b16 %v729, %v725
        %v906 = vpack.c.b16 %v730, %v726
        %v907 = vpack.c.b16 %v731, %v727
        %v908 = vpack.c.b16 %v736, %v732
        %v909 = vpack.c.b16 %v737, %v733
        %v910 = vpack.c.b16 %v738, %v734
        %v911 = vpack.c.b16 %v739, %v735
        %v912 = vpack.c.b16 %v744, %v740
        %v913 = vpack.c.b16 %v745, %v741
        %v914 = vpack.c.b16 %v746, %v742
        %v915 = vpack.c.b16 %v747, %v743
        %v916 = vpack.c.b16 %v752, %v748
        %v917 = vpack.c.b16 %v753, %v749
        %v918 = vpack.c.b16 %v754, %v750
        %v919 = vpack.c.b16 %v755, %v751
        %v920 = vpack.c.b16 %v760, %v756
        %v921 = vpack.c.b16 %v761, %v757
        %v922 = vpack.c.b16 %v762, %v758
        %v923 = vpack.c.b16 %v763, %v759
        %v924 = vpack.c.b16 %v768, %v764
        %v925 = vpack.c.b16 %v769, %v765
        %v926 = vpack.c.b16 %v770, %v766
        %v927 = vpack.c.b16 %v771, %v767
        %v928 = vpack.c.b16 %v776, %v772
        %v929 = vpack.c.b16 %v777, %v773
        %v930 = vpack.c.b16 %v778, %v774
        %v931 = vpack.c.b16 %v779, %v775
        %v932 = vpack.c.b16 %v784, %v780
        %v933 = vpack.c.b16 %v785, %v781
        %v934 = vpack.c.b16 %v786, %v782
        %v935 = vpack.c.b16 %v787, %v783
        %v936 = vpack.c.b16 %v792, %v788
        %v937 = vpack.c.b16 %v793, %v789
        %v938 = vpack.c.b16 %v794, %v790
        %v939 = vpack.c.b16 %v795, %v791
        %v940 = vpack.c.b16 %v800, %v796
        %v941 = vpack.c.b16 %v801, %v797
        %v942 = vpack.c.b16 %v802, %v798
        %v943 = vpack.c.b16 %v803, %v799
        %v944 = vpack.c.b16 %v808, %v804
        %v945 = vpack.c.b16 %v809, %v805
        %v946 = vpack.c.b16 %v810, %v806
        %v947 = vpack.c.b16 %v811, %v807
        %v948 = vpack.c.b16 %v816, %v812
        %v949 = vpack.c.b16 %v817, %v813
        %v950 = vpack.c.b16 %v818, %v814
        %v951 = vpack.c.b16 %v819, %v815
        %v952 = vpack.c.b16 %v824, %v820
        %v953 = vpack.c.b16 %v825, %v821
        %v954 = vpack.c.b16 %v826, %v822
        %v955 = vpack.c.b16 %v827, %v823
        %1084 = vmatprep.subr.bf16.mxu0 %v829
        %1085 = vmatpush1.bf16.msra.mxu0 %v828
        %1086 = vmatprep.subr.bf16.mxu0 %v833
        %1087 = vmatpush1.bf16.msra.mxu0 %v832
        %1088 = vmatprep.subr.bf16.mxu0 %v837
        %1089 = vmatpush1.bf16.msra.mxu0 %v836
        %1090 = vmatprep.subr.bf16.mxu0 %v841
        %1091 = vmatpush1.bf16.msra.mxu0 %v840
        %1092 = vmatprep.subr.bf16.mxu0 %v845
        %1093 = vmatpush1.bf16.msra.mxu0 %v844
        %1094 = vmatprep.subr.bf16.mxu0 %v849
        %1095 = vmatpush1.bf16.msra.mxu0 %v848
        %1096 = vmatprep.subr.bf16.mxu0 %v853
        %1097 = vmatpush1.bf16.msra.mxu0 %v852
        %1098 = vmatprep.subr.bf16.mxu0 %v857
        %1099 = vmatpush1.bf16.msra.mxu0 %v856
        %1100 = vmatprep.subr.bf16.mxu0 %v861
        %1101 = vmatpush1.bf16.msra.mxu0 %v860
        %1102 = vmatprep.subr.bf16.mxu0 %v865
        %1103 = vmatpush1.bf16.msra.mxu0 %v864
        %1104 = vmatprep.subr.bf16.mxu0 %v869
        %1105 = vmatpush1.bf16.msra.mxu0 %v868
        %1106 = vmatprep.subr.bf16.mxu0 %v873
        %1107 = vmatpush1.bf16.msra.mxu0 %v872
        %1108 = vmatprep.subr.bf16.mxu0 %v877
        %1109 = vmatpush1.bf16.msra.mxu0 %v876
        %1110 = vmatprep.subr.bf16.mxu0 %v881
        %1111 = vmatpush1.bf16.msra.mxu0 %v880
        %1112 = vmatprep.subr.bf16.mxu0 %v885
        %1113 = vmatpush1.bf16.msra.mxu0 %v884
        %1114 = vmatprep.subr.bf16.mxu0 %v889
        %1115 = vmatpush1.bf16.msra.mxu0 %v888
        %1116 = vmatprep.mubr.bf16.mxu0 %v437
        %1117 = vmatmul.mubr.bf16.gmra.mrb[0].mxu0 %v430
        %v1118 = vpop.f32.mrb[0].mxu0
        %v1119 = vadd.f32 0.0, %v1118
        %v1120 = vpop.f32.mrb[0].mxu0
        %v1121 = vadd.f32 0.0, %v1120
        %v1122 = vpop.f32.mrb[0].mxu0
        %v1123 = vpop.f32.mrb[0].mxu0
        %1124 = vdwg.mxu0
        %1125 = vmatprep.subr.bf16.mxu0 %v893
        %1126 = vmatpush1.bf16.msra.mxu0 %v892
        %1127 = vmatprep.subr.bf16.mxu0 %v897
        %1128 = vmatpush1.bf16.msra.mxu0 %v896
        %1129 = vmatprep.subr.bf16.mxu0 %v901
        %1130 = vmatpush1.bf16.msra.mxu0 %v900
        %1131 = vmatprep.subr.bf16.mxu0 %v905
        %1132 = vmatpush1.bf16.msra.mxu0 %v904
        %1133 = vmatprep.subr.bf16.mxu0 %v909
        %1134 = vmatpush1.bf16.msra.mxu0 %v908
        %1135 = vmatprep.subr.bf16.mxu0 %v913
        %1136 = vmatpush1.bf16.msra.mxu0 %v912
        %1137 = vmatprep.subr.bf16.mxu0 %v917
        %1138 = vmatpush1.bf16.msra.mxu0 %v916
        %1139 = vmatprep.subr.bf16.mxu0 %v921
        %1140 = vmatpush1.bf16.msra.mxu0 %v920
        %1141 = vmatprep.subr.bf16.mxu0 %v925
        %1142 = vmatpush1.bf16.msra.mxu0 %v924
        %1143 = vmatprep.subr.bf16.mxu0 %v929
        %1144 = vmatpush1.bf16.msra.mxu0 %v928
        %1145 = vmatprep.subr.bf16.mxu0 %v933
        %1146 = vmatpush1.bf16.msra.mxu0 %v932
        %1147 = vmatprep.subr.bf16.mxu0 %v937
        %1148 = vmatpush1.bf16.msra.mxu0 %v936
        %1149 = vmatprep.subr.bf16.mxu0 %v941
        %1150 = vmatpush1.bf16.msra.mxu0 %v940
        %1151 = vmatprep.subr.bf16.mxu0 %v945
        %1152 = vmatpush1.bf16.msra.mxu0 %v944
        %1153 = vmatprep.subr.bf16.mxu0 %v949
        %1154 = vmatpush1.bf16.msra.mxu0 %v948
        %1155 = vmatprep.subr.bf16.mxu0 %v953
        %1156 = vmatpush1.bf16.msra.mxu0 %v952
        %1157 = vmatprep.mubr.bf16.mxu0 %v439
        %1158 = vmatmul.mubr.bf16.gmra.mrb[0].mxu0 %v438
        %v1159 = vpop.f32.mrb[0].mxu0
        %v1160 = vadd.f32 %v1119, %v1159
        %v1161 = vpop.f32.mrb[0].mxu0
        %v1162 = vadd.f32 %v1121, %v1161
        %v1163 = vpop.f32.mrb[0].mxu0
        %v1164 = vpop.f32.mrb[0].mxu0
        %1165 = vdwg.mxu0
        %1166 = vmatprep.subr.bf16.mxu0 %v831
        %1167 = vmatpush1.bf16.msra.mxu0 %v830
        %1168 = vmatprep.subr.bf16.mxu0 %v835
        %1169 = vmatpush1.bf16.msra.mxu0 %v834
        %1170 = vmatprep.subr.bf16.mxu0 %v839
        %1171 = vmatpush1.bf16.msra.mxu0 %v838
        %1172 = vmatprep.subr.bf16.mxu0 %v843
        %1173 = vmatpush1.bf16.msra.mxu0 %v842
        %1174 = vmatprep.subr.bf16.mxu0 %v847
        %1175 = vmatpush1.bf16.msra.mxu0 %v846
        %1176 = vmatprep.subr.bf16.mxu0 %v851
        %1177 = vmatpush1.bf16.msra.mxu0 %v850
        %1178 = vmatprep.subr.bf16.mxu0 %v855
        %1179 = vmatpush1.bf16.msra.mxu0 %v854
        %1180 = vmatprep.subr.bf16.mxu0 %v859
        %1181 = vmatpush1.bf16.msra.mxu0 %v858
        %1182 = vmatprep.subr.bf16.mxu0 %v863
        %1183 = vmatpush1.bf16.msra.mxu0 %v862
        %1184 = vmatprep.subr.bf16.mxu0 %v867
        %1185 = vmatpush1.bf16.msra.mxu0 %v866
        %1186 = vmatprep.subr.bf16.mxu0 %v871
        %1187 = vmatpush1.bf16.msra.mxu0 %v870
        %1188 = vmatprep.subr.bf16.mxu0 %v875
        %1189 = vmatpush1.bf16.msra.mxu0 %v874
        %1190 = vmatprep.subr.bf16.mxu0 %v879
        %1191 = vmatpush1.bf16.msra.mxu0 %v878
        %1192 = vmatprep.subr.bf16.mxu0 %v883
        %1193 = vmatpush1.bf16.msra.mxu0 %v882
        %1194 = vmatprep.subr.bf16.mxu0 %v887
        %1195 = vmatpush1.bf16.msra.mxu0 %v886
        %1196 = vmatprep.subr.bf16.mxu0 %v891
        %1197 = vmatpush1.bf16.msra.mxu0 %v890
        %1198 = vmatprep.mubr.bf16.mxu0 %v437
        %1199 = vmatmul.mubr.bf16.gmra.mrb[0].mxu0 %v430
        %v1200 = vpop.f32.mrb[0].mxu0
        %v1201 = vadd.f32 0.0, %v1200
        %v1202 = vpop.f32.mrb[0].mxu0
        %v1203 = vadd.f32 0.0, %v1202
        %v1204 = vpop.f32.mrb[0].mxu0
        %v1205 = vpop.f32.mrb[0].mxu0
        %1206 = vdwg.mxu0
        %1207 = vmatprep.subr.bf16.mxu0 %v895
        %1208 = vmatpush1.bf16.msra.mxu0 %v894
        %1209 = vmatprep.subr.bf16.mxu0 %v899
        %1210 = vmatpush1.bf16.msra.mxu0 %v898
        %1211 = vmatprep.subr.bf16.mxu0 %v903
        %1212 = vmatpush1.bf16.msra.mxu0 %v902
        %1213 = vmatprep.subr.bf16.mxu0 %v907
        %1214 = vmatpush1.bf16.msra.mxu0 %v906
        %1215 = vmatprep.subr.bf16.mxu0 %v911
        %1216 = vmatpush1.bf16.msra.mxu0 %v910
        %1217 = vmatprep.subr.bf16.mxu0 %v915
        %1218 = vmatpush1.bf16.msra.mxu0 %v914
        %1219 = vmatprep.subr.bf16.mxu0 %v919
        %1220 = vmatpush1.bf16.msra.mxu0 %v918
        %1221 = vmatprep.subr.bf16.mxu0 %v923
        %1222 = vmatpush1.bf16.msra.mxu0 %v922
        %1223 = vmatprep.subr.bf16.mxu0 %v927
        %1224 = vmatpush1.bf16.msra.mxu0 %v926
        %1225 = vmatprep.subr.bf16.mxu0 %v931
        %1226 = vmatpush1.bf16.msra.mxu0 %v930
        %1227 = vmatprep.subr.bf16.mxu0 %v935
        %1228 = vmatpush1.bf16.msra.mxu0 %v934
        %1229 = vmatprep.subr.bf16.mxu0 %v939
        %1230 = vmatpush1.bf16.msra.mxu0 %v938
        %1231 = vmatprep.subr.bf16.mxu0 %v943
        %1232 = vmatpush1.bf16.msra.mxu0 %v942
        %1233 = vmatprep.subr.bf16.mxu0 %v947
        %1234 = vmatpush1.bf16.msra.mxu0 %v946
        %1235 = vmatprep.subr.bf16.mxu0 %v951
        %1236 = vmatpush1.bf16.msra.mxu0 %v950
        %1237 = vmatprep.subr.bf16.mxu0 %v955
        %1238 = vmatpush1.bf16.msra.mxu0 %v954
        %1239 = vmatprep.mubr.bf16.mxu0 %v439
        %1240 = vmatmul.mubr.bf16.gmra.mrb[0].mxu0 %v438
        %v1241 = vpop.f32.mrb[0].mxu0
        %v1242 = vadd.f32 %v1201, %v1241
        %v1243 = vpop.f32.mrb[0].mxu0
        %v1244 = vadd.f32 %v1203, %v1243
        %v1245 = vpop.f32.mrb[0].mxu0
        %v1246 = vpop.f32.mrb[0].mxu0
        %1247 = vdwg.mxu0
        %v1252 = vcombine.low %v1160, %v1162
        %v1253 = vcombine.low %v1242, %v1244
        %v1255 = vunpack.c.l.s4 1983009808
        %v1256 = vunpack.c.0.s8 %v1255
        %v1257 = vlaneseq
        %v1258 = vshrl.u32 %v1257, 7
        %v1259 = vsub.s32 %v1256, %v1258
        %v1260 = vrot.slane %v1252, %v1259
        %v1262 = vunpack.c.l.s4 1983009808
        %v1263 = vunpack.c.0.s8 %v1262
        %v1264 = vlaneseq
        %v1265 = vshrl.u32 %v1264, 7
        %v1266 = vsub.s32 %v1263, %v1265
        %v1267 = vrot.slane %v1253, %v1266
        %v1268 = vcombine.low %v1260, %v1267
        %v1270 = vadd.f32 %v285, %v1268
        %1271 = vst [vmem:[#allocation2] sm:$0xff] %v1270
        // Predicated region
        $region41: #{clip_caption_forward.14} parent=31 // pred_check
          %p1272 = pneg %p280
        $region42: #{clip_caption_forward.14} parent=31 // pred_check_branch
          %1274 = sbr.rel (%p1272) target = $region44
        $region43: #{clip_caption_forward.14} parent=31 // pred_region
          %v1275 = vld [vmem:[#allocation2] sm:$0xff]
          %v1276 = vld [vmem:[%s268] sm:$0xf]
          %v1278 = vlaneseq
          %v1279 = vshrl.u32 %v1278, 7
          %v1280 = vsub.s32 0, %v1279
          %v1281 = vrot.slane %v1276, %v1280
          %v1282 = vlaneseq
          %v1283 = vshrl.u32 %v1282, 7
          %v1284 = vsub.s32 1, %v1283
          %v1285 = vrot.slane %v1276, %v1284
          %v1286 = vlaneseq
          %v1287 = vshrl.u32 %v1286, 7
          %v1288 = vsub.s32 2, %v1287
          %v1289 = vrot.slane %v1276, %v1288
          %v1290 = vlaneseq
          %v1291 = vshrl.u32 %v1290, 7
          %v1292 = vsub.s32 3, %v1291
          %v1293 = vrot.slane %v1276, %v1292
          %v1294 = vcombine.low %v1281, %v1285
          %v1295 = vcombine.low %v1289, %v1293
          %v1297 = vunpack.c.l.s4 1983009808
          %v1298 = vunpack.c.0.s8 %v1297
          %v1299 = vlaneseq
          %v1300 = vshrl.u32 %v1299, 7
          %v1301 = vsub.s32 %v1298, %v1300
          %v1302 = vrot.slane %v1294, %v1301
          %v1304 = vunpack.c.l.s4 1983009808
          %v1305 = vunpack.c.0.s8 %v1304
          %v1306 = vlaneseq
          %v1307 = vshrl.u32 %v1306, 7
          %v1308 = vsub.s32 %v1305, %v1307
          %v1309 = vrot.slane %v1295, %v1308
          %v1310 = vcombine.low %v1302, %v1309
          %v1312 = vadd.f32 %v1275, %v1310
          %1313 = vst [vmem:[%s278] sm:$0xff] %v1312
        $region44: #{clip_caption_forward.14} parent=31 // pred_fallthru
          _
        %s1314 = smul.u32 4, %s23
        %p1315 = scmp.lt.s32.totalorder %s22, 0
        %s1316 = scalar_select %p1315, %s22, 0
        %p1317 = scmp.lt.s32.totalorder %s1314, 7
        %s1318 = scalar_select %p1317, %s1314, 7
        %s1319 = smul.addr %s1316, 8
        %s1320 = sadd.s32 %s1318, %s1319
        %s1321 = smul.addr %s1320, 2
        %s1322 = scalar_lea.vmem %s3, %s1321
        // Predicated region
        $region45: #{clip_caption_forward.14} parent=31 // pred_check
          %p1323 = pneg %p138
        $region46: #{clip_caption_forward.14} parent=31 // pred_check_branch
          %1325 = sbr.rel (%p1323) target = $region48
        $region47: #{clip_caption_forward.14} parent=31 // pred_region
          %s1326 = smul.u32 4, %s23
        $region48: #{clip_caption_forward.14} parent=31 // pred_fallthru
          _
      $region32: #{clip_caption_forward.14} parent=5 // pred_fallthru
        _
      %p1327 = scmp.le.s32.totalorder 2, %s12
      // Predicated region
      $region49: #{clip_caption_forward.14} parent=5 // pred_check
        %p1328 = pneg %p1327
      $region50: #{clip_caption_forward.14} parent=5 // pred_check_branch
        %1330 = sbr.rel (%p1328) target = $region52
      $region51: #{clip_caption_forward.14} parent=5 // pred_region
        %s1331 = ssub.s32 %s12, 2
        // Predicated region
        $region53: #{clip_caption_forward.14} parent=51 // pred_check
          %p1332 = pneg %p144
        $region54: #{clip_caption_forward.14} parent=51 // pred_check_branch
          %1334 = sbr.rel (%p1332) target = $region56
        $region55: #{clip_caption_forward.14} parent=51 // pred_region
          %s1335 = smul.u32 4, %s26
          %p1336 = scmp.lt.s32.totalorder %s25, 0
          %s1337 = scalar_select %p1336, %s25, 0
          %p1338 = scmp.lt.s32.totalorder %s1335, 7
          %s1339 = scalar_select %p1338, %s1335, 7
          %s1340 = smul.addr %s1337, 8
          %s1341 = sadd.s32 %s1339, %s1340
          %s1342 = smul.addr %s1341, 2
          %s1343 = scalar_lea.vmem %s3, %s1342
        $region56: #{clip_caption_forward.14} parent=51 // pred_fallthru
          _
      $region52: #{clip_caption_forward.14} parent=5 // pred_fallthru
        _
    $region6: #{clip_caption_forward.14} parent=1 // loop_footer
      %s16 = sadd.s32 1, %s12
    $region7: #{clip_caption_forward.14} parent=1 // loop_footer_branch
      %11 = sbr.rel target = $region3
    $region8: #{clip_caption_forward.14} parent=1 // loop_exit
      _
    %1344 = vsyncpa [#allocation4], 1
    %s1345 = scalar_lea.sflag [#allocation4], 1
    %1346 = vsyncpa %s1345, 1

// kernel: clip_caption_forward.17
$region0: #{clip_caption_forward.17}
  #allocation0 [shape = 'u32[]', space=smem, size = 0x4, offset = 0x4, fixed_abs, tag = 'smem constant byte address 0x4 - core index']
  #allocation1 [shape = 'u32[144,128]{1,0:T(1,128)}', space=vmem, size = 0x12000, scoped, tag = 'internal scratch']
  %s0 = inlined_call_operand.vmem [shape: bf16[32,128], index: 0, kind: input, shape index: {}]
  %s1 = inlined_call_operand.vmem [shape: bf16[128,128], index: 1, kind: input, shape index: {}]
  %s2 = inlined_call_operand.vmem [shape: f32[1,128], index: 2, kind: input, shape index: {}]
  %s3 = inlined_call_operand.vmem [shape: f32[32,128], index: 3, kind: input, shape index: {}]
  %s4 = inlined_call_operand.vmem [shape: f32[32,128], index: 4, kind: output, shape index: {}]
  %s5 = sld [smem:[#allocation0]]
  $region26: #{clip_caption_forward.17} parent=0
    _
  %s7 = ssub.s32 1, %s5
  %s8 = scalar_select 0, %s7, %s5
  // Predicated region
  $region2: #{clip_caption_forward.17} parent=0 // pred_check
    _
  $region3: #{clip_caption_forward.17} parent=0 // pred_check_branch
    %10 = sbr.rel (0) target = $region5
  $region4: #{clip_caption_forward.17} parent=0 // pred_region
    _
  $region5: #{clip_caption_forward.17} parent=0 // pred_fallthru
    _
  // Predicated region
  $region6: #{clip_caption_forward.17} parent=0 // pred_check
    _
  $region7: #{clip_caption_forward.17} parent=0 // pred_check_branch
    %12 = sbr.rel (0) target = $region9
  $region8: #{clip_caption_forward.17} parent=0 // pred_region
    _
  $region9: #{clip_caption_forward.17} parent=0 // pred_fallthru
    _
  // Predicated region
  $region10: #{clip_caption_forward.17} parent=0 // pred_check
    _
  $region11: #{clip_caption_forward.17} parent=0 // pred_check_branch
    %14 = sbr.rel (0) target = $region13
  $region12: #{clip_caption_forward.17} parent=0 // pred_region
    _
  $region13: #{clip_caption_forward.17} parent=0 // pred_fallthru
    _
  // Predicated region
  $region14: #{clip_caption_forward.17} parent=0 // pred_check
    _
  $region15: #{clip_caption_forward.17} parent=0 // pred_check_branch
    %16 = sbr.rel (0) target = $region17
  $region16: #{clip_caption_forward.17} parent=0 // pred_region
    _
  $region17: #{clip_caption_forward.17} parent=0 // pred_fallthru
    _
  %v18 = vld [vmem:[%s0] sm:$0xf]
  %v19 = vld [vmem:[%s0 + $0x4] sm:$0xf]
  %v20 = vld [vmem:[%s0 + $0x8] sm:$0xf]
  %v21 = vld [vmem:[%s0 + $0xc] sm:$0xf]
  %v22 = vld [vmem:[%s1] sm:$0xf]
  %v23 = vld [vmem:[%s1 + $0x4] sm:$0xf]
  %v24 = vld [vmem:[%s1 + $0x8] sm:$0xf]
  %v25 = vld [vmem:[%s1 + $0xc] sm:$0xf]
  %v26 = vld [vmem:[%s1 + $0x10] sm:$0xf]
  %v27 = vld [vmem:[%s1 + $0x14] sm:$0xf]
  %v28 = vld [vmem:[%s1 + $0x18] sm:$0xf]
  %v29 = vld [vmem:[%s1 + $0x1c] sm:$0xf]
  %v30 = vld [vmem:[%s1 + $0x20] sm:$0xf]
  %v31 = vld [vmem:[%s1 + $0x24] sm:$0xf]
  %v32 = vld [vmem:[%s1 + $0x28] sm:$0xf]
  %v33 = vld [vmem:[%s1 + $0x2c] sm:$0xf]
  %v34 = vld [vmem:[%s1 + $0x30] sm:$0xf]
  %v35 = vld [vmem:[%s1 + $0x34] sm:$0xf]
  %v36 = vld [vmem:[%s1 + $0x38] sm:$0xf]
  %v37 = vld [vmem:[%s1 + $0x3c] sm:$0xf]
  %v38 = vld [vmem:[%s2] sm:$0x1]
  %v40 = vlaneseq
  %v41 = vshrl.u32 %v40, 7
  %v42 = vsub.s32 0, %v41
  %v43 = vrot.slane %v38, %v42
  %v49 = vunpack.c.l.b16 %v18
  %v50 = vunpack.c.l.b16 %v19
  %v51 = vunpack.c.l.b16 %v20
  %v52 = vunpack.c.l.b16 %v21
  %v53 = vpack.c.b16 %v50, %v49
  %v54 = vpack.c.b16 %v52, %v51
  %v73 = vunpack.c.l.b16 %v22
  %v74 = vunpack.c.l.b16 %v23
  %v75 = vunpack.c.l.b16 %v24
  %v76 = vunpack.c.l.b16 %v25
  %v77 = vunpack.c.l.b16 %v26
  %v78 = vunpack.c.l.b16 %v27
  %v79 = vunpack.c.l.b16 %v28
  %v80 = vunpack.c.l.b16 %v29
  %v81 = vunpack.c.l.b16 %v30
  %v82 = vunpack.c.l.b16 %v31
  %v83 = vunpack.c.l.b16 %v32
  %v84 = vunpack.c.l.b16 %v33
  %v85 = vunpack.c.l.b16 %v34
  %v86 = vunpack.c.l.b16 %v35
  %v87 = vunpack.c.l.b16 %v36
  %v88 = vunpack.c.l.b16 %v37
  %v89 = vpack.c.b16 %v74, %v73
  %v90 = vpack.c.b16 %v76, %v75
  %v91 = vpack.c.b16 %v78, %v77
  %v92 = vpack.c.b16 %v80, %v79
  %v93 = vpack.c.b16 %v82, %v81
  %v94 = vpack.c.b16 %v84, %v83
  %v95 = vpack.c.b16 %v86, %v85
  %v96 = vpack.c.b16 %v88, %v87
  %105 = vmatprep.subr.bf16.mxu0 0
  %106 = vmatpush1.bf16.msra.mxu0 %v89
  %107 = vmatprep.subr.bf16.mxu0 0
  %108 = vmatpush1.bf16.msra.mxu0 %v90
  %109 = vmatprep.subr.bf16.mxu0 0
  %110 = vmatpush1.bf16.msra.mxu0 %v91
  %111 = vmatprep.subr.bf16.mxu0 0
  %112 = vmatpush1.bf16.msra.mxu0 %v92
  %113 = vmatprep.subr.bf16.mxu0 0
  %114 = vmatpush1.bf16.msra.mxu0 %v93
  %115 = vmatprep.subr.bf16.mxu0 0
  %116 = vmatpush1.bf16.msra.mxu0 %v94
  %117 = vmatprep.subr.bf16.mxu0 0
  %118 = vmatpush1.bf16.msra.mxu0 %v95
  %119 = vmatprep.subr.bf16.mxu0 0
  %120 = vmatpush1.bf16.msra.mxu0 %v96
  %121 = vmatprep.subr.bf16.mxu0 0
  %122 = vmatpush1.bf16.msra.mxu0 0
  %123 = vmatprep.subr.bf16.mxu0 0
  %124 = vmatpush1.bf16.msra.mxu0 0
  %125 = vmatprep.subr.bf16.mxu0 0
  %126 = vmatpush1.bf16.msra.mxu0 0
  %127 = vmatprep.subr.bf16.mxu0 0
  %128 = vmatpush1.bf16.msra.mxu0 0
  %129 = vmatprep.subr.bf16.mxu0 0
  %130 = vmatpush1.bf16.msra.mxu0 0
  %131 = vmatprep.subr.bf16.mxu0 0
  %132 = vmatpush1.bf16.msra.mxu0 0
  %133 = vmatprep.subr.bf16.mxu0 0
  %134 = vmatpush1.bf16.msra.mxu0 0
  %135 = vmatprep.subr.bf16.mxu0 0
  %136 = vmatpush1.bf16.msra.mxu0 0
  %137 = vmatprep.mubr.bf16.mxu0 0
  %138 = vmatmul.mubr.bf16.gmra.mrb[0].mxu0 %v53
  %v139 = vpop.f32.mrb[0].mxu0
  %v140 = vadd.f32 %v43, %v139
  %v141 = vpop.f32.mrb[0].mxu0
  %v142 = vpop.f32.mrb[0].mxu0
  %v143 = vadd.f32 %v43, %v142
  %v144 = vpop.f32.mrb[0].mxu0
  %145 = vmatprep.mubr.bf16.mxu0 0
  %146 = vmatmul.mubr.bf16.gmra.mrb[0].mxu0 %v54
  %v147 = vpop.f32.mrb[0].mxu0
  %v148 = vadd.f32 %v43, %v147
  %v149 = vpop.f32.mrb[0].mxu0
  %v150 = vpop.f32.mrb[0].mxu0
  %v151 = vadd.f32 %v43, %v150
  %v152 = vpop.f32.mrb[0].mxu0
  %153 = vdwg.mxu0
  %v154 = vld [vmem:[%s3] sm:$0xff]
  %v155 = vld [vmem:[%s3 + $0x8] sm:$0xff]
  %v156 = vld [vmem:[%s3 + $0x10] sm:$0xff]
  %v157 = vld [vmem:[%s3 + $0x18] sm:$0xff]
  %v158 = vadd.f32 %v140, %v154
  %v159 = vadd.f32 %v143, %v155
  %v160 = vadd.f32 %v148, %v156
  %v161 = vadd.f32 %v151, %v157
  %162 = vst [vmem:[%s4] sm:$0xff] %v158
  %163 = vst [vmem:[%s4 + $0x8] sm:$0xff] %v159
  %164 = vst [vmem:[%s4 + $0x10] sm:$0xff] %v160
  %165 = vst [vmem:[%s4 + $0x18] sm:$0xff] %v161
  // Predicated region
  $region18: #{clip_caption_forward.17} parent=0 // pred_check
    _
  $region19: #{clip_caption_forward.17} parent=0 // pred_check_branch
    %167 = sbr.rel (0) target = $region21
  $region20: #{clip_caption_forward.17} parent=0 // pred_region
    _
  $region21: #{clip_caption_forward.17} parent=0 // pred_fallthru
    _
  // Predicated region
  $region22: #{clip_caption_forward.17} parent=0 // pred_check
    _
  $region23: #{clip_caption_forward.17} parent=0 // pred_check_branch
    %169 = sbr.rel (0) target = $region25
  $region24: #{clip_caption_forward.17} parent=0 // pred_region
    _
  $region25: #{clip_caption_forward.17} parent=0 // pred_fallthru
    _

// kernel: clip_caption_forward.16
$region0: #{clip_caption_forward.16}
  #allocation0 [shape = 'u32[]', space=smem, size = 0x4, offset = 0x4, fixed_abs, tag = 'smem constant byte address 0x4 - core index']
  #allocation1 [shape = 'u32[144,128]{1,0:T(1,128)}', space=vmem, size = 0x12000, scoped, tag = 'internal scratch']
  #allocation2 [shape = 'f32[4,16,1]{2,1,0:T(8,128)}', space=vmem, size = 0x8000, scoped, tag = 'scratch operand']
  #allocation3 [shape = 'f32[4,16,1]{2,1,0:T(8,128)}', space=vmem, size = 0x8000, scoped, tag = 'scratch operand']
  #allocation4 [shape = 'f32[4,16,32]{2,1,0:T(8,128)}', space=vmem, size = 0x8000, scoped, tag = 'scratch operand']
  %s0 = inlined_call_operand.vmem [shape: bf16[2,16,384], index: 0, kind: input, shape index: {}, may-alias: {0,1,2}]
  %s1 = inlined_call_operand.vmem [shape: bf16[2,16,384], index: 1, kind: input, shape index: {}, may-alias: {0,1,2}]
  %s2 = inlined_call_operand.vmem [shape: bf16[2,16,384], index: 2, kind: input, shape index: {}, may-alias: {0,1,2}]
  %s3 = inlined_call_operand.vmem [shape: bf16[2,16,128], index: 3, kind: output, shape index: {}]
  %s4 = sld [smem:[#allocation0]]
  $region180: #{clip_caption_forward.16} parent=0
    _
  %s6 = ssub.s32 1, %s4
  %s7 = scalar_select 0, %s6, %s4
  $region1: #{clip_caption_forward.16} parent=0
    #allocation5 [shape = 'u8[8192]{0}', space=vmem, size = 0x2000, scoped, tag = 'input window, operand 0']
    #allocation6 [shape = 'u8[8192]{0}', space=vmem, size = 0x2000, scoped, tag = 'input window, operand 1']
    #allocation7 [shape = 'u8[8192]{0}', space=vmem, size = 0x2000, scoped, tag = 'input window, operand 2']
    loop: start=0, step=1, limit=4
    $region2: #{clip_caption_forward.16} parent=1 // loop_pre_header
      _
    $region3: #{clip_caption_forward.16} parent=1 // loop_header
      %s9 = sphi 0, %s13
      %p10 = scmp.ge.s32.totalorder %s9, 4
      %s16 = sphi 0, %s35
      %s17 = sphi 0, %s31
      %s18 = sphi 0, %s27
      %s19 = sphi 0, %s16
      %s20 = sphi 0, %s17
      %s21 = sphi 0, %s18
      %s22 = sphi 0, %s19
      %s23 = sphi 0, %s20
      %s24 = sphi 0, %s21
      %s40 = sphi 0, %s42
      %s43 = sphi 0, %s40
      %s44 = sphi 0, %s43
      %s60 = sphi 0, %s44
      %s68 = sphi 0, %s70
      %s71 = sphi 0, %s68
      %s72 = sphi 0, %s71
      %s88 = sphi 0, %s72
      %s96 = sphi 0, %s98
      %s99 = sphi 0, %s96
      %s100 = sphi 0, %s99
      %s116 = sphi 0, %s100
      %s124 = sphi 0, %s126
      %s127 = sphi 0, %s124
      %s128 = sphi 0, %s127
      %s144 = sphi 0, %s128
    $region4: #{clip_caption_forward.16} parent=1 // loop_header_branch
      %12 = sbr.rel (%p10) target = $region8
    $region5: #{clip_caption_forward.16} parent=1 // loop_body
      %s14 = ssub.s32 %s9, 1
      %s15 = ssub.s32 %s9, 2
      %s25 = sadd.s32 1, %s18
      %p26 = scmp.ge.s32.totalorder %s25, 1
      %s27 = scalar_select %p26, 0, %s25
      %s28 = sadd.s32 1, %s17
      %s29 = scalar_select %p26, %s28, %s17
      %p30 = scmp.ge.s32.totalorder %s29, 1
      %s31 = scalar_select %p30, 0, %s29
      %s32 = sadd.s32 1, %s16
      %s33 = scalar_select %p30, %s32, %s16
      %p34 = scmp.ge.s32.totalorder %s33, 2
      %s35 = scalar_select %p34, 0, %s33
      %s36 = ssub.s32 %s16, %s35
      %s37 = ssub.s32 %s17, %s31
      %s38 = sor.u32 %s36, %s37
      %p39 = scmp.eq.s32.totalorder %s38, 0
      %s41 = sadd.s32 %s40, 1
      %s42 = scalar_select %p39, %s40, %s41
      %p45 = pneg %p39
      %p46 = scmp.eq.s32.totalorder %s9, 1
      %p47 = por %p45, %p46
      %p48 = scmp.ne.s32.totalorder %s40, %s43
      %p49 = scmp.eq.s32.totalorder %s9, 0
      %p50 = por %p48, %p49
      %p51 = scmp.ne.s32.totalorder %s40, %s43
      %p52 = scmp.eq.s32.totalorder %s14, 1
      %p53 = por %p51, %p52
      %p54 = scmp.ne.s32.totalorder %s43, %s44
      %p55 = scmp.eq.s32.totalorder %s14, 0
      %p56 = por %p54, %p55
      %p57 = scmp.ne.s32.totalorder %s43, %s44
      %p58 = scmp.eq.s32.totalorder %s15, 1
      %p59 = por %p57, %p58
      %p61 = scmp.ne.s32.totalorder %s44, %s60
      %p62 = scmp.eq.s32.totalorder %s15, 0
      %p63 = por %p61, %p62
      %s64 = ssub.s32 %s16, %s35
      %s65 = ssub.s32 %s18, %s27
      %s66 = sor.u32 %s64, %s65
      %p67 = scmp.eq.s32.totalorder %s66, 0
      %s69 = sadd.s32 %s68, 1
      %s70 = scalar_select %p67, %s68, %s69
      %p73 = pneg %p67
      %p74 = scmp.eq.s32.totalorder %s9, 1
      %p75 = por %p73, %p74
      %p76 = scmp.ne.s32.totalorder %s68, %s71
      %p77 = scmp.eq.s32.totalorder %s9, 0
      %p78 = por %p76, %p77
      %p79 = scmp.ne.s32.totalorder %s68, %s71
      %p80 = scmp.eq.s32.totalorder %s14, 1
      %p81 = por %p79, %p80
      %p82 = scmp.ne.s32.totalorder %s71, %s72
      %p83 = scmp.eq.s32.totalorder %s14, 0
      %p84 = por %p82, %p83
      %p85 = scmp.ne.s32.totalorder %s71, %s72
      %p86 = scmp.eq.s32.totalorder %s15, 1
      %p87 = por %p85, %p86
      %p89 = scmp.ne.s32.totalorder %s72, %s88
      %p90 = scmp.eq.s32.totalorder %s15, 0
      %p91 = por %p89, %p90
      %s92 = ssub.s32 %s16, %s35
      %s93 = ssub.s32 %s18, %s27
      %s94 = sor.u32 %s92, %s93
      %p95 = scmp.eq.s32.totalorder %s94, 0
      %s97 = sadd.s32 %s96, 1
      %s98 = scalar_select %p95, %s96, %s97
      %p101 = pneg %p95
      %p102 = scmp.eq.s32.totalorder %s9, 1
      %p103 = por %p101, %p102
      %p104 = scmp.ne.s32.totalorder %s96, %s99
      %p105 = scmp.eq.s32.totalorder %s9, 0
      %p106 = por %p104, %p105
      %p107 = scmp.ne.s32.totalorder %s96, %s99
      %p108 = scmp.eq.s32.totalorder %s14, 1
      %p109 = por %p107, %p108
      %p110 = scmp.ne.s32.totalorder %s99, %s100
      %p111 = scmp.eq.s32.totalorder %s14, 0
      %p112 = por %p110, %p111
      %p113 = scmp.ne.s32.totalorder %s99, %s100
      %p114 = scmp.eq.s32.totalorder %s15, 1
      %p115 = por %p113, %p114
      %p117 = scmp.ne.s32.totalorder %s100, %s116
      %p118 = scmp.eq.s32.totalorder %s15, 0
      %p119 = por %p117, %p118
      %s120 = ssub.s32 %s16, %s35
      %s121 = ssub.s32 %s17, %s31
      %s122 = sor.u32 %s120, %s121
      %p123 = scmp.eq.s32.totalorder %s122, 0
      %s125 = sadd.s32 %s124, 1
      %s126 = scalar_select %p123, %s124, %s125
      %p129 = pneg %p123
      %p130 = scmp.eq.s32.totalorder %s9, 1
      %p131 = por %p129, %p130
      %p132 = scmp.ne.s32.totalorder %s124, %s127
      %p133 = scmp.eq.s32.totalorder %s9, 0
      %p134 = por %p132, %p133
      %p135 = scmp.ne.s32.totalorder %s124, %s127
      %p136 = scmp.eq.s32.totalorder %s14, 1
      %p137 = por %p135, %p136
      %p138 = scmp.ne.s32.totalorder %s127, %s128
      %p139 = scmp.eq.s32.totalorder %s14, 0
      %p140 = por %p138, %p139
      %p141 = scmp.ne.s32.totalorder %s127, %s128
      %p142 = scmp.eq.s32.totalorder %s15, 1
      %p143 = por %p141, %p142
      %p145 = scmp.ne.s32.totalorder %s128, %s144
      %p146 = scmp.eq.s32.totalorder %s15, 0
      %p147 = por %p145, %p146
      %p148 = scmp.le.s32.totalorder 1, %s9
      %p149 = scmp.lt.s32.totalorder %s9, 3
      %p150 = pnand %p148, %p149
      %p151 = pneg %p150
      // Predicated region
      $region9: #{clip_caption_forward.16} parent=5 // pred_check
        _
      $region10: #{clip_caption_forward.16} parent=5 // pred_check_branch
        %153 = sbr.rel (%p150) target = $region12
      $region11: #{clip_caption_forward.16} parent=5 // pred_region
        %s154 = ssub.s32 %s9, 1
      $region12: #{clip_caption_forward.16} parent=5 // pred_fallthru
        _
      %p155 = scmp.lt.s32.totalorder %s9, 2
      // Predicated region
      $region13: #{clip_caption_forward.16} parent=5 // pred_check
        %p156 = pneg %p155
      $region14: #{clip_caption_forward.16} parent=5 // pred_check_branch
        %158 = sbr.rel (%p156) target = $region16
      $region15: #{clip_caption_forward.16} parent=5 // pred_region
        // Predicated region
        $region17: #{clip_caption_forward.16} parent=15 // pred_check
          %p159 = pneg %p50
        $region18: #{clip_caption_forward.16} parent=15 // pred_check_branch
          %161 = sbr.rel (%p159) target = $region20
        $region19: #{clip_caption_forward.16} parent=15 // pred_region
          %s162 = sand.u32 %s40, 1
          %s163 = sand.u32 %s40, 1
          %s164 = smul.addr %s163, 8
          %s165 = scalar_lea.vmem [#allocation5], %s164
          %s166 = smul.u32 2, %s17
          %s167 = smul.addr %s166, 3
          %s168 = smul.addr %s16, 6
          %s169 = sadd.s32 %s167, %s168
          %s170 = smul.addr %s169, 4
          %s171 = scalar_lea.vmem %s0, %s170
          // Predicated region
          $region21: #{clip_caption_forward.16} parent=19 // pred_check
            _
          $region22: #{clip_caption_forward.16} parent=19 // pred_check_branch
            %173 = sbr.rel (0) target = $region24
          $region23: #{clip_caption_forward.16} parent=19 // pred_region
            // Predicated region
            $region25: #{clip_caption_forward.16} parent=23 // pred_check
              _
            $region26: #{clip_caption_forward.16} parent=23 // pred_check_branch
              %175 = sbr.rel target = $region28
            $region27: #{clip_caption_forward.16} parent=23 // pred_region
              // Predicated region
              $region40: #{clip_caption_forward.16} parent=27 // pred_check
                _
              $region41: #{clip_caption_forward.16} parent=27 // pred_check_branch
                %192 = sbr.rel (0) target = $region43
              $region42: #{clip_caption_forward.16} parent=27 // pred_region
                loop: start=0, step=1, limit=1
                $region44: #{clip_caption_forward.16} parent=42 // loop_pre_header
                  _
                $region45: #{clip_caption_forward.16} parent=42 // loop_header
                  %s194 = sphi 0, %s198
                  %p195 = scmp.ge.s32.totalorder %s194, 1
                  %s199 = sphi %s171, %s171
                  %s200 = sphi %s165, %s165
                $region46: #{clip_caption_forward.16} parent=42 // loop_header_branch
                  %197 = sbr.rel (%p195) target = $region50
                $region47: #{clip_caption_forward.16} parent=42 // loop_body
                  _
                $region48: #{clip_caption_forward.16} parent=42 // loop_footer
                  %s198 = sadd.s32 1, %s194
                $region49: #{clip_caption_forward.16} parent=42 // loop_footer_branch
                  %193 = sbr.rel target = $region45
                $region50: #{clip_caption_forward.16} parent=42 // loop_exit
                  _
                loop: start=0, step=1, limit=1
                $region51: #{clip_caption_forward.16} parent=42 // loop_pre_header
                  _
                $region52: #{clip_caption_forward.16} parent=42 // loop_header
                  %s203 = sphi 0, %s207
                  %p204 = scmp.ge.s32.totalorder %s203, 1
                  %s208 = sphi %s171, %s171
                  %s209 = sphi %s165, %s165
                $region53: #{clip_caption_forward.16} parent=42 // loop_header_branch
                  %206 = sbr.rel (%p204) target = $region57
                $region54: #{clip_caption_forward.16} parent=42 // loop_body
                  %v210 = vld [vmem:[%s208] sm:$0xf]
                  %211 = vst [vmem:[%s209] sm:$0xf] %v210
                  %v212 = vld [vmem:[%s208 + $0xc] sm:$0xf]
                  %213 = vst [vmem:[%s209 + $0x4] sm:$0xf] %v212
                $region55: #{clip_caption_forward.16} parent=42 // loop_footer
                  %s207 = sadd.s32 1, %s203
                $region56: #{clip_caption_forward.16} parent=42 // loop_footer_branch
                  %202 = sbr.rel target = $region52
                $region57: #{clip_caption_forward.16} parent=42 // loop_exit
                  _
              $region43: #{clip_caption_forward.16} parent=27 // pred_fallthru
                _
            $region28: #{clip_caption_forward.16} parent=23 // pred_fallthru
              _
            // Predicated region
            $region29: #{clip_caption_forward.16} parent=23 // pred_check
              _
            $region30: #{clip_caption_forward.16} parent=23 // pred_check_branch
              %177 = sbr.rel (0) target = $region32
            $region31: #{clip_caption_forward.16} parent=23 // pred_region
              loop: start=0, step=1, limit=1
              $region33: #{clip_caption_forward.16} parent=31 // loop_pre_header
                _
              $region34: #{clip_caption_forward.16} parent=31 // loop_header
                %s180 = sphi 0, %s184
                %p181 = scmp.ge.s32.totalorder %s180, 1
                %s185 = sphi %s171, %s171
                %s186 = sphi %s165, %s165
              $region35: #{clip_caption_forward.16} parent=31 // loop_header_branch
                %183 = sbr.rel (%p181) target = $region39
              $region36: #{clip_caption_forward.16} parent=31 // loop_body
                %v187 = vld [vmem:[%s185] sm:$0xf]
                %188 = vst [vmem:[%s186] sm:$0xf] %v187
                %v189 = vld [vmem:[%s185 + $0xc] sm:$0xf]
                %190 = vst [vmem:[%s186 + $0x4] sm:$0xf] %v189
              $region37: #{clip_caption_forward.16} parent=31 // loop_footer
                %s184 = sadd.s32 1, %s180
              $region38: #{clip_caption_forward.16} parent=31 // loop_footer_branch
                %179 = sbr.rel target = $region34
              $region39: #{clip_caption_forward.16} parent=31 // loop_exit
                _
            $region32: #{clip_caption_forward.16} parent=23 // pred_fallthru
              _
          $region24: #{clip_caption_forward.16} parent=19 // pred_fallthru
            _
          %214 = vnop
        $region20: #{clip_caption_forward.16} parent=15 // pred_fallthru
          _
        // Predicated region
        $region58: #{clip_caption_forward.16} parent=15 // pred_check
          %p215 = pneg %p78
        $region59: #{clip_caption_forward.16} parent=15 // pred_check_branch
          %217 = sbr.rel (%p215) target = $region61
        $region60: #{clip_caption_forward.16} parent=15 // pred_region
          %s218 = sand.u32 %s68, 1
          %s219 = sand.u32 %s68, 1
          %s220 = smul.addr %s219, 8
          %s221 = scalar_lea.vmem [#allocation6], %s220
          %s222 = smul.u32 2, %s18
          %s223 = smul.addr %s222, 3
          %s224 = sadd.s32 1, %s223
          %s225 = smul.addr %s16, 6
          %s226 = sadd.s32 %s224, %s225
          %s227 = smul.addr %s226, 4
          %s228 = scalar_lea.vmem %s1, %s227
          // Predicated region
          $region62: #{clip_caption_forward.16} parent=60 // pred_check
            _
          $region63: #{clip_caption_forward.16} parent=60 // pred_check_branch
            %230 = sbr.rel (0) target = $region65
          $region64: #{clip_caption_forward.16} parent=60 // pred_region
            // Predicated region
            $region66: #{clip_caption_forward.16} parent=64 // pred_check
              _
            $region67: #{clip_caption_forward.16} parent=64 // pred_check_branch
              %232 = sbr.rel target = $region69
            $region68: #{clip_caption_forward.16} parent=64 // pred_region
              // Predicated region
              $region81: #{clip_caption_forward.16} parent=68 // pred_check
                _
              $region82: #{clip_caption_forward.16} parent=68 // pred_check_branch
                %249 = sbr.rel (0) target = $region84
              $region83: #{clip_caption_forward.16} parent=68 // pred_region
                loop: start=0, step=1, limit=1
                $region85: #{clip_caption_forward.16} parent=83 // loop_pre_header
                  _
                $region86: #{clip_caption_forward.16} parent=83 // loop_header
                  %s251 = sphi 0, %s255
                  %p252 = scmp.ge.s32.totalorder %s251, 1
                  %s256 = sphi %s228, %s228
                  %s257 = sphi %s221, %s221
                $region87: #{clip_caption_forward.16} parent=83 // loop_header_branch
                  %254 = sbr.rel (%p252) target = $region91
                $region88: #{clip_caption_forward.16} parent=83 // loop_body
                  _
                $region89: #{clip_caption_forward.16} parent=83 // loop_footer
                  %s255 = sadd.s32 1, %s251
                $region90: #{clip_caption_forward.16} parent=83 // loop_footer_branch
                  %250 = sbr.rel target = $region86
                $region91: #{clip_caption_forward.16} parent=83 // loop_exit
                  _
                loop: start=0, step=1, limit=1
                $region92: #{clip_caption_forward.16} parent=83 // loop_pre_header
                  _
                $region93: #{clip_caption_forward.16} parent=83 // loop_header
                  %s260 = sphi 0, %s264
                  %p261 = scmp.ge.s32.totalorder %s260, 1
                  %s265 = sphi %s228, %s228
                  %s266 = sphi %s221, %s221
                $region94: #{clip_caption_forward.16} parent=83 // loop_header_branch
                  %263 = sbr.rel (%p261) target = $region98
                $region95: #{clip_caption_forward.16} parent=83 // loop_body
                  %v267 = vld [vmem:[%s265] sm:$0xf]
                  %268 = vst [vmem:[%s266] sm:$0xf] %v267
                  %v269 = vld [vmem:[%s265 + $0xc] sm:$0xf]
                  %270 = vst [vmem:[%s266 + $0x4] sm:$0xf] %v269
                $region96: #{clip_caption_forward.16} parent=83 // loop_footer
                  %s264 = sadd.s32 1, %s260
                $region97: #{clip_caption_forward.16} parent=83 // loop_footer_branch
                  %259 = sbr.rel target = $region93
                $region98: #{clip_caption_forward.16} parent=83 // loop_exit
                  _
              $region84: #{clip_caption_forward.16} parent=68 // pred_fallthru
                _
            $region69: #{clip_caption_forward.16} parent=64 // pred_fallthru
              _
            // Predicated region
            $region70: #{clip_caption_forward.16} parent=64 // pred_check
              _
            $region71: #{clip_caption_forward.16} parent=64 // pred_check_branch
              %234 = sbr.rel (0) target = $region73
            $region72: #{clip_caption_forward.16} parent=64 // pred_region
              loop: start=0, step=1, limit=1
              $region74: #{clip_caption_forward.16} parent=72 // loop_pre_header
                _
              $region75: #{clip_caption_forward.16} parent=72 // loop_header
                %s237 = sphi 0, %s241
                %p238 = scmp.ge.s32.totalorder %s237, 1
                %s242 = sphi %s228, %s228
                %s243 = sphi %s221, %s221
              $region76: #{clip_caption_forward.16} parent=72 // loop_header_branch
                %240 = sbr.rel (%p238) target = $region80
              $region77: #{clip_caption_forward.16} parent=72 // loop_body
                %v244 = vld [vmem:[%s242] sm:$0xf]
                %245 = vst [vmem:[%s243] sm:$0xf] %v244
                %v246 = vld [vmem:[%s242 + $0xc] sm:$0xf]
                %247 = vst [vmem:[%s243 + $0x4] sm:$0xf] %v246
              $region78: #{clip_caption_forward.16} parent=72 // loop_footer
                %s241 = sadd.s32 1, %s237
              $region79: #{clip_caption_forward.16} parent=72 // loop_footer_branch
                %236 = sbr.rel target = $region75
              $region80: #{clip_caption_forward.16} parent=72 // loop_exit
                _
            $region73: #{clip_caption_forward.16} parent=64 // pred_fallthru
              _
          $region65: #{clip_caption_forward.16} parent=60 // pred_fallthru
            _
          %271 = vnop
        $region61: #{clip_caption_forward.16} parent=15 // pred_fallthru
          _
        // Predicated region
        $region99: #{clip_caption_forward.16} parent=15 // pred_check
          %p272 = pneg %p106
        $region100: #{clip_caption_forward.16} parent=15 // pred_check_branch
          %274 = sbr.rel (%p272) target = $region102
        $region101: #{clip_caption_forward.16} parent=15 // pred_region
          %s275 = sand.u32 %s96, 1
          %s276 = sand.u32 %s96, 1
          %s277 = smul.addr %s276, 8
          %s278 = scalar_lea.vmem [#allocation7], %s277
          %s279 = smul.u32 2, %s18
          %s280 = smul.addr %s279, 3
          %s281 = sadd.s32 2, %s280
          %s282 = smul.addr %s16, 6
          %s283 = sadd.s32 %s281, %s282
          %s284 = smul.addr %s283, 4
          %s285 = scalar_lea.vmem %s2, %s284
          // Predicated region
          $region103: #{clip_caption_forward.16} parent=101 // pred_check
            _
          $region104: #{clip_caption_forward.16} parent=101 // pred_check_branch
            %287 = sbr.rel (0) target = $region106
          $region105: #{clip_caption_forward.16} parent=101 // pred_region
            // Predicated region
            $region107: #{clip_caption_forward.16} parent=105 // pred_check
              _
            $region108: #{clip_caption_forward.16} parent=105 // pred_check_branch
              %289 = sbr.rel target = $region110
            $region109: #{clip_caption_forward.16} parent=105 // pred_region
              // Predicated region
              $region122: #{clip_caption_forward.16} parent=109 // pred_check
                _
              $region123: #{clip_caption_forward.16} parent=109 // pred_check_branch
                %306 = sbr.rel (0) target = $region125
              $region124: #{clip_caption_forward.16} parent=109 // pred_region
                loop: start=0, step=1, limit=1
                $region126: #{clip_caption_forward.16} parent=124 // loop_pre_header
                  _
                $region127: #{clip_caption_forward.16} parent=124 // loop_header
                  %s308 = sphi 0, %s312
                  %p309 = scmp.ge.s32.totalorder %s308, 1
                  %s313 = sphi %s285, %s285
                  %s314 = sphi %s278, %s278
                $region128: #{clip_caption_forward.16} parent=124 // loop_header_branch
                  %311 = sbr.rel (%p309) target = $region132
                $region129: #{clip_caption_forward.16} parent=124 // loop_body
                  _
                $region130: #{clip_caption_forward.16} parent=124 // loop_footer
                  %s312 = sadd.s32 1, %s308
                $region131: #{clip_caption_forward.16} parent=124 // loop_footer_branch
                  %307 = sbr.rel target = $region127
                $region132: #{clip_caption_forward.16} parent=124 // loop_exit
                  _
                loop: start=0, step=1, limit=1
                $region133: #{clip_caption_forward.16} parent=124 // loop_pre_header
                  _
                $region134: #{clip_caption_forward.16} parent=124 // loop_header
                  %s317 = sphi 0, %s321
                  %p318 = scmp.ge.s32.totalorder %s317, 1
                  %s322 = sphi %s285, %s285
                  %s323 = sphi %s278, %s278
                $region135: #{clip_caption_forward.16} parent=124 // loop_header_branch
                  %320 = sbr.rel (%p318) target = $region139
                $region136: #{clip_caption_forward.16} parent=124 // loop_body
                  %v324 = vld [vmem:[%s322] sm:$0xf]
                  %325 = vst [vmem:[%s323] sm:$0xf] %v324
                  %v326 = vld [vmem:[%s322 + $0xc] sm:$0xf]
                  %327 = vst [vmem:[%s323 + $0x4] sm:$0xf] %v326
                $region137: #{clip_caption_forward.16} parent=124 // loop_footer
                  %s321 = sadd.s32 1, %s317
                $region138: #{clip_caption_forward.16} parent=124 // loop_footer_branch
                  %316 = sbr.rel target = $region134
                $region139: #{clip_caption_forward.16} parent=124 // loop_exit
                  _
              $region125: #{clip_caption_forward.16} parent=109 // pred_fallthru
                _
            $region110: #{clip_caption_forward.16} parent=105 // pred_fallthru
              _
            // Predicated region
            $region111: #{clip_caption_forward.16} parent=105 // pred_check
              _
            $region112: #{clip_caption_forward.16} parent=105 // pred_check_branch
              %291 = sbr.rel (0) target = $region114
            $region113: #{clip_caption_forward.16} parent=105 // pred_region
              loop: start=0, step=1, limit=1
              $region115: #{clip_caption_forward.16} parent=113 // loop_pre_header
                _
              $region116: #{clip_caption_forward.16} parent=113 // loop_header
                %s294 = sphi 0, %s298
                %p295 = scmp.ge.s32.totalorder %s294, 1
                %s299 = sphi %s285, %s285
                %s300 = sphi %s278, %s278
              $region117: #{clip_caption_forward.16} parent=113 // loop_header_branch
                %297 = sbr.rel (%p295) target = $region121
              $region118: #{clip_caption_forward.16} parent=113 // loop_body
                %v301 = vld [vmem:[%s299] sm:$0xf]
                %302 = vst [vmem:[%s300] sm:$0xf] %v301
                %v303 = vld [vmem:[%s299 + $0xc] sm:$0xf]
                %304 = vst [vmem:[%s300 + $0x4] sm:$0xf] %v303
              $region119: #{clip_caption_forward.16} parent=113 // loop_footer
                %s298 = sadd.s32 1, %s294
              $region120: #{clip_caption_forward.16} parent=113 // loop_footer_branch
                %293 = sbr.rel target = $region116
              $region121: #{clip_caption_forward.16} parent=113 // loop_exit
                _
            $region114: #{clip_caption_forward.16} parent=105 // pred_fallthru
              _
          $region106: #{clip_caption_forward.16} parent=101 // pred_fallthru
            _
          %328 = vnop
        $region102: #{clip_caption_forward.16} parent=15 // pred_fallthru
          _
      $region16: #{clip_caption_forward.16} parent=5 // pred_fallthru
        _
      %p329 = scmp.le.s32.totalorder 1, %s9
      %p330 = scmp.lt.s32.totalorder %s9, 3
      %p331 = pnand %p329, %p330
      %p332 = pneg %p331
      // Predicated region
      $region140: #{clip_caption_forward.16} parent=5 // pred_check
        _
      $region141: #{clip_caption_forward.16} parent=5 // pred_check_branch
        %334 = sbr.rel (%p331) target = $region143
      $region142: #{clip_caption_forward.16} parent=5 // pred_region
        %s335 = ssub.s32 %s9, 1
        %s336 = sand.u32 %s43, 1
        %s337 = sand.u32 %s43, 1
        %s338 = smul.addr %s337, 8
        %s339 = scalar_lea.vmem [#allocation5], %s338
        // Predicated region
        $region144: #{clip_caption_forward.16} parent=142 // pred_check
          %p340 = pneg %p56
        $region145: #{clip_caption_forward.16} parent=142 // pred_check_branch
          %342 = sbr.rel (%p340) target = $region147
        $region146: #{clip_caption_forward.16} parent=142 // pred_region
          _
        $region147: #{clip_caption_forward.16} parent=142 // pred_fallthru
          _
        %s343 = sand.u32 %s71, 1
        %s344 = sand.u32 %s71, 1
        %s345 = smul.addr %s344, 8
        %s346 = scalar_lea.vmem [#allocation6], %s345
        // Predicated region
        $region148: #{clip_caption_forward.16} parent=142 // pred_check
          %p347 = pneg %p84
        $region149: #{clip_caption_forward.16} parent=142 // pred_check_branch
          %349 = sbr.rel (%p347) target = $region151
        $region150: #{clip_caption_forward.16} parent=142 // pred_region
          _
        $region151: #{clip_caption_forward.16} parent=142 // pred_fallthru
          _
        %s350 = sand.u32 %s99, 1
        %s351 = sand.u32 %s99, 1
        %s352 = smul.addr %s351, 8
        %s353 = scalar_lea.vmem [#allocation7], %s352
        // Predicated region
        $region152: #{clip_caption_forward.16} parent=142 // pred_check
          %p354 = pneg %p112
        $region153: #{clip_caption_forward.16} parent=142 // pred_check_branch
          %356 = sbr.rel (%p354) target = $region155
        $region154: #{clip_caption_forward.16} parent=142 // pred_region
          _
        $region155: #{clip_caption_forward.16} parent=142 // pred_fallthru
          _
        %s357 = sand.u32 %s43, 1
        %s358 = sand.u32 %s43, 1
        %s359 = smul.addr %s358, 8
        %s360 = scalar_lea.vmem [#allocation5], %s359
        %p361 = pneg %p56
        %p362 = pneg %p53
        %s363 = sand.u32 %s71, 1
        %s364 = sand.u32 %s71, 1
        %s365 = smul.addr %s364, 8
        %s366 = scalar_lea.vmem [#allocation6], %s365
        %p367 = pneg %p84
        %p368 = pneg %p81
        %s369 = sand.u32 %s99, 1
        %s370 = sand.u32 %s99, 1
        %s371 = smul.addr %s370, 8
        %s372 = scalar_lea.vmem [#allocation7], %s371
        %p373 = pneg %p112
        %p374 = pneg %p109
        %p375 = pneg %p140
        %p376 = pneg %p137
        %s377 = smul.u32 2, %s20
        %p378 = scmp.lt.s32.totalorder %s19, 1
        %s379 = scalar_select %p378, %s19, 1
        %p380 = scmp.lt.s32.totalorder %s377, 1
        %s381 = scalar_select %p380, %s377, 1
        %s382 = smul.addr %s379, 2
        %s383 = sadd.s32 %s381, %s382
        %s384 = smul.addr %s383, 4
        %s385 = scalar_lea.vmem %s3, %s384
        %s386 = smul.u32 2, %s20
        %s387 = smul.u32 2, %s21
        %s388 = smul.u32 2, %s21
        %s389 = smul.u32 2, %s20
        %p390 = scmp.lt.s32.totalorder %s19, 1
        %s391 = scalar_select %p390, %s19, 1
        %p392 = scmp.lt.s32.totalorder %s389, 1
        %s393 = scalar_select %p392, %s389, 1
        %s394 = smul.addr %s391, 2
        %s395 = sadd.s32 %s393, %s394
        %s396 = smul.addr %s395, 4
        %s397 = scalar_lea.vmem %s3, %s396
        %s398 = smul.u32 2, %s20
        %p400 = scmp.eq.s32.totalorder %s21, 0
        // Predicated region
        $region156: #{clip_caption_forward.16} parent=142 // pred_check
          %p401 = pneg %p400
        $region157: #{clip_caption_forward.16} parent=142 // pred_check_branch
          %403 = sbr.rel (%p401) target = $region159
        $region158: #{clip_caption_forward.16} parent=142 // pred_region
          %vm404 = vcmask 7168
          %405 = vst.msk [vmem:[#allocation2] sm:$0xff] %vm404, -inf
          %406 = vst.msk [vmem:[#allocation2 + $0x8] sm:$0xff] %vm404, -inf
          %407 = vst.msk [vmem:[#allocation2 + $0x10] sm:$0xff] %vm404, -inf
          %408 = vst.msk [vmem:[#allocation2 + $0x18] sm:$0xff] %vm404, -inf
          %409 = vst.msk [vmem:[#allocation2 + $0x20] sm:$0xff] %vm404, -inf
          %410 = vst.msk [vmem:[#allocation2 + $0x28] sm:$0xff] %vm404, -inf
          %411 = vst.msk [vmem:[#allocation2 + $0x30] sm:$0xff] %vm404, -inf
          %412 = vst.msk [vmem:[#allocation2 + $0x38] sm:$0xff] %vm404, -inf
          %413 = vst.msk [vmem:[#allocation3] sm:$0xff] %vm404, 0.0
          %414 = vst.msk [vmem:[#allocation3 + $0x8] sm:$0xff] %vm404, 0.0
          %415 = vst.msk [vmem:[#allocation3 + $0x10] sm:$0xff] %vm404, 0.0
          %416 = vst.msk [vmem:[#allocation3 + $0x18] sm:$0xff] %vm404, 0.0
          %417 = vst.msk [vmem:[#allocation3 + $0x20] sm:$0xff] %vm404, 0.0
          %418 = vst.msk [vmem:[#allocation3 + $0x28] sm:$0xff] %vm404, 0.0
          %419 = vst.msk [vmem:[#allocation3 + $0x30] sm:$0xff] %vm404, 0.0
          %420 = vst.msk [vmem:[#allocation3 + $0x38] sm:$0xff] %vm404, 0.0
          %vm421 = vcmask 261120
          %422 = vst.msk [vmem:[#allocation4] sm:$0xff] %vm421, 0.0
          %423 = vst.msk [vmem:[#allocation4 + $0x8] sm:$0xff] %vm421, 0.0
          %424 = vst.msk [vmem:[#allocation4 + $0x10] sm:$0xff] %vm421, 0.0
          %425 = vst.msk [vmem:[#allocation4 + $0x18] sm:$0xff] %vm421, 0.0
          %426 = vst.msk [vmem:[#allocation4 + $0x20] sm:$0xff] %vm421, 0.0
          %427 = vst.msk [vmem:[#allocation4 + $0x28] sm:$0xff] %vm421, 0.0
          %428 = vst.msk [vmem:[#allocation4 + $0x30] sm:$0xff] %vm421, 0.0
          %429 = vst.msk [vmem:[#allocation4 + $0x38] sm:$0xff] %vm421, 0.0
        $region159: #{clip_caption_forward.16} parent=142 // pred_fallthru
          _
        %s430 = smul.u32 %s21, 16
        %s431 = smul.u32 %s20, 16
        %s432 = sadd.s32 %s431, 15
        %p433 = scmp.le.s32.totalorder %s430, %s432
        // Predicated region
        $region160: #{clip_caption_forward.16} parent=142 // pred_check
          %p434 = pneg %p433
        $region161: #{clip_caption_forward.16} parent=142 // pred_check_branch
          %436 = sbr.rel (%p434) target = $region163
        $region162: #{clip_caption_forward.16} parent=142 // pred_region
          %v437 = vlaneseq
          %v438 = vshrl.u32 %v437, 7
          %v439 = vadd.s32 %v438, 8
          %v440 = vstv %s431
          %v441 = vadd.s32 %v440, %v438
          %v442 = vadd.s32 %v440, %v439
          %v443 = vlaneseq
          %v444 = vand.u32 %v443, 127
          %v445 = vstv %s430
          %v446 = vadd.s32 %v445, %v444
          %vm447 = vcmp.le.s32.totalorder %v446, %v441
          %vm448 = vcmp.le.s32.totalorder %v446, %v442
          %v449 = vld [vmem:[%s339] sm:$0xf]
          %v450 = vld [vmem:[%s339 + $0x4] sm:$0xf]
          %v451 = vunpack.c.l.bf16 %v449
          %v452 = vunpack.c.l.bf16 %v450
          %v453 = vmul.f32 %v451, 0.17677669
          %v454 = vmul.f32 %v452, 0.17677669
          %v455 = vpack.c.bf16 %v454, %v453
          %v456 = vld [vmem:[%s346] sm:$0xf]
          %v457 = vld [vmem:[%s346 + $0x4] sm:$0xf]
          %v458 = vld [vmem:[%s353] sm:$0xf]
          %v459 = vld [vmem:[%s353 + $0x4] sm:$0xf]
          %v462 = vunpack.c.l.b16 %v456
          %v463 = vunpack.c.l.b16 %v457
          %v464 = vpack.c.b16 %v463, %v462
          %vm465 = vcmask 261120
          %v467 = vsel %vm465, %v455, 0
          %v470 = vsel %vm465, %v464, 0
          %472 = vmatprep.subr.bf16.mxu0 0
          %473 = vmatpush1.bf16.xpose.msra.mxu0 %v470
          %474 = vmatprep.subr.bf16.mxu0 0
          %475 = vmatpush1.bf16.xpose.msra.mxu0 0
          %476 = vmatprep.subr.bf16.mxu0 0
          %477 = vmatpush1.bf16.xpose.msra.mxu0 0
          %478 = vmatprep.subr.bf16.mxu0 0
          %479 = vmatpush1.bf16.xpose.msra.mxu0 0
          %480 = vmatprep.subr.bf16.mxu0 0
          %481 = vmatpush1.bf16.xpose.msra.mxu0 0
          %482 = vmatprep.subr.bf16.mxu0 0
          %483 = vmatpush1.bf16.xpose.msra.mxu0 0
          %484 = vmatprep.subr.bf16.mxu0 0
          %485 = vmatpush1.bf16.xpose.msra.mxu0 0
          %486 = vmatprep.subr.bf16.mxu0 0
          %487 = vmatpush1.bf16.xpose.msra.mxu0 0
          %488 = vmatprep.subr.bf16.mxu0 0
          %489 = vmatpush1.bf16.xpose.msra.mxu0 0
          %490 = vmatprep.subr.bf16.mxu0 0
          %491 = vmatpush1.bf16.xpose.msra.mxu0 0
          %492 = vmatprep.subr.bf16.mxu0 0
          %493 = vmatpush1.bf16.xpose.msra.mxu0 0
          %494 = vmatprep.subr.bf16.mxu0 0
          %495 = vmatpush1.bf16.xpose.msra.mxu0 0
          %496 = vmatprep.subr.bf16.mxu0 0
          %497 = vmatpush1.bf16.xpose.msra.mxu0 0
          %498 = vmatprep.subr.bf16.mxu0 0
          %499 = vmatpush1.bf16.xpose.msra.mxu0 0
          %500 = vmatprep.subr.bf16.mxu0 0
          %501 = vmatpush1.bf16.xpose.msra.mxu0 0
          %502 = vmatprep.subr.bf16.mxu0 0
          %503 = vmatpush1.bf16.xpose.msra.mxu0 0
          %504 = vmatprep.mubr.bf16.mxu0 0
          %505 = vmatmul.mubr.bf16.gmra.mrb[0].mxu0 %v467
          %v506 = vpop.f32.mrb[0].mxu0
          %v507 = vadd.f32 0.0, %v506
          %v508 = vpop.f32.mrb[0].mxu0
          %v509 = vpop.f32.mrb[0].mxu0
          %v510 = vadd.f32 0.0, %v509
          %v511 = vpop.f32.mrb[0].mxu0
          %512 = vdwg.mxu0
          %v513 = vsel %vm447, %v507, -1e+30
          %v514 = vsel %vm448, %v510, -1e+30
          %v515 = vld [vmem:[#allocation2] sm:$0xff]
          %v516 = vld [vmem:[#allocation2 + $0x8] sm:$0xff]
          %vm517 = vcmask 130048
          %v518 = vsel %vm517, %v513, -inf
          %519 = vmax.xlane.f32.xlu0 %v518
          %v520 = vpop.xlane.xlu0 %519
          %v521 = vsel %vm517, %v514, -inf
          %522 = vmax.xlane.f32.xlu0 %v521
          %v523 = vpop.xlane.xlu0 %522
          %v524 = vmax.f32 %v515, %v520
          %v525 = vmax.f32 %v516, %v523
          %v526 = vsub.f32 %v515, %v524
          %v527 = vsub.f32 %v516, %v525
          %v528 = vmul.f32 %v526, 1.442695
          %v529 = vpow.pop %v528
          %v530 = vmul.f32 %v527, 1.442695
          %v531 = vpow.pop %v530
          %533 = vset.pattern.permute.xlu0 0
          %534 = vperm.xlu0 %533, %v524
          %v535 = vpop.permute.xlu0 %534
          %538 = vset.pattern.permute.xlu0 0
          %539 = vperm.xlu0 %538, %v525
          %v540 = vpop.permute.xlu0 %539
          %v542 = vsub.f32 %v513, %v535
          %v543 = vsub.f32 %v514, %v540
          %v544 = vmul.f32 %v542, 1.442695
          %v545 = vpow.pop %v544
          %v546 = vmul.f32 %v543, 1.442695
          %v547 = vpow.pop %v546
          %v548 = vld [vmem:[#allocation3] sm:$0xff]
          %v549 = vld [vmem:[#allocation3 + $0x8] sm:$0xff]
          %v550 = vmul.f32 %v529, %v548
          %v551 = vmul.f32 %v531, %v549
          %v552 = vsel %vm517, %v545, 0.0
          %553 = vadd.xlane.f32.xlu0 %v552
          %v554 = vpop.xlane.xlu0 %553
          %v555 = vsel %vm517, %v547, 0.0
          %556 = vadd.xlane.f32.xlu0 %v555
          %v557 = vpop.xlane.xlu0 %556
          %v558 = vadd.f32 %v550, %v554
          %v559 = vadd.f32 %v551, %v557
          %vm560 = vcmask 7168
          %561 = vst.msk [vmem:[#allocation3] sm:$0xff] %vm560, %v558
          %562 = vst.msk [vmem:[#allocation3 + $0x8] sm:$0xff] %vm560, %v559
          %v563 = vld [vmem:[#allocation4] sm:$0xff]
          %v564 = vld [vmem:[#allocation4 + $0x8] sm:$0xff]
          %566 = vset.pattern.permute.xlu0 0
          %567 = vperm.xlu0 %566, %v529
          %v568 = vpop.permute.xlu0 %567
          %571 = vset.pattern.permute.xlu0 0
          %572 = vperm.xlu0 %571, %v531
          %v573 = vpop.permute.xlu0 %572
          %v575 = vmul.f32 %v568, %v563
          %v576 = vmul.f32 %v573, %v564
          %v577 = vpack.c.bf16 %v547, %v545
          %v580 = vunpack.c.l.b16 %v458
          %v581 = vunpack.c.l.b16 %v459
          %v582 = vpack.c.b16 %v581, %v580
          %v585 = vsel %vm517, %v577, 0
          %587 = vmatprep.subr.bf16.mxu0 0
          %588 = vmatpush1.bf16.msra.mxu0 %v582
          %589 = vmatprep.subr.bf16.mxu0 0
          %590 = vmatpush1.bf16.msra.mxu0 0
          %591 = vmatprep.subr.bf16.mxu0 0
          %592 = vmatpush1.bf16.msra.mxu0 0
          %593 = vmatprep.subr.bf16.mxu0 0
          %594 = vmatpush1.bf16.msra.mxu0 0
          %595 = vmatprep.subr.bf16.mxu0 0
          %596 = vmatpush1.bf16.msra.mxu0 0
          %597 = vmatprep.subr.bf16.mxu0 0
          %598 = vmatpush1.bf16.msra.mxu0 0
          %599 = vmatprep.subr.bf16.mxu0 0
          %600 = vmatpush1.bf16.msra.mxu0 0
          %601 = vmatprep.subr.bf16.mxu0 0
          %602 = vmatpush1.bf16.msra.mxu0 0
          %603 = vmatprep.subr.bf16.mxu0 0
          %604 = vmatpush1.bf16.msra.mxu0 0
          %605 = vmatprep.subr.bf16.mxu0 0
          %606 = vmatpush1.bf16.msra.mxu0 0
          %607 = vmatprep.subr.bf16.mxu0 0
          %608 = vmatpush1.bf16.msra.mxu0 0
          %609 = vmatprep.subr.bf16.mxu0 0
          %610 = vmatpush1.bf16.msra.mxu0 0
          %611 = vmatprep.subr.bf16.mxu0 0
          %612 = vmatpush1.bf16.msra.mxu0 0
          %613 = vmatprep.subr.bf16.mxu0 0
          %614 = vmatpush1.bf16.msra.mxu0 0
          %615 = vmatprep.subr.bf16.mxu0 0
          %616 = vmatpush1.bf16.msra.mxu0 0
          %617 = vmatprep.subr.bf16.mxu0 0
          %618 = vmatpush1.bf16.msra.mxu0 0
          %619 = vmatprep.mubr.bf16.mxu0 0
          %620 = vmatmul.mubr.bf16.gmra.mrb[0].mxu0 %v585
          %v621 = vpop.f32.mrb[0].mxu0
          %v622 = vadd.f32 0.0, %v621
          %v623 = vpop.f32.mrb[0].mxu0
          %v624 = vpop.f32.mrb[0].mxu0
          %v625 = vadd.f32 0.0, %v624
          %v626 = vpop.f32.mrb[0].mxu0
          %627 = vdwg.mxu0
          %v628 = vadd.f32 %v575, %v622
          %v629 = vadd.f32 %v576, %v625
          %630 = vst.msk [vmem:[#allocation4] sm:$0xff] %vm465, %v628
          %631 = vst.msk [vmem:[#allocation4 + $0x8] sm:$0xff] %vm465, %v629
          %632 = vst.msk [vmem:[#allocation2] sm:$0xff] %vm560, %v524
          %633 = vst.msk [vmem:[#allocation2 + $0x8] sm:$0xff] %vm560, %v525
          %v634 = vld [vmem:[%s339] sm:$0xf]
          %v635 = vld [vmem:[%s339 + $0x4] sm:$0xf]
          %v636 = vunpack.c.l.bf16 %v634
          %v637 = vunpack.c.l.bf16 %v635
          %v638 = vmul.f32 %v636, 0.17677669
          %v639 = vmul.f32 %v637, 0.17677669
          %v640 = vpack.c.bf16 %v639, %v638
          %v641 = vld [vmem:[%s346] sm:$0xf]
          %v642 = vld [vmem:[%s346 + $0x4] sm:$0xf]
          %v643 = vld [vmem:[%s353] sm:$0xf]
          %v644 = vld [vmem:[%s353 + $0x4] sm:$0xf]
          %646 = vrot.lane.b32.xlu0 %v640, 96
          %v647 = vpop.permute.xlu0 %646
          %v650 = vunpack.c.l.b16 %v641
          %v651 = vunpack.c.l.b16 %v642
          %v652 = vpack.c.b16 %v651, %v650
          %653 = vrot.lane.b32.xlu0 %v652, 96
          %v654 = vpop.permute.xlu0 %653
          %v656 = vsel %vm465, %v647, 0
          %v659 = vsel %vm465, %v654, 0
          %661 = vmatprep.subr.bf16.mxu0 0
          %662 = vmatpush1.bf16.xpose.msra.mxu0 %v659
          %663 = vmatprep.subr.bf16.mxu0 0
          %664 = vmatpush1.bf16.xpose.msra.mxu0 0
          %665 = vmatprep.subr.bf16.mxu0 0
          %666 = vmatpush1.bf16.xpose.msra.mxu0 0
          %667 = vmatprep.subr.bf16.mxu0 0
          %668 = vmatpush1.bf16.xpose.msra.mxu0 0
          %669 = vmatprep.subr.bf16.mxu0 0
          %670 = vmatpush1.bf16.xpose.msra.mxu0 0
          %671 = vmatprep.subr.bf16.mxu0 0
          %672 = vmatpush1.bf16.xpose.msra.mxu0 0
          %673 = vmatprep.subr.bf16.mxu0 0
          %674 = vmatpush1.bf16.xpose.msra.mxu0 0
          %675 = vmatprep.subr.bf16.mxu0 0
          %676 = vmatpush1.bf16.xpose.msra.mxu0 0
          %677 = vmatprep.subr.bf16.mxu0 0
          %678 = vmatpush1.bf16.xpose.msra.mxu0 0
          %679 = vmatprep.subr.bf16.mxu0 0
          %680 = vmatpush1.bf16.xpose.msra.mxu0 0
          %681 = vmatprep.subr.bf16.mxu0 0
          %682 = vmatpush1.bf16.xpose.msra.mxu0 0
          %683 = vmatprep.subr.bf16.mxu0 0
          %684 = vmatpush1.bf16.xpose.msra.mxu0 0
          %685 = vmatprep.subr.bf16.mxu0 0
          %686 = vmatpush1.bf16.xpose.msra.mxu0 0
          %687 = vmatprep.subr.bf16.mxu0 0
          %688 = vmatpush1.bf16.xpose.msra.mxu0 0
          %689 = vmatprep.subr.bf16.mxu0 0
          %690 = vmatpush1.bf16.xpose.msra.mxu0 0
          %691 = vmatprep.subr.bf16.mxu0 0
          %692 = vmatpush1.bf16.xpose.msra.mxu0 0
          %693 = vmatprep.mubr.bf16.mxu0 0
          %694 = vmatmul.mubr.bf16.gmra.mrb[0].mxu0 %v656
          %v695 = vpop.f32.mrb[0].mxu0
          %v696 = vadd.f32 0.0, %v695
          %v697 = vpop.f32.mrb[0].mxu0
          %v698 = vpop.f32.mrb[0].mxu0
          %v699 = vadd.f32 0.0, %v698
          %v700 = vpop.f32.mrb[0].mxu0
          %701 = vdwg.mxu0
          %v702 = vsel %vm447, %v696, -1e+30
          %v703 = vsel %vm448, %v699, -1e+30
          %s704 = scalar_lea.vmem [#allocation2], 16
          %v705 = vld [vmem:[%s704] sm:$0xff]
          %v706 = vld [vmem:[%s704 + $0x8] sm:$0xff]
          %v707 = vsel %vm517, %v702, -inf
          %708 = vmax.xlane.f32.xlu0 %v707
          %v709 = vpop.xlane.xlu0 %708
          %v710 = vsel %vm517, %v703, -inf
          %711 = vmax.xlane.f32.xlu0 %v710
          %v712 = vpop.xlane.xlu0 %711
          %v713 = vmax.f32 %v705, %v709
          %v714 = vmax.f32 %v706, %v712
          %v715 = vsub.f32 %v705, %v713
          %v716 = vsub.f32 %v706, %v714
          %v717 = vmul.f32 %v715, 1.442695
          %v718 = vpow.pop %v717
          %v719 = vmul.f32 %v716, 1.442695
          %v720 = vpow.pop %v719
          %722 = vset.pattern.permute.xlu0 0
          %723 = vperm.xlu0 %722, %v713
          %v724 = vpop.permute.xlu0 %723
          %727 = vset.pattern.permute.xlu0 0
          %728 = vperm.xlu0 %727, %v714
          %v729 = vpop.permute.xlu0 %728
          %v731 = vsub.f32 %v702, %v724
          %v732 = vsub.f32 %v703, %v729
          %v733 = vmul.f32 %v731, 1.442695
          %v734 = vpow.pop %v733
          %v735 = vmul.f32 %v732, 1.442695
          %v736 = vpow.pop %v735
          %s737 = scalar_lea.vmem [#allocation3], 16
          %v738 = vld [vmem:[%s737] sm:$0xff]
          %v739 = vld [vmem:[%s737 + $0x8] sm:$0xff]
          %v740 = vmul.f32 %v718, %v738
          %v741 = vmul.f32 %v720, %v739
          %v742 = vsel %vm517, %v734, 0.0
          %743 = vadd.xlane.f32.xlu0 %v742
          %v744 = vpop.xlane.xlu0 %743
          %v745 = vsel %vm517, %v736, 0.0
          %746 = vadd.xlane.f32.xlu0 %v745
          %v747 = vpop.xlane.xlu0 %746
          %v748 = vadd.f32 %v740, %v744
          %v749 = vadd.f32 %v741, %v747
          %750 = vst.msk [vmem:[%s737] sm:$0xff] %vm560, %v748
          %751 = vst.msk [vmem:[%s737 + $0x8] sm:$0xff] %vm560, %v749
          %s752 = scalar_lea.vmem [#allocation4], 16
          %v753 = vld [vmem:[%s752] sm:$0xff]
          %v754 = vld [vmem:[%s752 + $0x8] sm:$0xff]
          %756 = vset.pattern.permute.xlu0 0
          %757 = vperm.xlu0 %756, %v718
          %v758 = vpop.permute.xlu0 %757
          %761 = vset.pattern.permute.xlu0 0
          %762 = vperm.xlu0 %761, %v720
          %v763 = vpop.permute.xlu0 %762
          %v765 = vmul.f32 %v758, %v753
          %v766 = vmul.f32 %v763, %v754
          %v767 = vpack.c.bf16 %v736, %v734
          %v770 = vunpack.c.l.b16 %v643
          %v771 = vunpack.c.l.b16 %v644
          %v772 = vpack.c.b16 %v771, %v770
          %773 = vrot.lane.b32.xlu0 %v772, 96
          %v774 = vpop.permute.xlu0 %773
          %v777 = vsel %vm517, %v767, 0
          %779 = vmatprep.subr.bf16.mxu0 0
          %780 = vmatpush1.bf16.msra.mxu0 %v774
          %781 = vmatprep.subr.bf16.mxu0 0
          %782 = vmatpush1.bf16.msra.mxu0 0
          %783 = vmatprep.subr.bf16.mxu0 0
          %784 = vmatpush1.bf16.msra.mxu0 0
          %785 = vmatprep.subr.bf16.mxu0 0
          %786 = vmatpush1.bf16.msra.mxu0 0
          %787 = vmatprep.subr.bf16.mxu0 0
          %788 = vmatpush1.bf16.msra.mxu0 0
          %789 = vmatprep.subr.bf16.mxu0 0
          %790 = vmatpush1.bf16.msra.mxu0 0
          %791 = vmatprep.subr.bf16.mxu0 0
          %792 = vmatpush1.bf16.msra.mxu0 0
          %793 = vmatprep.subr.bf16.mxu0 0
          %794 = vmatpush1.bf16.msra.mxu0 0
          %795 = vmatprep.subr.bf16.mxu0 0
          %796 = vmatpush1.bf16.msra.mxu0 0
          %797 = vmatprep.subr.bf16.mxu0 0
          %798 = vmatpush1.bf16.msra.mxu0 0
          %799 = vmatprep.subr.bf16.mxu0 0
          %800 = vmatpush1.bf16.msra.mxu0 0
          %801 = vmatprep.subr.bf16.mxu0 0
          %802 = vmatpush1.bf16.msra.mxu0 0
          %803 = vmatprep.subr.bf16.mxu0 0
          %804 = vmatpush1.bf16.msra.mxu0 0
          %805 = vmatprep.subr.bf16.mxu0 0
          %806 = vmatpush1.bf16.msra.mxu0 0
          %807 = vmatprep.subr.bf16.mxu0 0
          %808 = vmatpush1.bf16.msra.mxu0 0
          %809 = vmatprep.subr.bf16.mxu0 0
          %810 = vmatpush1.bf16.msra.mxu0 0
          %811 = vmatprep.mubr.bf16.mxu0 0
          %812 = vmatmul.mubr.bf16.gmra.mrb[0].mxu0 %v777
          %v813 = vpop.f32.mrb[0].mxu0
          %v814 = vadd.f32 0.0, %v813
          %v815 = vpop.f32.mrb[0].mxu0
          %v816 = vpop.f32.mrb[0].mxu0
          %v817 = vadd.f32 0.0, %v816
          %v818 = vpop.f32.mrb[0].mxu0
          %819 = vdwg.mxu0
          %v820 = vadd.f32 %v765, %v814
          %v821 = vadd.f32 %v766, %v817
          %822 = vst.msk [vmem:[%s752] sm:$0xff] %vm465, %v820
          %823 = vst.msk [vmem:[%s752 + $0x8] sm:$0xff] %vm465, %v821
          %824 = vst.msk [vmem:[%s704] sm:$0xff] %vm560, %v713
          %825 = vst.msk [vmem:[%s704 + $0x8] sm:$0xff] %vm560, %v714
          %v826 = vld [vmem:[%s339] sm:$0xf]
          %v827 = vld [vmem:[%s339 + $0x4] sm:$0xf]
          %v828 = vunpack.c.l.bf16 %v826
          %v829 = vunpack.c.l.bf16 %v827
          %v830 = vmul.f32 %v828, 0.17677669
          %v831 = vmul.f32 %v829, 0.17677669
          %v832 = vpack.c.bf16 %v831, %v830
          %v833 = vld [vmem:[%s346] sm:$0xf]
          %v834 = vld [vmem:[%s346 + $0x4] sm:$0xf]
          %v835 = vld [vmem:[%s353] sm:$0xf]
          %v836 = vld [vmem:[%s353 + $0x4] sm:$0xf]
          %838 = vrot.lane.b32.xlu0 %v832, 64
          %v839 = vpop.permute.xlu0 %838
          %v842 = vunpack.c.l.b16 %v833
          %v843 = vunpack.c.l.b16 %v834
          %v844 = vpack.c.b16 %v843, %v842
          %845 = vrot.lane.b32.xlu0 %v844, 64
          %v846 = vpop.permute.xlu0 %845
          %v848 = vsel %vm465, %v839, 0
          %v851 = vsel %vm465, %v846, 0
          %853 = vmatprep.subr.bf16.mxu0 0
          %854 = vmatpush1.bf16.xpose.msra.mxu0 %v851
          %855 = vmatprep.subr.bf16.mxu0 0
          %856 = vmatpush1.bf16.xpose.msra.mxu0 0
          %857 = vmatprep.subr.bf16.mxu0 0
          %858 = vmatpush1.bf16.xpose.msra.mxu0 0
          %859 = vmatprep.subr.bf16.mxu0 0
          %860 = vmatpush1.bf16.xpose.msra.mxu0 0
          %861 = vmatprep.subr.bf16.mxu0 0
          %862 = vmatpush1.bf16.xpose.msra.mxu0 0
          %863 = vmatprep.subr.bf16.mxu0 0
          %864 = vmatpush1.bf16.xpose.msra.mxu0 0
          %865 = vmatprep.subr.bf16.mxu0 0
          %866 = vmatpush1.bf16.xpose.msra.mxu0 0
          %867 = vmatprep.subr.bf16.mxu0 0
          %868 = vmatpush1.bf16.xpose.msra.mxu0 0
          %869 = vmatprep.subr.bf16.mxu0 0
          %870 = vmatpush1.bf16.xpose.msra.mxu0 0
          %871 = vmatprep.subr.bf16.mxu0 0
          %872 = vmatpush1.bf16.xpose.msra.mxu0 0
          %873 = vmatprep.subr.bf16.mxu0 0
          %874 = vmatpush1.bf16.xpose.msra.mxu0 0
          %875 = vmatprep.subr.bf16.mxu0 0
          %876 = vmatpush1.bf16.xpose.msra.mxu0 0
          %877 = vmatprep.subr.bf16.mxu0 0
          %878 = vmatpush1.bf16.xpose.msra.mxu0 0
          %879 = vmatprep.subr.bf16.mxu0 0
          %880 = vmatpush1.bf16.xpose.msra.mxu0 0
          %881 = vmatprep.subr.bf16.mxu0 0
          %882 = vmatpush1.bf16.xpose.msra.mxu0 0
          %883 = vmatprep.subr.bf16.mxu0 0
          %884 = vmatpush1.bf16.xpose.msra.mxu0 0
          %885 = vmatprep.mubr.bf16.mxu0 0
          %886 = vmatmul.mubr.bf16.gmra.mrb[0].mxu0 %v848
          %v887 = vpop.f32.mrb[0].mxu0
          %v888 = vadd.f32 0.0, %v887
          %v889 = vpop.f32.mrb[0].mxu0
          %v890 = vpop.f32.mrb[0].mxu0
          %v891 = vadd.f32 0.0, %v890
          %v892 = vpop.f32.mrb[0].mxu0
          %893 = vdwg.mxu0
          %v894 = vsel %vm447, %v888, -1e+30
          %v895 = vsel %vm448, %v891, -1e+30
          %s896 = scalar_lea.vmem [#allocation2], 32
          %v897 = vld [vmem:[%s896] sm:$0xff]
          %v898 = vld [vmem:[%s896 + $0x8] sm:$0xff]
          %v899 = vsel %vm517, %v894, -inf
          %900 = vmax.xlane.f32.xlu0 %v899
          %v901 = vpop.xlane.xlu0 %900
          %v902 = vsel %vm517, %v895, -inf
          %903 = vmax.xlane.f32.xlu0 %v902
          %v904 = vpop.xlane.xlu0 %903
          %v905 = vmax.f32 %v897, %v901
          %v906 = vmax.f32 %v898, %v904
          %v907 = vsub.f32 %v897, %v905
          %v908 = vsub.f32 %v898, %v906
          %v909 = vmul.f32 %v907, 1.442695
          %v910 = vpow.pop %v909
          %v911 = vmul.f32 %v908, 1.442695
          %v912 = vpow.pop %v911
          %914 = vset.pattern.permute.xlu0 0
          %915 = vperm.xlu0 %914, %v905
          %v916 = vpop.permute.xlu0 %915
          %919 = vset.pattern.permute.xlu0 0
          %920 = vperm.xlu0 %919, %v906
          %v921 = vpop.permute.xlu0 %920
          %v923 = vsub.f32 %v894, %v916
          %v924 = vsub.f32 %v895, %v921
          %v925 = vmul.f32 %v923, 1.442695
          %v926 = vpow.pop %v925
          %v927 = vmul.f32 %v924, 1.442695
          %v928 = vpow.pop %v927
          %s929 = scalar_lea.vmem [#allocation3], 32
          %v930 = vld [vmem:[%s929] sm:$0xff]
          %v931 = vld [vmem:[%s929 + $0x8] sm:$0xff]
          %v932 = vmul.f32 %v910, %v930
          %v933 = vmul.f32 %v912, %v931
          %v934 = vsel %vm517, %v926, 0.0
          %935 = vadd.xlane.f32.xlu0 %v934
          %v936 = vpop.xlane.xlu0 %935
          %v937 = vsel %vm517, %v928, 0.0
          %938 = vadd.xlane.f32.xlu0 %v937
          %v939 = vpop.xlane.xlu0 %938
          %v940 = vadd.f32 %v932, %v936
          %v941 = vadd.f32 %v933, %v939
          %942 = vst.msk [vmem:[%s929] sm:$0xff] %vm560, %v940
          %943 = vst.msk [vmem:[%s929 + $0x8] sm:$0xff] %vm560, %v941
          %s944 = scalar_lea.vmem [#allocation4], 32
          %v945 = vld [vmem:[%s944] sm:$0xff]
          %v946 = vld [vmem:[%s944 + $0x8] sm:$0xff]
          %948 = vset.pattern.permute.xlu0 0
          %949 = vperm.xlu0 %948, %v910
          %v950 = vpop.permute.xlu0 %949
          %953 = vset.pattern.permute.xlu0 0
          %954 = vperm.xlu0 %953, %v912
          %v955 = vpop.permute.xlu0 %954
          %v957 = vmul.f32 %v950, %v945
          %v958 = vmul.f32 %v955, %v946
          %v959 = vpack.c.bf16 %v928, %v926
          %v962 = vunpack.c.l.b16 %v835
          %v963 = vunpack.c.l.b16 %v836
          %v964 = vpack.c.b16 %v963, %v962
          %965 = vrot.lane.b32.xlu0 %v964, 64
          %v966 = vpop.permute.xlu0 %965
          %v969 = vsel %vm517, %v959, 0
          %971 = vmatprep.subr.bf16.mxu0 0
          %972 = vmatpush1.bf16.msra.mxu0 %v966
          %973 = vmatprep.subr.bf16.mxu0 0
          %974 = vmatpush1.bf16.msra.mxu0 0
          %975 = vmatprep.subr.bf16.mxu0 0
          %976 = vmatpush1.bf16.msra.mxu0 0
          %977 = vmatprep.subr.bf16.mxu0 0
          %978 = vmatpush1.bf16.msra.mxu0 0
          %979 = vmatprep.subr.bf16.mxu0 0
          %980 = vmatpush1.bf16.msra.mxu0 0
          %981 = vmatprep.subr.bf16.mxu0 0
          %982 = vmatpush1.bf16.msra.mxu0 0
          %983 = vmatprep.subr.bf16.mxu0 0
          %984 = vmatpush1.bf16.msra.mxu0 0
          %985 = vmatprep.subr.bf16.mxu0 0
          %986 = vmatpush1.bf16.msra.mxu0 0
          %987 = vmatprep.subr.bf16.mxu0 0
          %988 = vmatpush1.bf16.msra.mxu0 0
          %989 = vmatprep.subr.bf16.mxu0 0
          %990 = vmatpush1.bf16.msra.mxu0 0
          %991 = vmatprep.subr.bf16.mxu0 0
          %992 = vmatpush1.bf16.msra.mxu0 0
          %993 = vmatprep.subr.bf16.mxu0 0
          %994 = vmatpush1.bf16.msra.mxu0 0
          %995 = vmatprep.subr.bf16.mxu0 0
          %996 = vmatpush1.bf16.msra.mxu0 0
          %997 = vmatprep.subr.bf16.mxu0 0
          %998 = vmatpush1.bf16.msra.mxu0 0
          %999 = vmatprep.subr.bf16.mxu0 0
          %1000 = vmatpush1.bf16.msra.mxu0 0
          %1001 = vmatprep.subr.bf16.mxu0 0
          %1002 = vmatpush1.bf16.msra.mxu0 0
          %1003 = vmatprep.mubr.bf16.mxu0 0
          %1004 = vmatmul.mubr.bf16.gmra.mrb[0].mxu0 %v969
          %v1005 = vpop.f32.mrb[0].mxu0
          %v1006 = vadd.f32 0.0, %v1005
          %v1007 = vpop.f32.mrb[0].mxu0
          %v1008 = vpop.f32.mrb[0].mxu0
          %v1009 = vadd.f32 0.0, %v1008
          %v1010 = vpop.f32.mrb[0].mxu0
          %1011 = vdwg.mxu0
          %v1012 = vadd.f32 %v957, %v1006
          %v1013 = vadd.f32 %v958, %v1009
          %1014 = vst.msk [vmem:[%s944] sm:$0xff] %vm465, %v1012
          %1015 = vst.msk [vmem:[%s944 + $0x8] sm:$0xff] %vm465, %v1013
          %1016 = vst.msk [vmem:[%s896] sm:$0xff] %vm560, %v905
          %1017 = vst.msk [vmem:[%s896 + $0x8] sm:$0xff] %vm560, %v906
          %v1018 = vld [vmem:[%s339] sm:$0xf]
          %v1019 = vld [vmem:[%s339 + $0x4] sm:$0xf]
          %v1020 = vunpack.c.l.bf16 %v1018
          %v1021 = vunpack.c.l.bf16 %v1019
          %v1022 = vmul.f32 %v1020, 0.17677669
          %v1023 = vmul.f32 %v1021, 0.17677669
          %v1024 = vpack.c.bf16 %v1023, %v1022
          %v1025 = vld [vmem:[%s346] sm:$0xf]
          %v1026 = vld [vmem:[%s346 + $0x4] sm:$0xf]
          %v1027 = vld [vmem:[%s353] sm:$0xf]
          %v1028 = vld [vmem:[%s353 + $0x4] sm:$0xf]
          %1030 = vrot.lane.b32.xlu0 %v1024, 32
          %v1031 = vpop.permute.xlu0 %1030
          %v1034 = vunpack.c.l.b16 %v1025
          %v1035 = vunpack.c.l.b16 %v1026
          %v1036 = vpack.c.b16 %v1035, %v1034
          %1037 = vrot.lane.b32.xlu0 %v1036, 32
          %v1038 = vpop.permute.xlu0 %1037
          %v1040 = vsel %vm465, %v1031, 0
          %v1043 = vsel %vm465, %v1038, 0
          %1045 = vmatprep.subr.bf16.mxu0 0
          %1046 = vmatpush1.bf16.xpose.msra.mxu0 %v1043
          %1047 = vmatprep.subr.bf16.mxu0 0
          %1048 = vmatpush1.bf16.xpose.msra.mxu0 0
          %1049 = vmatprep.subr.bf16.mxu0 0
          %1050 = vmatpush1.bf16.xpose.msra.mxu0 0
          %1051 = vmatprep.subr.bf16.mxu0 0
          %1052 = vmatpush1.bf16.xpose.msra.mxu0 0
          %1053 = vmatprep.subr.bf16.mxu0 0
          %1054 = vmatpush1.bf16.xpose.msra.mxu0 0
          %1055 = vmatprep.subr.bf16.mxu0 0
          %1056 = vmatpush1.bf16.xpose.msra.mxu0 0
          %1057 = vmatprep.subr.bf16.mxu0 0
          %1058 = vmatpush1.bf16.xpose.msra.mxu0 0
          %1059 = vmatprep.subr.bf16.mxu0 0
          %1060 = vmatpush1.bf16.xpose.msra.mxu0 0
          %1061 = vmatprep.subr.bf16.mxu0 0
          %1062 = vmatpush1.bf16.xpose.msra.mxu0 0
          %1063 = vmatprep.subr.bf16.mxu0 0
          %1064 = vmatpush1.bf16.xpose.msra.mxu0 0
          %1065 = vmatprep.subr.bf16.mxu0 0
          %1066 = vmatpush1.bf16.xpose.msra.mxu0 0
          %1067 = vmatprep.subr.bf16.mxu0 0
          %1068 = vmatpush1.bf16.xpose.msra.mxu0 0
          %1069 = vmatprep.subr.bf16.mxu0 0
          %1070 = vmatpush1.bf16.xpose.msra.mxu0 0
          %1071 = vmatprep.subr.bf16.mxu0 0
          %1072 = vmatpush1.bf16.xpose.msra.mxu0 0
          %1073 = vmatprep.subr.bf16.mxu0 0
          %1074 = vmatpush1.bf16.xpose.msra.mxu0 0
          %1075 = vmatprep.subr.bf16.mxu0 0
          %1076 = vmatpush1.bf16.xpose.msra.mxu0 0
          %1077 = vmatprep.mubr.bf16.mxu0 0
          %1078 = vmatmul.mubr.bf16.gmra.mrb[0].mxu0 %v1040
          %v1079 = vpop.f32.mrb[0].mxu0
          %v1080 = vadd.f32 0.0, %v1079
          %v1081 = vpop.f32.mrb[0].mxu0
          %v1082 = vpop.f32.mrb[0].mxu0
          %v1083 = vadd.f32 0.0, %v1082
          %v1084 = vpop.f32.mrb[0].mxu0
          %1085 = vdwg.mxu0
          %v1086 = vsel %vm447, %v1080, -1e+30
          %v1087 = vsel %vm448, %v1083, -1e+30
          %s1088 = scalar_lea.vmem [#allocation2], 48
          %v1089 = vld [vmem:[%s1088] sm:$0xff]
          %v1090 = vld [vmem:[%s1088 + $0x8] sm:$0xff]
          %v1091 = vsel %vm517, %v1086, -inf
          %1092 = vmax.xlane.f32.xlu0 %v1091
          %v1093 = vpop.xlane.xlu0 %1092
          %v1094 = vsel %vm517, %v1087, -inf
          %1095 = vmax.xlane.f32.xlu0 %v1094
          %v1096 = vpop.xlane.xlu0 %1095
          %v1097 = vmax.f32 %v1089, %v1093
          %v1098 = vmax.f32 %v1090, %v1096
          %v1099 = vsub.f32 %v1089, %v1097
          %v1100 = vsub.f32 %v1090, %v1098
          %v1101 = vmul.f32 %v1099, 1.442695
          %v1102 = vpow.pop %v1101
          %v1103 = vmul.f32 %v1100, 1.442695
          %v1104 = vpow.pop %v1103
          %1106 = vset.pattern.permute.xlu0 0
          %1107 = vperm.xlu0 %1106, %v1097
          %v1108 = vpop.permute.xlu0 %1107
          %1111 = vset.pattern.permute.xlu0 0
          %1112 = vperm.xlu0 %1111, %v1098
          %v1113 = vpop.permute.xlu0 %1112
          %v1115 = vsub.f32 %v1086, %v1108
          %v1116 = vsub.f32 %v1087, %v1113
          %v1117 = vmul.f32 %v1115, 1.442695
          %v1118 = vpow.pop %v1117
          %v1119 = vmul.f32 %v1116, 1.442695
          %v1120 = vpow.pop %v1119
          %s1121 = scalar_lea.vmem [#allocation3], 48
          %v1122 = vld [vmem:[%s1121] sm:$0xff]
          %v1123 = vld [vmem:[%s1121 + $0x8] sm:$0xff]
          %v1124 = vmul.f32 %v1102, %v1122
          %v1125 = vmul.f32 %v1104, %v1123
          %v1126 = vsel %vm517, %v1118, 0.0
          %1127 = vadd.xlane.f32.xlu0 %v1126
          %v1128 = vpop.xlane.xlu0 %1127
          %v1129 = vsel %vm517, %v1120, 0.0
          %1130 = vadd.xlane.f32.xlu0 %v1129
          %v1131 = vpop.xlane.xlu0 %1130
          %v1132 = vadd.f32 %v1124, %v1128
          %v1133 = vadd.f32 %v1125, %v1131
          %1134 = vst.msk [vmem:[%s1121] sm:$0xff] %vm560, %v1132
          %1135 = vst.msk [vmem:[%s1121 + $0x8] sm:$0xff] %vm560, %v1133
          %s1136 = scalar_lea.vmem [#allocation4], 48
          %v1137 = vld [vmem:[%s1136] sm:$0xff]
          %v1138 = vld [vmem:[%s1136 + $0x8] sm:$0xff]
          %1140 = vset.pattern.permute.xlu0 0
          %1141 = vperm.xlu0 %1140, %v1102
          %v1142 = vpop.permute.xlu0 %1141
          %1145 = vset.pattern.permute.xlu0 0
          %1146 = vperm.xlu0 %1145, %v1104
          %v1147 = vpop.permute.xlu0 %1146
          %v1149 = vmul.f32 %v1142, %v1137
          %v1150 = vmul.f32 %v1147, %v1138
          %v1151 = vpack.c.bf16 %v1120, %v1118
          %v1154 = vunpack.c.l.b16 %v1027
          %v1155 = vunpack.c.l.b16 %v1028
          %v1156 = vpack.c.b16 %v1155, %v1154
          %1157 = vrot.lane.b32.xlu0 %v1156, 32
          %v1158 = vpop.permute.xlu0 %1157
          %v1161 = vsel %vm517, %v1151, 0
          %1163 = vmatprep.subr.bf16.mxu0 0
          %1164 = vmatpush1.bf16.msra.mxu0 %v1158
          %1165 = vmatprep.subr.bf16.mxu0 0
          %1166 = vmatpush1.bf16.msra.mxu0 0
          %1167 = vmatprep.subr.bf16.mxu0 0
          %1168 = vmatpush1.bf16.msra.mxu0 0
          %1169 = vmatprep.subr.bf16.mxu0 0
          %1170 = vmatpush1.bf16.msra.mxu0 0
          %1171 = vmatprep.subr.bf16.mxu0 0
          %1172 = vmatpush1.bf16.msra.mxu0 0
          %1173 = vmatprep.subr.bf16.mxu0 0
          %1174 = vmatpush1.bf16.msra.mxu0 0
          %1175 = vmatprep.subr.bf16.mxu0 0
          %1176 = vmatpush1.bf16.msra.mxu0 0
          %1177 = vmatprep.subr.bf16.mxu0 0
          %1178 = vmatpush1.bf16.msra.mxu0 0
          %1179 = vmatprep.subr.bf16.mxu0 0
          %1180 = vmatpush1.bf16.msra.mxu0 0
          %1181 = vmatprep.subr.bf16.mxu0 0
          %1182 = vmatpush1.bf16.msra.mxu0 0
          %1183 = vmatprep.subr.bf16.mxu0 0
          %1184 = vmatpush1.bf16.msra.mxu0 0
          %1185 = vmatprep.subr.bf16.mxu0 0
          %1186 = vmatpush1.bf16.msra.mxu0 0
          %1187 = vmatprep.subr.bf16.mxu0 0
          %1188 = vmatpush1.bf16.msra.mxu0 0
          %1189 = vmatprep.subr.bf16.mxu0 0
          %1190 = vmatpush1.bf16.msra.mxu0 0
          %1191 = vmatprep.subr.bf16.mxu0 0
          %1192 = vmatpush1.bf16.msra.mxu0 0
          %1193 = vmatprep.subr.bf16.mxu0 0
          %1194 = vmatpush1.bf16.msra.mxu0 0
          %1195 = vmatprep.mubr.bf16.mxu0 0
          %1196 = vmatmul.mubr.bf16.gmra.mrb[0].mxu0 %v1161
          %v1197 = vpop.f32.mrb[0].mxu0
          %v1198 = vadd.f32 0.0, %v1197
          %v1199 = vpop.f32.mrb[0].mxu0
          %v1200 = vpop.f32.mrb[0].mxu0
          %v1201 = vadd.f32 0.0, %v1200
          %v1202 = vpop.f32.mrb[0].mxu0
          %1203 = vdwg.mxu0
          %v1204 = vadd.f32 %v1149, %v1198
          %v1205 = vadd.f32 %v1150, %v1201
          %1206 = vst.msk [vmem:[%s1136] sm:$0xff] %vm465, %v1204
          %1207 = vst.msk [vmem:[%s1136 + $0x8] sm:$0xff] %vm465, %v1205
          %1208 = vst.msk [vmem:[%s1088] sm:$0xff] %vm560, %v1097
          %1209 = vst.msk [vmem:[%s1088 + $0x8] sm:$0xff] %vm560, %v1098
        $region163: #{clip_caption_forward.16} parent=142 // pred_fallthru
          _
        // Predicated region
        $region164: #{clip_caption_forward.16} parent=142 // pred_check
          %p1210 = pneg %p400
        $region165: #{clip_caption_forward.16} parent=142 // pred_check_branch
          %1212 = sbr.rel (%p1210) target = $region167
        $region166: #{clip_caption_forward.16} parent=142 // pred_region
          %v1213 = vld [vmem:[#allocation3] sm:$0xff]
          %v1214 = vld [vmem:[#allocation3 + $0x8] sm:$0xff]
          %v1215 = vrcp.pop %v1213
          %v1216 = vrcp.pop %v1214
          %v1217 = vld [vmem:[#allocation4] sm:$0xff]
          %v1218 = vld [vmem:[#allocation4 + $0x8] sm:$0xff]
          %1220 = vset.pattern.permute.xlu0 0
          %1221 = vperm.xlu0 %1220, %v1215
          %v1222 = vpop.permute.xlu0 %1221
          %1225 = vset.pattern.permute.xlu0 0
          %1226 = vperm.xlu0 %1225, %v1216
          %v1227 = vpop.permute.xlu0 %1226
          %v1229 = vmul.f32 %v1217, %v1222
          %v1230 = vmul.f32 %v1218, %v1227
          %s1231 = scalar_lea.vmem [#allocation3], 16
          %v1232 = vld [vmem:[%s1231] sm:$0xff]
          %v1233 = vld [vmem:[%s1231 + $0x8] sm:$0xff]
          %v1234 = vrcp.pop %v1232
          %v1235 = vrcp.pop %v1233
          %s1236 = scalar_lea.vmem [#allocation4], 16
          %v1237 = vld [vmem:[%s1236] sm:$0xff]
          %v1238 = vld [vmem:[%s1236 + $0x8] sm:$0xff]
          %1240 = vset.pattern.permute.xlu0 0
          %1241 = vperm.xlu0 %1240, %v1234
          %v1242 = vpop.permute.xlu0 %1241
          %1245 = vset.pattern.permute.xlu0 0
          %1246 = vperm.xlu0 %1245, %v1235
          %v1247 = vpop.permute.xlu0 %1246
          %v1249 = vmul.f32 %v1237, %v1242
          %v1250 = vmul.f32 %v1238, %v1247
          %s1251 = scalar_lea.vmem [#allocation3], 32
          %v1252 = vld [vmem:[%s1251] sm:$0xff]
          %v1253 = vld [vmem:[%s1251 + $0x8] sm:$0xff]
          %v1254 = vrcp.pop %v1252
          %v1255 = vrcp.pop %v1253
          %s1256 = scalar_lea.vmem [#allocation4], 32
          %v1257 = vld [vmem:[%s1256] sm:$0xff]
          %v1258 = vld [vmem:[%s1256 + $0x8] sm:$0xff]
          %1260 = vset.pattern.permute.xlu0 0
          %1261 = vperm.xlu0 %1260, %v1254
          %v1262 = vpop.permute.xlu0 %1261
          %1265 = vset.pattern.permute.xlu0 0
          %1266 = vperm.xlu0 %1265, %v1255
          %v1267 = vpop.permute.xlu0 %1266
          %v1269 = vmul.f32 %v1257, %v1262
          %v1270 = vmul.f32 %v1258, %v1267
          %s1271 = scalar_lea.vmem [#allocation3], 48
          %v1272 = vld [vmem:[%s1271] sm:$0xff]
          %v1273 = vld [vmem:[%s1271 + $0x8] sm:$0xff]
          %v1274 = vrcp.pop %v1272
          %v1275 = vrcp.pop %v1273
          %s1276 = scalar_lea.vmem [#allocation4], 48
          %v1277 = vld [vmem:[%s1276] sm:$0xff]
          %v1278 = vld [vmem:[%s1276 + $0x8] sm:$0xff]
          %1280 = vset.pattern.permute.xlu0 0
          %1281 = vperm.xlu0 %1280, %v1274
          %v1282 = vpop.permute.xlu0 %1281
          %1285 = vset.pattern.permute.xlu0 0
          %1286 = vperm.xlu0 %1285, %v1275
          %v1287 = vpop.permute.xlu0 %1286
          %v1289 = vmul.f32 %v1277, %v1282
          %v1290 = vmul.f32 %v1278, %v1287
          %1293 = vrot.lane.b32.xlu0 %v1249, 32
          %v1294 = vpop.permute.xlu0 %1293
          %1295 = vrot.lane.b32.xlu0 %v1250, 32
          %v1296 = vpop.permute.xlu0 %1295
          %1301 = vrot.lane.b32.xlu0 %v1269, 64
          %v1302 = vpop.permute.xlu0 %1301
          %1303 = vrot.lane.b32.xlu0 %v1270, 64
          %v1304 = vpop.permute.xlu0 %1303
          %1309 = vrot.lane.b32.xlu0 %v1289, 96
          %v1310 = vpop.permute.xlu0 %1309
          %1311 = vrot.lane.b32.xlu0 %v1290, 96
          %v1312 = vpop.permute.xlu0 %1311
          %vm1315 = vcmask 261120
          %v1316 = vsel %vm1315, %v1229, %v1294
          %v1317 = vsel %vm1315, %v1230, %v1296
          %vm1318 = vcmask 523264
          %v1319 = vsel %vm1318, %v1316, %v1302
          %v1320 = vsel %vm1318, %v1317, %v1304
          %vm1321 = vcmask 785408
          %v1322 = vsel %vm1321, %v1319, %v1310
          %v1323 = vsel %vm1321, %v1320, %v1312
          %v1324 = vpack.c.bf16 %v1323, %v1322
          %v1326 = vunpack.c.l.b16 %v1324
          %v1327 = vunpack.c.h.b16 %v1324
          %v1328 = vpack.c.b16 %v1326, %v1326
          %v1329 = vpack.c.b16 %v1327, %v1327
          %1332 = vst [vmem:[%s397] sm:$0xf] %v1328
          %1333 = vst [vmem:[%s397 + $0x4] sm:$0xf] %v1329
        $region167: #{clip_caption_forward.16} parent=142 // pred_fallthru
          _
        %s1334 = smul.u32 2, %s20
        %p1335 = scmp.lt.s32.totalorder %s19, 1
        %s1336 = scalar_select %p1335, %s19, 1
        %p1337 = scmp.lt.s32.totalorder %s1334, 1
        %s1338 = scalar_select %p1337, %s1334, 1
        %s1339 = smul.addr %s1336, 2
        %s1340 = sadd.s32 %s1338, %s1339
        %s1341 = smul.addr %s1340, 4
        %s1342 = scalar_lea.vmem %s3, %s1341
        // Predicated region
        $region168: #{clip_caption_forward.16} parent=142 // pred_check
          %p1343 = pneg %p137
        $region169: #{clip_caption_forward.16} parent=142 // pred_check_branch
          %1345 = sbr.rel (%p1343) target = $region171
        $region170: #{clip_caption_forward.16} parent=142 // pred_region
          %s1346 = smul.u32 2, %s20
        $region171: #{clip_caption_forward.16} parent=142 // pred_fallthru
          _
      $region143: #{clip_caption_forward.16} parent=5 // pred_fallthru
        _
      %p1347 = scmp.le.s32.totalorder 2, %s9
      // Predicated region
      $region172: #{clip_caption_forward.16} parent=5 // pred_check
        %p1348 = pneg %p1347
      $region173: #{clip_caption_forward.16} parent=5 // pred_check_branch
        %1350 = sbr.rel (%p1348) target = $region175
      $region174: #{clip_caption_forward.16} parent=5 // pred_region
        %s1351 = ssub.s32 %s9, 2
        // Predicated region
        $region176: #{clip_caption_forward.16} parent=174 // pred_check
          %p1352 = pneg %p143
        $region177: #{clip_caption_forward.16} parent=174 // pred_check_branch
          %1354 = sbr.rel (%p1352) target = $region179
        $region178: #{clip_caption_forward.16} parent=174 // pred_region
          %s1355 = smul.u32 2, %s23
          %p1356 = scmp.lt.s32.totalorder %s22, 1
          %s1357 = scalar_select %p1356, %s22, 1
          %p1358 = scmp.lt.s32.totalorder %s1355, 1
          %s1359 = scalar_select %p1358, %s1355, 1
          %s1360 = smul.addr %s1357, 2
          %s1361 = sadd.s32 %s1359, %s1360
          %s1362 = smul.addr %s1361, 4
          %s1363 = scalar_lea.vmem %s3, %s1362
        $region179: #{clip_caption_forward.16} parent=174 // pred_fallthru
          _
      $region175: #{clip_caption_forward.16} parent=5 // pred_fallthru
        _
    $region6: #{clip_caption_forward.16} parent=1 // loop_footer
      %s13 = sadd.s32 1, %s9
    $region7: #{clip_caption_forward.16} parent=1 // loop_footer_branch
      %8 = sbr.rel target = $region3
    $region8: #{clip_caption_forward.16} parent=1 // loop_exit
      _

// kernel: clip_caption_forward.18
$region0: #{clip_caption_forward.18}
  #allocation0 [shape = 'u32[]', space=smem, size = 0x4, offset = 0x4, fixed_abs, tag = 'smem constant byte address 0x4 - core index']
  #allocation1 [shape = 'u32[144,128]{1,0:T(1,128)}', space=vmem, size = 0x12000, scoped, tag = 'internal scratch']
  %s0 = inlined_call_operand.vmem [shape: f32[32,128], index: 0, kind: input, shape index: {}]
  %s1 = inlined_call_operand.vmem [shape: f32[1,128], index: 1, kind: input, shape index: {}]
  %s2 = inlined_call_operand.vmem [shape: f32[1,128], index: 2, kind: input, shape index: {}]
  %s3 = inlined_call_operand.vmem [shape: bf16[128,512], index: 3, kind: input, shape index: {}]
  %s4 = inlined_call_operand.vmem [shape: f32[1,512], index: 4, kind: input, shape index: {}]
  %s5 = inlined_call_operand.vmem [shape: bf16[32,512], index: 5, kind: output, shape index: {}]
  %s6 = sld [smem:[#allocation0]]
  $region30: #{clip_caption_forward.18} parent=0
    _
  %s8 = ssub.s32 1, %s6
  %s9 = scalar_select 0, %s8, %s6
  // Predicated region
  $region2: #{clip_caption_forward.18} parent=0 // pred_check
    _
  $region3: #{clip_caption_forward.18} parent=0 // pred_check_branch
    %11 = sbr.rel (0) target = $region5
  $region4: #{clip_caption_forward.18} parent=0 // pred_region
    _
  $region5: #{clip_caption_forward.18} parent=0 // pred_fallthru
    _
  // Predicated region
  $region6: #{clip_caption_forward.18} parent=0 // pred_check
    _
  $region7: #{clip_caption_forward.18} parent=0 // pred_check_branch
    %13 = sbr.rel (0) target = $region9
  $region8: #{clip_caption_forward.18} parent=0 // pred_region
    _
  $region9: #{clip_caption_forward.18} parent=0 // pred_fallthru
    _
  // Predicated region
  $region10: #{clip_caption_forward.18} parent=0 // pred_check
    _
  $region11: #{clip_caption_forward.18} parent=0 // pred_check_branch
    %15 = sbr.rel (0) target = $region13
  $region12: #{clip_caption_forward.18} parent=0 // pred_region
    _
  $region13: #{clip_caption_forward.18} parent=0 // pred_fallthru
    _
  // Predicated region
  $region14: #{clip_caption_forward.18} parent=0 // pred_check
    _
  $region15: #{clip_caption_forward.18} parent=0 // pred_check_branch
    %17 = sbr.rel (0) target = $region17
  $region16: #{clip_caption_forward.18} parent=0 // pred_region
    _
  $region17: #{clip_caption_forward.18} parent=0 // pred_fallthru
    _
  // Predicated region
  $region18: #{clip_caption_forward.18} parent=0 // pred_check
    _
  $region19: #{clip_caption_forward.18} parent=0 // pred_check_branch
    %19 = sbr.rel (0) target = $region21
  $region20: #{clip_caption_forward.18} parent=0 // pred_region
    _
  $region21: #{clip_caption_forward.18} parent=0 // pred_fallthru
    _
  %v21 = vld [vmem:[%s0] sm:$0xff]
  %v22 = vld [vmem:[%s0 + $0x8] sm:$0xff]
  %v23 = vld [vmem:[%s0 + $0x10] sm:$0xff]
  %v24 = vld [vmem:[%s0 + $0x18] sm:$0xff]
  %25 = vadd.xlane.f32.xlu0 %v21
  %v26 = vpop.xlane.xlu0 %25
  %27 = vadd.xlane.f32.xlu0 %v22
  %v28 = vpop.xlane.xlu0 %27
  %29 = vadd.xlane.f32.xlu0 %v23
  %v30 = vpop.xlane.xlu0 %29
  %31 = vadd.xlane.f32.xlu0 %v24
  %v32 = vpop.xlane.xlu0 %31
  %v33 = vrcp.pop 128.0
  %v34 = vmul.f32 %v26, %v33
  %v35 = vmul.f32 %v28, %v33
  %v36 = vmul.f32 %v30, %v33
  %v37 = vmul.f32 %v32, %v33
  %v38 = vsub.f32 %v21, %v34
  %v39 = vsub.f32 %v22, %v35
  %v40 = vsub.f32 %v23, %v36
  %v41 = vsub.f32 %v24, %v37
  %v42 = vmul.f32 %v38, %v38
  %v43 = vmul.f32 %v39, %v39
  %v44 = vmul.f32 %v40, %v40
  %v45 = vmul.f32 %v41, %v41
  %46 = vadd.xlane.f32.xlu0 %v42
  %v47 = vpop.xlane.xlu0 %46
  %48 = vadd.xlane.f32.xlu0 %v43
  %v49 = vpop.xlane.xlu0 %48
  %50 = vadd.xlane.f32.xlu0 %v44
  %v51 = vpop.xlane.xlu0 %50
  %52 = vadd.xlane.f32.xlu0 %v45
  %v53 = vpop.xlane.xlu0 %52
  %v54 = vmul.f32 %v47, %v33
  %v55 = vmul.f32 %v49, %v33
  %v56 = vmul.f32 %v51, %v33
  %v57 = vmul.f32 %v53, %v33
  %v58 = vadd.f32 %v54, 1e-05
  %v59 = vadd.f32 %v55, 1e-05
  %v60 = vadd.f32 %v56, 1e-05
  %v61 = vadd.f32 %v57, 1e-05
  %v62 = vrsqrt.pop %v58
  %v63 = vrsqrt.pop %v59
  %v64 = vrsqrt.pop %v60
  %v65 = vrsqrt.pop %v61
  %v66 = vmul.f32 %v38, %v62
  %v67 = vmul.f32 %v39, %v63
  %v68 = vmul.f32 %v40, %v64
  %v69 = vmul.f32 %v41, %v65
  %v70 = vld [vmem:[%s1] sm:$0x1]
  %v72 = vlaneseq
  %v73 = vshrl.u32 %v72, 7
  %v74 = vsub.s32 0, %v73
  %v75 = vrot.slane %v70, %v74
  %v77 = vmul.f32 %v66, %v75
  %v78 = vmul.f32 %v67, %v75
  %v79 = vmul.f32 %v68, %v75
  %v80 = vmul.f32 %v69, %v75
  %v81 = vld [vmem:[%s2] sm:$0x1]
  %v83 = vlaneseq
  %v84 = vshrl.u32 %v83, 7
  %v85 = vsub.s32 0, %v84
  %v86 = vrot.slane %v81, %v85
  %v88 = vadd.f32 %v77, %v86
  %v89 = vadd.f32 %v78, %v86
  %v90 = vadd.f32 %v79, %v86
  %v91 = vadd.f32 %v80, %v86
  %v92 = vpack.c.bf16 %v89, %v88
  %v93 = vpack.c.bf16 %v91, %v90
  %v94 = vld [vmem:[%s3] sm:$0xff]
  %v95 = vld [vmem:[%s3 + $0x8] sm:$0xff]
  %v96 = vld [vmem:[%s3 + $0x10] sm:$0xff]
  %v97 = vld [vmem:[%s3 + $0x18] sm:$0xff]
  %v98 = vld [vmem:[%s3 + $0x20] sm:$0xff]
  %v99 = vld [vmem:[%s3 + $0x28] sm:$0xff]
  %v100 = vld [vmem:[%s3 + $0x30] sm:$0xff]
  %v101 = vld [vmem:[%s3 + $0x38] sm:$0xff]
  %v102 = vld [vmem:[%s3 + $0x40] sm:$0xff]
  %v103 = vld [vmem:[%s3 + $0x48] sm:$0xff]
  %v104 = vld [vmem:[%s3 + $0x50] sm:$0xff]
  %v105 = vld [vmem:[%s3 + $0x58] sm:$0xff]
  %v106 = vld [vmem:[%s3 + $0x60] sm:$0xff]
  %v107 = vld [vmem:[%s3 + $0x68] sm:$0xff]
  %v108 = vld [vmem:[%s3 + $0x70] sm:$0xff]
  %v109 = vld [vmem:[%s3 + $0x78] sm:$0xff]
  %v110 = vld [vmem:[%s3 + $0x80] sm:$0xff]
  %v111 = vld [vmem:[%s3 + $0x88] sm:$0xff]
  %v112 = vld [vmem:[%s3 + $0x90] sm:$0xff]
  %v113 = vld [vmem:[%s3 + $0x98] sm:$0xff]
  %v114 = vld [vmem:[%s3 + $0xa0] sm:$0xff]
  %v115 = vld [vmem:[%s3 + $0xa8] sm:$0xff]
  %v116 = vld [vmem:[%s3 + $0xb0] sm:$0xff]
  %v117 = vld [vmem:[%s3 + $0xb8] sm:$0xff]
  %v118 = vld [vmem:[%s3 + $0xc0] sm:$0xff]
  %v119 = vld [vmem:[%s3 + $0xc8] sm:$0xff]
  %v120 = vld [vmem:[%s3 + $0xd0] sm:$0xff]
  %v121 = vld [vmem:[%s3 + $0xd8] sm:$0xff]
  %v122 = vld [vmem:[%s3 + $0xe0] sm:$0xff]
  %v123 = vld [vmem:[%s3 + $0xe8] sm:$0xff]
  %v124 = vld [vmem:[%s3 + $0xf0] sm:$0xff]
  %v125 = vld [vmem:[%s3 + $0xf8] sm:$0xff]
  %v126 = vld [vmem:[%s4] sm:$0xf]
  %v128 = vlaneseq
  %v129 = vshrl.u32 %v128, 7
  %v130 = vsub.s32 0, %v129
  %v131 = vrot.slane %v126, %v130
  %v132 = vlaneseq
  %v133 = vshrl.u32 %v132, 7
  %v134 = vsub.s32 1, %v133
  %v135 = vrot.slane %v126, %v134
  %v136 = vlaneseq
  %v137 = vshrl.u32 %v136, 7
  %v138 = vsub.s32 2, %v137
  %v139 = vrot.slane %v126, %v138
  %v140 = vlaneseq
  %v141 = vshrl.u32 %v140, 7
  %v142 = vsub.s32 3, %v141
  %v143 = vrot.slane %v126, %v142
  %v180 = vunpack.c.l.b16 %v94
  %v181 = vunpack.c.h.b16 %v94
  %v182 = vunpack.c.l.b16 %v95
  %v183 = vunpack.c.h.b16 %v95
  %v184 = vunpack.c.l.b16 %v96
  %v185 = vunpack.c.h.b16 %v96
  %v186 = vunpack.c.l.b16 %v97
  %v187 = vunpack.c.h.b16 %v97
  %v188 = vunpack.c.l.b16 %v98
  %v189 = vunpack.c.h.b16 %v98
  %v190 = vunpack.c.l.b16 %v99
  %v191 = vunpack.c.h.b16 %v99
  %v192 = vunpack.c.l.b16 %v100
  %v193 = vunpack.c.h.b16 %v100
  %v194 = vunpack.c.l.b16 %v101
  %v195 = vunpack.c.h.b16 %v101
  %v196 = vunpack.c.l.b16 %v102
  %v197 = vunpack.c.h.b16 %v102
  %v198 = vunpack.c.l.b16 %v103
  %v199 = vunpack.c.h.b16 %v103
  %v200 = vunpack.c.l.b16 %v104
  %v201 = vunpack.c.h.b16 %v104
  %v202 = vunpack.c.l.b16 %v105
  %v203 = vunpack.c.h.b16 %v105
  %v204 = vunpack.c.l.b16 %v106
  %v205 = vunpack.c.h.b16 %v106
  %v206 = vunpack.c.l.b16 %v107
  %v207 = vunpack.c.h.b16 %v107
  %v208 = vunpack.c.l.b16 %v108
  %v209 = vunpack.c.h.b16 %v108
  %v210 = vunpack.c.l.b16 %v109
  %v211 = vunpack.c.h.b16 %v109
  %v212 = vunpack.c.l.b16 %v110
  %v213 = vunpack.c.h.b16 %v110
  %v214 = vunpack.c.l.b16 %v111
  %v215 = vunpack.c.h.b16 %v111
  %v216 = vunpack.c.l.b16 %v112
  %v217 = vunpack.c.h.b16 %v112
  %v218 = vunpack.c.l.b16 %v113
  %v219 = vunpack.c.h.b16 %v113
  %v220 = vunpack.c.l.b16 %v114
  %v221 = vunpack.c.h.b16 %v114
  %v222 = vunpack.c.l.b16 %v115
  %v223 = vunpack.c.h.b16 %v115
  %v224 = vunpack.c.l.b16 %v116
  %v225 = vunpack.c.h.b16 %v116
  %v226 = vunpack.c.l.b16 %v117
  %v227 = vunpack.c.h.b16 %v117
  %v228 = vunpack.c.l.b16 %v118
  %v229 = vunpack.c.h.b16 %v118
  %v230 = vunpack.c.l.b16 %v119
  %v231 = vunpack.c.h.b16 %v119
  %v232 = vunpack.c.l.b16 %v120
  %v233 = vunpack.c.h.b16 %v120
  %v234 = vunpack.c.l.b16 %v121
  %v235 = vunpack.c.h.b16 %v121
  %v236 = vunpack.c.l.b16 %v122
  %v237 = vunpack.c.h.b16 %v122
  %v238 = vunpack.c.l.b16 %v123
  %v239 = vunpack.c.h.b16 %v123
  %v240 = vunpack.c.l.b16 %v124
  %v241 = vunpack.c.h.b16 %v124
  %v242 = vunpack.c.l.b16 %v125
  %v243 = vunpack.c.h.b16 %v125
  %v244 = vpack.c.b16 %v184, %v180
  %v245 = vpack.c.b16 %v185, %v181
  %v246 = vpack.c.b16 %v186, %v182
  %v247 = vpack.c.b16 %v187, %v183
  %v248 = vpack.c.b16 %v192, %v188
  %v249 = vpack.c.b16 %v193, %v189
  %v250 = vpack.c.b16 %v194, %v190
  %v251 = vpack.c.b16 %v195, %v191
  %v252 = vpack.c.b16 %v200, %v196
  %v253 = vpack.c.b16 %v201, %v197
  %v254 = vpack.c.b16 %v202, %v198
  %v255 = vpack.c.b16 %v203, %v199
  %v256 = vpack.c.b16 %v208, %v204
  %v257 = vpack.c.b16 %v209, %v205
  %v258 = vpack.c.b16 %v210, %v206
  %v259 = vpack.c.b16 %v211, %v207
  %v260 = vpack.c.b16 %v216, %v212
  %v261 = vpack.c.b16 %v217, %v213
  %v262 = vpack.c.b16 %v218, %v214
  %v263 = vpack.c.b16 %v219, %v215
  %v264 = vpack.c.b16 %v224, %v220
  %v265 = vpack.c.b16 %v225, %v221
  %v266 = vpack.c.b16 %v226, %v222
  %v267 = vpack.c.b16 %v227, %v223
  %v268 = vpack.c.b16 %v232, %v228
  %v269 = vpack.c.b16 %v233, %v229
  %v270 = vpack.c.b16 %v234, %v230
  %v271 = vpack.c.b16 %v235, %v231
  %v272 = vpack.c.b16 %v240, %v236
  %v273 = vpack.c.b16 %v241, %v237
  %v274 = vpack.c.b16 %v242, %v238
  %v275 = vpack.c.b16 %v243, %v239
  %308 = vmatprep.subr.bf16.mxu0 %v245
  %309 = vmatpush1.bf16.msra.mxu0 %v244
  %310 = vmatprep.subr.bf16.mxu0 %v249
  %311 = vmatpush1.bf16.msra.mxu0 %v248
  %312 = vmatprep.subr.bf16.mxu0 %v253
  %313 = vmatpush1.bf16.msra.mxu0 %v252
  %314 = vmatprep.subr.bf16.mxu0 %v257
  %315 = vmatpush1.bf16.msra.mxu0 %v256
  %316 = vmatprep.subr.bf16.mxu0 %v261
  %317 = vmatpush1.bf16.msra.mxu0 %v260
  %318 = vmatprep.subr.bf16.mxu0 %v265
  %319 = vmatpush1.bf16.msra.mxu0 %v264
  %320 = vmatprep.subr.bf16.mxu0 %v269
  %321 = vmatpush1.bf16.msra.mxu0 %v268
  %322 = vmatprep.subr.bf16.mxu0 %v273
  %323 = vmatpush1.bf16.msra.mxu0 %v272
  %324 = vmatprep.subr.bf16.mxu0 0
  %325 = vmatpush1.bf16.msra.mxu0 0
  %326 = vmatprep.subr.bf16.mxu0 0
  %327 = vmatpush1.bf16.msra.mxu0 0
  %328 = vmatprep.subr.bf16.mxu0 0
  %329 = vmatpush1.bf16.msra.mxu0 0
  %330 = vmatprep.subr.bf16.mxu0 0
  %331 = vmatpush1.bf16.msra.mxu0 0
  %332 = vmatprep.subr.bf16.mxu0 0
  %333 = vmatpush1.bf16.msra.mxu0 0
  %334 = vmatprep.subr.bf16.mxu0 0
  %335 = vmatpush1.bf16.msra.mxu0 0
  %336 = vmatprep.subr.bf16.mxu0 0
  %337 = vmatpush1.bf16.msra.mxu0 0
  %338 = vmatprep.subr.bf16.mxu0 0
  %339 = vmatpush1.bf16.msra.mxu0 0
  %340 = vmatprep.mubr.bf16.mxu0 0
  %341 = vmatmul.mubr.bf16.gmra.mrb[0].mxu0 %v92
  %v342 = vpop.f32.mrb[0].mxu0
  %v343 = vadd.f32 %v131, %v342
  %v344 = vpop.f32.mrb[0].mxu0
  %v345 = vadd.f32 %v135, %v344
  %v346 = vpop.f32.mrb[0].mxu0
  %v347 = vadd.f32 %v131, %v346
  %v348 = vpop.f32.mrb[0].mxu0
  %v349 = vadd.f32 %v135, %v348
  %350 = vmatprep.mubr.bf16.mxu0 0
  %351 = vmatmul.mubr.bf16.gmra.mrb[0].mxu0 %v93
  %v352 = vpop.f32.mrb[0].mxu0
  %v353 = vadd.f32 %v131, %v352
  %v354 = vpop.f32.mrb[0].mxu0
  %v355 = vadd.f32 %v135, %v354
  %v356 = vpop.f32.mrb[0].mxu0
  %v357 = vadd.f32 %v131, %v356
  %v358 = vpop.f32.mrb[0].mxu0
  %v359 = vadd.f32 %v135, %v358
  %360 = vdwg.mxu0
  %361 = vmatprep.subr.bf16.mxu0 %v247
  %362 = vmatpush1.bf16.msra.mxu0 %v246
  %363 = vmatprep.subr.bf16.mxu0 %v251
  %364 = vmatpush1.bf16.msra.mxu0 %v250
  %365 = vmatprep.subr.bf16.mxu0 %v255
  %366 = vmatpush1.bf16.msra.mxu0 %v254
  %367 = vmatprep.subr.bf16.mxu0 %v259
  %368 = vmatpush1.bf16.msra.mxu0 %v258
  %369 = vmatprep.subr.bf16.mxu0 %v263
  %370 = vmatpush1.bf16.msra.mxu0 %v262
  %371 = vmatprep.subr.bf16.mxu0 %v267
  %372 = vmatpush1.bf16.msra.mxu0 %v266
  %373 = vmatprep.subr.bf16.mxu0 %v271
  %374 = vmatpush1.bf16.msra.mxu0 %v270
  %375 = vmatprep.subr.bf16.mxu0 %v275
  %376 = vmatpush1.bf16.msra.mxu0 %v274
  %377 = vmatprep.subr.bf16.mxu0 0
  %378 = vmatpush1.bf16.msra.mxu0 0
  %379 = vmatprep.subr.bf16.mxu0 0
  %380 = vmatpush1.bf16.msra.mxu0 0
  %381 = vmatprep.subr.bf16.mxu0 0
  %382 = vmatpush1.bf16.msra.mxu0 0
  %383 = vmatprep.subr.bf16.mxu0 0
  %384 = vmatpush1.bf16.msra.mxu0 0
  %385 = vmatprep.subr.bf16.mxu0 0
  %386 = vmatpush1.bf16.msra.mxu0 0
  %387 = vmatprep.subr.bf16.mxu0 0
  %388 = vmatpush1.bf16.msra.mxu0 0
  %389 = vmatprep.subr.bf16.mxu0 0
  %390 = vmatpush1.bf16.msra.mxu0 0
  %391 = vmatprep.subr.bf16.mxu0 0
  %392 = vmatpush1.bf16.msra.mxu0 0
  %393 = vmatprep.mubr.bf16.mxu0 0
  %394 = vmatmul.mubr.bf16.gmra.mrb[0].mxu0 %v92
  %v395 = vpop.f32.mrb[0].mxu0
  %v396 = vadd.f32 %v139, %v395
  %v397 = vpop.f32.mrb[0].mxu0
  %v398 = vadd.f32 %v143, %v397
  %v399 = vpop.f32.mrb[0].mxu0
  %v400 = vadd.f32 %v139, %v399
  %v401 = vpop.f32.mrb[0].mxu0
  %v402 = vadd.f32 %v143, %v401
  %403 = vmatprep.mubr.bf16.mxu0 0
  %404 = vmatmul.mubr.bf16.gmra.mrb[0].mxu0 %v93
  %v405 = vpop.f32.mrb[0].mxu0
  %v406 = vadd.f32 %v139, %v405
  %v407 = vpop.f32.mrb[0].mxu0
  %v408 = vadd.f32 %v143, %v407
  %v409 = vpop.f32.mrb[0].mxu0
  %v410 = vadd.f32 %v139, %v409
  %v411 = vpop.f32.mrb[0].mxu0
  %v412 = vadd.f32 %v143, %v411
  %413 = vdwg.mxu0
  %v414 = vmul.f32 %v343, 0.5
  %v415 = vmul.f32 %v345, 0.5
  %v416 = vmul.f32 %v396, 0.5
  %v417 = vmul.f32 %v398, 0.5
  %v418 = vmul.f32 %v347, 0.5
  %v419 = vmul.f32 %v349, 0.5
  %v420 = vmul.f32 %v400, 0.5
  %v421 = vmul.f32 %v402, 0.5
  %v422 = vmul.f32 %v353, 0.5
  %v423 = vmul.f32 %v355, 0.5
  %v424 = vmul.f32 %v406, 0.5
  %v425 = vmul.f32 %v408, 0.5
  %v426 = vmul.f32 %v357, 0.5
  %v427 = vmul.f32 %v359, 0.5
  %v428 = vmul.f32 %v410, 0.5
  %v429 = vmul.f32 %v412, 0.5
  %v430 = vmul.f32 %v343, %v343
  %v431 = vmul.f32 %v345, %v345
  %v432 = vmul.f32 %v396, %v396
  %v433 = vmul.f32 %v398, %v398
  %v434 = vmul.f32 %v347, %v347
  %v435 = vmul.f32 %v349, %v349
  %v436 = vmul.f32 %v400, %v400
  %v437 = vmul.f32 %v402, %v402
  %v438 = vmul.f32 %v353, %v353
  %v439 = vmul.f32 %v355, %v355
  %v440 = vmul.f32 %v406, %v406
  %v441 = vmul.f32 %v408, %v408
  %v442 = vmul.f32 %v357, %v357
  %v443 = vmul.f32 %v359, %v359
  %v444 = vmul.f32 %v410, %v410
  %v445 = vmul.f32 %v412, %v412
  %v446 = vmul.f32 %v343, %v430
  %v447 = vmul.f32 %v345, %v431
  %v448 = vmul.f32 %v396, %v432
  %v449 = vmul.f32 %v398, %v433
  %v450 = vmul.f32 %v347, %v434
  %v451 = vmul.f32 %v349, %v435
  %v452 = vmul.f32 %v400, %v436
  %v453 = vmul.f32 %v402, %v437
  %v454 = vmul.f32 %v353, %v438
  %v455 = vmul.f32 %v355, %v439
  %v456 = vmul.f32 %v406, %v440
  %v457 = vmul.f32 %v408, %v441
  %v458 = vmul.f32 %v357, %v442
  %v459 = vmul.f32 %v359, %v443
  %v460 = vmul.f32 %v410, %v444
  %v461 = vmul.f32 %v412, %v445
  %v462 = vmul.f32 %v446, 0.044715
  %v463 = vmul.f32 %v447, 0.044715
  %v464 = vmul.f32 %v448, 0.044715
  %v465 = vmul.f32 %v449, 0.044715
  %v466 = vmul.f32 %v450, 0.044715
  %v467 = vmul.f32 %v451, 0.044715
  %v468 = vmul.f32 %v452, 0.044715
  %v469 = vmul.f32 %v453, 0.044715
  %v470 = vmul.f32 %v454, 0.044715
  %v471 = vmul.f32 %v455, 0.044715
  %v472 = vmul.f32 %v456, 0.044715
  %v473 = vmul.f32 %v457, 0.044715
  %v474 = vmul.f32 %v458, 0.044715
  %v475 = vmul.f32 %v459, 0.044715
  %v476 = vmul.f32 %v460, 0.044715
  %v477 = vmul.f32 %v461, 0.044715
  %v478 = vadd.f32 %v343, %v462
  %v479 = vadd.f32 %v345, %v463
  %v480 = vadd.f32 %v396, %v464
  %v481 = vadd.f32 %v398, %v465
  %v482 = vadd.f32 %v347, %v466
  %v483 = vadd.f32 %v349, %v467
  %v484 = vadd.f32 %v400, %v468
  %v485 = vadd.f32 %v402, %v469
  %v486 = vadd.f32 %v353, %v470
  %v487 = vadd.f32 %v355, %v471
  %v488 = vadd.f32 %v406, %v472
  %v489 = vadd.f32 %v408, %v473
  %v490 = vadd.f32 %v357, %v474
  %v491 = vadd.f32 %v359, %v475
  %v492 = vadd.f32 %v410, %v476
  %v493 = vadd.f32 %v412, %v477
  %v494 = vmul.f32 %v478, 0.7978846
  %v495 = vmul.f32 %v479, 0.7978846
  %v496 = vmul.f32 %v480, 0.7978846
  %v497 = vmul.f32 %v481, 0.7978846
  %v498 = vmul.f32 %v482, 0.7978846
  %v499 = vmul.f32 %v483, 0.7978846
  %v500 = vmul.f32 %v484, 0.7978846
  %v501 = vmul.f32 %v485, 0.7978846
  %v502 = vmul.f32 %v486, 0.7978846
  %v503 = vmul.f32 %v487, 0.7978846
  %v504 = vmul.f32 %v488, 0.7978846
  %v505 = vmul.f32 %v489, 0.7978846
  %v506 = vmul.f32 %v490, 0.7978846
  %v507 = vmul.f32 %v491, 0.7978846
  %v508 = vmul.f32 %v492, 0.7978846
  %v509 = vmul.f32 %v493, 0.7978846
  %v510 = vtanh.pop %v494
  %v511 = vtanh.pop %v495
  %v512 = vtanh.pop %v496
  %v513 = vtanh.pop %v497
  %v514 = vtanh.pop %v498
  %v515 = vtanh.pop %v499
  %v516 = vtanh.pop %v500
  %v517 = vtanh.pop %v501
  %v518 = vtanh.pop %v502
  %v519 = vtanh.pop %v503
  %v520 = vtanh.pop %v504
  %v521 = vtanh.pop %v505
  %v522 = vtanh.pop %v506
  %v523 = vtanh.pop %v507
  %v524 = vtanh.pop %v508
  %v525 = vtanh.pop %v509
  %v526 = vadd.f32 %v510, 1.0
  %v527 = vadd.f32 %v511, 1.0
  %v528 = vadd.f32 %v512, 1.0
  %v529 = vadd.f32 %v513, 1.0
  %v530 = vadd.f32 %v514, 1.0
  %v531 = vadd.f32 %v515, 1.0
  %v532 = vadd.f32 %v516, 1.0
  %v533 = vadd.f32 %v517, 1.0
  %v534 = vadd.f32 %v518, 1.0
  %v535 = vadd.f32 %v519, 1.0
  %v536 = vadd.f32 %v520, 1.0
  %v537 = vadd.f32 %v521, 1.0
  %v538 = vadd.f32 %v522, 1.0
  %v539 = vadd.f32 %v523, 1.0
  %v540 = vadd.f32 %v524, 1.0
  %v541 = vadd.f32 %v525, 1.0
  %v542 = vmul.f32 %v414, %v526
  %v543 = vmul.f32 %v415, %v527
  %v544 = vmul.f32 %v416, %v528
  %v545 = vmul.f32 %v417, %v529
  %v546 = vmul.f32 %v418, %v530
  %v547 = vmul.f32 %v419, %v531
  %v548 = vmul.f32 %v420, %v532
  %v549 = vmul.f32 %v421, %v533
  %v550 = vmul.f32 %v422, %v534
  %v551 = vmul.f32 %v423, %v535
  %v552 = vmul.f32 %v424, %v536
  %v553 = vmul.f32 %v425, %v537
  %v554 = vmul.f32 %v426, %v538
  %v555 = vmul.f32 %v427, %v539
  %v556 = vmul.f32 %v428, %v540
  %v557 = vmul.f32 %v429, %v541
  %v558 = vpack.c.bf16 %v546, %v542
  %v559 = vpack.c.bf16 %v547, %v543
  %v560 = vpack.c.bf16 %v548, %v544
  %v561 = vpack.c.bf16 %v549, %v545
  %v562 = vpack.c.bf16 %v554, %v550
  %v563 = vpack.c.bf16 %v555, %v551
  %v564 = vpack.c.bf16 %v556, %v552
  %v565 = vpack.c.bf16 %v557, %v553
  %v574 = vunpack.c.l.b16 %v558
  %v575 = vunpack.c.l.b16 %v559
  %v576 = vunpack.c.l.b16 %v560
  %v577 = vunpack.c.l.b16 %v561
  %v578 = vunpack.c.h.b16 %v558
  %v579 = vunpack.c.h.b16 %v559
  %v580 = vunpack.c.h.b16 %v560
  %v581 = vunpack.c.h.b16 %v561
  %v582 = vunpack.c.l.b16 %v562
  %v583 = vunpack.c.l.b16 %v563
  %v584 = vunpack.c.l.b16 %v564
  %v585 = vunpack.c.l.b16 %v565
  %v586 = vunpack.c.h.b16 %v562
  %v587 = vunpack.c.h.b16 %v563
  %v588 = vunpack.c.h.b16 %v564
  %v589 = vunpack.c.h.b16 %v565
  %v590 = vpack.c.b16 %v575, %v574
  %v591 = vpack.c.b16 %v577, %v576
  %v592 = vpack.c.b16 %v579, %v578
  %v593 = vpack.c.b16 %v581, %v580
  %v594 = vpack.c.b16 %v583, %v582
  %v595 = vpack.c.b16 %v585, %v584
  %v596 = vpack.c.b16 %v587, %v586
  %v597 = vpack.c.b16 %v589, %v588
  %606 = vst [vmem:[%s5] sm:$0xff] %v590
  %607 = vst [vmem:[%s5 + $0x8] sm:$0xff] %v591
  %608 = vst [vmem:[%s5 + $0x10] sm:$0xff] %v592
  %609 = vst [vmem:[%s5 + $0x18] sm:$0xff] %v593
  %610 = vst [vmem:[%s5 + $0x20] sm:$0xff] %v594
  %611 = vst [vmem:[%s5 + $0x28] sm:$0xff] %v595
  %612 = vst [vmem:[%s5 + $0x30] sm:$0xff] %v596
  %613 = vst [vmem:[%s5 + $0x38] sm:$0xff] %v597
  // Predicated region
  $region22: #{clip_caption_forward.18} parent=0 // pred_check
    _
  $region23: #{clip_caption_forward.18} parent=0 // pred_check_branch
    %615 = sbr.rel (0) target = $region25
  $region24: #{clip_caption_forward.18} parent=0 // pred_region
    _
  $region25: #{clip_caption_forward.18} parent=0 // pred_fallthru
    _
  // Predicated region
  $region26: #{clip_caption_forward.18} parent=0 // pred_check
    _
  $region27: #{clip_caption_forward.18} parent=0 // pred_check_branch
    %617 = sbr.rel (0) target = $region29
  $region28: #{clip_caption_forward.18} parent=0 // pred_region
    _
  $region29: #{clip_caption_forward.18} parent=0 // pred_fallthru
    _

// kernel: clip_caption_forward.19
$region0: #{clip_caption_forward.19}
  #allocation0 [shape = 'u32[]', space=smem, size = 0x4, offset = 0x4, fixed_abs, tag = 'smem constant byte address 0x4 - core index']
  #allocation1 [shape = 'u32[144,128]{1,0:T(1,128)}', space=vmem, size = 0x12000, scoped, tag = 'internal scratch']
  %s0 = inlined_call_operand.vmem [shape: bf16[32,512], index: 0, kind: input, shape index: {}]
  %s1 = inlined_call_operand.vmem [shape: bf16[512,128], index: 1, kind: input, shape index: {}]
  %s2 = inlined_call_operand.vmem [shape: f32[1,128], index: 2, kind: input, shape index: {}]
  %s3 = inlined_call_operand.vmem [shape: f32[32,128], index: 3, kind: input, shape index: {}]
  %s4 = inlined_call_operand.vmem [shape: f32[32,128], index: 4, kind: output, shape index: {}]
  %s5 = sld [smem:[#allocation0]]
  $region26: #{clip_caption_forward.19} parent=0
    _
  %s7 = ssub.s32 1, %s5
  %s8 = scalar_select 0, %s7, %s5
  // Predicated region
  $region2: #{clip_caption_forward.19} parent=0 // pred_check
    _
  $region3: #{clip_caption_forward.19} parent=0 // pred_check_branch
    %10 = sbr.rel (0) target = $region5
  $region4: #{clip_caption_forward.19} parent=0 // pred_region
    _
  $region5: #{clip_caption_forward.19} parent=0 // pred_fallthru
    _
  // Predicated region
  $region6: #{clip_caption_forward.19} parent=0 // pred_check
    _
  $region7: #{clip_caption_forward.19} parent=0 // pred_check_branch
    %12 = sbr.rel (0) target = $region9
  $region8: #{clip_caption_forward.19} parent=0 // pred_region
    _
  $region9: #{clip_caption_forward.19} parent=0 // pred_fallthru
    _
  // Predicated region
  $region10: #{clip_caption_forward.19} parent=0 // pred_check
    _
  $region11: #{clip_caption_forward.19} parent=0 // pred_check_branch
    %14 = sbr.rel (0) target = $region13
  $region12: #{clip_caption_forward.19} parent=0 // pred_region
    _
  $region13: #{clip_caption_forward.19} parent=0 // pred_fallthru
    _
  // Predicated region
  $region14: #{clip_caption_forward.19} parent=0 // pred_check
    _
  $region15: #{clip_caption_forward.19} parent=0 // pred_check_branch
    %16 = sbr.rel (0) target = $region17
  $region16: #{clip_caption_forward.19} parent=0 // pred_region
    _
  $region17: #{clip_caption_forward.19} parent=0 // pred_fallthru
    _
  %v18 = vld [vmem:[%s0] sm:$0xff]
  %v19 = vld [vmem:[%s0 + $0x8] sm:$0xff]
  %v20 = vld [vmem:[%s0 + $0x10] sm:$0xff]
  %v21 = vld [vmem:[%s0 + $0x18] sm:$0xff]
  %v22 = vld [vmem:[%s0 + $0x20] sm:$0xff]
  %v23 = vld [vmem:[%s0 + $0x28] sm:$0xff]
  %v24 = vld [vmem:[%s0 + $0x30] sm:$0xff]
  %v25 = vld [vmem:[%s0 + $0x38] sm:$0xff]
  %v26 = vld [vmem:[%s1] sm:$0xf]
  %v27 = vld [vmem:[%s1 + $0x4] sm:$0xf]
  %v28 = vld [vmem:[%s1 + $0x8] sm:$0xf]
  %v29 = vld [vmem:[%s1 + $0xc] sm:$0xf]
  %v30 = vld [vmem:[%s1 + $0x10] sm:$0xf]
  %v31 = vld [vmem:[%s1 + $0x14] sm:$0xf]
  %v32 = vld [vmem:[%s1 + $0x18] sm:$0xf]
  %v33 = vld [vmem:[%s1 + $0x1c] sm:$0xf]
  %v34 = vld [vmem:[%s1 + $0x20] sm:$0xf]
  %v35 = vld [vmem:[%s1 + $0x24] sm:$0xf]
  %v36 = vld [vmem:[%s1 + $0x28] sm:$0xf]
  %v37 = vld [vmem:[%s1 + $0x2c] sm:$0xf]
  %v38 = vld [vmem:[%s1 + $0x30] sm:$0xf]
  %v39 = vld [vmem:[%s1 + $0x34] sm:$0xf]
  %v40 = vld [vmem:[%s1 + $0x38] sm:$0xf]
  %v41 = vld [vmem:[%s1 + $0x3c] sm:$0xf]
  %v42 = vld [vmem:[%s1 + $0x40] sm:$0xf]
  %v43 = vld [vmem:[%s1 + $0x44] sm:$0xf]
  %v44 = vld [vmem:[%s1 + $0x48] sm:$0xf]
  %v45 = vld [vmem:[%s1 + $0x4c] sm:$0xf]
  %v46 = vld [vmem:[%s1 + $0x50] sm:$0xf]
  %v47 = vld [vmem:[%s1 + $0x54] sm:$0xf]
  %v48 = vld [vmem:[%s1 + $0x58] sm:$0xf]
  %v49 = vld [vmem:[%s1 + $0x5c] sm:$0xf]
  %v50 = vld [vmem:[%s1 + $0x60] sm:$0xf]
  %v51 = vld [vmem:[%s1 + $0x64] sm:$0xf]
  %v52 = vld [vmem:[%s1 + $0x68] sm:$0xf]
  %v53 = vld [vmem:[%s1 + $0x6c] sm:$0xf]
  %v54 = vld [vmem:[%s1 + $0x70] sm:$0xf]
  %v55 = vld [vmem:[%s1 + $0x74] sm:$0xf]
  %v56 = vld [vmem:[%s1 + $0x78] sm:$0xf]
  %v57 = vld [vmem:[%s1 + $0x7c] sm:$0xf]
  %v58 = vld [vmem:[%s1 + $0x80] sm:$0xf]
  %v59 = vld [vmem:[%s1 + $0x84] sm:$0xf]
  %v60 = vld [vmem:[%s1 + $0x88] sm:$0xf]
  %v61 = vld [vmem:[%s1 + $0x8c] sm:$0xf]
  %v62 = vld [vmem:[%s1 + $0x90] sm:$0xf]
  %v63 = vld [vmem:[%s1 + $0x94] sm:$0xf]
  %v64 = vld [vmem:[%s1 + $0x98] sm:$0xf]
  %v65 = vld [vmem:[%s1 + $0x9c] sm:$0xf]
  %v66 = vld [vmem:[%s1 + $0xa0] sm:$0xf]
  %v67 = vld [vmem:[%s1 + $0xa4] sm:$0xf]
  %v68 = vld [vmem:[%s1 + $0xa8] sm:$0xf]
  %v69 = vld [vmem:[%s1 + $0xac] sm:$0xf]
  %v70 = vld [vmem:[%s1 + $0xb0] sm:$0xf]
  %v71 = vld [vmem:[%s1 + $0xb4] sm:$0xf]
  %v72 = vld [vmem:[%s1 + $0xb8] sm:$0xf]
  %v73 = vld [vmem:[%s1 + $0xbc] sm:$0xf]
  %v74 = vld [vmem:[%s1 + $0xc0] sm:$0xf]
  %v75 = vld [vmem:[%s1 + $0xc4] sm:$0xf]
  %v76 = vld [vmem:[%s1 + $0xc8] sm:$0xf]
  %v77 = vld [vmem:[%s1 + $0xcc] sm:$0xf]
  %v78 = vld [vmem:[%s1 + $0xd0] sm:$0xf]
  %v79 = vld [vmem:[%s1 + $0xd4] sm:$0xf]
  %v80 = vld [vmem:[%s1 + $0xd8] sm:$0xf]
  %v81 = vld [vmem:[%s1 + $0xdc] sm:$0xf]
  %v82 = vld [vmem:[%s1 + $0xe0] sm:$0xf]
  %v83 = vld [vmem:[%s1 + $0xe4] sm:$0xf]
  %v84 = vld [vmem:[%s1 + $0xe8] sm:$0xf]
  %v85 = vld [vmem:[%s1 + $0xec] sm:$0xf]
  %v86 = vld [vmem:[%s1 + $0xf0] sm:$0xf]
  %v87 = vld [vmem:[%s1 + $0xf4] sm:$0xf]
  %v88 = vld [vmem:[%s1 + $0xf8] sm:$0xf]
  %v89 = vld [vmem:[%s1 + $0xfc] sm:$0xf]
  %v90 = vld [vmem:[%s2] sm:$0x1]
  %v92 = vlaneseq
  %v93 = vshrl.u32 %v92, 7
  %v94 = vsub.s32 0, %v93
  %v95 = vrot.slane %v90, %v94
  %v105 = vunpack.c.l.b16 %v18
  %v106 = vunpack.c.h.b16 %v18
  %v107 = vunpack.c.l.b16 %v19
  %v108 = vunpack.c.h.b16 %v19
  %v109 = vunpack.c.l.b16 %v20
  %v110 = vunpack.c.h.b16 %v20
  %v111 = vunpack.c.l.b16 %v21
  %v112 = vunpack.c.h.b16 %v21
  %v113 = vunpack.c.l.b16 %v22
  %v114 = vunpack.c.h.b16 %v22
  %v115 = vunpack.c.l.b16 %v23
  %v116 = vunpack.c.h.b16 %v23
  %v117 = vunpack.c.l.b16 %v24
  %v118 = vunpack.c.h.b16 %v24
  %v119 = vunpack.c.l.b16 %v25
  %v120 = vunpack.c.h.b16 %v25
  %v121 = vpack.c.b16 %v109, %v105
  %v122 = vpack.c.b16 %v110, %v106
  %v123 = vpack.c.b16 %v111, %v107
  %v124 = vpack.c.b16 %v112, %v108
  %v125 = vpack.c.b16 %v117, %v113
  %v126 = vpack.c.b16 %v118, %v114
  %v127 = vpack.c.b16 %v119, %v115
  %v128 = vpack.c.b16 %v120, %v116
  %v201 = vunpack.c.l.b16 %v26
  %v202 = vunpack.c.l.b16 %v27
  %v203 = vunpack.c.l.b16 %v28
  %v204 = vunpack.c.l.b16 %v29
  %v205 = vunpack.c.l.b16 %v30
  %v206 = vunpack.c.l.b16 %v31
  %v207 = vunpack.c.l.b16 %v32
  %v208 = vunpack.c.l.b16 %v33
  %v209 = vunpack.c.l.b16 %v34
  %v210 = vunpack.c.l.b16 %v35
  %v211 = vunpack.c.l.b16 %v36
  %v212 = vunpack.c.l.b16 %v37
  %v213 = vunpack.c.l.b16 %v38
  %v214 = vunpack.c.l.b16 %v39
  %v215 = vunpack.c.l.b16 %v40
  %v216 = vunpack.c.l.b16 %v41
  %v217 = vunpack.c.l.b16 %v42
  %v218 = vunpack.c.l.b16 %v43
  %v219 = vunpack.c.l.b16 %v44
  %v220 = vunpack.c.l.b16 %v45
  %v221 = vunpack.c.l.b16 %v46
  %v222 = vunpack.c.l.b16 %v47
  %v223 = vunpack.c.l.b16 %v48
  %v224 = vunpack.c.l.b16 %v49
  %v225 = vunpack.c.l.b16 %v50
  %v226 = vunpack.c.l.b16 %v51
  %v227 = vunpack.c.l.b16 %v52
  %v228 = vunpack.c.l.b16 %v53
  %v229 = vunpack.c.l.b16 %v54
  %v230 = vunpack.c.l.b16 %v55
  %v231 = vunpack.c.l.b16 %v56
  %v232 = vunpack.c.l.b16 %v57
  %v233 = vunpack.c.l.b16 %v58
  %v234 = vunpack.c.l.b16 %v59
  %v235 = vunpack.c.l.b16 %v60
  %v236 = vunpack.c.l.b16 %v61
  %v237 = vunpack.c.l.b16 %v62
  %v238 = vunpack.c.l.b16 %v63
  %v239 = vunpack.c.l.b16 %v64
  %v240 = vunpack.c.l.b16 %v65
  %v241 = vunpack.c.l.b16 %v66
  %v242 = vunpack.c.l.b16 %v67
  %v243 = vunpack.c.l.b16 %v68
  %v244 = vunpack.c.l.b16 %v69
  %v245 = vunpack.c.l.b16 %v70
  %v246 = vunpack.c.l.b16 %v71
  %v247 = vunpack.c.l.b16 %v72
  %v248 = vunpack.c.l.b16 %v73
  %v249 = vunpack.c.l.b16 %v74
  %v250 = vunpack.c.l.b16 %v75
  %v251 = vunpack.c.l.b16 %v76
  %v252 = vunpack.c.l.b16 %v77
  %v253 = vunpack.c.l.b16 %v78
  %v254 = vunpack.c.l.b16 %v79
  %v255 = vunpack.c.l.b16 %v80
  %v256 = vunpack.c.l.b16 %v81
  %v257 = vunpack.c.l.b16 %v82
  %v258 = vunpack.c.l.b16 %v83
  %v259 = vunpack.c.l.b16 %v84
  %v260 = vunpack.c.l.b16 %v85
  %v261 = vunpack.c.l.b16 %v86
  %v262 = vunpack.c.l.b16 %v87
  %v263 = vunpack.c.l.b16 %v88
  %v264 = vunpack.c.l.b16 %v89
  %v265 = vpack.c.b16 %v202, %v201
  %v266 = vpack.c.b16 %v204, %v203
  %v267 = vpack.c.b16 %v206, %v205
  %v268 = vpack.c.b16 %v208, %v207
  %v269 = vpack.c.b16 %v210, %v209
  %v270 = vpack.c.b16 %v212, %v211
  %v271 = vpack.c.b16 %v214, %v213
  %v272 = vpack.c.b16 %v216, %v215
  %v273 = vpack.c.b16 %v218, %v217
  %v274 = vpack.c.b16 %v220, %v219
  %v275 = vpack.c.b16 %v222, %v221
  %v276 = vpack.c.b16 %v224, %v223
  %v277 = vpack.c.b16 %v226, %v225
  %v278 = vpack.c.b16 %v228, %v227
  %v279 = vpack.c.b16 %v230, %v229
  %v280 = vpack.c.b16 %v232, %v231
  %v281 = vpack.c.b16 %v234, %v233
  %v282 = vpack.c.b16 %v236, %v235
  %v283 = vpack.c.b16 %v238, %v237
  %v284 = vpack.c.b16 %v240, %v239
  %v285 = vpack.c.b16 %v242, %v241
  %v286 = vpack.c.b16 %v244, %v243
  %v287 = vpack.c.b16 %v246, %v245
  %v288 = vpack.c.b16 %v248, %v247
  %v289 = vpack.c.b16 %v250, %v249
  %v290 = vpack.c.b16 %v252, %v251
  %v291 = vpack.c.b16 %v254, %v253
  %v292 = vpack.c.b16 %v256, %v255
  %v293 = vpack.c.b16 %v258, %v257
  %v294 = vpack.c.b16 %v260, %v259
  %v295 = vpack.c.b16 %v262, %v261
  %v296 = vpack.c.b16 %v264, %v263
  %329 = vmatprep.subr.bf16.mxu0 0
  %330 = vmatpush1.bf16.msra.mxu0 %v265
  %331 = vmatprep.subr.bf16.mxu0 0
  %332 = vmatpush1.bf16.msra.mxu0 %v266
  %333 = vmatprep.subr.bf16.mxu0 0
  %334 = vmatpush1.bf16.msra.mxu0 %v267
  %335 = vmatprep.subr.bf16.mxu0 0
  %336 = vmatpush1.bf16.msra.mxu0 %v268
  %337 = vmatprep.subr.bf16.mxu0 0
  %338 = vmatpush1.bf16.msra.mxu0 %v269
  %339 = vmatprep.subr.bf16.mxu0 0
  %340 = vmatpush1.bf16.msra.mxu0 %v270
  %341 = vmatprep.subr.bf16.mxu0 0
  %342 = vmatpush1.bf16.msra.mxu0 %v271
  %343 = vmatprep.subr.bf16.mxu0 0
  %344 = vmatpush1.bf16.msra.mxu0 %v272
  %345 = vmatprep.subr.bf16.mxu0 0
  %346 = vmatpush1.bf16.msra.mxu0 %v273
  %347 = vmatprep.subr.bf16.mxu0 0
  %348 = vmatpush1.bf16.msra.mxu0 %v274
  %349 = vmatprep.subr.bf16.mxu0 0
  %350 = vmatpush1.bf16.msra.mxu0 %v275
  %351 = vmatprep.subr.bf16.mxu0 0
  %352 = vmatpush1.bf16.msra.mxu0 %v276
  %353 = vmatprep.subr.bf16.mxu0 0
  %354 = vmatpush1.bf16.msra.mxu0 %v277
  %355 = vmatprep.subr.bf16.mxu0 0
  %356 = vmatpush1.bf16.msra.mxu0 %v278
  %357 = vmatprep.subr.bf16.mxu0 0
  %358 = vmatpush1.bf16.msra.mxu0 %v279
  %359 = vmatprep.subr.bf16.mxu0 0
  %360 = vmatpush1.bf16.msra.mxu0 %v280
  %361 = vmatprep.mubr.bf16.mxu0 %v122
  %362 = vmatmul.mubr.bf16.gmra.mrb[0].mxu0 %v121
  %v363 = vpop.f32.mrb[0].mxu0
  %v364 = vadd.f32 %v95, %v363
  %v365 = vpop.f32.mrb[0].mxu0
  %v366 = vpop.f32.mrb[0].mxu0
  %v367 = vadd.f32 %v95, %v366
  %v368 = vpop.f32.mrb[0].mxu0
  %369 = vmatprep.mubr.bf16.mxu0 %v126
  %370 = vmatmul.mubr.bf16.gmra.mrb[0].mxu0 %v125
  %v371 = vpop.f32.mrb[0].mxu0
  %v372 = vadd.f32 %v95, %v371
  %v373 = vpop.f32.mrb[0].mxu0
  %v374 = vpop.f32.mrb[0].mxu0
  %v375 = vadd.f32 %v95, %v374
  %v376 = vpop.f32.mrb[0].mxu0
  %377 = vdwg.mxu0
  %378 = vmatprep.subr.bf16.mxu0 0
  %379 = vmatpush1.bf16.msra.mxu0 %v281
  %380 = vmatprep.subr.bf16.mxu0 0
  %381 = vmatpush1.bf16.msra.mxu0 %v282
  %382 = vmatprep.subr.bf16.mxu0 0
  %383 = vmatpush1.bf16.msra.mxu0 %v283
  %384 = vmatprep.subr.bf16.mxu0 0
  %385 = vmatpush1.bf16.msra.mxu0 %v284
  %386 = vmatprep.subr.bf16.mxu0 0
  %387 = vmatpush1.bf16.msra.mxu0 %v285
  %388 = vmatprep.subr.bf16.mxu0 0
  %389 = vmatpush1.bf16.msra.mxu0 %v286
  %390 = vmatprep.subr.bf16.mxu0 0
  %391 = vmatpush1.bf16.msra.mxu0 %v287
  %392 = vmatprep.subr.bf16.mxu0 0
  %393 = vmatpush1.bf16.msra.mxu0 %v288
  %394 = vmatprep.subr.bf16.mxu0 0
  %395 = vmatpush1.bf16.msra.mxu0 %v289
  %396 = vmatprep.subr.bf16.mxu0 0
  %397 = vmatpush1.bf16.msra.mxu0 %v290
  %398 = vmatprep.subr.bf16.mxu0 0
  %399 = vmatpush1.bf16.msra.mxu0 %v291
  %400 = vmatprep.subr.bf16.mxu0 0
  %401 = vmatpush1.bf16.msra.mxu0 %v292
  %402 = vmatprep.subr.bf16.mxu0 0
  %403 = vmatpush1.bf16.msra.mxu0 %v293
  %404 = vmatprep.subr.bf16.mxu0 0
  %405 = vmatpush1.bf16.msra.mxu0 %v294
  %406 = vmatprep.subr.bf16.mxu0 0
  %407 = vmatpush1.bf16.msra.mxu0 %v295
  %408 = vmatprep.subr.bf16.mxu0 0
  %409 = vmatpush1.bf16.msra.mxu0 %v296
  %410 = vmatprep.mubr.bf16.mxu0 %v124
  %411 = vmatmul.mubr.bf16.gmra.mrb[0].mxu0 %v123
  %v412 = vpop.f32.mrb[0].mxu0
  %v413 = vadd.f32 %v364, %v412
  %v414 = vpop.f32.mrb[0].mxu0
  %v415 = vpop.f32.mrb[0].mxu0
  %v416 = vadd.f32 %v367, %v415
  %v417 = vpop.f32.mrb[0].mxu0
  %418 = vmatprep.mubr.bf16.mxu0 %v128
  %419 = vmatmul.mubr.bf16.gmra.mrb[0].mxu0 %v127
  %v420 = vpop.f32.mrb[0].mxu0
  %v421 = vadd.f32 %v372, %v420
  %v422 = vpop.f32.mrb[0].mxu0
  %v423 = vpop.f32.mrb[0].mxu0
  %v424 = vadd.f32 %v375, %v423
  %v425 = vpop.f32.mrb[0].mxu0
  %426 = vdwg.mxu0
  %v427 = vld [vmem:[%s3] sm:$0xff]
  %v428 = vld [vmem:[%s3 + $0x8] sm:$0xff]
  %v429 = vld [vmem:[%s3 + $0x10] sm:$0xff]
  %v430 = vld [vmem:[%s3 + $0x18] sm:$0xff]
  %v431 = vadd.f32 %v413, %v427
  %v432 = vadd.f32 %v416, %v428
  %v433 = vadd.f32 %v421, %v429
  %v434 = vadd.f32 %v424, %v430
  %435 = vst [vmem:[%s4] sm:$0xff] %v431
  %436 = vst [vmem:[%s4 + $0x8] sm:$0xff] %v432
  %437 = vst [vmem:[%s4 + $0x10] sm:$0xff] %v433
  %438 = vst [vmem:[%s4 + $0x18] sm:$0xff] %v434
  // Predicated region
  $region18: #{clip_caption_forward.19} parent=0 // pred_check
    _
  $region19: #{clip_caption_forward.19} parent=0 // pred_check_branch
    %440 = sbr.rel (0) target = $region21
  $region20: #{clip_caption_forward.19} parent=0 // pred_region
    _
  $region21: #{clip_caption_forward.19} parent=0 // pred_fallthru
    _
  // Predicated region
  $region22: #{clip_caption_forward.19} parent=0 // pred_check
    _
  $region23: #{clip_caption_forward.19} parent=0 // pred_check_branch
    %442 = sbr.rel (0) target = $region25
  $region24: #{clip_caption_forward.19} parent=0 // pred_region
    _
  $region25: #{clip_caption_forward.19} parent=0 // pred_fallthru
    _

// kernel: clip_caption_forward.25
$region0: #{clip_caption_forward.25}
  #allocation0 [shape = 'u32[]', space=smem, size = 0x4, offset = 0x4, fixed_abs, tag = 'smem constant byte address 0x4 - core index']
  #allocation1 [shape = 'u32[144,128]{1,0:T(1,128)}', space=vmem, size = 0x12000, scoped, tag = 'internal scratch']
  %s0 = inlined_call_operand.vmem [shape: f32[32,128], index: 0, kind: input, shape index: {}]
  %s1 = inlined_call_operand.vmem [shape: f32[1,128], index: 1, kind: input, shape index: {}]
  %s2 = inlined_call_operand.vmem [shape: f32[1,128], index: 2, kind: input, shape index: {}]
  %s3 = inlined_call_operand.vmem [shape: bf16[256,128], index: 3, kind: input, shape index: {}]
  %s4 = inlined_call_operand.vmem [shape: f32[1,256], index: 4, kind: input, shape index: {}]
  %s5 = inlined_call_operand.hbm [shape: f32[32,256], index: 5, kind: output, shape index: {}]
  %s6 = sld [smem:[#allocation0]]
  $region30: #{clip_caption_forward.25} parent=0
    _
  %s8 = ssub.s32 1, %s6
  %s9 = scalar_select 0, %s8, %s6
  $region1: #{clip_caption_forward.25} parent=0
    #allocation2 [shape = 'u8[32768]{0}', space=vmem, size = 0x8000, scoped, tag = 'output window, operand 0, single buffered']
    #allocation3 [shape = 's32[1]{0}', space=sflag, size = 0x4, scoped, tag = 'scoped memory for clip_caption_forward.25']
    %10 = vsyncpa [#allocation3], 0
    // Predicated region
    $region2: #{clip_caption_forward.25} parent=1 // pred_check
      _
    $region3: #{clip_caption_forward.25} parent=1 // pred_check_branch
      %12 = sbr.rel (0) target = $region5
    $region4: #{clip_caption_forward.25} parent=1 // pred_region
      _
    $region5: #{clip_caption_forward.25} parent=1 // pred_fallthru
      _
    // Predicated region
    $region6: #{clip_caption_forward.25} parent=1 // pred_check
      _
    $region7: #{clip_caption_forward.25} parent=1 // pred_check_branch
      %14 = sbr.rel (0) target = $region9
    $region8: #{clip_caption_forward.25} parent=1 // pred_region
      _
    $region9: #{clip_caption_forward.25} parent=1 // pred_fallthru
      _
    // Predicated region
    $region10: #{clip_caption_forward.25} parent=1 // pred_check
      _
    $region11: #{clip_caption_forward.25} parent=1 // pred_check_branch
      %16 = sbr.rel (0) target = $region13
    $region12: #{clip_caption_forward.25} parent=1 // pred_region
      _
    $region13: #{clip_caption_forward.25} parent=1 // pred_fallthru
      _
    // Predicated region
    $region14: #{clip_caption_forward.25} parent=1 // pred_check
      _
    $region15: #{clip_caption_forward.25} parent=1 // pred_check_branch
      %18 = sbr.rel (0) target = $region17
    $region16: #{clip_caption_forward.25} parent=1 // pred_region
      _
    $region17: #{clip_caption_forward.25} parent=1 // pred_fallthru
      _
    // Predicated region
    $region18: #{clip_caption_forward.25} parent=1 // pred_check
      _
    $region19: #{clip_caption_forward.25} parent=1 // pred_check_branch
      %20 = sbr.rel (0) target = $region21
    $region20: #{clip_caption_forward.25} parent=1 // pred_region
      _
    $region21: #{clip_caption_forward.25} parent=1 // pred_fallthru
      _
    %v22 = vld [vmem:[%s0] sm:$0xff]
    %v23 = vld [vmem:[%s0 + $0x8] sm:$0xff]
    %v24 = vld [vmem:[%s0 + $0x10] sm:$0xff]
    %v25 = vld [vmem:[%s0 + $0x18] sm:$0xff]
    %26 = vadd.xlane.f32.xlu0 %v22
    %v27 = vpop.xlane.xlu0 %26
    %28 = vadd.xlane.f32.xlu0 %v23
    %v29 = vpop.xlane.xlu0 %28
    %30 = vadd.xlane.f32.xlu0 %v24
    %v31 = vpop.xlane.xlu0 %30
    %32 = vadd.xlane.f32.xlu0 %v25
    %v33 = vpop.xlane.xlu0 %32
    %v34 = vrcp.pop 128.0
    %v35 = vmul.f32 %v27, %v34
    %v36 = vmul.f32 %v29, %v34
    %v37 = vmul.f32 %v31, %v34
    %v38 = vmul.f32 %v33, %v34
    %v39 = vsub.f32 %v22, %v35
    %v40 = vsub.f32 %v23, %v36
    %v41 = vsub.f32 %v24, %v37
    %v42 = vsub.f32 %v25, %v38
    %v43 = vmul.f32 %v39, %v39
    %v44 = vmul.f32 %v40, %v40
    %v45 = vmul.f32 %v41, %v41
    %v46 = vmul.f32 %v42, %v42
    %47 = vadd.xlane.f32.xlu0 %v43
    %v48 = vpop.xlane.xlu0 %47
    %49 = vadd.xlane.f32.xlu0 %v44
    %v50 = vpop.xlane.xlu0 %49
    %51 = vadd.xlane.f32.xlu0 %v45
    %v52 = vpop.xlane.xlu0 %51
    %53 = vadd.xlane.f32.xlu0 %v46
    %v54 = vpop.xlane.xlu0 %53
    %v55 = vmul.f32 %v48, %v34
    %v56 = vmul.f32 %v50, %v34
    %v57 = vmul.f32 %v52, %v34
    %v58 = vmul.f32 %v54, %v34
    %v59 = vadd.f32 %v55, 1e-05
    %v60 = vadd.f32 %v56, 1e-05
    %v61 = vadd.f32 %v57, 1e-05
    %v62 = vadd.f32 %v58, 1e-05
    %v63 = vrsqrt.pop %v59
    %v64 = vrsqrt.pop %v60
    %v65 = vrsqrt.pop %v61
    %v66 = vrsqrt.pop %v62
    %v67 = vmul.f32 %v39, %v63
    %v68 = vmul.f32 %v40, %v64
    %v69 = vmul.f32 %v41, %v65
    %v70 = vmul.f32 %v42, %v66
    %v71 = vld [vmem:[%s1] sm:$0x1]
    %v73 = vlaneseq
    %v74 = vshrl.u32 %v73, 7
    %v75 = vsub.s32 0, %v74
    %v76 = vrot.slane %v71, %v75
    %v78 = vmul.f32 %v67, %v76
    %v79 = vmul.f32 %v68, %v76
    %v80 = vmul.f32 %v69, %v76
    %v81 = vmul.f32 %v70, %v76
    %v82 = vld [vmem:[%s2] sm:$0x1]
    %v84 = vlaneseq
    %v85 = vshrl.u32 %v84, 7
    %v86 = vsub.s32 0, %v85
    %v87 = vrot.slane %v82, %v86
    %v89 = vadd.f32 %v78, %v87
    %v90 = vadd.f32 %v79, %v87
    %v91 = vadd.f32 %v80, %v87
    %v92 = vadd.f32 %v81, %v87
    %v93 = vpack.c.bf16 %v90, %v89
    %v94 = vpack.c.bf16 %v92, %v91
    %v95 = vld [vmem:[%s3] sm:$0xf]
    %v96 = vld [vmem:[%s3 + $0x4] sm:$0xf]
    %v97 = vld [vmem:[%s3 + $0x8] sm:$0xf]
    %v98 = vld [vmem:[%s3 + $0xc] sm:$0xf]
    %v99 = vld [vmem:[%s3 + $0x10] sm:$0xf]
    %v100 = vld [vmem:[%s3 + $0x14] sm:$0xf]
    %v101 = vld [vmem:[%s3 + $0x18] sm:$0xf]
    %v102 = vld [vmem:[%s3 + $0x1c] sm:$0xf]
    %v103 = vld [vmem:[%s3 + $0x20] sm:$0xf]
    %v104 = vld [vmem:[%s3 + $0x24] sm:$0xf]
    %v105 = vld [vmem:[%s3 + $0x28] sm:$0xf]
    %v106 = vld [vmem:[%s3 + $0x2c] sm:$0xf]
    %v107 = vld [vmem:[%s3 + $0x30] sm:$0xf]
    %v108 = vld [vmem:[%s3 + $0x34] sm:$0xf]
    %v109 = vld [vmem:[%s3 + $0x38] sm:$0xf]
    %v110 = vld [vmem:[%s3 + $0x3c] sm:$0xf]
    %v111 = vld [vmem:[%s3 + $0x40] sm:$0xf]
    %v112 = vld [vmem:[%s3 + $0x44] sm:$0xf]
    %v113 = vld [vmem:[%s3 + $0x48] sm:$0xf]
    %v114 = vld [vmem:[%s3 + $0x4c] sm:$0xf]
    %v115 = vld [vmem:[%s3 + $0x50] sm:$0xf]
    %v116 = vld [vmem:[%s3 + $0x54] sm:$0xf]
    %v117 = vld [vmem:[%s3 + $0x58] sm:$0xf]
    %v118 = vld [vmem:[%s3 + $0x5c] sm:$0xf]
    %v119 = vld [vmem:[%s3 + $0x60] sm:$0xf]
    %v120 = vld [vmem:[%s3 + $0x64] sm:$0xf]
    %v121 = vld [vmem:[%s3 + $0x68] sm:$0xf]
    %v122 = vld [vmem:[%s3 + $0x6c] sm:$0xf]
    %v123 = vld [vmem:[%s3 + $0x70] sm:$0xf]
    %v124 = vld [vmem:[%s3 + $0x74] sm:$0xf]
    %v125 = vld [vmem:[%s3 + $0x78] sm:$0xf]
    %v126 = vld [vmem:[%s3 + $0x7c] sm:$0xf]
    %v127 = vld [vmem:[%s4] sm:$0x3]
    %v129 = vlaneseq
    %v130 = vshrl.u32 %v129, 7
    %v131 = vsub.s32 0, %v130
    %v132 = vrot.slane %v127, %v131
    %v133 = vlaneseq
    %v134 = vshrl.u32 %v133, 7
    %v135 = vsub.s32 1, %v134
    %v136 = vrot.slane %v127, %v135
    %v171 = vunpack.c.l.b16 %v95
    %v172 = vunpack.c.l.b16 %v96
    %v173 = vunpack.c.l.b16 %v97
    %v174 = vunpack.c.l.b16 %v98
    %v175 = vunpack.c.l.b16 %v99
    %v176 = vunpack.c.l.b16 %v100
    %v177 = vunpack.c.l.b16 %v101
    %v178 = vunpack.c.l.b16 %v102
    %v179 = vunpack.c.l.b16 %v103
    %v180 = vunpack.c.l.b16 %v104
    %v181 = vunpack.c.l.b16 %v105
    %v182 = vunpack.c.l.b16 %v106
    %v183 = vunpack.c.l.b16 %v107
    %v184 = vunpack.c.l.b16 %v108
    %v185 = vunpack.c.l.b16 %v109
    %v186 = vunpack.c.l.b16 %v110
    %v187 = vunpack.c.l.b16 %v111
    %v188 = vunpack.c.l.b16 %v112
    %v189 = vunpack.c.l.b16 %v113
    %v190 = vunpack.c.l.b16 %v114
    %v191 = vunpack.c.l.b16 %v115
    %v192 = vunpack.c.l.b16 %v116
    %v193 = vunpack.c.l.b16 %v117
    %v194 = vunpack.c.l.b16 %v118
    %v195 = vunpack.c.l.b16 %v119
    %v196 = vunpack.c.l.b16 %v120
    %v197 = vunpack.c.l.b16 %v121
    %v198 = vunpack.c.l.b16 %v122
    %v199 = vunpack.c.l.b16 %v123
    %v200 = vunpack.c.l.b16 %v124
    %v201 = vunpack.c.l.b16 %v125
    %v202 = vunpack.c.l.b16 %v126
    %v203 = vpack.c.b16 %v172, %v171
    %v204 = vpack.c.b16 %v174, %v173
    %v205 = vpack.c.b16 %v176, %v175
    %v206 = vpack.c.b16 %v178, %v177
    %v207 = vpack.c.b16 %v180, %v179
    %v208 = vpack.c.b16 %v182, %v181
    %v209 = vpack.c.b16 %v184, %v183
    %v210 = vpack.c.b16 %v186, %v185
    %v211 = vpack.c.b16 %v188, %v187
    %v212 = vpack.c.b16 %v190, %v189
    %v213 = vpack.c.b16 %v192, %v191
    %v214 = vpack.c.b16 %v194, %v193
    %v215 = vpack.c.b16 %v196, %v195
    %v216 = vpack.c.b16 %v198, %v197
    %v217 = vpack.c.b16 %v200, %v199
    %v218 = vpack.c.b16 %v202, %v201
    %235 = vmatprep.subr.bf16.mxu0 0
    %236 = vmatpush1.bf16.xpose.msra.mxu0 %v203
    %237 = vmatprep.subr.bf16.mxu0 0
    %238 = vmatpush1.bf16.xpose.msra.mxu0 %v204
    %239 = vmatprep.subr.bf16.mxu0 0
    %240 = vmatpush1.bf16.xpose.msra.mxu0 %v205
    %241 = vmatprep.subr.bf16.mxu0 0
    %242 = vmatpush1.bf16.xpose.msra.mxu0 %v206
    %243 = vmatprep.subr.bf16.mxu0 0
    %244 = vmatpush1.bf16.xpose.msra.mxu0 %v207
    %245 = vmatprep.subr.bf16.mxu0 0
    %246 = vmatpush1.bf16.xpose.msra.mxu0 %v208
    %247 = vmatprep.subr.bf16.mxu0 0
    %248 = vmatpush1.bf16.xpose.msra.mxu0 %v209
    %249 = vmatprep.subr.bf16.mxu0 0
    %250 = vmatpush1.bf16.xpose.msra.mxu0 %v210
    %251 = vmatprep.subr.bf16.mxu0 0
    %252 = vmatpush1.bf16.xpose.msra.mxu0 %v211
    %253 = vmatprep.subr.bf16.mxu0 0
    %254 = vmatpush1.bf16.xpose.msra.mxu0 %v212
    %255 = vmatprep.subr.bf16.mxu0 0
    %256 = vmatpush1.bf16.xpose.msra.mxu0 %v213
    %257 = vmatprep.subr.bf16.mxu0 0
    %258 = vmatpush1.bf16.xpose.msra.mxu0 %v214
    %259 = vmatprep.subr.bf16.mxu0 0
    %260 = vmatpush1.bf16.xpose.msra.mxu0 %v215
    %261 = vmatprep.subr.bf16.mxu0 0
    %262 = vmatpush1.bf16.xpose.msra.mxu0 %v216
    %263 = vmatprep.subr.bf16.mxu0 0
    %264 = vmatpush1.bf16.xpose.msra.mxu0 %v217
    %265 = vmatprep.subr.bf16.mxu0 0
    %266 = vmatpush1.bf16.xpose.msra.mxu0 %v218
    %267 = vmatprep.mubr.bf16.mxu0 0
    %268 = vmatmul.mubr.bf16.gmra.mrb[0].mxu0 %v93
    %v269 = vpop.f32.mrb[0].mxu0
    %v270 = vadd.f32 %v132, %v269
    %v271 = vpop.f32.mrb[0].mxu0
    %v272 = vadd.f32 %v136, %v271
    %v273 = vpop.f32.mrb[0].mxu0
    %v274 = vadd.f32 %v132, %v273
    %v275 = vpop.f32.mrb[0].mxu0
    %v276 = vadd.f32 %v136, %v275
    %277 = vmatprep.mubr.bf16.mxu0 0
    %278 = vmatmul.mubr.bf16.gmra.mrb[0].mxu0 %v94
    %v279 = vpop.f32.mrb[0].mxu0
    %v280 = vadd.f32 %v132, %v279
    %v281 = vpop.f32.mrb[0].mxu0
    %v282 = vadd.f32 %v136, %v281
    %v283 = vpop.f32.mrb[0].mxu0
    %v284 = vadd.f32 %v132, %v283
    %v285 = vpop.f32.mrb[0].mxu0
    %v286 = vadd.f32 %v136, %v285
    %287 = vdwg.mxu0
    %288 = vst [vmem:[#allocation2] sm:$0xff] %v270
    %289 = vst [vmem:[#allocation2 + $0x8] sm:$0xff] %v272
    %290 = vst [vmem:[#allocation2 + $0x10] sm:$0xff] %v274
    %291 = vst [vmem:[#allocation2 + $0x18] sm:$0xff] %v276
    %292 = vst [vmem:[#allocation2 + $0x20] sm:$0xff] %v280
    %293 = vst [vmem:[#allocation2 + $0x28] sm:$0xff] %v282
    %294 = vst [vmem:[#allocation2 + $0x30] sm:$0xff] %v284
    %295 = vst [vmem:[#allocation2 + $0x38] sm:$0xff] %v286
    // Predicated region
    $region22: #{clip_caption_forward.25} parent=1 // pred_check
      _
    $region23: #{clip_caption_forward.25} parent=1 // pred_check_branch
      %297 = sbr.rel (0) target = $region25
    $region24: #{clip_caption_forward.25} parent=1 // pred_region
      %s299 = ssub.s32 1024, 1024
      %300 = vsyncadd [#allocation3], %s299
      %s301 = sshll.u32 [#allocation2], 4
      %s302 = int_to_ptr.vmem [resolvable:$true] %s301
      %307 = dma.vmem_to_hbm [thread:$0]  %s302, 1024, %s5, [#allocation3], 256, 256, 16
    $region25: #{clip_caption_forward.25} parent=1 // pred_fallthru
      _
    // Predicated region
    $region26: #{clip_caption_forward.25} parent=1 // pred_check
      _
    $region27: #{clip_caption_forward.25} parent=1 // pred_check_branch
      %309 = sbr.rel (0) target = $region29
    $region28: #{clip_caption_forward.25} parent=1 // pred_region
      %310 = dma.done [#allocation3], 1024
    $region29: #{clip_caption_forward.25} parent=1 // pred_fallthru
      _
    %311 = vsyncpa [#allocation3], 1

</llo_original>
